<compile_context>
chip_gen: v7x
topology: tpu7x:2x2x1
jax: 0.10.0
libtpu: 0.0.40
codegen_flags: <defaults>
</compile_context>

<pallas_src>
import functools

import jax
import jax.numpy as jnp
import numpy as np
from jax.experimental import pallas as pl
from jax.experimental.pallas import tpu as pltpu

EPS = 1e-5
EXPANSION = 4
LANE = 128          # pad channel dims to multiples of the 128-lane vreg width
SUBLANE = 8
# 256 keeps the toy test multi-tile; for production shapes use 512-1024
# (~85% of HBM roofline) and re-derive against v7x's 64 MiB VMEM.
DEFAULT_TILE_M = 256
VMEM_LIMIT = 32 * 1024 * 1024


# ----------------------------------------------------------------------------
# small helpers
# ----------------------------------------------------------------------------
def _round_up(x, m):
    return (x + m - 1) // m * m


def _pad_axis(a, axis, target):
    pad = target - a.shape[axis]
    if pad == 0:
        return a
    widths = [(0, 0)] * a.ndim
    widths[axis] = (0, pad)
    return jnp.pad(a, widths)


def _pad_rows(a, m_pad):
    if a.shape[0] == m_pad:
        return a
    return jnp.pad(a, ((0, m_pad - a.shape[0]),) + ((0, 0),) * (a.ndim - 1))


# ----------------------------------------------------------------------------
# Pallas kernels
# ----------------------------------------------------------------------------
def _matmul_stats_kernel(x_ref, w_ref, y_ref, stats_ref):
    """Pass 1 of a 1x1 conv + BN stage.

    y = x @ w (bf16 in, f32 MXU accumulation), plus per-channel sum and
    sum-of-squares accumulated across the M grid axis into a resident
    (2, Cout) output (BN statistics are global, not per-tile).
    """
    i = pl.program_id(0)
    y = jnp.dot(x_ref[...], w_ref[...], preferred_element_type=jnp.float32)
    y_ref[...] = y

    @pl.when(i == 0)
    def _():
        stats_ref[...] = jnp.zeros_like(stats_ref)

    stats_ref[0:1, :] += jnp.sum(y, axis=0, keepdims=True)
    stats_ref[1:2, :] += jnp.sum(y * y, axis=0, keepdims=True)


def _conv3x3_stats_kernel(x_ref, w_ref, y_ref, stats_ref, acc_ref, *,
                          stride, ho, wo):
    """Pass 1 of the 3x3 conv + BN stage (one batch sample per grid step).

    The conv is 9 accumulated MXU matmuls over shifted windows of the
    spatially pre-padded input -- no materialized im2col tensor.
    """
    n = pl.program_id(0)
    cin = x_ref.shape[3]
    span_h = (ho - 1) * stride + 1
    span_w = (wo - 1) * stride + 1

    acc_ref[...] = jnp.zeros_like(acc_ref)
    for t in range(9):
        dy, dx = divmod(t, 3)
        patch = x_ref[0, pl.ds(dy, span_h), pl.ds(dx, span_w), :]
        if stride > 1:
            patch = patch[::stride, ::stride, :]
        acc_ref[...] += jnp.dot(patch.reshape(ho * wo, cin), w_ref[t],
                                preferred_element_type=jnp.float32)

    acc = acc_ref[...]
    y_ref[...] = acc.reshape(y_ref.shape)

    @pl.when(n == 0)
    def _():
        stats_ref[...] = jnp.zeros_like(stats_ref)

    stats_ref[0:1, :] += jnp.sum(acc, axis=0, keepdims=True)
    stats_ref[1:2, :] += jnp.sum(acc * acc, axis=0, keepdims=True)


def _bn_act_kernel(y_ref, stats_ref, g_ref, b_ref, o_ref, *, m_true, relu):
    """Pass 2: out = [relu]((y - mean) * rsqrt(var + eps) * g + b).

    mean/var come from globally accumulated sum / sumsq divided by the TRUE
    row count, so the result is identical to whole-batch BatchNorm even
    though the kernel is tiled over M.  Padded tail rows (>= m_true) are
    zeroed so they cannot pollute the next stage's statistics.
    """
    inv_m = 1.0 / m_true
    mean = stats_ref[0:1, :] * inv_m
    var = jnp.maximum(stats_ref[1:2, :] * inv_m - mean * mean, 0.0)
    scale = jax.lax.rsqrt(var + EPS) * g_ref[...]
    shift = b_ref[...] - mean * scale
    out = y_ref[...] * scale + shift
    if relu:
        out = jnp.maximum(out, 0.0)
    tm = o_ref.shape[0]
    row = jax.lax.broadcasted_iota(jnp.int32, out.shape, 0) + pl.program_id(0) * tm
    out = jnp.where(row < m_true, out, 0.0)
    o_ref[...] = out.astype(o_ref.dtype)


def _bn_add_relu_kernel(y_ref, stats_ref, g_ref, b_ref, res_ref, o_ref, *, m_true):
    """Pass 2 of the last stage: out = relu(batchnorm(y) + residual)."""
    inv_m = 1.0 / m_true
    mean = stats_ref[0:1, :] * inv_m
    var = jnp.maximum(stats_ref[1:2, :] * inv_m - mean * mean, 0.0)
    scale = jax.lax.rsqrt(var + EPS) * g_ref[...]
    shift = b_ref[...] - mean * scale
    out = y_ref[...] * scale + shift + res_ref[...].astype(jnp.float32)
    o_ref[...] = jnp.maximum(out, 0.0).astype(o_ref.dtype)


# ----------------------------------------------------------------------------
# pallas_call wrappers
# ----------------------------------------------------------------------------
def _matmul_stats(x2d, w2d, *, tile_m):
    """x2d: (M_pad, Cin) bf16, w2d: (Cin, Cout) bf16 ->
    (y (M_pad, Cout) f32, stats (2, Cout) f32 = [sum, sumsq])."""
    m_pad, cin = x2d.shape
    cout = w2d.shape[1]
    grid = (m_pad // tile_m,)
    flops = 2 * m_pad * cin * cout
    bytes_accessed = (x2d.size * x2d.dtype.itemsize + w2d.size * w2d.dtype.itemsize
                      + m_pad * cout * 4 + 2 * cout * 4)
    return pl.pallas_call(
        _matmul_stats_kernel,
        out_shape=(jax.ShapeDtypeStruct((m_pad, cout), jnp.float32),
                   jax.ShapeDtypeStruct((2, cout), jnp.float32)),
        grid_spec=pltpu.PrefetchScalarGridSpec(
            num_scalar_prefetch=0,
            grid=grid,
            in_specs=[pl.BlockSpec((tile_m, cin), lambda i: (i, 0)),
                      pl.BlockSpec((cin, cout), lambda i: (0, 0))],
            out_specs=[pl.BlockSpec((tile_m, cout), lambda i: (i, 0)),
                       pl.BlockSpec((2, cout), lambda i: (0, 0))],
        ),
        compiler_params=pltpu.CompilerParams(
            dimension_semantics=("arbitrary",),   # stats accumulate across M tiles
            vmem_limit_bytes=VMEM_LIMIT),
        cost_estimate=pl.CostEstimate(flops=flops, transcendentals=0,
                                      bytes_accessed=bytes_accessed),
    )(x2d, w2d)


def _conv3x3_stats(x_pad, w9, *, stride):
    """x_pad: (N, H+2, W+2, Cin) bf16 (spatial zero pad already applied),
    w9: (9, Cin, Cout) bf16 -> (y (N, Ho, Wo, Cout) f32, stats (2, Cout) f32)."""
    n, hp, wp, cin = x_pad.shape
    cout = w9.shape[2]
    ho = (hp - 3) // stride + 1
    wo = (wp - 3) // stride + 1
    kernel = functools.partial(_conv3x3_stats_kernel, stride=stride, ho=ho, wo=wo)
    flops = 2 * n * ho * wo * 9 * cin * cout
    bytes_accessed = (x_pad.size * x_pad.dtype.itemsize + w9.size * w9.dtype.itemsize
                      + n * ho * wo * cout * 4 + 2 * cout * 4)
    return pl.pallas_call(
        kernel,
        out_shape=(jax.ShapeDtypeStruct((n, ho, wo, cout), jnp.float32),
                   jax.ShapeDtypeStruct((2, cout), jnp.float32)),
        grid_spec=pltpu.PrefetchScalarGridSpec(
            num_scalar_prefetch=0,
            grid=(n,),
            in_specs=[pl.BlockSpec((1, hp, wp, cin), lambda i: (i, 0, 0, 0)),
                      pl.BlockSpec((9, cin, cout), lambda i: (0, 0, 0))],
            out_specs=[pl.BlockSpec((1, ho, wo, cout), lambda i: (i, 0, 0, 0)),
                       pl.BlockSpec((2, cout), lambda i: (0, 0))],
            scratch_shapes=[pltpu.VMEM((ho * wo, cout), jnp.float32)],
        ),
        compiler_params=pltpu.CompilerParams(
            dimension_semantics=("arbitrary",),   # stats accumulate across samples
            vmem_limit_bytes=VMEM_LIMIT),
        cost_estimate=pl.CostEstimate(flops=flops, transcendentals=0,
                                      bytes_accessed=bytes_accessed),
    )(x_pad, w9)


def _bn_act(y, stats, g, b, *, m_true, tile_m, relu, out_dtype):
    m_pad, c = y.shape
    kernel = functools.partial(_bn_act_kernel, m_true=m_true, relu=relu)
    return pl.pallas_call(
        kernel,
        out_shape=jax.ShapeDtypeStruct((m_pad, c), out_dtype),
        grid_spec=pltpu.PrefetchScalarGridSpec(
            num_scalar_prefetch=0,
            grid=(m_pad // tile_m,),
            in_specs=[pl.BlockSpec((tile_m, c), lambda i: (i, 0)),
                      pl.BlockSpec((2, c), lambda i: (0, 0)),
                      pl.BlockSpec((1, c), lambda i: (0, 0)),
                      pl.BlockSpec((1, c), lambda i: (0, 0))],
            out_specs=pl.BlockSpec((tile_m, c), lambda i: (i, 0)),
        ),
        compiler_params=pltpu.CompilerParams(
            dimension_semantics=("parallel",)),    # pure elementwise per M tile
    )(y, stats, g, b)


def _bn_add_relu(y, stats, g, b, res, *, m_true, tile_m):
    m_pad, c = y.shape
    kernel = functools.partial(_bn_add_relu_kernel, m_true=m_true)
    return pl.pallas_call(
        kernel,
        out_shape=jax.ShapeDtypeStruct((m_pad, c), jnp.float32),
        grid_spec=pltpu.PrefetchScalarGridSpec(
            num_scalar_prefetch=0,
            grid=(m_pad // tile_m,),
            in_specs=[pl.BlockSpec((tile_m, c), lambda i: (i, 0)),
                      pl.BlockSpec((2, c), lambda i: (0, 0)),
                      pl.BlockSpec((1, c), lambda i: (0, 0)),
                      pl.BlockSpec((1, c), lambda i: (0, 0)),
                      pl.BlockSpec((tile_m, c), lambda i: (i, 0))],
            out_specs=pl.BlockSpec((tile_m, c), lambda i: (i, 0)),
        ),
        compiler_params=pltpu.CompilerParams(
            dimension_semantics=("parallel",)),
    )(y, stats, g, b, res)


# ----------------------------------------------------------------------------
# parameter prep (layout plumbing only) and forward pass
# ----------------------------------------------------------------------------
def init_bottleneck_params(key, in_planes, planes, stride):
    """Synthetic parameters; conv weights stored HWIO like lax.conv expects."""
    out_planes = EXPANSION * planes
    k1, k2, k3, k4 = jax.random.split(key, 4)
    p = {
        "w1": jax.random.normal(k1, (1, 1, in_planes, planes), jnp.float32) * 0.1,
        "g1": jnp.ones((planes,), jnp.float32), "b1": jnp.zeros((planes,), jnp.float32),
        "w2": jax.random.normal(k2, (3, 3, planes, planes), jnp.float32) * 0.1,
        "g2": jnp.ones((planes,), jnp.float32), "b2": jnp.zeros((planes,), jnp.float32),
        "w3": jax.random.normal(k3, (1, 1, planes, out_planes), jnp.float32) * 0.1,
        "g3": jnp.ones((out_planes,), jnp.float32), "b3": jnp.zeros((out_planes,), jnp.float32),
    }
    if stride != 1 or in_planes != out_planes:
        p["ws"] = jax.random.normal(k4, (1, 1, in_planes, out_planes), jnp.float32) * 0.1
        p["gs"] = jnp.ones((out_planes,), jnp.float32)
        p["bs"] = jnp.zeros((out_planes,), jnp.float32)
    return p


def prepare_params(params):
    """HWIO conv weights -> padded bf16 matmul layouts; gamma/beta -> (1, Cp) f32.
    Padded channels use zero weight / zero gamma / zero beta so they stay 0."""
    in_planes, planes = params["w1"].shape[2], params["w1"].shape[3]
    out_planes = EXPANSION * planes
    cin_p = _round_up(in_planes, LANE)
    cmid_p = _round_up(planes, LANE)
    cout_p = _round_up(out_planes, LANE)

    def mat(w, ci, co):                     # (1,1,ci_raw,co_raw) -> (ci, co) bf16
        w = w.reshape(w.shape[2], w.shape[3])
        return _pad_axis(_pad_axis(w, 0, ci), 1, co).astype(jnp.bfloat16)

    def vec(v, c):                          # (co_raw,) -> (1, c) f32
        return _pad_axis(v.astype(jnp.float32), 0, c).reshape(1, c)

    w2 = params["w2"].reshape(9, planes, planes)          # tap-major (dy*3+dx)
    w2 = _pad_axis(_pad_axis(w2, 1, cmid_p), 2, cmid_p).astype(jnp.bfloat16)

    prep = {
        "w1": mat(params["w1"], cin_p, cmid_p),
        "g1": vec(params["g1"], cmid_p), "b1": vec(params["b1"], cmid_p),
        "w2": w2,
        "g2": vec(params["g2"], cmid_p), "b2": vec(params["b2"], cmid_p),
        "w3": mat(params["w3"], cmid_p, cout_p),
        "g3": vec(params["g3"], cout_p), "b3": vec(params["b3"], cout_p),
    }
    if "ws" in params:
        prep["ws"] = mat(params["ws"], cin_p, cout_p)
        prep["gs"] = vec(params["gs"], cout_p)
        prep["bs"] = vec(params["bs"], cout_p)
    return prep


def bottleneck_forward(x_nchw, params, *, stride, tile_m=DEFAULT_TILE_M):
    """NCHW in / NCHW out, matching the PyTorch Bottleneck in train-mode BN."""
    in_planes, planes = params["w1"].shape[2], params["w1"].shape[3]
    out_planes = EXPANSION * planes
    cin_p = _round_up(in_planes, LANE)
    cmid_p = _round_up(planes, LANE)
    cout_p = _round_up(out_planes, LANE)
    prep = prepare_params(params)

    # NCHW -> NHWC, channel-pad to 128 lanes (lane-dense loads/stores).
    x = jnp.transpose(x_nchw, (0, 2, 3, 1)).astype(jnp.float32)
    n, h, w, _ = x.shape
    xp = _pad_axis(x, 3, cin_p)

    # ---- stage 1: 1x1 conv + BN + ReLU -----------------------------------
    m1 = n * h * w
    tm1 = min(tile_m, _round_up(m1, SUBLANE))
    m1_pad = _round_up(m1, tm1)
    x1 = _pad_rows(xp.reshape(m1, cin_p), m1_pad).astype(jnp.bfloat16)
    y1, s1 = _matmul_stats(x1, prep["w1"], tile_m=tm1)
    a1 = _bn_act(y1, s1, prep["g1"], prep["b1"], m_true=m1, tile_m=tm1,
                 relu=True, out_dtype=jnp.bfloat16)
    a1 = a1[:m1].reshape(n, h, w, cmid_p)

    # ---- stage 2: 3x3 conv (stride, pad=1) + BN + ReLU --------------------
    a1p = jnp.pad(a1, ((0, 0), (1, 1), (1, 1), (0, 0)))      # spatial halo only
    y2, s2 = _conv3x3_stats(a1p, prep["w2"], stride=stride)  # (N, Ho, Wo, Cmid)
    ho, wo = y2.shape[1], y2.shape[2]
    m2 = n * ho * wo
    tm2 = min(tile_m, _round_up(m2, SUBLANE))
    m2_pad = _round_up(m2, tm2)
    y2 = _pad_rows(y2.reshape(m2, cmid_p), m2_pad)
    a2 = _bn_act(y2, s2, prep["g2"], prep["b2"], m_true=m2, tile_m=tm2,
                 relu=True, out_dtype=jnp.bfloat16)

    # ---- shortcut ----------------------------------------------------------
    if "ws" in prep:                                          # projection
        xs = xp[:, ::stride, ::stride, :].reshape(m2, cin_p)
        xs = _pad_rows(xs, m2_pad).astype(jnp.bfloat16)
        ysc, ssc = _matmul_stats(xs, prep["ws"], tile_m=tm2)
        sc = _bn_act(ysc, ssc, prep["gs"], prep["bs"], m_true=m2, tile_m=tm2,
                     relu=False, out_dtype=jnp.float32)
    else:                                                     # identity
        sc = _pad_rows(xp.reshape(m1, cin_p), m2_pad)

    # ---- stage 3: 1x1 conv + BN + residual add + ReLU (fused pass 2) ------
    y3, s3 = _matmul_stats(a2, prep["w3"], tile_m=tm2)
    out = _bn_add_relu(y3, s3, prep["g3"], prep["b3"], sc, m_true=m2, tile_m=tm2)
    out = out[:m2].reshape(n, ho, wo, cout_p)[..., :out_planes]
    return jnp.transpose(out, (0, 3, 1, 2))                   # back to NCHW


# ----------------------------------------------------------------------------
# pure-JAX reference (correctness check)
# ----------------------------------------------------------------------------
def _conv_ref(x, w, stride, padding):
    return jax.lax.conv_general_dilated(
        x, w, (stride, stride), padding,
        dimension_numbers=("NHWC", "HWIO", "NHWC"),
        precision=jax.lax.Precision.HIGHEST)


def _bn_train_ref(y, g, b):
    mean = jnp.mean(y, axis=(0, 1, 2), keepdims=True)
    var = jnp.mean(jnp.square(y - mean), axis=(0, 1, 2), keepdims=True)
    return (y - mean) * jax.lax.rsqrt(var + EPS) * g + b


def bottleneck_reference(x_nchw, params, *, stride):
    x = jnp.transpose(x_nchw, (0, 2, 3, 1)).astype(jnp.float32)
    out = jax.nn.relu(_bn_train_ref(_conv_ref(x, params["w1"], 1, "VALID"),
                                    params["g1"], params["b1"]))
    out = jax.nn.relu(_bn_train_ref(_conv_ref(out, params["w2"], stride,
                                              [(1, 1), (1, 1)]),
                                    params["g2"], params["b2"]))
    out = _bn_train_ref(_conv_ref(out, params["w3"], 1, "VALID"),
                        params["g3"], params["b3"])
    if "ws" in params:
        sc = _bn_train_ref(_conv_ref(x, params["ws"], stride, "VALID"),
                           params["gs"], params["bs"])
    else:
        sc = x[:, ::stride, ::stride, :]
    out = jax.nn.relu(out + sc)
    return jnp.transpose(out, (0, 3, 1, 2))


# ----------------------------------------------------------------------------
if __name__ == "__main__":
    key = jax.random.PRNGKey(0)

    configs = [
        # (in_planes, planes, stride, N, H, W)
        (4, 4, 1, 2, 16, 16),    # projection shortcut (1x1 conv + BN)
        (16, 4, 1, 2, 8, 8),     # identity shortcut
    ]
    for in_planes, planes, stride, n, h, w in configs:
        key, k_x, k_p = jax.random.split(key, 3)
        x = jax.random.normal(k_x, (n, in_planes, h, w), jnp.float32)
        params = init_bottleneck_params(k_p, in_planes, planes, stride)

        fwd = jax.jit(functools.partial(bottleneck_forward, stride=stride))
        y = jax.block_until_ready(fwd(x, params))

        expected_shape = (n, EXPANSION * planes, h // stride, w // stride)
        assert y.shape == expected_shape, (y.shape, expected_shape)
        assert bool(jnp.all(jnp.isfinite(y)))
        assert bool(jnp.all(y >= 0.0))   # final ReLU

        y_ref = bottleneck_reference(x, params, stride=stride)
        # Loose tolerance: kernel path uses bf16 MXU inputs, reference is f32.
        np.testing.assert_allclose(np.asarray(y), np.asarray(y_ref),
                                   rtol=0.1, atol=0.1)

    print("KERNEL_OK")
</pallas_src>

<mosaic_0001>
module attributes {stable_mosaic.version = 11 : i64} {
  func.func @_matmul_stats_kernel(%arg0: i32, %arg1: memref<256x128xbf16, #tpu.memory_space<vmem>>, %arg2: memref<128x128xbf16, #tpu.memory_space<vmem>>, %arg3: memref<256x128xf32, #tpu.memory_space<vmem>>, %arg4: memref<2x128xf32, #tpu.memory_space<vmem>>) attributes {dimension_semantics = [#tpu.dimension_semantics<arbitrary>], iteration_bounds = array<i64: 2>, scalar_prefetch = 0 : i64, scratch_operands = 0 : i64, tpu.core_type = #tpu.core_type<tc>, window_params = [{transform_indices = @transform_0, window_bounds = array<i64: 256, 128>}, {pipeline_mode = #tpu.pipeline_mode<synchronous>, transform_indices = @transform_1, window_bounds = array<i64: 128, 128>}, {transform_indices = @transform_2, window_bounds = array<i64: 256, 128>}, {pipeline_mode = #tpu.pipeline_mode<synchronous>, transform_indices = @transform_3, window_bounds = array<i64: 2, 128>}]} {
    %c0 = arith.constant 0 : index
    %c0_0 = arith.constant 0 : index
    %0 = vector.load %arg1[%c0, %c0_0] : memref<256x128xbf16, #tpu.memory_space<vmem>>, vector<256x128xbf16>
    %c0_1 = arith.constant 0 : index
    %c0_2 = arith.constant 0 : index
    %1 = vector.load %arg2[%c0_1, %c0_2] : memref<128x128xbf16, #tpu.memory_space<vmem>>, vector<128x128xbf16>
    %cst = arith.constant dense<0.000000e+00> : vector<256x128xf32>
    %2 = tpu.matmul %0, %1, %cst {dimension_numbers = #tpu.dot_dimension_numbers<[1], [0], [0], [1], [0, 0, 1, 1], [], []>} : vector<256x128xbf16>, vector<128x128xbf16>, vector<256x128xf32> -> vector<256x128xf32>
    %c0_3 = arith.constant 0 : index
    %c0_4 = arith.constant 0 : index
    %3 = vector.load %arg3[%c0_3, %c0_4] : memref<256x128xf32, #tpu.memory_space<vmem>>, vector<256x128xf32>
    tpu.vector_store %arg3[%c0_3, %c0_4], %2 {strides = array<i32>} : memref<256x128xf32, #tpu.memory_space<vmem>>, vector<256x128xf32>,
    %c0_i32 = arith.constant 0 : i32
    %4 = arith.cmpi eq, %arg0, %c0_i32 : i32
    %5 = arith.extui %4 : i1 to i32
    %c0_i32_5 = arith.constant 0 : i32
    %6 = arith.cmpi ne, %5, %c0_i32_5 : i32
    scf.if %6 {
      %cst_15 = arith.constant 0.000000e+00 : f32
      %18 = vector.broadcast %cst_15 : f32 to vector<2x128xf32>
      %c0_16 = arith.constant 0 : index
      %c0_17 = arith.constant 0 : index
      %19 = vector.load %arg4[%c0_16, %c0_17] : memref<2x128xf32, #tpu.memory_space<vmem>>, vector<2x128xf32>
      tpu.vector_store %arg4[%c0_16, %c0_17], %18 {strides = array<i32>} : memref<2x128xf32, #tpu.memory_space<vmem>>, vector<2x128xf32>,
    } else {
    }
    %c0_6 = arith.constant 0 : index
    %c0_7 = arith.constant 0 : index
    %7 = vector.load %arg4[%c0_6, %c0_7] : memref<2x128xf32, #tpu.memory_space<vmem>>, vector<1x128xf32>
    %cst_8 = arith.constant dense<0.000000e+00> : vector<128xf32>
    %8 = vector.multi_reduction <add>, %2, %cst_8 [0] : vector<256x128xf32> to vector<128xf32>
    %9 = vector.shape_cast %8 : vector<128xf32> to vector<1x128xf32>
    %10 = arith.addf %7, %9 : vector<1x128xf32>
    %c0_9 = arith.constant 0 : index
    %c0_10 = arith.constant 0 : index
    %11 = vector.load %arg4[%c0_9, %c0_10] : memref<2x128xf32, #tpu.memory_space<vmem>>, vector<1x128xf32>
    tpu.vector_store %arg4[%c0_9, %c0_10], %10 {strides = array<i32>} : memref<2x128xf32, #tpu.memory_space<vmem>>, vector<1x128xf32>,
    %c1 = arith.constant 1 : index
    %c0_11 = arith.constant 0 : index
    %12 = vector.load %arg4[%c1, %c0_11] : memref<2x128xf32, #tpu.memory_space<vmem>>, vector<1x128xf32>
    %13 = arith.mulf %2, %2 : vector<256x128xf32>
    %cst_12 = arith.constant dense<0.000000e+00> : vector<128xf32>
    %14 = vector.multi_reduction <add>, %13, %cst_12 [0] : vector<256x128xf32> to vector<128xf32>
    %15 = vector.shape_cast %14 : vector<128xf32> to vector<1x128xf32>
    %16 = arith.addf %12, %15 : vector<1x128xf32>
    %c1_13 = arith.constant 1 : index
    %c0_14 = arith.constant 0 : index
    %17 = vector.load %arg4[%c1_13, %c0_14] : memref<2x128xf32, #tpu.memory_space<vmem>>, vector<1x128xf32>
    tpu.vector_store %arg4[%c1_13, %c0_14], %16 {strides = array<i32>} : memref<2x128xf32, #tpu.memory_space<vmem>>, vector<1x128xf32>,
    return
  }
  func.func @transform_0(%arg0: i32) -> (i32, i32) {
    %c0_i32 = arith.constant 0 : i32
    %c0_i32_0 = arith.constant 0 : i32
    return %arg0, %c0_i32 : i32, i32
  }
  func.func @transform_1(%arg0: i32) -> (i32, i32) {
    %c0_i32 = arith.constant 0 : i32
    %c0_i32_0 = arith.constant 0 : i32
    %c0_i32_1 = arith.constant 0 : i32
    return %c0_i32, %c0_i32_0 : i32, i32
  }
  func.func @transform_2(%arg0: i32) -> (i32, i32) {
    %c0_i32 = arith.constant 0 : i32
    %c0_i32_0 = arith.constant 0 : i32
    return %arg0, %c0_i32 : i32, i32
  }
  func.func @transform_3(%arg0: i32) -> (i32, i32) {
    %c0_i32 = arith.constant 0 : i32
    %c0_i32_0 = arith.constant 0 : i32
    %c0_i32_1 = arith.constant 0 : i32
    return %c0_i32, %c0_i32_0 : i32, i32
  }
}

module attributes {stable_mosaic.version = 11 : i64} {
  func.func @_bn_act_kernel(%arg0: i32, %arg1: memref<256x128xf32, #tpu.memory_space<vmem>>, %arg2: memref<2x128xf32, #tpu.memory_space<vmem>>, %arg3: memref<1x128xf32, #tpu.memory_space<vmem>>, %arg4: memref<1x128xf32, #tpu.memory_space<vmem>>, %arg5: memref<256x128xbf16, #tpu.memory_space<vmem>>) attributes {dimension_semantics = [#tpu.dimension_semantics<parallel>], iteration_bounds = array<i64: 2>, scalar_prefetch = 0 : i64, scratch_operands = 0 : i64, tpu.core_type = #tpu.core_type<tc>, window_params = [{transform_indices = @transform_0, window_bounds = array<i64: 256, 128>}, {pipeline_mode = #tpu.pipeline_mode<synchronous>, transform_indices = @transform_1, window_bounds = array<i64: 2, 128>}, {pipeline_mode = #tpu.pipeline_mode<synchronous>, transform_indices = @transform_2, window_bounds = array<i64: 1, 128>}, {pipeline_mode = #tpu.pipeline_mode<synchronous>, transform_indices = @transform_3, window_bounds = array<i64: 1, 128>}, {transform_indices = @transform_4, window_bounds = array<i64: 256, 128>}]} {
    %c0 = arith.constant 0 : index
    %c0_0 = arith.constant 0 : index
    %0 = vector.load %arg2[%c0, %c0_0] : memref<2x128xf32, #tpu.memory_space<vmem>>, vector<1x128xf32>
    %cst = arith.constant 0.001953125 : f32
    %1 = vector.broadcast %cst : f32 to vector<1x128xf32>
    %2 = arith.mulf %0, %1 : vector<1x128xf32>
    %c1 = arith.constant 1 : index
    %c0_1 = arith.constant 0 : index
    %3 = vector.load %arg2[%c1, %c0_1] : memref<2x128xf32, #tpu.memory_space<vmem>>, vector<1x128xf32>
    %cst_2 = arith.constant 0.001953125 : f32
    %4 = vector.broadcast %cst_2 : f32 to vector<1x128xf32>
    %5 = arith.mulf %3, %4 : vector<1x128xf32>
    %6 = arith.mulf %2, %2 : vector<1x128xf32>
    %7 = arith.subf %5, %6 : vector<1x128xf32>
    %cst_3 = arith.constant 0.000000e+00 : f32
    %8 = vector.broadcast %cst_3 : f32 to vector<1x128xf32>
    %9 = arith.maximumf %7, %8 : vector<1x128xf32>
    %cst_4 = arith.constant 9.99999974E-6 : f32
    %10 = vector.broadcast %cst_4 : f32 to vector<1x128xf32>
    %11 = arith.addf %9, %10 : vector<1x128xf32>
    %12 = math.rsqrt %11 : vector<1x128xf32>
    %c0_5 = arith.constant 0 : index
    %c0_6 = arith.constant 0 : index
    %13 = vector.load %arg3[%c0_5, %c0_6] : memref<1x128xf32, #tpu.memory_space<vmem>>, vector<1x128xf32>
    %14 = arith.mulf %12, %13 : vector<1x128xf32>
    %c0_7 = arith.constant 0 : index
    %c0_8 = arith.constant 0 : index
    %15 = vector.load %arg4[%c0_7, %c0_8] : memref<1x128xf32, #tpu.memory_space<vmem>>, vector<1x128xf32>
    %16 = arith.mulf %2, %14 : vector<1x128xf32>
    %17 = arith.subf %15, %16 : vector<1x128xf32>
    %c0_9 = arith.constant 0 : index
    %c0_10 = arith.constant 0 : index
    %18 = vector.load %arg1[%c0_9, %c0_10] : memref<256x128xf32, #tpu.memory_space<vmem>>, vector<256x128xf32>
    %19 = vector.broadcast %14 : vector<1x128xf32> to vector<256x128xf32>
    %20 = arith.mulf %18, %19 : vector<256x128xf32>
    %21 = vector.broadcast %17 : vector<1x128xf32> to vector<256x128xf32>
    %22 = arith.addf %20, %21 : vector<256x128xf32>
    %cst_11 = arith.constant 0.000000e+00 : f32
    %23 = vector.broadcast %cst_11 : f32 to vector<256x128xf32>
    %24 = arith.maximumf %22, %23 : vector<256x128xf32>
    %25 = tpu.iota {dimensions = array<i32: 0>} : vector<256x128xi32>
    %c256_i32 = arith.constant 256 : i32
    %26 = arith.muli %arg0, %c256_i32 : i32
    %27 = vector.broadcast %26 : i32 to vector<256x128xi32>
    %28 = arith.addi %25, %27 : vector<256x128xi32>
    %c512_i32 = arith.constant 512 : i32
    %29 = vector.broadcast %c512_i32 : i32 to vector<256x128xi32>
    %30 = arith.cmpi slt, %28, %29 : vector<256x128xi32>
    %cst_12 = arith.constant 0.000000e+00 : f32
    %31 = vector.broadcast %cst_12 : f32 to vector<256x128xf32>
    %32 = arith.select %30, %24, %31 : vector<256x128xi1>, vector<256x128xf32>
    %33 = arith.truncf %32 : vector<256x128xf32> to vector<256x128xbf16>
    %c0_13 = arith.constant 0 : index
    %c0_14 = arith.constant 0 : index
    %34 = vector.load %arg5[%c0_13, %c0_14] : memref<256x128xbf16, #tpu.memory_space<vmem>>, vector<256x128xbf16>
    tpu.vector_store %arg5[%c0_13, %c0_14], %33 {strides = array<i32>} : memref<256x128xbf16, #tpu.memory_space<vmem>>, vector<256x128xbf16>,
    return
  }
  func.func @transform_0(%arg0: i32) -> (i32, i32) {
    %c0_i32 = arith.constant 0 : i32
    %c0_i32_0 = arith.constant 0 : i32
    return %arg0, %c0_i32 : i32, i32
  }
  func.func @transform_1(%arg0: i32) -> (i32, i32) {
    %c0_i32 = arith.constant 0 : i32
    %c0_i32_0 = arith.constant 0 : i32
    %c0_i32_1 = arith.constant 0 : i32
    return %c0_i32, %c0_i32_0 : i32, i32
  }
  func.func @transform_2(%arg0: i32) -> (i32, i32) {
    %c0_i32 = arith.constant 0 : i32
    %c0_i32_0 = arith.constant 0 : i32
    %c0_i32_1 = arith.constant 0 : i32
    return %c0_i32, %c0_i32_0 : i32, i32
  }
  func.func @transform_3(%arg0: i32) -> (i32, i32) {
    %c0_i32 = arith.constant 0 : i32
    %c0_i32_0 = arith.constant 0 : i32
    %c0_i32_1 = arith.constant 0 : i32
    return %c0_i32, %c0_i32_0 : i32, i32
  }
  func.func @transform_4(%arg0: i32) -> (i32, i32) {
    %c0_i32 = arith.constant 0 : i32
    %c0_i32_0 = arith.constant 0 : i32
    return %arg0, %c0_i32 : i32, i32
  }
}

module attributes {stable_mosaic.version = 11 : i64} {
  func.func @_bn_act_kernel(%arg0: i32, %arg1: memref<256x128xf32, #tpu.memory_space<vmem>>, %arg2: memref<2x128xf32, #tpu.memory_space<vmem>>, %arg3: memref<1x128xf32, #tpu.memory_space<vmem>>, %arg4: memref<1x128xf32, #tpu.memory_space<vmem>>, %arg5: memref<256x128xf32, #tpu.memory_space<vmem>>) attributes {dimension_semantics = [#tpu.dimension_semantics<parallel>], iteration_bounds = array<i64: 2>, scalar_prefetch = 0 : i64, scratch_operands = 0 : i64, tpu.core_type = #tpu.core_type<tc>, window_params = [{transform_indices = @transform_0, window_bounds = array<i64: 256, 128>}, {pipeline_mode = #tpu.pipeline_mode<synchronous>, transform_indices = @transform_1, window_bounds = array<i64: 2, 128>}, {pipeline_mode = #tpu.pipeline_mode<synchronous>, transform_indices = @transform_2, window_bounds = array<i64: 1, 128>}, {pipeline_mode = #tpu.pipeline_mode<synchronous>, transform_indices = @transform_3, window_bounds = array<i64: 1, 128>}, {transform_indices = @transform_4, window_bounds = array<i64: 256, 128>}]} {
    %c0 = arith.constant 0 : index
    %c0_0 = arith.constant 0 : index
    %0 = vector.load %arg2[%c0, %c0_0] : memref<2x128xf32, #tpu.memory_space<vmem>>, vector<1x128xf32>
    %cst = arith.constant 0.001953125 : f32
    %1 = vector.broadcast %cst : f32 to vector<1x128xf32>
    %2 = arith.mulf %0, %1 : vector<1x128xf32>
    %c1 = arith.constant 1 : index
    %c0_1 = arith.constant 0 : index
    %3 = vector.load %arg2[%c1, %c0_1] : memref<2x128xf32, #tpu.memory_space<vmem>>, vector<1x128xf32>
    %cst_2 = arith.constant 0.001953125 : f32
    %4 = vector.broadcast %cst_2 : f32 to vector<1x128xf32>
    %5 = arith.mulf %3, %4 : vector<1x128xf32>
    %6 = arith.mulf %2, %2 : vector<1x128xf32>
    %7 = arith.subf %5, %6 : vector<1x128xf32>
    %cst_3 = arith.constant 0.000000e+00 : f32
    %8 = vector.broadcast %cst_3 : f32 to vector<1x128xf32>
    %9 = arith.maximumf %7, %8 : vector<1x128xf32>
    %cst_4 = arith.constant 9.99999974E-6 : f32
    %10 = vector.broadcast %cst_4 : f32 to vector<1x128xf32>
    %11 = arith.addf %9, %10 : vector<1x128xf32>
    %12 = math.rsqrt %11 : vector<1x128xf32>
    %c0_5 = arith.constant 0 : index
    %c0_6 = arith.constant 0 : index
    %13 = vector.load %arg3[%c0_5, %c0_6] : memref<1x128xf32, #tpu.memory_space<vmem>>, vector<1x128xf32>
    %14 = arith.mulf %12, %13 : vector<1x128xf32>
    %c0_7 = arith.constant 0 : index
    %c0_8 = arith.constant 0 : index
    %15 = vector.load %arg4[%c0_7, %c0_8] : memref<1x128xf32, #tpu.memory_space<vmem>>, vector<1x128xf32>
    %16 = arith.mulf %2, %14 : vector<1x128xf32>
    %17 = arith.subf %15, %16 : vector<1x128xf32>
    %c0_9 = arith.constant 0 : index
    %c0_10 = arith.constant 0 : index
    %18 = vector.load %arg1[%c0_9, %c0_10] : memref<256x128xf32, #tpu.memory_space<vmem>>, vector<256x128xf32>
    %19 = vector.broadcast %14 : vector<1x128xf32> to vector<256x128xf32>
    %20 = arith.mulf %18, %19 : vector<256x128xf32>
    %21 = vector.broadcast %17 : vector<1x128xf32> to vector<256x128xf32>
    %22 = arith.addf %20, %21 : vector<256x128xf32>
    %23 = tpu.iota {dimensions = array<i32: 0>} : vector<256x128xi32>
    %c256_i32 = arith.constant 256 : i32
    %24 = arith.muli %arg0, %c256_i32 : i32
    %25 = vector.broadcast %24 : i32 to vector<256x128xi32>
    %26 = arith.addi %23, %25 : vector<256x128xi32>
    %c512_i32 = arith.constant 512 : i32
    %27 = vector.broadcast %c512_i32 : i32 to vector<256x128xi32>
    %28 = arith.cmpi slt, %26, %27 : vector<256x128xi32>
    %cst_11 = arith.constant 0.000000e+00 : f32
    %29 = vector.broadcast %cst_11 : f32 to vector<256x128xf32>
    %30 = arith.select %28, %22, %29 : vector<256x128xi1>, vector<256x128xf32>
    %c0_12 = arith.constant 0 : index
    %c0_13 = arith.constant 0 : index
    %31 = vector.load %arg5[%c0_12, %c0_13] : memref<256x128xf32, #tpu.memory_space<vmem>>, vector<256x128xf32>
    tpu.vector_store %arg5[%c0_12, %c0_13], %30 {strides = array<i32>} : memref<256x128xf32, #tpu.memory_space<vmem>>, vector<256x128xf32>,
    return
  }
  func.func @transform_0(%arg0: i32) -> (i32, i32) {
    %c0_i32 = arith.constant 0 : i32
    %c0_i32_0 = arith.constant 0 : i32
    return %arg0, %c0_i32 : i32, i32
  }
  func.func @transform_1(%arg0: i32) -> (i32, i32) {
    %c0_i32 = arith.constant 0 : i32
    %c0_i32_0 = arith.constant 0 : i32
    %c0_i32_1 = arith.constant 0 : i32
    return %c0_i32, %c0_i32_0 : i32, i32
  }
  func.func @transform_2(%arg0: i32) -> (i32, i32) {
    %c0_i32 = arith.constant 0 : i32
    %c0_i32_0 = arith.constant 0 : i32
    %c0_i32_1 = arith.constant 0 : i32
    return %c0_i32, %c0_i32_0 : i32, i32
  }
  func.func @transform_3(%arg0: i32) -> (i32, i32) {
    %c0_i32 = arith.constant 0 : i32
    %c0_i32_0 = arith.constant 0 : i32
    %c0_i32_1 = arith.constant 0 : i32
    return %c0_i32, %c0_i32_0 : i32, i32
  }
  func.func @transform_4(%arg0: i32) -> (i32, i32) {
    %c0_i32 = arith.constant 0 : i32
    %c0_i32_0 = arith.constant 0 : i32
    return %arg0, %c0_i32 : i32, i32
  }
}

module attributes {stable_mosaic.version = 11 : i64} {
  func.func @_conv3x3_stats_kernel(%arg0: i32, %arg1: memref<1x18x18x128xbf16, #tpu.memory_space<vmem>>, %arg2: memref<9x128x128xbf16, #tpu.memory_space<vmem>>, %arg3: memref<1x16x16x128xf32, #tpu.memory_space<vmem>>, %arg4: memref<2x128xf32, #tpu.memory_space<vmem>>, %arg5: memref<256x128xf32, #tpu.memory_space<vmem>>) attributes {dimension_semantics = [#tpu.dimension_semantics<arbitrary>], iteration_bounds = array<i64: 2>, scalar_prefetch = 0 : i64, scratch_operands = 1 : i64, tpu.core_type = #tpu.core_type<tc>, window_params = [{transform_indices = @transform_0, window_bounds = array<i64: 1, 18, 18, 128>}, {pipeline_mode = #tpu.pipeline_mode<synchronous>, transform_indices = @transform_1, window_bounds = array<i64: 9, 128, 128>}, {transform_indices = @transform_2, window_bounds = array<i64: 1, 16, 16, 128>}, {pipeline_mode = #tpu.pipeline_mode<synchronous>, transform_indices = @transform_3, window_bounds = array<i64: 2, 128>}]} {
    %cst = arith.constant 0.000000e+00 : f32
    %0 = vector.broadcast %cst : f32 to vector<256x128xf32>
    %c0 = arith.constant 0 : index
    %c0_0 = arith.constant 0 : index
    %1 = vector.load %arg5[%c0, %c0_0] : memref<256x128xf32, #tpu.memory_space<vmem>>, vector<256x128xf32>
    tpu.vector_store %arg5[%c0, %c0_0], %0 {strides = array<i32>} : memref<256x128xf32, #tpu.memory_space<vmem>>, vector<256x128xf32>,
    %c0_1 = arith.constant 0 : index
    %c0_2 = arith.constant 0 : index
    %c0_3 = arith.constant 0 : index
    %c0_4 = arith.constant 0 : index
    %2 = vector.load %arg1[%c0_1, %c0_2, %c0_3, %c0_4] : memref<1x18x18x128xbf16, #tpu.memory_space<vmem>>, vector<1x16x16x128xbf16>
    %3 = vector.shape_cast %2 : vector<1x16x16x128xbf16> to vector<16x16x128xbf16>
    %c0_5 = arith.constant 0 : index
    %c0_6 = arith.constant 0 : index
    %4 = vector.load %arg5[%c0_5, %c0_6] : memref<256x128xf32, #tpu.memory_space<vmem>>, vector<256x128xf32>
    %5 = vector.shape_cast %3 : vector<16x16x128xbf16> to vector<256x128xbf16>
    %c0_7 = arith.constant 0 : index
    %c0_8 = arith.constant 0 : index
    %c0_9 = arith.constant 0 : index
    %6 = vector.load %arg2[%c0_7, %c0_8, %c0_9] : memref<9x128x128xbf16, #tpu.memory_space<vmem>>, vector<1x128x128xbf16>
    %7 = vector.shape_cast %6 : vector<1x128x128xbf16> to vector<128x128xbf16>
    %cst_10 = arith.constant dense<0.000000e+00> : vector<256x128xf32>
    %8 = tpu.matmul %5, %7, %cst_10 {dimension_numbers = #tpu.dot_dimension_numbers<[1], [0], [0], [1], [0, 0, 1, 1], [], []>} : vector<256x128xbf16>, vector<128x128xbf16>, vector<256x128xf32> -> vector<256x128xf32>
    %9 = arith.addf %4, %8 : vector<256x128xf32>
    %c0_11 = arith.constant 0 : index
    %c0_12 = arith.constant 0 : index
    %10 = vector.load %arg5[%c0_11, %c0_12] : memref<256x128xf32, #tpu.memory_space<vmem>>, vector<256x128xf32>
    tpu.vector_store %arg5[%c0_11, %c0_12], %9 {strides = array<i32>} : memref<256x128xf32, #tpu.memory_space<vmem>>, vector<256x128xf32>,
    %c0_13 = arith.constant 0 : index
    %c0_14 = arith.constant 0 : index
    %c1 = arith.constant 1 : index
    %c0_15 = arith.constant 0 : index
    %11 = vector.load %arg1[%c0_13, %c0_14, %c1, %c0_15] : memref<1x18x18x128xbf16, #tpu.memory_space<vmem>>, vector<1x16x16x128xbf16>
    %12 = vector.shape_cast %11 : vector<1x16x16x128xbf16> to vector<16x16x128xbf16>
    %c0_16 = arith.constant 0 : index
    %c0_17 = arith.constant 0 : index
    %13 = vector.load %arg5[%c0_16, %c0_17] : memref<256x128xf32, #tpu.memory_space<vmem>>, vector<256x128xf32>
    %14 = vector.shape_cast %12 : vector<16x16x128xbf16> to vector<256x128xbf16>
    %c1_18 = arith.constant 1 : index
    %c0_19 = arith.constant 0 : index
    %c0_20 = arith.constant 0 : index
    %15 = vector.load %arg2[%c1_18, %c0_19, %c0_20] : memref<9x128x128xbf16, #tpu.memory_space<vmem>>, vector<1x128x128xbf16>
    %16 = vector.shape_cast %15 : vector<1x128x128xbf16> to vector<128x128xbf16>
    %cst_21 = arith.constant dense<0.000000e+00> : vector<256x128xf32>
    %17 = tpu.matmul %14, %16, %cst_21 {dimension_numbers = #tpu.dot_dimension_numbers<[1], [0], [0], [1], [0, 0, 1, 1], [], []>} : vector<256x128xbf16>, vector<128x128xbf16>, vector<256x128xf32> -> vector<256x128xf32>
    %18 = arith.addf %13, %17 : vector<256x128xf32>
    %c0_22 = arith.constant 0 : index
    %c0_23 = arith.constant 0 : index
    %19 = vector.load %arg5[%c0_22, %c0_23] : memref<256x128xf32, #tpu.memory_space<vmem>>, vector<256x128xf32>
    tpu.vector_store %arg5[%c0_22, %c0_23], %18 {strides = array<i32>} : memref<256x128xf32, #tpu.memory_space<vmem>>, vector<256x128xf32>,
    %c0_24 = arith.constant 0 : index
    %c0_25 = arith.constant 0 : index
    %c2 = arith.constant 2 : index
    %c0_26 = arith.constant 0 : index
    %20 = vector.load %arg1[%c0_24, %c0_25, %c2, %c0_26] : memref<1x18x18x128xbf16, #tpu.memory_space<vmem>>, vector<1x16x16x128xbf16>
    %21 = vector.shape_cast %20 : vector<1x16x16x128xbf16> to vector<16x16x128xbf16>
    %c0_27 = arith.constant 0 : index
    %c0_28 = arith.constant 0 : index
    %22 = vector.load %arg5[%c0_27, %c0_28] : memref<256x128xf32, #tpu.memory_space<vmem>>, vector<256x128xf32>
    %23 = vector.shape_cast %21 : vector<16x16x128xbf16> to vector<256x128xbf16>
    %c2_29 = arith.constant 2 : index
    %c0_30 = arith.constant 0 : index
    %c0_31 = arith.constant 0 : index
    %24 = vector.load %arg2[%c2_29, %c0_30, %c0_31] : memref<9x128x128xbf16, #tpu.memory_space<vmem>>, vector<1x128x128xbf16>
    %25 = vector.shape_cast %24 : vector<1x128x128xbf16> to vector<128x128xbf16>
    %cst_32 = arith.constant dense<0.000000e+00> : vector<256x128xf32>
    %26 = tpu.matmul %23, %25, %cst_32 {dimension_numbers = #tpu.dot_dimension_numbers<[1], [0], [0], [1], [0, 0, 1, 1], [], []>} : vector<256x128xbf16>, vector<128x128xbf16>, vector<256x128xf32> -> vector<256x128xf32>
    %27 = arith.addf %22, %26 : vector<256x128xf32>
    %c0_33 = arith.constant 0 : index
    %c0_34 = arith.constant 0 : index
    %28 = vector.load %arg5[%c0_33, %c0_34] : memref<256x128xf32, #tpu.memory_space<vmem>>, vector<256x128xf32>
    tpu.vector_store %arg5[%c0_33, %c0_34], %27 {strides = array<i32>} : memref<256x128xf32, #tpu.memory_space<vmem>>, vector<256x128xf32>,
    %c0_35 = arith.constant 0 : index
    %c1_36 = arith.constant 1 : index
    %c0_37 = arith.constant 0 : index
    %c0_38 = arith.constant 0 : index
    %29 = vector.load %arg1[%c0_35, %c1_36, %c0_37, %c0_38] : memref<1x18x18x128xbf16, #tpu.memory_space<vmem>>, vector<1x16x16x128xbf16>
    %30 = vector.shape_cast %29 : vector<1x16x16x128xbf16> to vector<16x16x128xbf16>
    %c0_39 = arith.constant 0 : index
    %c0_40 = arith.constant 0 : index
    %31 = vector.load %arg5[%c0_39, %c0_40] : memref<256x128xf32, #tpu.memory_space<vmem>>, vector<256x128xf32>
    %32 = vector.shape_cast %30 : vector<16x16x128xbf16> to vector<256x128xbf16>
    %c3 = arith.constant 3 : index
    %c0_41 = arith.constant 0 : index
    %c0_42 = arith.constant 0 : index
    %33 = vector.load %arg2[%c3, %c0_41, %c0_42] : memref<9x128x128xbf16, #tpu.memory_space<vmem>>, vector<1x128x128xbf16>
    %34 = vector.shape_cast %33 : vector<1x128x128xbf16> to vector<128x128xbf16>
    %cst_43 = arith.constant dense<0.000000e+00> : vector<256x128xf32>
    %35 = tpu.matmul %32, %34, %cst_43 {dimension_numbers = #tpu.dot_dimension_numbers<[1], [0], [0], [1], [0, 0, 1, 1], [], []>} : vector<256x128xbf16>, vector<128x128xbf16>, vector<256x128xf32> -> vector<256x128xf32>
    %36 = arith.addf %31, %35 : vector<256x128xf32>
    %c0_44 = arith.constant 0 : index
    %c0_45 = arith.constant 0 : index
    %37 = vector.load %arg5[%c0_44, %c0_45] : memref<256x128xf32, #tpu.memory_space<vmem>>, vector<256x128xf32>
    tpu.vector_store %arg5[%c0_44, %c0_45], %36 {strides = array<i32>} : memref<256x128xf32, #tpu.memory_space<vmem>>, vector<256x128xf32>,
    %c0_46 = arith.constant 0 : index
    %c1_47 = arith.constant 1 : index
    %c1_48 = arith.constant 1 : index
    %c0_49 = arith.constant 0 : index
    %38 = vector.load %arg1[%c0_46, %c1_47, %c1_48, %c0_49] : memref<1x18x18x128xbf16, #tpu.memory_space<vmem>>, vector<1x16x16x128xbf16>
    %39 = vector.shape_cast %38 : vector<1x16x16x128xbf16> to vector<16x16x128xbf16>
    %c0_50 = arith.constant 0 : index
    %c0_51 = arith.constant 0 : index
    %40 = vector.load %arg5[%c0_50, %c0_51] : memref<256x128xf32, #tpu.memory_space<vmem>>, vector<256x128xf32>
    %41 = vector.shape_cast %39 : vector<16x16x128xbf16> to vector<256x128xbf16>
    %c4 = arith.constant 4 : index
    %c0_52 = arith.constant 0 : index
    %c0_53 = arith.constant 0 : index
    %42 = vector.load %arg2[%c4, %c0_52, %c0_53] : memref<9x128x128xbf16, #tpu.memory_space<vmem>>, vector<1x128x128xbf16>
    %43 = vector.shape_cast %42 : vector<1x128x128xbf16> to vector<128x128xbf16>
    %cst_54 = arith.constant dense<0.000000e+00> : vector<256x128xf32>
    %44 = tpu.matmul %41, %43, %cst_54 {dimension_numbers = #tpu.dot_dimension_numbers<[1], [0], [0], [1], [0, 0, 1, 1], [], []>} : vector<256x128xbf16>, vector<128x128xbf16>, vector<256x128xf32> -> vector<256x128xf32>
    %45 = arith.addf %40, %44 : vector<256x128xf32>
    %c0_55 = arith.constant 0 : index
    %c0_56 = arith.constant 0 : index
    %46 = vector.load %arg5[%c0_55, %c0_56] : memref<256x128xf32, #tpu.memory_space<vmem>>, vector<256x128xf32>
    tpu.vector_store %arg5[%c0_55, %c0_56], %45 {strides = array<i32>} : memref<256x128xf32, #tpu.memory_space<vmem>>, vector<256x128xf32>,
    %c0_57 = arith.constant 0 : index
    %c1_58 = arith.constant 1 : index
    %c2_59 = arith.constant 2 : index
    %c0_60 = arith.constant 0 : index
    %47 = vector.load %arg1[%c0_57, %c1_58, %c2_59, %c0_60] : memref<1x18x18x128xbf16, #tpu.memory_space<vmem>>, vector<1x16x16x128xbf16>
    %48 = vector.shape_cast %47 : vector<1x16x16x128xbf16> to vector<16x16x128xbf16>
    %c0_61 = arith.constant 0 : index
    %c0_62 = arith.constant 0 : index
    %49 = vector.load %arg5[%c0_61, %c0_62] : memref<256x128xf32, #tpu.memory_space<vmem>>, vector<256x128xf32>
    %50 = vector.shape_cast %48 : vector<16x16x128xbf16> to vector<256x128xbf16>
    %c5 = arith.constant 5 : index
    %c0_63 = arith.constant 0 : index
    %c0_64 = arith.constant 0 : index
    %51 = vector.load %arg2[%c5, %c0_63, %c0_64] : memref<9x128x128xbf16, #tpu.memory_space<vmem>>, vector<1x128x128xbf16>
    %52 = vector.shape_cast %51 : vector<1x128x128xbf16> to vector<128x128xbf16>
    %cst_65 = arith.constant dense<0.000000e+00> : vector<256x128xf32>
    %53 = tpu.matmul %50, %52, %cst_65 {dimension_numbers = #tpu.dot_dimension_numbers<[1], [0], [0], [1], [0, 0, 1, 1], [], []>} : vector<256x128xbf16>, vector<128x128xbf16>, vector<256x128xf32> -> vector<256x128xf32>
    %54 = arith.addf %49, %53 : vector<256x128xf32>
    %c0_66 = arith.constant 0 : index
    %c0_67 = arith.constant 0 : index
    %55 = vector.load %arg5[%c0_66, %c0_67] : memref<256x128xf32, #tpu.memory_space<vmem>>, vector<256x128xf32>
    tpu.vector_store %arg5[%c0_66, %c0_67], %54 {strides = array<i32>} : memref<256x128xf32, #tpu.memory_space<vmem>>, vector<256x128xf32>,
    %c0_68 = arith.constant 0 : index
    %c2_69 = arith.constant 2 : index
    %c0_70 = arith.constant 0 : index
    %c0_71 = arith.constant 0 : index
    %56 = vector.load %arg1[%c0_68, %c2_69, %c0_70, %c0_71] : memref<1x18x18x128xbf16, #tpu.memory_space<vmem>>, vector<1x16x16x128xbf16>
    %57 = vector.shape_cast %56 : vector<1x16x16x128xbf16> to vector<16x16x128xbf16>
    %c0_72 = arith.constant 0 : index
    %c0_73 = arith.constant 0 : index
    %58 = vector.load %arg5[%c0_72, %c0_73] : memref<256x128xf32, #tpu.memory_space<vmem>>, vector<256x128xf32>
    %59 = vector.shape_cast %57 : vector<16x16x128xbf16> to vector<256x128xbf16>
    %c6 = arith.constant 6 : index
    %c0_74 = arith.constant 0 : index
    %c0_75 = arith.constant 0 : index
    %60 = vector.load %arg2[%c6, %c0_74, %c0_75] : memref<9x128x128xbf16, #tpu.memory_space<vmem>>, vector<1x128x128xbf16>
    %61 = vector.shape_cast %60 : vector<1x128x128xbf16> to vector<128x128xbf16>
    %cst_76 = arith.constant dense<0.000000e+00> : vector<256x128xf32>
    %62 = tpu.matmul %59, %61, %cst_76 {dimension_numbers = #tpu.dot_dimension_numbers<[1], [0], [0], [1], [0, 0, 1, 1], [], []>} : vector<256x128xbf16>, vector<128x128xbf16>, vector<256x128xf32> -> vector<256x128xf32>
    %63 = arith.addf %58, %62 : vector<256x128xf32>
    %c0_77 = arith.constant 0 : index
    %c0_78 = arith.constant 0 : index
    %64 = vector.load %arg5[%c0_77, %c0_78] : memref<256x128xf32, #tpu.memory_space<vmem>>, vector<256x128xf32>
    tpu.vector_store %arg5[%c0_77, %c0_78], %63 {strides = array<i32>} : memref<256x128xf32, #tpu.memory_space<vmem>>, vector<256x128xf32>,
    %c0_79 = arith.constant 0 : index
    %c2_80 = arith.constant 2 : index
    %c1_81 = arith.constant 1 : index
    %c0_82 = arith.constant 0 : index
    %65 = vector.load %arg1[%c0_79, %c2_80, %c1_81, %c0_82] : memref<1x18x18x128xbf16, #tpu.memory_space<vmem>>, vector<1x16x16x128xbf16>
    %66 = vector.shape_cast %65 : vector<1x16x16x128xbf16> to vector<16x16x128xbf16>
    %c0_83 = arith.constant 0 : index
    %c0_84 = arith.constant 0 : index
    %67 = vector.load %arg5[%c0_83, %c0_84] : memref<256x128xf32, #tpu.memory_space<vmem>>, vector<256x128xf32>
    %68 = vector.shape_cast %66 : vector<16x16x128xbf16> to vector<256x128xbf16>
    %c7 = arith.constant 7 : index
    %c0_85 = arith.constant 0 : index
    %c0_86 = arith.constant 0 : index
    %69 = vector.load %arg2[%c7, %c0_85, %c0_86] : memref<9x128x128xbf16, #tpu.memory_space<vmem>>, vector<1x128x128xbf16>
    %70 = vector.shape_cast %69 : vector<1x128x128xbf16> to vector<128x128xbf16>
    %cst_87 = arith.constant dense<0.000000e+00> : vector<256x128xf32>
    %71 = tpu.matmul %68, %70, %cst_87 {dimension_numbers = #tpu.dot_dimension_numbers<[1], [0], [0], [1], [0, 0, 1, 1], [], []>} : vector<256x128xbf16>, vector<128x128xbf16>, vector<256x128xf32> -> vector<256x128xf32>
    %72 = arith.addf %67, %71 : vector<256x128xf32>
    %c0_88 = arith.constant 0 : index
    %c0_89 = arith.constant 0 : index
    %73 = vector.load %arg5[%c0_88, %c0_89] : memref<256x128xf32, #tpu.memory_space<vmem>>, vector<256x128xf32>
    tpu.vector_store %arg5[%c0_88, %c0_89], %72 {strides = array<i32>} : memref<256x128xf32, #tpu.memory_space<vmem>>, vector<256x128xf32>,
    %c0_90 = arith.constant 0 : index
    %c2_91 = arith.constant 2 : index
    %c2_92 = arith.constant 2 : index
    %c0_93 = arith.constant 0 : index
    %74 = vector.load %arg1[%c0_90, %c2_91, %c2_92, %c0_93] : memref<1x18x18x128xbf16, #tpu.memory_space<vmem>>, vector<1x16x16x128xbf16>
    %75 = vector.shape_cast %74 : vector<1x16x16x128xbf16> to vector<16x16x128xbf16>
    %c0_94 = arith.constant 0 : index
    %c0_95 = arith.constant 0 : index
    %76 = vector.load %arg5[%c0_94, %c0_95] : memref<256x128xf32, #tpu.memory_space<vmem>>, vector<256x128xf32>
    %77 = vector.shape_cast %75 : vector<16x16x128xbf16> to vector<256x128xbf16>
    %c8 = arith.constant 8 : index
    %c0_96 = arith.constant 0 : index
    %c0_97 = arith.constant 0 : index
    %78 = vector.load %arg2[%c8, %c0_96, %c0_97] : memref<9x128x128xbf16, #tpu.memory_space<vmem>>, vector<1x128x128xbf16>
    %79 = vector.shape_cast %78 : vector<1x128x128xbf16> to vector<128x128xbf16>
    %cst_98 = arith.constant dense<0.000000e+00> : vector<256x128xf32>
    %80 = tpu.matmul %77, %79, %cst_98 {dimension_numbers = #tpu.dot_dimension_numbers<[1], [0], [0], [1], [0, 0, 1, 1], [], []>} : vector<256x128xbf16>, vector<128x128xbf16>, vector<256x128xf32> -> vector<256x128xf32>
    %81 = arith.addf %76, %80 : vector<256x128xf32>
    %c0_99 = arith.constant 0 : index
    %c0_100 = arith.constant 0 : index
    %82 = vector.load %arg5[%c0_99, %c0_100] : memref<256x128xf32, #tpu.memory_space<vmem>>, vector<256x128xf32>
    tpu.vector_store %arg5[%c0_99, %c0_100], %81 {strides = array<i32>} : memref<256x128xf32, #tpu.memory_space<vmem>>, vector<256x128xf32>,
    %c0_101 = arith.constant 0 : index
    %c0_102 = arith.constant 0 : index
    %83 = vector.load %arg5[%c0_101, %c0_102] : memref<256x128xf32, #tpu.memory_space<vmem>>, vector<256x128xf32>
    %84 = vector.shape_cast %83 : vector<256x128xf32> to vector<1x16x16x128xf32>
    %c0_103 = arith.constant 0 : index
    %c0_104 = arith.constant 0 : index
    %c0_105 = arith.constant 0 : index
    %c0_106 = arith.constant 0 : index
    %85 = vector.load %arg3[%c0_103, %c0_104, %c0_105, %c0_106] : memref<1x16x16x128xf32, #tpu.memory_space<vmem>>, vector<1x16x16x128xf32>
    tpu.vector_store %arg3[%c0_103, %c0_104, %c0_105, %c0_106], %84 {strides = array<i32>} : memref<1x16x16x128xf32, #tpu.memory_space<vmem>>, vector<1x16x16x128xf32>,
    %c0_i32 = arith.constant 0 : i32
    %86 = arith.cmpi eq, %arg0, %c0_i32 : i32
    %87 = arith.extui %86 : i1 to i32
    %c0_i32_107 = arith.constant 0 : i32
    %88 = arith.cmpi ne, %87, %c0_i32_107 : i32
    scf.if %88 {
      %cst_118 = arith.constant 0.000000e+00 : f32
      %100 = vector.broadcast %cst_118 : f32 to vector<2x128xf32>
      %c0_119 = arith.constant 0 : index
      %c0_120 = arith.constant 0 : index
      %101 = vector.load %arg4[%c0_119, %c0_120] : memref<2x128xf32, #tpu.memory_space<vmem>>, vector<2x128xf32>
      tpu.vector_store %arg4[%c0_119, %c0_120], %100 {strides = array<i32>} : memref<2x128xf32, #tpu.memory_space<vmem>>, vector<2x128xf32>,
    } else {
    }
    %c0_108 = arith.constant 0 : index
    %c0_109 = arith.constant 0 : index
    %89 = vector.load %arg4[%c0_108, %c0_109] : memref<2x128xf32, #tpu.memory_space<vmem>>, vector<1x128xf32>
    %cst_110 = arith.constant dense<0.000000e+00> : vector<128xf32>
    %90 = vector.multi_reduction <add>, %83, %cst_110 [0] : vector<256x128xf32> to vector<128xf32>
    %91 = vector.shape_cast %90 : vector<128xf32> to vector<1x128xf32>
    %92 = arith.addf %89, %91 : vector<1x128xf32>
    %c0_111 = arith.constant 0 : index
    %c0_112 = arith.constant 0 : index
    %93 = vector.load %arg4[%c0_111, %c0_112] : memref<2x128xf32, #tpu.memory_space<vmem>>, vector<1x128xf32>
    tpu.vector_store %arg4[%c0_111, %c0_112], %92 {strides = array<i32>} : memref<2x128xf32, #tpu.memory_space<vmem>>, vector<1x128xf32>,
    %c1_113 = arith.constant 1 : index
    %c0_114 = arith.constant 0 : index
    %94 = vector.load %arg4[%c1_113, %c0_114] : memref<2x128xf32, #tpu.memory_space<vmem>>, vector<1x128xf32>
    %95 = arith.mulf %83, %83 : vector<256x128xf32>
    %cst_115 = arith.constant dense<0.000000e+00> : vector<128xf32>
    %96 = vector.multi_reduction <add>, %95, %cst_115 [0] : vector<256x128xf32> to vector<128xf32>
    %97 = vector.shape_cast %96 : vector<128xf32> to vector<1x128xf32>
    %98 = arith.addf %94, %97 : vector<1x128xf32>
    %c1_116 = arith.constant 1 : index
    %c0_117 = arith.constant 0 : index
    %99 = vector.load %arg4[%c1_116, %c0_117] : memref<2x128xf32, #tpu.memory_space<vmem>>, vector<1x128xf32>
    tpu.vector_store %arg4[%c1_116, %c0_117], %98 {strides = array<i32>} : memref<2x128xf32, #tpu.memory_space<vmem>>, vector<1x128xf32>,
    return
  }
  func.func @transform_0(%arg0: i32) -> (i32, i32, i32, i32) {
    %c0_i32 = arith.constant 0 : i32
    %c0_i32_0 = arith.constant 0 : i32
    %c0_i32_1 = arith.constant 0 : i32
    %c0_i32_2 = arith.constant 0 : i32
    return %arg0, %c0_i32, %c0_i32_0, %c0_i32_1 : i32, i32, i32, i32
  }
  func.func @transform_1(%arg0: i32) -> (i32, i32, i32) {
    %c0_i32 = arith.constant 0 : i32
    %c0_i32_0 = arith.constant 0 : i32
    %c0_i32_1 = arith.constant 0 : i32
    %c0_i32_2 = arith.constant 0 : i32
    return %c0_i32, %c0_i32_0, %c0_i32_1 : i32, i32, i32
  }
  func.func @transform_2(%arg0: i32) -> (i32, i32, i32, i32) {
    %c0_i32 = arith.constant 0 : i32
    %c0_i32_0 = arith.constant 0 : i32
    %c0_i32_1 = arith.constant 0 : i32
    %c0_i32_2 = arith.constant 0 : i32
    return %arg0, %c0_i32, %c0_i32_0, %c0_i32_1 : i32, i32, i32, i32
  }
  func.func @transform_3(%arg0: i32) -> (i32, i32) {
    %c0_i32 = arith.constant 0 : i32
    %c0_i32_0 = arith.constant 0 : i32
    %c0_i32_1 = arith.constant 0 : i32
    return %c0_i32, %c0_i32_0 : i32, i32
  }
}

module attributes {stable_mosaic.version = 11 : i64} {
  func.func @_bn_add_relu_kernel(%arg0: i32, %arg1: memref<256x128xf32, #tpu.memory_space<vmem>>, %arg2: memref<2x128xf32, #tpu.memory_space<vmem>>, %arg3: memref<1x128xf32, #tpu.memory_space<vmem>>, %arg4: memref<1x128xf32, #tpu.memory_space<vmem>>, %arg5: memref<256x128xf32, #tpu.memory_space<vmem>>, %arg6: memref<256x128xf32, #tpu.memory_space<vmem>>) attributes {dimension_semantics = [#tpu.dimension_semantics<parallel>], iteration_bounds = array<i64: 2>, scalar_prefetch = 0 : i64, scratch_operands = 0 : i64, tpu.core_type = #tpu.core_type<tc>, window_params = [{transform_indices = @transform_0, window_bounds = array<i64: 256, 128>}, {pipeline_mode = #tpu.pipeline_mode<synchronous>, transform_indices = @transform_1, window_bounds = array<i64: 2, 128>}, {pipeline_mode = #tpu.pipeline_mode<synchronous>, transform_indices = @transform_2, window_bounds = array<i64: 1, 128>}, {pipeline_mode = #tpu.pipeline_mode<synchronous>, transform_indices = @transform_3, window_bounds = array<i64: 1, 128>}, {transform_indices = @transform_4, window_bounds = array<i64: 256, 128>}, {transform_indices = @transform_5, window_bounds = array<i64: 256, 128>}]} {
    %c0 = arith.constant 0 : index
    %c0_0 = arith.constant 0 : index
    %0 = vector.load %arg2[%c0, %c0_0] : memref<2x128xf32, #tpu.memory_space<vmem>>, vector<1x128xf32>
    %cst = arith.constant 0.001953125 : f32
    %1 = vector.broadcast %cst : f32 to vector<1x128xf32>
    %2 = arith.mulf %0, %1 : vector<1x128xf32>
    %c1 = arith.constant 1 : index
    %c0_1 = arith.constant 0 : index
    %3 = vector.load %arg2[%c1, %c0_1] : memref<2x128xf32, #tpu.memory_space<vmem>>, vector<1x128xf32>
    %cst_2 = arith.constant 0.001953125 : f32
    %4 = vector.broadcast %cst_2 : f32 to vector<1x128xf32>
    %5 = arith.mulf %3, %4 : vector<1x128xf32>
    %6 = arith.mulf %2, %2 : vector<1x128xf32>
    %7 = arith.subf %5, %6 : vector<1x128xf32>
    %cst_3 = arith.constant 0.000000e+00 : f32
    %8 = vector.broadcast %cst_3 : f32 to vector<1x128xf32>
    %9 = arith.maximumf %7, %8 : vector<1x128xf32>
    %cst_4 = arith.constant 9.99999974E-6 : f32
    %10 = vector.broadcast %cst_4 : f32 to vector<1x128xf32>
    %11 = arith.addf %9, %10 : vector<1x128xf32>
    %12 = math.rsqrt %11 : vector<1x128xf32>
    %c0_5 = arith.constant 0 : index
    %c0_6 = arith.constant 0 : index
    %13 = vector.load %arg3[%c0_5, %c0_6] : memref<1x128xf32, #tpu.memory_space<vmem>>, vector<1x128xf32>
    %14 = arith.mulf %12, %13 : vector<1x128xf32>
    %c0_7 = arith.constant 0 : index
    %c0_8 = arith.constant 0 : index
    %15 = vector.load %arg4[%c0_7, %c0_8] : memref<1x128xf32, #tpu.memory_space<vmem>>, vector<1x128xf32>
    %16 = arith.mulf %2, %14 : vector<1x128xf32>
    %17 = arith.subf %15, %16 : vector<1x128xf32>
    %c0_9 = arith.constant 0 : index
    %c0_10 = arith.constant 0 : index
    %18 = vector.load %arg1[%c0_9, %c0_10] : memref<256x128xf32, #tpu.memory_space<vmem>>, vector<256x128xf32>
    %19 = vector.broadcast %14 : vector<1x128xf32> to vector<256x128xf32>
    %20 = arith.mulf %18, %19 : vector<256x128xf32>
    %21 = vector.broadcast %17 : vector<1x128xf32> to vector<256x128xf32>
    %22 = arith.addf %20, %21 : vector<256x128xf32>
    %c0_11 = arith.constant 0 : index
    %c0_12 = arith.constant 0 : index
    %23 = vector.load %arg5[%c0_11, %c0_12] : memref<256x128xf32, #tpu.memory_space<vmem>>, vector<256x128xf32>
    %24 = arith.addf %22, %23 : vector<256x128xf32>
    %cst_13 = arith.constant 0.000000e+00 : f32
    %25 = vector.broadcast %cst_13 : f32 to vector<256x128xf32>
    %26 = arith.maximumf %24, %25 : vector<256x128xf32>
    %c0_14 = arith.constant 0 : index
    %c0_15 = arith.constant 0 : index
    %27 = vector.load %arg6[%c0_14, %c0_15] : memref<256x128xf32, #tpu.memory_space<vmem>>, vector<256x128xf32>
    tpu.vector_store %arg6[%c0_14, %c0_15], %26 {strides = array<i32>} : memref<256x128xf32, #tpu.memory_space<vmem>>, vector<256x128xf32>,
    return
  }
  func.func @transform_0(%arg0: i32) -> (i32, i32) {
    %c0_i32 = arith.constant 0 : i32
    %c0_i32_0 = arith.constant 0 : i32
    return %arg0, %c0_i32 : i32, i32
  }
  func.func @transform_1(%arg0: i32) -> (i32, i32) {
    %c0_i32 = arith.constant 0 : i32
    %c0_i32_0 = arith.constant 0 : i32
    %c0_i32_1 = arith.constant 0 : i32
    return %c0_i32, %c0_i32_0 : i32, i32
  }
  func.func @transform_2(%arg0: i32) -> (i32, i32) {
    %c0_i32 = arith.constant 0 : i32
    %c0_i32_0 = arith.constant 0 : i32
    %c0_i32_1 = arith.constant 0 : i32
    return %c0_i32, %c0_i32_0 : i32, i32
  }
  func.func @transform_3(%arg0: i32) -> (i32, i32) {
    %c0_i32 = arith.constant 0 : i32
    %c0_i32_0 = arith.constant 0 : i32
    %c0_i32_1 = arith.constant 0 : i32
    return %c0_i32, %c0_i32_0 : i32, i32
  }
  func.func @transform_4(%arg0: i32) -> (i32, i32) {
    %c0_i32 = arith.constant 0 : i32
    %c0_i32_0 = arith.constant 0 : i32
    return %arg0, %c0_i32 : i32, i32
  }
  func.func @transform_5(%arg0: i32) -> (i32, i32) {
    %c0_i32 = arith.constant 0 : i32
    %c0_i32_0 = arith.constant 0 : i32
    return %arg0, %c0_i32 : i32, i32
  }
}

</mosaic_0001>

<llo_original>
// kernel: bottleneck_forward.9
$region0: #{bottleneck_forward.9}
  #allocation0 [shape = 'u32[]', space=smem, size = 0x4, offset = 0x4, fixed_abs, tag = 'smem constant byte address 0x4 - core index']
  #allocation1 [shape = 'u32[144,128]{1,0:T(1,128)}', space=vmem, size = 0x12000, scoped, tag = 'internal scratch']
  %s0 = inlined_call_operand.vmem [shape: f32[512,128], index: 0, kind: input, shape index: {}]
  %s1 = inlined_call_operand.vmem [shape: f32[2,128], index: 1, kind: input, shape index: {}]
  %s2 = inlined_call_operand.vmem [shape: f32[1,128], index: 2, kind: input, shape index: {}]
  %s3 = inlined_call_operand.vmem [shape: f32[1,128], index: 3, kind: input, shape index: {}]
  %s4 = inlined_call_operand.vmem [shape: bf16[512,128], index: 4, kind: output, shape index: {}]
  %s5 = sld [smem:[#allocation0]]
  $region49: #{bottleneck_forward.9} parent=0
    _
  %s7 = ssub.s32 1, %s5
  %s8 = scalar_select 0, %s7, %s5
  loop: start=0, step=1, limit=4
  $region2: #{bottleneck_forward.9} parent=0 // loop_pre_header
    _
  $region3: #{bottleneck_forward.9} parent=0 // loop_header
    %s10 = sphi 0, %s14
    %p11 = scmp.ge.s32.totalorder %s10, 4
    %s20 = sphi 0, %s22
    %s23 = sphi 0, %s20
    %s24 = sphi 0, %s23
    %s40 = sphi 0, %s24
    %s44 = sphi 0, %s44
    %s46 = sphi 0, %s44
    %s47 = sphi 0, %s46
    %s61 = sphi 0, %s47
    %s65 = sphi 0, %s65
    %s67 = sphi 0, %s65
    %s68 = sphi 0, %s67
    %s82 = sphi 0, %s68
    %s86 = sphi 0, %s86
    %s88 = sphi 0, %s86
    %s89 = sphi 0, %s88
    %s103 = sphi 0, %s89
    %s109 = sphi 0, %s111
    %s112 = sphi 0, %s109
    %s113 = sphi 0, %s112
    %s129 = sphi 0, %s113
  $region4: #{bottleneck_forward.9} parent=0 // loop_header_branch
    %13 = sbr.rel (%p11) target = $region8
  $region5: #{bottleneck_forward.9} parent=0 // loop_body
    %s15 = ssub.s32 %s10, 1
    %s16 = ssub.s32 %s10, 2
    %s17 = sadd.s32 %s10, 1
    %s18 = ssub.s32 %s10, %s17
    %p19 = scmp.eq.s32.totalorder %s18, 0
    %s21 = sadd.s32 %s20, 1
    %s22 = scalar_select %p19, %s20, %s21
    %p25 = pneg %p19
    %p26 = scmp.eq.s32.totalorder %s10, 1
    %p27 = por %p25, %p26
    %p28 = scmp.ne.s32.totalorder %s20, %s23
    %p29 = scmp.eq.s32.totalorder %s10, 0
    %p30 = por %p28, %p29
    %p31 = scmp.ne.s32.totalorder %s20, %s23
    %p32 = scmp.eq.s32.totalorder %s15, 1
    %p33 = por %p31, %p32
    %p34 = scmp.ne.s32.totalorder %s23, %s24
    %p35 = scmp.eq.s32.totalorder %s15, 0
    %p36 = por %p34, %p35
    %p37 = scmp.ne.s32.totalorder %s23, %s24
    %p38 = scmp.eq.s32.totalorder %s16, 1
    %p39 = por %p37, %p38
    %p41 = scmp.ne.s32.totalorder %s24, %s40
    %p42 = scmp.eq.s32.totalorder %s16, 0
    %p43 = por %p41, %p42
    %s45 = sadd.s32 %s44, 1
    %p48 = scmp.eq.s32.totalorder %s10, 1
    %p49 = scmp.ne.s32.totalorder %s44, %s46
    %p50 = scmp.eq.s32.totalorder %s10, 0
    %p51 = por %p49, %p50
    %p52 = scmp.ne.s32.totalorder %s44, %s46
    %p53 = scmp.eq.s32.totalorder %s15, 1
    %p54 = por %p52, %p53
    %p55 = scmp.ne.s32.totalorder %s46, %s47
    %p56 = scmp.eq.s32.totalorder %s15, 0
    %p57 = por %p55, %p56
    %p58 = scmp.ne.s32.totalorder %s46, %s47
    %p59 = scmp.eq.s32.totalorder %s16, 1
    %p60 = por %p58, %p59
    %p62 = scmp.ne.s32.totalorder %s47, %s61
    %p63 = scmp.eq.s32.totalorder %s16, 0
    %p64 = por %p62, %p63
    %s66 = sadd.s32 %s65, 1
    %p69 = scmp.eq.s32.totalorder %s10, 1
    %p70 = scmp.ne.s32.totalorder %s65, %s67
    %p71 = scmp.eq.s32.totalorder %s10, 0
    %p72 = por %p70, %p71
    %p73 = scmp.ne.s32.totalorder %s65, %s67
    %p74 = scmp.eq.s32.totalorder %s15, 1
    %p75 = por %p73, %p74
    %p76 = scmp.ne.s32.totalorder %s67, %s68
    %p77 = scmp.eq.s32.totalorder %s15, 0
    %p78 = por %p76, %p77
    %p79 = scmp.ne.s32.totalorder %s67, %s68
    %p80 = scmp.eq.s32.totalorder %s16, 1
    %p81 = por %p79, %p80
    %p83 = scmp.ne.s32.totalorder %s68, %s82
    %p84 = scmp.eq.s32.totalorder %s16, 0
    %p85 = por %p83, %p84
    %s87 = sadd.s32 %s86, 1
    %p90 = scmp.eq.s32.totalorder %s10, 1
    %p91 = scmp.ne.s32.totalorder %s86, %s88
    %p92 = scmp.eq.s32.totalorder %s10, 0
    %p93 = por %p91, %p92
    %p94 = scmp.ne.s32.totalorder %s86, %s88
    %p95 = scmp.eq.s32.totalorder %s15, 1
    %p96 = por %p94, %p95
    %p97 = scmp.ne.s32.totalorder %s88, %s89
    %p98 = scmp.eq.s32.totalorder %s15, 0
    %p99 = por %p97, %p98
    %p100 = scmp.ne.s32.totalorder %s88, %s89
    %p101 = scmp.eq.s32.totalorder %s16, 1
    %p102 = por %p100, %p101
    %p104 = scmp.ne.s32.totalorder %s89, %s103
    %p105 = scmp.eq.s32.totalorder %s16, 0
    %p106 = por %p104, %p105
    %s107 = ssub.s32 %s10, %s17
    %p108 = scmp.eq.s32.totalorder %s107, 0
    %s110 = sadd.s32 %s109, 1
    %s111 = scalar_select %p108, %s109, %s110
    %p114 = pneg %p108
    %p115 = scmp.eq.s32.totalorder %s10, 1
    %p116 = por %p114, %p115
    %p117 = scmp.ne.s32.totalorder %s109, %s112
    %p118 = scmp.eq.s32.totalorder %s10, 0
    %p119 = por %p117, %p118
    %p120 = scmp.ne.s32.totalorder %s109, %s112
    %p121 = scmp.eq.s32.totalorder %s15, 1
    %p122 = por %p120, %p121
    %p123 = scmp.ne.s32.totalorder %s112, %s113
    %p124 = scmp.eq.s32.totalorder %s15, 0
    %p125 = por %p123, %p124
    %p126 = scmp.ne.s32.totalorder %s112, %s113
    %p127 = scmp.eq.s32.totalorder %s16, 1
    %p128 = por %p126, %p127
    %p130 = scmp.ne.s32.totalorder %s113, %s129
    %p131 = scmp.eq.s32.totalorder %s16, 0
    %p132 = por %p130, %p131
    %p133 = scmp.le.s32.totalorder 1, %s10
    %p134 = scmp.lt.s32.totalorder %s10, 3
    %p135 = pnand %p133, %p134
    %p136 = pneg %p135
    // Predicated region
    $region9: #{bottleneck_forward.9} parent=5 // pred_check
      _
    $region10: #{bottleneck_forward.9} parent=5 // pred_check_branch
      %138 = sbr.rel (%p135) target = $region12
    $region11: #{bottleneck_forward.9} parent=5 // pred_region
      %s139 = ssub.s32 %s10, 1
      // Predicated region
      $region13: #{bottleneck_forward.9} parent=11 // pred_check
        %p140 = pneg %p57
      $region14: #{bottleneck_forward.9} parent=11 // pred_check_branch
        %142 = sbr.rel (%p140) target = $region16
      $region15: #{bottleneck_forward.9} parent=11 // pred_region
        _
      $region16: #{bottleneck_forward.9} parent=11 // pred_fallthru
        _
      // Predicated region
      $region17: #{bottleneck_forward.9} parent=11 // pred_check
        %p143 = pneg %p78
      $region18: #{bottleneck_forward.9} parent=11 // pred_check_branch
        %145 = sbr.rel (%p143) target = $region20
      $region19: #{bottleneck_forward.9} parent=11 // pred_region
        _
      $region20: #{bottleneck_forward.9} parent=11 // pred_fallthru
        _
      // Predicated region
      $region21: #{bottleneck_forward.9} parent=11 // pred_check
        %p146 = pneg %p99
      $region22: #{bottleneck_forward.9} parent=11 // pred_check_branch
        %148 = sbr.rel (%p146) target = $region24
      $region23: #{bottleneck_forward.9} parent=11 // pred_region
        _
      $region24: #{bottleneck_forward.9} parent=11 // pred_fallthru
        _
    $region12: #{bottleneck_forward.9} parent=5 // pred_fallthru
      _
    %p149 = scmp.lt.s32.totalorder %s10, 2
    // Predicated region
    $region25: #{bottleneck_forward.9} parent=5 // pred_check
      %p150 = pneg %p149
    $region26: #{bottleneck_forward.9} parent=5 // pred_check_branch
      %152 = sbr.rel (%p150) target = $region28
    $region27: #{bottleneck_forward.9} parent=5 // pred_region
      // Predicated region
      $region29: #{bottleneck_forward.9} parent=27 // pred_check
        %p153 = pneg %p30
      $region30: #{bottleneck_forward.9} parent=27 // pred_check_branch
        %155 = sbr.rel (%p153) target = $region32
      $region31: #{bottleneck_forward.9} parent=27 // pred_region
        %s156 = smul.u32 32, %s10
        %p157 = scmp.lt.s32.totalorder %s156, 63
        %s158 = scalar_select %p157, %s156, 63
        %s159 = smul.addr %s158, 8
        %s160 = scalar_lea.vmem %s0, %s159
        %s161 = smul.u32 32, %s10
      $region32: #{bottleneck_forward.9} parent=27 // pred_fallthru
        _
    $region28: #{bottleneck_forward.9} parent=5 // pred_fallthru
      _
    %p162 = scmp.le.s32.totalorder 1, %s10
    %p163 = scmp.lt.s32.totalorder %s10, 3
    %p164 = pnand %p162, %p163
    %p165 = pneg %p164
    // Predicated region
    $region33: #{bottleneck_forward.9} parent=5 // pred_check
      _
    $region34: #{bottleneck_forward.9} parent=5 // pred_check_branch
      %167 = sbr.rel (%p164) target = $region36
    $region35: #{bottleneck_forward.9} parent=5 // pred_region
      %s168 = ssub.s32 %s10, 1
      %s169 = smul.u32 32, %s15
      %p170 = scmp.lt.s32.totalorder %s169, 63
      %s171 = scalar_select %p170, %s169, 63
      %s172 = smul.addr %s171, 8
      %s173 = scalar_lea.vmem %s0, %s172
      %p174 = pneg %p36
      %p175 = pneg %p33
      %p176 = pneg %p57
      %p177 = pneg %p54
      %p178 = pneg %p78
      %p179 = pneg %p75
      %p180 = pneg %p99
      %p181 = pneg %p96
      %p182 = pneg %p125
      %p183 = pneg %p122
      %s184 = smul.u32 32, %s15
      %p185 = scmp.lt.s32.totalorder %s184, 63
      %s186 = scalar_select %p185, %s184, 63
      %s187 = smul.addr %s186, 4
      %s188 = scalar_lea.vmem %s4, %s187
      %s189 = smul.u32 32, %s15
      %p190 = scmp.lt.s32.totalorder %s189, 63
      %s191 = scalar_select %p190, %s189, 63
      %s192 = smul.addr %s191, 8
      %s193 = scalar_lea.vmem %s0, %s192
      %s194 = smul.u32 32, %s15
      %s195 = smul.u32 32, %s15
      %p196 = scmp.lt.s32.totalorder %s195, 63
      %s197 = scalar_select %p196, %s195, 63
      %s198 = smul.addr %s197, 4
      %s199 = scalar_lea.vmem %s4, %s198
      %s200 = smul.u32 32, %s15
      %v201 = vld [vmem:[%s1] sm:$0x1]
      %v202 = vmul.f32 %v201, 0.001953125
      %v203 = vld [vmem:[%s1 + $0x1] sm:$0x1]
      %v204 = vmul.f32 %v203, 0.001953125
      %v205 = vmul.f32 %v202, %v202
      %v206 = vsub.f32 %v204, %v205
      %v207 = vmax.f32 %v206, 0.0
      %v208 = vadd.f32 %v207, 1e-05
      %v209 = vrsqrt.pop %v208
      %v210 = vld [vmem:[%s2] sm:$0x1]
      %v211 = vmul.f32 %v209, %v210
      %v212 = vld [vmem:[%s3] sm:$0x1]
      %v213 = vmul.f32 %v202, %v211
      %v214 = vsub.f32 %v212, %v213
      %v215 = vld [vmem:[%s193] sm:$0xff]
      %v216 = vld [vmem:[%s193 + $0x8] sm:$0xff]
      %v217 = vld [vmem:[%s193 + $0x10] sm:$0xff]
      %v218 = vld [vmem:[%s193 + $0x18] sm:$0xff]
      %v219 = vld [vmem:[%s193 + $0x20] sm:$0xff]
      %v220 = vld [vmem:[%s193 + $0x28] sm:$0xff]
      %v221 = vld [vmem:[%s193 + $0x30] sm:$0xff]
      %v222 = vld [vmem:[%s193 + $0x38] sm:$0xff]
      %v223 = vld [vmem:[%s193 + $0x40] sm:$0xff]
      %v224 = vld [vmem:[%s193 + $0x48] sm:$0xff]
      %v225 = vld [vmem:[%s193 + $0x50] sm:$0xff]
      %v226 = vld [vmem:[%s193 + $0x58] sm:$0xff]
      %v227 = vld [vmem:[%s193 + $0x60] sm:$0xff]
      %v228 = vld [vmem:[%s193 + $0x68] sm:$0xff]
      %v229 = vld [vmem:[%s193 + $0x70] sm:$0xff]
      %v230 = vld [vmem:[%s193 + $0x78] sm:$0xff]
      %v231 = vld [vmem:[%s193 + $0x80] sm:$0xff]
      %v232 = vld [vmem:[%s193 + $0x88] sm:$0xff]
      %v233 = vld [vmem:[%s193 + $0x90] sm:$0xff]
      %v234 = vld [vmem:[%s193 + $0x98] sm:$0xff]
      %v235 = vld [vmem:[%s193 + $0xa0] sm:$0xff]
      %v236 = vld [vmem:[%s193 + $0xa8] sm:$0xff]
      %v237 = vld [vmem:[%s193 + $0xb0] sm:$0xff]
      %v238 = vld [vmem:[%s193 + $0xb8] sm:$0xff]
      %v239 = vld [vmem:[%s193 + $0xc0] sm:$0xff]
      %v240 = vld [vmem:[%s193 + $0xc8] sm:$0xff]
      %v241 = vld [vmem:[%s193 + $0xd0] sm:$0xff]
      %v242 = vld [vmem:[%s193 + $0xd8] sm:$0xff]
      %v243 = vld [vmem:[%s193 + $0xe0] sm:$0xff]
      %v244 = vld [vmem:[%s193 + $0xe8] sm:$0xff]
      %v245 = vld [vmem:[%s193 + $0xf0] sm:$0xff]
      %v246 = vld [vmem:[%s193 + $0xf8] sm:$0xff]
      %v247 = vlaneseq
      %v248 = vshrl.u32 %v247, 7
      %v249 = vsub.s32 0, %v248
      %v250 = vrot.slane %v211, %v249
      %v251 = vmul.f32 %v215, %v250
      %v252 = vmul.f32 %v216, %v250
      %v253 = vmul.f32 %v217, %v250
      %v254 = vmul.f32 %v218, %v250
      %v255 = vmul.f32 %v219, %v250
      %v256 = vmul.f32 %v220, %v250
      %v257 = vmul.f32 %v221, %v250
      %v258 = vmul.f32 %v222, %v250
      %v259 = vmul.f32 %v223, %v250
      %v260 = vmul.f32 %v224, %v250
      %v261 = vmul.f32 %v225, %v250
      %v262 = vmul.f32 %v226, %v250
      %v263 = vmul.f32 %v227, %v250
      %v264 = vmul.f32 %v228, %v250
      %v265 = vmul.f32 %v229, %v250
      %v266 = vmul.f32 %v230, %v250
      %v267 = vmul.f32 %v231, %v250
      %v268 = vmul.f32 %v232, %v250
      %v269 = vmul.f32 %v233, %v250
      %v270 = vmul.f32 %v234, %v250
      %v271 = vmul.f32 %v235, %v250
      %v272 = vmul.f32 %v236, %v250
      %v273 = vmul.f32 %v237, %v250
      %v274 = vmul.f32 %v238, %v250
      %v275 = vmul.f32 %v239, %v250
      %v276 = vmul.f32 %v240, %v250
      %v277 = vmul.f32 %v241, %v250
      %v278 = vmul.f32 %v242, %v250
      %v279 = vmul.f32 %v243, %v250
      %v280 = vmul.f32 %v244, %v250
      %v281 = vmul.f32 %v245, %v250
      %v282 = vmul.f32 %v246, %v250
      %v284 = vlaneseq
      %v285 = vshrl.u32 %v284, 7
      %v286 = vsub.s32 0, %v285
      %v287 = vrot.slane %v214, %v286
      %v289 = vadd.f32 %v251, %v287
      %v290 = vadd.f32 %v252, %v287
      %v291 = vadd.f32 %v253, %v287
      %v292 = vadd.f32 %v254, %v287
      %v293 = vadd.f32 %v255, %v287
      %v294 = vadd.f32 %v256, %v287
      %v295 = vadd.f32 %v257, %v287
      %v296 = vadd.f32 %v258, %v287
      %v297 = vadd.f32 %v259, %v287
      %v298 = vadd.f32 %v260, %v287
      %v299 = vadd.f32 %v261, %v287
      %v300 = vadd.f32 %v262, %v287
      %v301 = vadd.f32 %v263, %v287
      %v302 = vadd.f32 %v264, %v287
      %v303 = vadd.f32 %v265, %v287
      %v304 = vadd.f32 %v266, %v287
      %v305 = vadd.f32 %v267, %v287
      %v306 = vadd.f32 %v268, %v287
      %v307 = vadd.f32 %v269, %v287
      %v308 = vadd.f32 %v270, %v287
      %v309 = vadd.f32 %v271, %v287
      %v310 = vadd.f32 %v272, %v287
      %v311 = vadd.f32 %v273, %v287
      %v312 = vadd.f32 %v274, %v287
      %v313 = vadd.f32 %v275, %v287
      %v314 = vadd.f32 %v276, %v287
      %v315 = vadd.f32 %v277, %v287
      %v316 = vadd.f32 %v278, %v287
      %v317 = vadd.f32 %v279, %v287
      %v318 = vadd.f32 %v280, %v287
      %v319 = vadd.f32 %v281, %v287
      %v320 = vadd.f32 %v282, %v287
      %v321 = vmax.f32 %v289, 0.0
      %v322 = vmax.f32 %v290, 0.0
      %v323 = vmax.f32 %v291, 0.0
      %v324 = vmax.f32 %v292, 0.0
      %v325 = vmax.f32 %v293, 0.0
      %v326 = vmax.f32 %v294, 0.0
      %v327 = vmax.f32 %v295, 0.0
      %v328 = vmax.f32 %v296, 0.0
      %v329 = vmax.f32 %v297, 0.0
      %v330 = vmax.f32 %v298, 0.0
      %v331 = vmax.f32 %v299, 0.0
      %v332 = vmax.f32 %v300, 0.0
      %v333 = vmax.f32 %v301, 0.0
      %v334 = vmax.f32 %v302, 0.0
      %v335 = vmax.f32 %v303, 0.0
      %v336 = vmax.f32 %v304, 0.0
      %v337 = vmax.f32 %v305, 0.0
      %v338 = vmax.f32 %v306, 0.0
      %v339 = vmax.f32 %v307, 0.0
      %v340 = vmax.f32 %v308, 0.0
      %v341 = vmax.f32 %v309, 0.0
      %v342 = vmax.f32 %v310, 0.0
      %v343 = vmax.f32 %v311, 0.0
      %v344 = vmax.f32 %v312, 0.0
      %v345 = vmax.f32 %v313, 0.0
      %v346 = vmax.f32 %v314, 0.0
      %v347 = vmax.f32 %v315, 0.0
      %v348 = vmax.f32 %v316, 0.0
      %v349 = vmax.f32 %v317, 0.0
      %v350 = vmax.f32 %v318, 0.0
      %v351 = vmax.f32 %v319, 0.0
      %v352 = vmax.f32 %v320, 0.0
      %v353 = vlaneseq
      %v354 = vshrl.u32 %v353, 7
      %v355 = vadd.s32 %v354, 8
      %v356 = vadd.s32 %v354, 16
      %v357 = vadd.s32 %v354, 24
      %v358 = vadd.s32 %v354, 32
      %v359 = vadd.s32 %v354, 40
      %v360 = vadd.s32 %v354, 48
      %v361 = vadd.s32 %v354, 56
      %v362 = vadd.s32 %v354, 64
      %v363 = vadd.s32 %v354, 72
      %v364 = vadd.s32 %v354, 80
      %v365 = vadd.s32 %v354, 88
      %v366 = vadd.s32 %v354, 96
      %v367 = vadd.s32 %v354, 104
      %v368 = vadd.s32 %v354, 112
      %v369 = vadd.s32 %v354, 120
      %v370 = vadd.s32 %v354, 128
      %v371 = vadd.s32 %v354, 136
      %v372 = vadd.s32 %v354, 144
      %v373 = vadd.s32 %v354, 152
      %v374 = vadd.s32 %v354, 160
      %v375 = vadd.s32 %v354, 168
      %v376 = vadd.s32 %v354, 176
      %v377 = vadd.s32 %v354, 184
      %v378 = vadd.s32 %v354, 192
      %v379 = vadd.s32 %v354, 200
      %v380 = vadd.s32 %v354, 208
      %v381 = vadd.s32 %v354, 216
      %v382 = vadd.s32 %v354, 224
      %v383 = vadd.s32 %v354, 232
      %v384 = vadd.s32 %v354, 240
      %v385 = vadd.s32 %v354, 248
      %s386 = smul.u32 %s15, 256
      %v387 = vstv %s386
      %v388 = vadd.s32 %v354, %v387
      %v389 = vadd.s32 %v355, %v387
      %v390 = vadd.s32 %v356, %v387
      %v391 = vadd.s32 %v357, %v387
      %v392 = vadd.s32 %v358, %v387
      %v393 = vadd.s32 %v359, %v387
      %v394 = vadd.s32 %v360, %v387
      %v395 = vadd.s32 %v361, %v387
      %v396 = vadd.s32 %v362, %v387
      %v397 = vadd.s32 %v363, %v387
      %v398 = vadd.s32 %v364, %v387
      %v399 = vadd.s32 %v365, %v387
      %v400 = vadd.s32 %v366, %v387
      %v401 = vadd.s32 %v367, %v387
      %v402 = vadd.s32 %v368, %v387
      %v403 = vadd.s32 %v369, %v387
      %v404 = vadd.s32 %v370, %v387
      %v405 = vadd.s32 %v371, %v387
      %v406 = vadd.s32 %v372, %v387
      %v407 = vadd.s32 %v373, %v387
      %v408 = vadd.s32 %v374, %v387
      %v409 = vadd.s32 %v375, %v387
      %v410 = vadd.s32 %v376, %v387
      %v411 = vadd.s32 %v377, %v387
      %v412 = vadd.s32 %v378, %v387
      %v413 = vadd.s32 %v379, %v387
      %v414 = vadd.s32 %v380, %v387
      %v415 = vadd.s32 %v381, %v387
      %v416 = vadd.s32 %v382, %v387
      %v417 = vadd.s32 %v383, %v387
      %v418 = vadd.s32 %v384, %v387
      %v419 = vadd.s32 %v385, %v387
      %vm420 = vcmp.lt.s32.totalorder %v388, 512
      %vm421 = vcmp.lt.s32.totalorder %v389, 512
      %vm422 = vcmp.lt.s32.totalorder %v390, 512
      %vm423 = vcmp.lt.s32.totalorder %v391, 512
      %vm424 = vcmp.lt.s32.totalorder %v392, 512
      %vm425 = vcmp.lt.s32.totalorder %v393, 512
      %vm426 = vcmp.lt.s32.totalorder %v394, 512
      %vm427 = vcmp.lt.s32.totalorder %v395, 512
      %vm428 = vcmp.lt.s32.totalorder %v396, 512
      %vm429 = vcmp.lt.s32.totalorder %v397, 512
      %vm430 = vcmp.lt.s32.totalorder %v398, 512
      %vm431 = vcmp.lt.s32.totalorder %v399, 512
      %vm432 = vcmp.lt.s32.totalorder %v400, 512
      %vm433 = vcmp.lt.s32.totalorder %v401, 512
      %vm434 = vcmp.lt.s32.totalorder %v402, 512
      %vm435 = vcmp.lt.s32.totalorder %v403, 512
      %vm436 = vcmp.lt.s32.totalorder %v404, 512
      %vm437 = vcmp.lt.s32.totalorder %v405, 512
      %vm438 = vcmp.lt.s32.totalorder %v406, 512
      %vm439 = vcmp.lt.s32.totalorder %v407, 512
      %vm440 = vcmp.lt.s32.totalorder %v408, 512
      %vm441 = vcmp.lt.s32.totalorder %v409, 512
      %vm442 = vcmp.lt.s32.totalorder %v410, 512
      %vm443 = vcmp.lt.s32.totalorder %v411, 512
      %vm444 = vcmp.lt.s32.totalorder %v412, 512
      %vm445 = vcmp.lt.s32.totalorder %v413, 512
      %vm446 = vcmp.lt.s32.totalorder %v414, 512
      %vm447 = vcmp.lt.s32.totalorder %v415, 512
      %vm448 = vcmp.lt.s32.totalorder %v416, 512
      %vm449 = vcmp.lt.s32.totalorder %v417, 512
      %vm450 = vcmp.lt.s32.totalorder %v418, 512
      %vm451 = vcmp.lt.s32.totalorder %v419, 512
      %v452 = vsel %vm420, %v321, 0.0
      %v453 = vsel %vm421, %v322, 0.0
      %v454 = vsel %vm422, %v323, 0.0
      %v455 = vsel %vm423, %v324, 0.0
      %v456 = vsel %vm424, %v325, 0.0
      %v457 = vsel %vm425, %v326, 0.0
      %v458 = vsel %vm426, %v327, 0.0
      %v459 = vsel %vm427, %v328, 0.0
      %v460 = vsel %vm428, %v329, 0.0
      %v461 = vsel %vm429, %v330, 0.0
      %v462 = vsel %vm430, %v331, 0.0
      %v463 = vsel %vm431, %v332, 0.0
      %v464 = vsel %vm432, %v333, 0.0
      %v465 = vsel %vm433, %v334, 0.0
      %v466 = vsel %vm434, %v335, 0.0
      %v467 = vsel %vm435, %v336, 0.0
      %v468 = vsel %vm436, %v337, 0.0
      %v469 = vsel %vm437, %v338, 0.0
      %v470 = vsel %vm438, %v339, 0.0
      %v471 = vsel %vm439, %v340, 0.0
      %v472 = vsel %vm440, %v341, 0.0
      %v473 = vsel %vm441, %v342, 0.0
      %v474 = vsel %vm442, %v343, 0.0
      %v475 = vsel %vm443, %v344, 0.0
      %v476 = vsel %vm444, %v345, 0.0
      %v477 = vsel %vm445, %v346, 0.0
      %v478 = vsel %vm446, %v347, 0.0
      %v479 = vsel %vm447, %v348, 0.0
      %v480 = vsel %vm448, %v349, 0.0
      %v481 = vsel %vm449, %v350, 0.0
      %v482 = vsel %vm450, %v351, 0.0
      %v483 = vsel %vm451, %v352, 0.0
      %v484 = vpack.c.bf16 %v453, %v452
      %v485 = vpack.c.bf16 %v455, %v454
      %v486 = vpack.c.bf16 %v457, %v456
      %v487 = vpack.c.bf16 %v459, %v458
      %v488 = vpack.c.bf16 %v461, %v460
      %v489 = vpack.c.bf16 %v463, %v462
      %v490 = vpack.c.bf16 %v465, %v464
      %v491 = vpack.c.bf16 %v467, %v466
      %v492 = vpack.c.bf16 %v469, %v468
      %v493 = vpack.c.bf16 %v471, %v470
      %v494 = vpack.c.bf16 %v473, %v472
      %v495 = vpack.c.bf16 %v475, %v474
      %v496 = vpack.c.bf16 %v477, %v476
      %v497 = vpack.c.bf16 %v479, %v478
      %v498 = vpack.c.bf16 %v481, %v480
      %v499 = vpack.c.bf16 %v483, %v482
      %v516 = vunpack.c.l.b16 %v484
      %v517 = vunpack.c.h.b16 %v484
      %v518 = vunpack.c.l.b16 %v485
      %v519 = vunpack.c.h.b16 %v485
      %v520 = vunpack.c.l.b16 %v486
      %v521 = vunpack.c.h.b16 %v486
      %v522 = vunpack.c.l.b16 %v487
      %v523 = vunpack.c.h.b16 %v487
      %v524 = vunpack.c.l.b16 %v488
      %v525 = vunpack.c.h.b16 %v488
      %v526 = vunpack.c.l.b16 %v489
      %v527 = vunpack.c.h.b16 %v489
      %v528 = vunpack.c.l.b16 %v490
      %v529 = vunpack.c.h.b16 %v490
      %v530 = vunpack.c.l.b16 %v491
      %v531 = vunpack.c.h.b16 %v491
      %v532 = vunpack.c.l.b16 %v492
      %v533 = vunpack.c.h.b16 %v492
      %v534 = vunpack.c.l.b16 %v493
      %v535 = vunpack.c.h.b16 %v493
      %v536 = vunpack.c.l.b16 %v494
      %v537 = vunpack.c.h.b16 %v494
      %v538 = vunpack.c.l.b16 %v495
      %v539 = vunpack.c.h.b16 %v495
      %v540 = vunpack.c.l.b16 %v496
      %v541 = vunpack.c.h.b16 %v496
      %v542 = vunpack.c.l.b16 %v497
      %v543 = vunpack.c.h.b16 %v497
      %v544 = vunpack.c.l.b16 %v498
      %v545 = vunpack.c.h.b16 %v498
      %v546 = vunpack.c.l.b16 %v499
      %v547 = vunpack.c.h.b16 %v499
      %v548 = vpack.c.b16 %v516, %v516
      %v549 = vpack.c.b16 %v517, %v517
      %v550 = vpack.c.b16 %v518, %v518
      %v551 = vpack.c.b16 %v519, %v519
      %v552 = vpack.c.b16 %v520, %v520
      %v553 = vpack.c.b16 %v521, %v521
      %v554 = vpack.c.b16 %v522, %v522
      %v555 = vpack.c.b16 %v523, %v523
      %v556 = vpack.c.b16 %v524, %v524
      %v557 = vpack.c.b16 %v525, %v525
      %v558 = vpack.c.b16 %v526, %v526
      %v559 = vpack.c.b16 %v527, %v527
      %v560 = vpack.c.b16 %v528, %v528
      %v561 = vpack.c.b16 %v529, %v529
      %v562 = vpack.c.b16 %v530, %v530
      %v563 = vpack.c.b16 %v531, %v531
      %v564 = vpack.c.b16 %v532, %v532
      %v565 = vpack.c.b16 %v533, %v533
      %v566 = vpack.c.b16 %v534, %v534
      %v567 = vpack.c.b16 %v535, %v535
      %v568 = vpack.c.b16 %v536, %v536
      %v569 = vpack.c.b16 %v537, %v537
      %v570 = vpack.c.b16 %v538, %v538
      %v571 = vpack.c.b16 %v539, %v539
      %v572 = vpack.c.b16 %v540, %v540
      %v573 = vpack.c.b16 %v541, %v541
      %v574 = vpack.c.b16 %v542, %v542
      %v575 = vpack.c.b16 %v543, %v543
      %v576 = vpack.c.b16 %v544, %v544
      %v577 = vpack.c.b16 %v545, %v545
      %v578 = vpack.c.b16 %v546, %v546
      %v579 = vpack.c.b16 %v547, %v547
      %612 = vst [vmem:[%s199] sm:$0xf] %v548
      %613 = vst [vmem:[%s199 + $0x4] sm:$0xf] %v549
      %614 = vst [vmem:[%s199 + $0x8] sm:$0xf] %v550
      %615 = vst [vmem:[%s199 + $0xc] sm:$0xf] %v551
      %616 = vst [vmem:[%s199 + $0x10] sm:$0xf] %v552
      %617 = vst [vmem:[%s199 + $0x14] sm:$0xf] %v553
      %618 = vst [vmem:[%s199 + $0x18] sm:$0xf] %v554
      %619 = vst [vmem:[%s199 + $0x1c] sm:$0xf] %v555
      %620 = vst [vmem:[%s199 + $0x20] sm:$0xf] %v556
      %621 = vst [vmem:[%s199 + $0x24] sm:$0xf] %v557
      %622 = vst [vmem:[%s199 + $0x28] sm:$0xf] %v558
      %623 = vst [vmem:[%s199 + $0x2c] sm:$0xf] %v559
      %624 = vst [vmem:[%s199 + $0x30] sm:$0xf] %v560
      %625 = vst [vmem:[%s199 + $0x34] sm:$0xf] %v561
      %626 = vst [vmem:[%s199 + $0x38] sm:$0xf] %v562
      %627 = vst [vmem:[%s199 + $0x3c] sm:$0xf] %v563
      %628 = vst [vmem:[%s199 + $0x40] sm:$0xf] %v564
      %629 = vst [vmem:[%s199 + $0x44] sm:$0xf] %v565
      %630 = vst [vmem:[%s199 + $0x48] sm:$0xf] %v566
      %631 = vst [vmem:[%s199 + $0x4c] sm:$0xf] %v567
      %632 = vst [vmem:[%s199 + $0x50] sm:$0xf] %v568
      %633 = vst [vmem:[%s199 + $0x54] sm:$0xf] %v569
      %634 = vst [vmem:[%s199 + $0x58] sm:$0xf] %v570
      %635 = vst [vmem:[%s199 + $0x5c] sm:$0xf] %v571
      %636 = vst [vmem:[%s199 + $0x60] sm:$0xf] %v572
      %637 = vst [vmem:[%s199 + $0x64] sm:$0xf] %v573
      %638 = vst [vmem:[%s199 + $0x68] sm:$0xf] %v574
      %639 = vst [vmem:[%s199 + $0x6c] sm:$0xf] %v575
      %640 = vst [vmem:[%s199 + $0x70] sm:$0xf] %v576
      %641 = vst [vmem:[%s199 + $0x74] sm:$0xf] %v577
      %642 = vst [vmem:[%s199 + $0x78] sm:$0xf] %v578
      %643 = vst [vmem:[%s199 + $0x7c] sm:$0xf] %v579
      %s644 = smul.u32 32, %s15
      %p645 = scmp.lt.s32.totalorder %s644, 63
      %s646 = scalar_select %p645, %s644, 63
      %s647 = smul.addr %s646, 4
      %s648 = scalar_lea.vmem %s4, %s647
      // Predicated region
      $region37: #{bottleneck_forward.9} parent=35 // pred_check
        %p649 = pneg %p122
      $region38: #{bottleneck_forward.9} parent=35 // pred_check_branch
        %651 = sbr.rel (%p649) target = $region40
      $region39: #{bottleneck_forward.9} parent=35 // pred_region
        %s652 = smul.u32 32, %s15
      $region40: #{bottleneck_forward.9} parent=35 // pred_fallthru
        _
    $region36: #{bottleneck_forward.9} parent=5 // pred_fallthru
      _
    %p653 = scmp.le.s32.totalorder 2, %s10
    // Predicated region
    $region41: #{bottleneck_forward.9} parent=5 // pred_check
      %p654 = pneg %p653
    $region42: #{bottleneck_forward.9} parent=5 // pred_check_branch
      %656 = sbr.rel (%p654) target = $region44
    $region43: #{bottleneck_forward.9} parent=5 // pred_region
      %s657 = ssub.s32 %s10, 2
      // Predicated region
      $region45: #{bottleneck_forward.9} parent=43 // pred_check
        %p658 = pneg %p128
      $region46: #{bottleneck_forward.9} parent=43 // pred_check_branch
        %660 = sbr.rel (%p658) target = $region48
      $region47: #{bottleneck_forward.9} parent=43 // pred_region
        %s661 = smul.u32 32, %s16
        %p662 = scmp.lt.s32.totalorder %s661, 63
        %s663 = scalar_select %p662, %s661, 63
        %s664 = smul.addr %s663, 4
        %s665 = scalar_lea.vmem %s4, %s664
      $region48: #{bottleneck_forward.9} parent=43 // pred_fallthru
        _
    $region44: #{bottleneck_forward.9} parent=5 // pred_fallthru
      _
  $region6: #{bottleneck_forward.9} parent=0 // loop_footer
    %s14 = sadd.s32 1, %s10
  $region7: #{bottleneck_forward.9} parent=0 // loop_footer_branch
    %9 = sbr.rel target = $region3
  $region8: #{bottleneck_forward.9} parent=0 // loop_exit
    _

// kernel: bottleneck_forward.13
$region0: #{bottleneck_forward.13}
  #allocation0 [shape = 'u32[]', space=smem, size = 0x4, offset = 0x4, fixed_abs, tag = 'smem constant byte address 0x4 - core index']
  #allocation1 [shape = 'u32[144,128]{1,0:T(1,128)}', space=vmem, size = 0x12000, scoped, tag = 'internal scratch']
  %s0 = inlined_call_operand.vmem [shape: f32[512,128], index: 0, kind: input, shape index: {}]
  %s1 = inlined_call_operand.vmem [shape: f32[2,128], index: 1, kind: input, shape index: {}]
  %s2 = inlined_call_operand.vmem [shape: f32[1,128], index: 2, kind: input, shape index: {}]
  %s3 = inlined_call_operand.vmem [shape: f32[1,128], index: 3, kind: input, shape index: {}]
  %s4 = inlined_call_operand.vmem [shape: f32[512,128], index: 4, kind: output, shape index: {}]
  %s5 = sld [smem:[#allocation0]]
  $region49: #{bottleneck_forward.13} parent=0
    _
  %s7 = ssub.s32 1, %s5
  %s8 = scalar_select 0, %s7, %s5
  loop: start=0, step=1, limit=4
  $region2: #{bottleneck_forward.13} parent=0 // loop_pre_header
    _
  $region3: #{bottleneck_forward.13} parent=0 // loop_header
    %s10 = sphi 0, %s14
    %p11 = scmp.ge.s32.totalorder %s10, 4
    %s20 = sphi 0, %s22
    %s23 = sphi 0, %s20
    %s24 = sphi 0, %s23
    %s40 = sphi 0, %s24
    %s44 = sphi 0, %s44
    %s46 = sphi 0, %s44
    %s47 = sphi 0, %s46
    %s61 = sphi 0, %s47
    %s65 = sphi 0, %s65
    %s67 = sphi 0, %s65
    %s68 = sphi 0, %s67
    %s82 = sphi 0, %s68
    %s86 = sphi 0, %s86
    %s88 = sphi 0, %s86
    %s89 = sphi 0, %s88
    %s103 = sphi 0, %s89
    %s109 = sphi 0, %s111
    %s112 = sphi 0, %s109
    %s113 = sphi 0, %s112
    %s129 = sphi 0, %s113
  $region4: #{bottleneck_forward.13} parent=0 // loop_header_branch
    %13 = sbr.rel (%p11) target = $region8
  $region5: #{bottleneck_forward.13} parent=0 // loop_body
    %s15 = ssub.s32 %s10, 1
    %s16 = ssub.s32 %s10, 2
    %s17 = sadd.s32 %s10, 1
    %s18 = ssub.s32 %s10, %s17
    %p19 = scmp.eq.s32.totalorder %s18, 0
    %s21 = sadd.s32 %s20, 1
    %s22 = scalar_select %p19, %s20, %s21
    %p25 = pneg %p19
    %p26 = scmp.eq.s32.totalorder %s10, 1
    %p27 = por %p25, %p26
    %p28 = scmp.ne.s32.totalorder %s20, %s23
    %p29 = scmp.eq.s32.totalorder %s10, 0
    %p30 = por %p28, %p29
    %p31 = scmp.ne.s32.totalorder %s20, %s23
    %p32 = scmp.eq.s32.totalorder %s15, 1
    %p33 = por %p31, %p32
    %p34 = scmp.ne.s32.totalorder %s23, %s24
    %p35 = scmp.eq.s32.totalorder %s15, 0
    %p36 = por %p34, %p35
    %p37 = scmp.ne.s32.totalorder %s23, %s24
    %p38 = scmp.eq.s32.totalorder %s16, 1
    %p39 = por %p37, %p38
    %p41 = scmp.ne.s32.totalorder %s24, %s40
    %p42 = scmp.eq.s32.totalorder %s16, 0
    %p43 = por %p41, %p42
    %s45 = sadd.s32 %s44, 1
    %p48 = scmp.eq.s32.totalorder %s10, 1
    %p49 = scmp.ne.s32.totalorder %s44, %s46
    %p50 = scmp.eq.s32.totalorder %s10, 0
    %p51 = por %p49, %p50
    %p52 = scmp.ne.s32.totalorder %s44, %s46
    %p53 = scmp.eq.s32.totalorder %s15, 1
    %p54 = por %p52, %p53
    %p55 = scmp.ne.s32.totalorder %s46, %s47
    %p56 = scmp.eq.s32.totalorder %s15, 0
    %p57 = por %p55, %p56
    %p58 = scmp.ne.s32.totalorder %s46, %s47
    %p59 = scmp.eq.s32.totalorder %s16, 1
    %p60 = por %p58, %p59
    %p62 = scmp.ne.s32.totalorder %s47, %s61
    %p63 = scmp.eq.s32.totalorder %s16, 0
    %p64 = por %p62, %p63
    %s66 = sadd.s32 %s65, 1
    %p69 = scmp.eq.s32.totalorder %s10, 1
    %p70 = scmp.ne.s32.totalorder %s65, %s67
    %p71 = scmp.eq.s32.totalorder %s10, 0
    %p72 = por %p70, %p71
    %p73 = scmp.ne.s32.totalorder %s65, %s67
    %p74 = scmp.eq.s32.totalorder %s15, 1
    %p75 = por %p73, %p74
    %p76 = scmp.ne.s32.totalorder %s67, %s68
    %p77 = scmp.eq.s32.totalorder %s15, 0
    %p78 = por %p76, %p77
    %p79 = scmp.ne.s32.totalorder %s67, %s68
    %p80 = scmp.eq.s32.totalorder %s16, 1
    %p81 = por %p79, %p80
    %p83 = scmp.ne.s32.totalorder %s68, %s82
    %p84 = scmp.eq.s32.totalorder %s16, 0
    %p85 = por %p83, %p84
    %s87 = sadd.s32 %s86, 1
    %p90 = scmp.eq.s32.totalorder %s10, 1
    %p91 = scmp.ne.s32.totalorder %s86, %s88
    %p92 = scmp.eq.s32.totalorder %s10, 0
    %p93 = por %p91, %p92
    %p94 = scmp.ne.s32.totalorder %s86, %s88
    %p95 = scmp.eq.s32.totalorder %s15, 1
    %p96 = por %p94, %p95
    %p97 = scmp.ne.s32.totalorder %s88, %s89
    %p98 = scmp.eq.s32.totalorder %s15, 0
    %p99 = por %p97, %p98
    %p100 = scmp.ne.s32.totalorder %s88, %s89
    %p101 = scmp.eq.s32.totalorder %s16, 1
    %p102 = por %p100, %p101
    %p104 = scmp.ne.s32.totalorder %s89, %s103
    %p105 = scmp.eq.s32.totalorder %s16, 0
    %p106 = por %p104, %p105
    %s107 = ssub.s32 %s10, %s17
    %p108 = scmp.eq.s32.totalorder %s107, 0
    %s110 = sadd.s32 %s109, 1
    %s111 = scalar_select %p108, %s109, %s110
    %p114 = pneg %p108
    %p115 = scmp.eq.s32.totalorder %s10, 1
    %p116 = por %p114, %p115
    %p117 = scmp.ne.s32.totalorder %s109, %s112
    %p118 = scmp.eq.s32.totalorder %s10, 0
    %p119 = por %p117, %p118
    %p120 = scmp.ne.s32.totalorder %s109, %s112
    %p121 = scmp.eq.s32.totalorder %s15, 1
    %p122 = por %p120, %p121
    %p123 = scmp.ne.s32.totalorder %s112, %s113
    %p124 = scmp.eq.s32.totalorder %s15, 0
    %p125 = por %p123, %p124
    %p126 = scmp.ne.s32.totalorder %s112, %s113
    %p127 = scmp.eq.s32.totalorder %s16, 1
    %p128 = por %p126, %p127
    %p130 = scmp.ne.s32.totalorder %s113, %s129
    %p131 = scmp.eq.s32.totalorder %s16, 0
    %p132 = por %p130, %p131
    %p133 = scmp.le.s32.totalorder 1, %s10
    %p134 = scmp.lt.s32.totalorder %s10, 3
    %p135 = pnand %p133, %p134
    %p136 = pneg %p135
    // Predicated region
    $region9: #{bottleneck_forward.13} parent=5 // pred_check
      _
    $region10: #{bottleneck_forward.13} parent=5 // pred_check_branch
      %138 = sbr.rel (%p135) target = $region12
    $region11: #{bottleneck_forward.13} parent=5 // pred_region
      %s139 = ssub.s32 %s10, 1
      // Predicated region
      $region13: #{bottleneck_forward.13} parent=11 // pred_check
        %p140 = pneg %p57
      $region14: #{bottleneck_forward.13} parent=11 // pred_check_branch
        %142 = sbr.rel (%p140) target = $region16
      $region15: #{bottleneck_forward.13} parent=11 // pred_region
        _
      $region16: #{bottleneck_forward.13} parent=11 // pred_fallthru
        _
      // Predicated region
      $region17: #{bottleneck_forward.13} parent=11 // pred_check
        %p143 = pneg %p78
      $region18: #{bottleneck_forward.13} parent=11 // pred_check_branch
        %145 = sbr.rel (%p143) target = $region20
      $region19: #{bottleneck_forward.13} parent=11 // pred_region
        _
      $region20: #{bottleneck_forward.13} parent=11 // pred_fallthru
        _
      // Predicated region
      $region21: #{bottleneck_forward.13} parent=11 // pred_check
        %p146 = pneg %p99
      $region22: #{bottleneck_forward.13} parent=11 // pred_check_branch
        %148 = sbr.rel (%p146) target = $region24
      $region23: #{bottleneck_forward.13} parent=11 // pred_region
        _
      $region24: #{bottleneck_forward.13} parent=11 // pred_fallthru
        _
    $region12: #{bottleneck_forward.13} parent=5 // pred_fallthru
      _
    %p149 = scmp.lt.s32.totalorder %s10, 2
    // Predicated region
    $region25: #{bottleneck_forward.13} parent=5 // pred_check
      %p150 = pneg %p149
    $region26: #{bottleneck_forward.13} parent=5 // pred_check_branch
      %152 = sbr.rel (%p150) target = $region28
    $region27: #{bottleneck_forward.13} parent=5 // pred_region
      // Predicated region
      $region29: #{bottleneck_forward.13} parent=27 // pred_check
        %p153 = pneg %p30
      $region30: #{bottleneck_forward.13} parent=27 // pred_check_branch
        %155 = sbr.rel (%p153) target = $region32
      $region31: #{bottleneck_forward.13} parent=27 // pred_region
        %s156 = smul.u32 32, %s10
        %p157 = scmp.lt.s32.totalorder %s156, 63
        %s158 = scalar_select %p157, %s156, 63
        %s159 = smul.addr %s158, 8
        %s160 = scalar_lea.vmem %s0, %s159
        %s161 = smul.u32 32, %s10
      $region32: #{bottleneck_forward.13} parent=27 // pred_fallthru
        _
    $region28: #{bottleneck_forward.13} parent=5 // pred_fallthru
      _
    %p162 = scmp.le.s32.totalorder 1, %s10
    %p163 = scmp.lt.s32.totalorder %s10, 3
    %p164 = pnand %p162, %p163
    %p165 = pneg %p164
    // Predicated region
    $region33: #{bottleneck_forward.13} parent=5 // pred_check
      _
    $region34: #{bottleneck_forward.13} parent=5 // pred_check_branch
      %167 = sbr.rel (%p164) target = $region36
    $region35: #{bottleneck_forward.13} parent=5 // pred_region
      %s168 = ssub.s32 %s10, 1
      %s169 = smul.u32 32, %s15
      %p170 = scmp.lt.s32.totalorder %s169, 63
      %s171 = scalar_select %p170, %s169, 63
      %s172 = smul.addr %s171, 8
      %s173 = scalar_lea.vmem %s0, %s172
      %p174 = pneg %p36
      %p175 = pneg %p33
      %p176 = pneg %p57
      %p177 = pneg %p54
      %p178 = pneg %p78
      %p179 = pneg %p75
      %p180 = pneg %p99
      %p181 = pneg %p96
      %p182 = pneg %p125
      %p183 = pneg %p122
      %s184 = smul.u32 32, %s15
      %p185 = scmp.lt.s32.totalorder %s184, 63
      %s186 = scalar_select %p185, %s184, 63
      %s187 = smul.addr %s186, 8
      %s188 = scalar_lea.vmem %s4, %s187
      %s189 = smul.u32 32, %s15
      %p190 = scmp.lt.s32.totalorder %s189, 63
      %s191 = scalar_select %p190, %s189, 63
      %s192 = smul.addr %s191, 8
      %s193 = scalar_lea.vmem %s0, %s192
      %s194 = smul.u32 32, %s15
      %s195 = smul.u32 32, %s15
      %p196 = scmp.lt.s32.totalorder %s195, 63
      %s197 = scalar_select %p196, %s195, 63
      %s198 = smul.addr %s197, 8
      %s199 = scalar_lea.vmem %s4, %s198
      %s200 = smul.u32 32, %s15
      %v201 = vld [vmem:[%s1] sm:$0x1]
      %v202 = vmul.f32 %v201, 0.001953125
      %v203 = vld [vmem:[%s1 + $0x1] sm:$0x1]
      %v204 = vmul.f32 %v203, 0.001953125
      %v205 = vmul.f32 %v202, %v202
      %v206 = vsub.f32 %v204, %v205
      %v207 = vmax.f32 %v206, 0.0
      %v208 = vadd.f32 %v207, 1e-05
      %v209 = vrsqrt.pop %v208
      %v210 = vld [vmem:[%s2] sm:$0x1]
      %v211 = vmul.f32 %v209, %v210
      %v212 = vld [vmem:[%s3] sm:$0x1]
      %v213 = vmul.f32 %v202, %v211
      %v214 = vsub.f32 %v212, %v213
      %v215 = vld [vmem:[%s193] sm:$0xff]
      %v216 = vld [vmem:[%s193 + $0x8] sm:$0xff]
      %v217 = vld [vmem:[%s193 + $0x10] sm:$0xff]
      %v218 = vld [vmem:[%s193 + $0x18] sm:$0xff]
      %v219 = vld [vmem:[%s193 + $0x20] sm:$0xff]
      %v220 = vld [vmem:[%s193 + $0x28] sm:$0xff]
      %v221 = vld [vmem:[%s193 + $0x30] sm:$0xff]
      %v222 = vld [vmem:[%s193 + $0x38] sm:$0xff]
      %v223 = vld [vmem:[%s193 + $0x40] sm:$0xff]
      %v224 = vld [vmem:[%s193 + $0x48] sm:$0xff]
      %v225 = vld [vmem:[%s193 + $0x50] sm:$0xff]
      %v226 = vld [vmem:[%s193 + $0x58] sm:$0xff]
      %v227 = vld [vmem:[%s193 + $0x60] sm:$0xff]
      %v228 = vld [vmem:[%s193 + $0x68] sm:$0xff]
      %v229 = vld [vmem:[%s193 + $0x70] sm:$0xff]
      %v230 = vld [vmem:[%s193 + $0x78] sm:$0xff]
      %v231 = vld [vmem:[%s193 + $0x80] sm:$0xff]
      %v232 = vld [vmem:[%s193 + $0x88] sm:$0xff]
      %v233 = vld [vmem:[%s193 + $0x90] sm:$0xff]
      %v234 = vld [vmem:[%s193 + $0x98] sm:$0xff]
      %v235 = vld [vmem:[%s193 + $0xa0] sm:$0xff]
      %v236 = vld [vmem:[%s193 + $0xa8] sm:$0xff]
      %v237 = vld [vmem:[%s193 + $0xb0] sm:$0xff]
      %v238 = vld [vmem:[%s193 + $0xb8] sm:$0xff]
      %v239 = vld [vmem:[%s193 + $0xc0] sm:$0xff]
      %v240 = vld [vmem:[%s193 + $0xc8] sm:$0xff]
      %v241 = vld [vmem:[%s193 + $0xd0] sm:$0xff]
      %v242 = vld [vmem:[%s193 + $0xd8] sm:$0xff]
      %v243 = vld [vmem:[%s193 + $0xe0] sm:$0xff]
      %v244 = vld [vmem:[%s193 + $0xe8] sm:$0xff]
      %v245 = vld [vmem:[%s193 + $0xf0] sm:$0xff]
      %v246 = vld [vmem:[%s193 + $0xf8] sm:$0xff]
      %v247 = vlaneseq
      %v248 = vshrl.u32 %v247, 7
      %v249 = vsub.s32 0, %v248
      %v250 = vrot.slane %v211, %v249
      %v251 = vmul.f32 %v215, %v250
      %v252 = vmul.f32 %v216, %v250
      %v253 = vmul.f32 %v217, %v250
      %v254 = vmul.f32 %v218, %v250
      %v255 = vmul.f32 %v219, %v250
      %v256 = vmul.f32 %v220, %v250
      %v257 = vmul.f32 %v221, %v250
      %v258 = vmul.f32 %v222, %v250
      %v259 = vmul.f32 %v223, %v250
      %v260 = vmul.f32 %v224, %v250
      %v261 = vmul.f32 %v225, %v250
      %v262 = vmul.f32 %v226, %v250
      %v263 = vmul.f32 %v227, %v250
      %v264 = vmul.f32 %v228, %v250
      %v265 = vmul.f32 %v229, %v250
      %v266 = vmul.f32 %v230, %v250
      %v267 = vmul.f32 %v231, %v250
      %v268 = vmul.f32 %v232, %v250
      %v269 = vmul.f32 %v233, %v250
      %v270 = vmul.f32 %v234, %v250
      %v271 = vmul.f32 %v235, %v250
      %v272 = vmul.f32 %v236, %v250
      %v273 = vmul.f32 %v237, %v250
      %v274 = vmul.f32 %v238, %v250
      %v275 = vmul.f32 %v239, %v250
      %v276 = vmul.f32 %v240, %v250
      %v277 = vmul.f32 %v241, %v250
      %v278 = vmul.f32 %v242, %v250
      %v279 = vmul.f32 %v243, %v250
      %v280 = vmul.f32 %v244, %v250
      %v281 = vmul.f32 %v245, %v250
      %v282 = vmul.f32 %v246, %v250
      %v284 = vlaneseq
      %v285 = vshrl.u32 %v284, 7
      %v286 = vsub.s32 0, %v285
      %v287 = vrot.slane %v214, %v286
      %v289 = vadd.f32 %v251, %v287
      %v290 = vadd.f32 %v252, %v287
      %v291 = vadd.f32 %v253, %v287
      %v292 = vadd.f32 %v254, %v287
      %v293 = vadd.f32 %v255, %v287
      %v294 = vadd.f32 %v256, %v287
      %v295 = vadd.f32 %v257, %v287
      %v296 = vadd.f32 %v258, %v287
      %v297 = vadd.f32 %v259, %v287
      %v298 = vadd.f32 %v260, %v287
      %v299 = vadd.f32 %v261, %v287
      %v300 = vadd.f32 %v262, %v287
      %v301 = vadd.f32 %v263, %v287
      %v302 = vadd.f32 %v264, %v287
      %v303 = vadd.f32 %v265, %v287
      %v304 = vadd.f32 %v266, %v287
      %v305 = vadd.f32 %v267, %v287
      %v306 = vadd.f32 %v268, %v287
      %v307 = vadd.f32 %v269, %v287
      %v308 = vadd.f32 %v270, %v287
      %v309 = vadd.f32 %v271, %v287
      %v310 = vadd.f32 %v272, %v287
      %v311 = vadd.f32 %v273, %v287
      %v312 = vadd.f32 %v274, %v287
      %v313 = vadd.f32 %v275, %v287
      %v314 = vadd.f32 %v276, %v287
      %v315 = vadd.f32 %v277, %v287
      %v316 = vadd.f32 %v278, %v287
      %v317 = vadd.f32 %v279, %v287
      %v318 = vadd.f32 %v280, %v287
      %v319 = vadd.f32 %v281, %v287
      %v320 = vadd.f32 %v282, %v287
      %v321 = vlaneseq
      %v322 = vshrl.u32 %v321, 7
      %v323 = vadd.s32 %v322, 8
      %v324 = vadd.s32 %v322, 16
      %v325 = vadd.s32 %v322, 24
      %v326 = vadd.s32 %v322, 32
      %v327 = vadd.s32 %v322, 40
      %v328 = vadd.s32 %v322, 48
      %v329 = vadd.s32 %v322, 56
      %v330 = vadd.s32 %v322, 64
      %v331 = vadd.s32 %v322, 72
      %v332 = vadd.s32 %v322, 80
      %v333 = vadd.s32 %v322, 88
      %v334 = vadd.s32 %v322, 96
      %v335 = vadd.s32 %v322, 104
      %v336 = vadd.s32 %v322, 112
      %v337 = vadd.s32 %v322, 120
      %v338 = vadd.s32 %v322, 128
      %v339 = vadd.s32 %v322, 136
      %v340 = vadd.s32 %v322, 144
      %v341 = vadd.s32 %v322, 152
      %v342 = vadd.s32 %v322, 160
      %v343 = vadd.s32 %v322, 168
      %v344 = vadd.s32 %v322, 176
      %v345 = vadd.s32 %v322, 184
      %v346 = vadd.s32 %v322, 192
      %v347 = vadd.s32 %v322, 200
      %v348 = vadd.s32 %v322, 208
      %v349 = vadd.s32 %v322, 216
      %v350 = vadd.s32 %v322, 224
      %v351 = vadd.s32 %v322, 232
      %v352 = vadd.s32 %v322, 240
      %v353 = vadd.s32 %v322, 248
      %s354 = smul.u32 %s15, 256
      %v355 = vstv %s354
      %v356 = vadd.s32 %v322, %v355
      %v357 = vadd.s32 %v323, %v355
      %v358 = vadd.s32 %v324, %v355
      %v359 = vadd.s32 %v325, %v355
      %v360 = vadd.s32 %v326, %v355
      %v361 = vadd.s32 %v327, %v355
      %v362 = vadd.s32 %v328, %v355
      %v363 = vadd.s32 %v329, %v355
      %v364 = vadd.s32 %v330, %v355
      %v365 = vadd.s32 %v331, %v355
      %v366 = vadd.s32 %v332, %v355
      %v367 = vadd.s32 %v333, %v355
      %v368 = vadd.s32 %v334, %v355
      %v369 = vadd.s32 %v335, %v355
      %v370 = vadd.s32 %v336, %v355
      %v371 = vadd.s32 %v337, %v355
      %v372 = vadd.s32 %v338, %v355
      %v373 = vadd.s32 %v339, %v355
      %v374 = vadd.s32 %v340, %v355
      %v375 = vadd.s32 %v341, %v355
      %v376 = vadd.s32 %v342, %v355
      %v377 = vadd.s32 %v343, %v355
      %v378 = vadd.s32 %v344, %v355
      %v379 = vadd.s32 %v345, %v355
      %v380 = vadd.s32 %v346, %v355
      %v381 = vadd.s32 %v347, %v355
      %v382 = vadd.s32 %v348, %v355
      %v383 = vadd.s32 %v349, %v355
      %v384 = vadd.s32 %v350, %v355
      %v385 = vadd.s32 %v351, %v355
      %v386 = vadd.s32 %v352, %v355
      %v387 = vadd.s32 %v353, %v355
      %vm388 = vcmp.lt.s32.totalorder %v356, 512
      %vm389 = vcmp.lt.s32.totalorder %v357, 512
      %vm390 = vcmp.lt.s32.totalorder %v358, 512
      %vm391 = vcmp.lt.s32.totalorder %v359, 512
      %vm392 = vcmp.lt.s32.totalorder %v360, 512
      %vm393 = vcmp.lt.s32.totalorder %v361, 512
      %vm394 = vcmp.lt.s32.totalorder %v362, 512
      %vm395 = vcmp.lt.s32.totalorder %v363, 512
      %vm396 = vcmp.lt.s32.totalorder %v364, 512
      %vm397 = vcmp.lt.s32.totalorder %v365, 512
      %vm398 = vcmp.lt.s32.totalorder %v366, 512
      %vm399 = vcmp.lt.s32.totalorder %v367, 512
      %vm400 = vcmp.lt.s32.totalorder %v368, 512
      %vm401 = vcmp.lt.s32.totalorder %v369, 512
      %vm402 = vcmp.lt.s32.totalorder %v370, 512
      %vm403 = vcmp.lt.s32.totalorder %v371, 512
      %vm404 = vcmp.lt.s32.totalorder %v372, 512
      %vm405 = vcmp.lt.s32.totalorder %v373, 512
      %vm406 = vcmp.lt.s32.totalorder %v374, 512
      %vm407 = vcmp.lt.s32.totalorder %v375, 512
      %vm408 = vcmp.lt.s32.totalorder %v376, 512
      %vm409 = vcmp.lt.s32.totalorder %v377, 512
      %vm410 = vcmp.lt.s32.totalorder %v378, 512
      %vm411 = vcmp.lt.s32.totalorder %v379, 512
      %vm412 = vcmp.lt.s32.totalorder %v380, 512
      %vm413 = vcmp.lt.s32.totalorder %v381, 512
      %vm414 = vcmp.lt.s32.totalorder %v382, 512
      %vm415 = vcmp.lt.s32.totalorder %v383, 512
      %vm416 = vcmp.lt.s32.totalorder %v384, 512
      %vm417 = vcmp.lt.s32.totalorder %v385, 512
      %vm418 = vcmp.lt.s32.totalorder %v386, 512
      %vm419 = vcmp.lt.s32.totalorder %v387, 512
      %v420 = vsel %vm388, %v289, 0.0
      %v421 = vsel %vm389, %v290, 0.0
      %v422 = vsel %vm390, %v291, 0.0
      %v423 = vsel %vm391, %v292, 0.0
      %v424 = vsel %vm392, %v293, 0.0
      %v425 = vsel %vm393, %v294, 0.0
      %v426 = vsel %vm394, %v295, 0.0
      %v427 = vsel %vm395, %v296, 0.0
      %v428 = vsel %vm396, %v297, 0.0
      %v429 = vsel %vm397, %v298, 0.0
      %v430 = vsel %vm398, %v299, 0.0
      %v431 = vsel %vm399, %v300, 0.0
      %v432 = vsel %vm400, %v301, 0.0
      %v433 = vsel %vm401, %v302, 0.0
      %v434 = vsel %vm402, %v303, 0.0
      %v435 = vsel %vm403, %v304, 0.0
      %v436 = vsel %vm404, %v305, 0.0
      %v437 = vsel %vm405, %v306, 0.0
      %v438 = vsel %vm406, %v307, 0.0
      %v439 = vsel %vm407, %v308, 0.0
      %v440 = vsel %vm408, %v309, 0.0
      %v441 = vsel %vm409, %v310, 0.0
      %v442 = vsel %vm410, %v311, 0.0
      %v443 = vsel %vm411, %v312, 0.0
      %v444 = vsel %vm412, %v313, 0.0
      %v445 = vsel %vm413, %v314, 0.0
      %v446 = vsel %vm414, %v315, 0.0
      %v447 = vsel %vm415, %v316, 0.0
      %v448 = vsel %vm416, %v317, 0.0
      %v449 = vsel %vm417, %v318, 0.0
      %v450 = vsel %vm418, %v319, 0.0
      %v451 = vsel %vm419, %v320, 0.0
      %452 = vst [vmem:[%s199] sm:$0xff] %v420
      %453 = vst [vmem:[%s199 + $0x8] sm:$0xff] %v421
      %454 = vst [vmem:[%s199 + $0x10] sm:$0xff] %v422
      %455 = vst [vmem:[%s199 + $0x18] sm:$0xff] %v423
      %456 = vst [vmem:[%s199 + $0x20] sm:$0xff] %v424
      %457 = vst [vmem:[%s199 + $0x28] sm:$0xff] %v425
      %458 = vst [vmem:[%s199 + $0x30] sm:$0xff] %v426
      %459 = vst [vmem:[%s199 + $0x38] sm:$0xff] %v427
      %460 = vst [vmem:[%s199 + $0x40] sm:$0xff] %v428
      %461 = vst [vmem:[%s199 + $0x48] sm:$0xff] %v429
      %462 = vst [vmem:[%s199 + $0x50] sm:$0xff] %v430
      %463 = vst [vmem:[%s199 + $0x58] sm:$0xff] %v431
      %464 = vst [vmem:[%s199 + $0x60] sm:$0xff] %v432
      %465 = vst [vmem:[%s199 + $0x68] sm:$0xff] %v433
      %466 = vst [vmem:[%s199 + $0x70] sm:$0xff] %v434
      %467 = vst [vmem:[%s199 + $0x78] sm:$0xff] %v435
      %468 = vst [vmem:[%s199 + $0x80] sm:$0xff] %v436
      %469 = vst [vmem:[%s199 + $0x88] sm:$0xff] %v437
      %470 = vst [vmem:[%s199 + $0x90] sm:$0xff] %v438
      %471 = vst [vmem:[%s199 + $0x98] sm:$0xff] %v439
      %472 = vst [vmem:[%s199 + $0xa0] sm:$0xff] %v440
      %473 = vst [vmem:[%s199 + $0xa8] sm:$0xff] %v441
      %474 = vst [vmem:[%s199 + $0xb0] sm:$0xff] %v442
      %475 = vst [vmem:[%s199 + $0xb8] sm:$0xff] %v443
      %476 = vst [vmem:[%s199 + $0xc0] sm:$0xff] %v444
      %477 = vst [vmem:[%s199 + $0xc8] sm:$0xff] %v445
      %478 = vst [vmem:[%s199 + $0xd0] sm:$0xff] %v446
      %479 = vst [vmem:[%s199 + $0xd8] sm:$0xff] %v447
      %480 = vst [vmem:[%s199 + $0xe0] sm:$0xff] %v448
      %481 = vst [vmem:[%s199 + $0xe8] sm:$0xff] %v449
      %482 = vst [vmem:[%s199 + $0xf0] sm:$0xff] %v450
      %483 = vst [vmem:[%s199 + $0xf8] sm:$0xff] %v451
      %s484 = smul.u32 32, %s15
      %p485 = scmp.lt.s32.totalorder %s484, 63
      %s486 = scalar_select %p485, %s484, 63
      %s487 = smul.addr %s486, 8
      %s488 = scalar_lea.vmem %s4, %s487
      // Predicated region
      $region37: #{bottleneck_forward.13} parent=35 // pred_check
        %p489 = pneg %p122
      $region38: #{bottleneck_forward.13} parent=35 // pred_check_branch
        %491 = sbr.rel (%p489) target = $region40
      $region39: #{bottleneck_forward.13} parent=35 // pred_region
        %s492 = smul.u32 32, %s15
      $region40: #{bottleneck_forward.13} parent=35 // pred_fallthru
        _
    $region36: #{bottleneck_forward.13} parent=5 // pred_fallthru
      _
    %p493 = scmp.le.s32.totalorder 2, %s10
    // Predicated region
    $region41: #{bottleneck_forward.13} parent=5 // pred_check
      %p494 = pneg %p493
    $region42: #{bottleneck_forward.13} parent=5 // pred_check_branch
      %496 = sbr.rel (%p494) target = $region44
    $region43: #{bottleneck_forward.13} parent=5 // pred_region
      %s497 = ssub.s32 %s10, 2
      // Predicated region
      $region45: #{bottleneck_forward.13} parent=43 // pred_check
        %p498 = pneg %p128
      $region46: #{bottleneck_forward.13} parent=43 // pred_check_branch
        %500 = sbr.rel (%p498) target = $region48
      $region47: #{bottleneck_forward.13} parent=43 // pred_region
        %s501 = smul.u32 32, %s16
        %p502 = scmp.lt.s32.totalorder %s501, 63
        %s503 = scalar_select %p502, %s501, 63
        %s504 = smul.addr %s503, 8
        %s505 = scalar_lea.vmem %s4, %s504
      $region48: #{bottleneck_forward.13} parent=43 // pred_fallthru
        _
    $region44: #{bottleneck_forward.13} parent=5 // pred_fallthru
      _
  $region6: #{bottleneck_forward.13} parent=0 // loop_footer
    %s14 = sadd.s32 1, %s10
  $region7: #{bottleneck_forward.13} parent=0 // loop_footer_branch
    %9 = sbr.rel target = $region3
  $region8: #{bottleneck_forward.13} parent=0 // loop_exit
    _

// kernel: bottleneck_forward.8
$region0: #{bottleneck_forward.8}
  #allocation0 [shape = 'u32[]', space=smem, size = 0x4, offset = 0x4, fixed_abs, tag = 'smem constant byte address 0x4 - core index']
  #allocation1 [shape = 'u32[144,128]{1,0:T(1,128)}', space=vmem, size = 0x12000, scoped, tag = 'internal scratch']
  %s0 = inlined_call_operand.vmem [shape: bf16[512,128], index: 0, kind: input, shape index: {}]
  %s1 = inlined_call_operand.vmem [shape: bf16[128,128], index: 1, kind: input, shape index: {}]
  %s2 = inlined_call_operand.vmem [shape: f32[512,128], index: 2, kind: output, shape index: {0}]
  %s3 = inlined_call_operand.vmem [shape: f32[2,128], index: 3, kind: output, shape index: {1}]
  %4 = xla_tuple %s2, %s3
  %s5 = sld [smem:[#allocation0]]
  $region53: #{bottleneck_forward.8} parent=0
    _
  %s7 = ssub.s32 1, %s5
  %s8 = scalar_select 0, %s7, %s5
  loop: start=0, step=1, limit=4
  $region2: #{bottleneck_forward.8} parent=0 // loop_pre_header
    _
  $region3: #{bottleneck_forward.8} parent=0 // loop_header
    %s10 = sphi 0, %s14
    %p11 = scmp.ge.s32.totalorder %s10, 4
    %s20 = sphi 0, %s22
    %s23 = sphi 0, %s20
    %s24 = sphi 0, %s23
    %s40 = sphi 0, %s24
    %s44 = sphi 0, %s44
    %s46 = sphi 0, %s44
    %s47 = sphi 0, %s46
    %s61 = sphi 0, %s47
    %s67 = sphi 0, %s69
    %s70 = sphi 0, %s67
    %s71 = sphi 0, %s70
    %s87 = sphi 0, %s71
    %s91 = sphi 0, %s91
    %s93 = sphi 0, %s91
    %s94 = sphi 0, %s93
    %s108 = sphi 0, %s94
  $region4: #{bottleneck_forward.8} parent=0 // loop_header_branch
    %13 = sbr.rel (%p11) target = $region8
  $region5: #{bottleneck_forward.8} parent=0 // loop_body
    %s15 = ssub.s32 %s10, 1
    %s16 = ssub.s32 %s10, 2
    %s17 = sadd.s32 %s10, 1
    %s18 = ssub.s32 %s10, %s17
    %p19 = scmp.eq.s32.totalorder %s18, 0
    %s21 = sadd.s32 %s20, 1
    %s22 = scalar_select %p19, %s20, %s21
    %p25 = pneg %p19
    %p26 = scmp.eq.s32.totalorder %s10, 1
    %p27 = por %p25, %p26
    %p28 = scmp.ne.s32.totalorder %s20, %s23
    %p29 = scmp.eq.s32.totalorder %s10, 0
    %p30 = por %p28, %p29
    %p31 = scmp.ne.s32.totalorder %s20, %s23
    %p32 = scmp.eq.s32.totalorder %s15, 1
    %p33 = por %p31, %p32
    %p34 = scmp.ne.s32.totalorder %s23, %s24
    %p35 = scmp.eq.s32.totalorder %s15, 0
    %p36 = por %p34, %p35
    %p37 = scmp.ne.s32.totalorder %s23, %s24
    %p38 = scmp.eq.s32.totalorder %s16, 1
    %p39 = por %p37, %p38
    %p41 = scmp.ne.s32.totalorder %s24, %s40
    %p42 = scmp.eq.s32.totalorder %s16, 0
    %p43 = por %p41, %p42
    %s45 = sadd.s32 %s44, 1
    %p48 = scmp.eq.s32.totalorder %s10, 1
    %p49 = scmp.ne.s32.totalorder %s44, %s46
    %p50 = scmp.eq.s32.totalorder %s10, 0
    %p51 = por %p49, %p50
    %p52 = scmp.ne.s32.totalorder %s44, %s46
    %p53 = scmp.eq.s32.totalorder %s15, 1
    %p54 = por %p52, %p53
    %p55 = scmp.ne.s32.totalorder %s46, %s47
    %p56 = scmp.eq.s32.totalorder %s15, 0
    %p57 = por %p55, %p56
    %p58 = scmp.ne.s32.totalorder %s46, %s47
    %p59 = scmp.eq.s32.totalorder %s16, 1
    %p60 = por %p58, %p59
    %p62 = scmp.ne.s32.totalorder %s47, %s61
    %p63 = scmp.eq.s32.totalorder %s16, 0
    %p64 = por %p62, %p63
    %s65 = ssub.s32 %s10, %s17
    %p66 = scmp.eq.s32.totalorder %s65, 0
    %s68 = sadd.s32 %s67, 1
    %s69 = scalar_select %p66, %s67, %s68
    %p72 = pneg %p66
    %p73 = scmp.eq.s32.totalorder %s10, 1
    %p74 = por %p72, %p73
    %p75 = scmp.ne.s32.totalorder %s67, %s70
    %p76 = scmp.eq.s32.totalorder %s10, 0
    %p77 = por %p75, %p76
    %p78 = scmp.ne.s32.totalorder %s67, %s70
    %p79 = scmp.eq.s32.totalorder %s15, 1
    %p80 = por %p78, %p79
    %p81 = scmp.ne.s32.totalorder %s70, %s71
    %p82 = scmp.eq.s32.totalorder %s15, 0
    %p83 = por %p81, %p82
    %p84 = scmp.ne.s32.totalorder %s70, %s71
    %p85 = scmp.eq.s32.totalorder %s16, 1
    %p86 = por %p84, %p85
    %p88 = scmp.ne.s32.totalorder %s71, %s87
    %p89 = scmp.eq.s32.totalorder %s16, 0
    %p90 = por %p88, %p89
    %s92 = sadd.s32 %s91, 1
    %p95 = scmp.eq.s32.totalorder %s10, 1
    %p96 = scmp.ne.s32.totalorder %s91, %s93
    %p97 = scmp.eq.s32.totalorder %s10, 0
    %p98 = por %p96, %p97
    %p99 = scmp.ne.s32.totalorder %s91, %s93
    %p100 = scmp.eq.s32.totalorder %s15, 1
    %p101 = por %p99, %p100
    %p102 = scmp.ne.s32.totalorder %s93, %s94
    %p103 = scmp.eq.s32.totalorder %s15, 0
    %p104 = por %p102, %p103
    %p105 = scmp.ne.s32.totalorder %s93, %s94
    %p106 = scmp.eq.s32.totalorder %s16, 1
    %p107 = por %p105, %p106
    %p109 = scmp.ne.s32.totalorder %s94, %s108
    %p110 = scmp.eq.s32.totalorder %s16, 0
    %p111 = por %p109, %p110
    %p112 = scmp.le.s32.totalorder 1, %s10
    %p113 = scmp.lt.s32.totalorder %s10, 3
    %p114 = pnand %p112, %p113
    %p115 = pneg %p114
    // Predicated region
    $region9: #{bottleneck_forward.8} parent=5 // pred_check
      _
    $region10: #{bottleneck_forward.8} parent=5 // pred_check_branch
      %117 = sbr.rel (%p114) target = $region12
    $region11: #{bottleneck_forward.8} parent=5 // pred_region
      %s118 = ssub.s32 %s10, 1
      // Predicated region
      $region13: #{bottleneck_forward.8} parent=11 // pred_check
        %p119 = pneg %p57
      $region14: #{bottleneck_forward.8} parent=11 // pred_check_branch
        %121 = sbr.rel (%p119) target = $region16
      $region15: #{bottleneck_forward.8} parent=11 // pred_region
        _
      $region16: #{bottleneck_forward.8} parent=11 // pred_fallthru
        _
    $region12: #{bottleneck_forward.8} parent=5 // pred_fallthru
      _
    %p122 = scmp.lt.s32.totalorder %s10, 2
    // Predicated region
    $region17: #{bottleneck_forward.8} parent=5 // pred_check
      %p123 = pneg %p122
    $region18: #{bottleneck_forward.8} parent=5 // pred_check_branch
      %125 = sbr.rel (%p123) target = $region20
    $region19: #{bottleneck_forward.8} parent=5 // pred_region
      // Predicated region
      $region21: #{bottleneck_forward.8} parent=19 // pred_check
        %p126 = pneg %p30
      $region22: #{bottleneck_forward.8} parent=19 // pred_check_branch
        %128 = sbr.rel (%p126) target = $region24
      $region23: #{bottleneck_forward.8} parent=19 // pred_region
        %s129 = smul.u32 32, %s10
        %p130 = scmp.lt.s32.totalorder %s129, 63
        %s131 = scalar_select %p130, %s129, 63
        %s132 = smul.addr %s131, 4
        %s133 = scalar_lea.vmem %s0, %s132
        %s134 = smul.u32 32, %s10
      $region24: #{bottleneck_forward.8} parent=19 // pred_fallthru
        _
    $region20: #{bottleneck_forward.8} parent=5 // pred_fallthru
      _
    %p135 = scmp.le.s32.totalorder 1, %s10
    %p136 = scmp.lt.s32.totalorder %s10, 3
    %p137 = pnand %p135, %p136
    %p138 = pneg %p137
    // Predicated region
    $region25: #{bottleneck_forward.8} parent=5 // pred_check
      _
    $region26: #{bottleneck_forward.8} parent=5 // pred_check_branch
      %140 = sbr.rel (%p137) target = $region28
    $region27: #{bottleneck_forward.8} parent=5 // pred_region
      %s141 = ssub.s32 %s10, 1
      %s142 = smul.u32 32, %s15
      %p143 = scmp.lt.s32.totalorder %s142, 63
      %s144 = scalar_select %p143, %s142, 63
      %s145 = smul.addr %s144, 4
      %s146 = scalar_lea.vmem %s0, %s145
      %p147 = pneg %p36
      %p148 = pneg %p33
      %p149 = pneg %p57
      %p150 = pneg %p54
      %p151 = pneg %p83
      %p152 = pneg %p80
      %s153 = smul.u32 32, %s15
      %p154 = scmp.lt.s32.totalorder %s153, 63
      %s155 = scalar_select %p154, %s153, 63
      %s156 = smul.addr %s155, 8
      %s157 = scalar_lea.vmem %s2, %s156
      %p158 = pneg %p104
      %p159 = pneg %p101
      %s160 = smul.u32 32, %s15
      %p161 = scmp.lt.s32.totalorder %s160, 63
      %s162 = scalar_select %p161, %s160, 63
      %s163 = smul.addr %s162, 4
      %s164 = scalar_lea.vmem %s0, %s163
      %s165 = smul.u32 32, %s15
      %s166 = smul.u32 32, %s15
      %p167 = scmp.lt.s32.totalorder %s166, 63
      %s168 = scalar_select %p167, %s166, 63
      %s169 = smul.addr %s168, 8
      %s170 = scalar_lea.vmem %s2, %s169
      %s171 = smul.u32 32, %s15
      %v173 = vld [vmem:[%s164] sm:$0xf]
      %v174 = vld [vmem:[%s164 + $0x4] sm:$0xf]
      %v175 = vld [vmem:[%s164 + $0x8] sm:$0xf]
      %v176 = vld [vmem:[%s164 + $0xc] sm:$0xf]
      %v177 = vld [vmem:[%s164 + $0x10] sm:$0xf]
      %v178 = vld [vmem:[%s164 + $0x14] sm:$0xf]
      %v179 = vld [vmem:[%s164 + $0x18] sm:$0xf]
      %v180 = vld [vmem:[%s164 + $0x1c] sm:$0xf]
      %v181 = vld [vmem:[%s164 + $0x20] sm:$0xf]
      %v182 = vld [vmem:[%s164 + $0x24] sm:$0xf]
      %v183 = vld [vmem:[%s164 + $0x28] sm:$0xf]
      %v184 = vld [vmem:[%s164 + $0x2c] sm:$0xf]
      %v185 = vld [vmem:[%s164 + $0x30] sm:$0xf]
      %v186 = vld [vmem:[%s164 + $0x34] sm:$0xf]
      %v187 = vld [vmem:[%s164 + $0x38] sm:$0xf]
      %v188 = vld [vmem:[%s164 + $0x3c] sm:$0xf]
      %v189 = vld [vmem:[%s164 + $0x40] sm:$0xf]
      %v190 = vld [vmem:[%s164 + $0x44] sm:$0xf]
      %v191 = vld [vmem:[%s164 + $0x48] sm:$0xf]
      %v192 = vld [vmem:[%s164 + $0x4c] sm:$0xf]
      %v193 = vld [vmem:[%s164 + $0x50] sm:$0xf]
      %v194 = vld [vmem:[%s164 + $0x54] sm:$0xf]
      %v195 = vld [vmem:[%s164 + $0x58] sm:$0xf]
      %v196 = vld [vmem:[%s164 + $0x5c] sm:$0xf]
      %v197 = vld [vmem:[%s164 + $0x60] sm:$0xf]
      %v198 = vld [vmem:[%s164 + $0x64] sm:$0xf]
      %v199 = vld [vmem:[%s164 + $0x68] sm:$0xf]
      %v200 = vld [vmem:[%s164 + $0x6c] sm:$0xf]
      %v201 = vld [vmem:[%s164 + $0x70] sm:$0xf]
      %v202 = vld [vmem:[%s164 + $0x74] sm:$0xf]
      %v203 = vld [vmem:[%s164 + $0x78] sm:$0xf]
      %v204 = vld [vmem:[%s164 + $0x7c] sm:$0xf]
      %v205 = vld [vmem:[%s1] sm:$0xf]
      %v206 = vld [vmem:[%s1 + $0x4] sm:$0xf]
      %v207 = vld [vmem:[%s1 + $0x8] sm:$0xf]
      %v208 = vld [vmem:[%s1 + $0xc] sm:$0xf]
      %v209 = vld [vmem:[%s1 + $0x10] sm:$0xf]
      %v210 = vld [vmem:[%s1 + $0x14] sm:$0xf]
      %v211 = vld [vmem:[%s1 + $0x18] sm:$0xf]
      %v212 = vld [vmem:[%s1 + $0x1c] sm:$0xf]
      %v213 = vld [vmem:[%s1 + $0x20] sm:$0xf]
      %v214 = vld [vmem:[%s1 + $0x24] sm:$0xf]
      %v215 = vld [vmem:[%s1 + $0x28] sm:$0xf]
      %v216 = vld [vmem:[%s1 + $0x2c] sm:$0xf]
      %v217 = vld [vmem:[%s1 + $0x30] sm:$0xf]
      %v218 = vld [vmem:[%s1 + $0x34] sm:$0xf]
      %v219 = vld [vmem:[%s1 + $0x38] sm:$0xf]
      %v220 = vld [vmem:[%s1 + $0x3c] sm:$0xf]
      %v253 = vunpack.c.l.b16 %v173
      %v254 = vunpack.c.l.b16 %v174
      %v255 = vunpack.c.l.b16 %v175
      %v256 = vunpack.c.l.b16 %v176
      %v257 = vunpack.c.l.b16 %v177
      %v258 = vunpack.c.l.b16 %v178
      %v259 = vunpack.c.l.b16 %v179
      %v260 = vunpack.c.l.b16 %v180
      %v261 = vunpack.c.l.b16 %v181
      %v262 = vunpack.c.l.b16 %v182
      %v263 = vunpack.c.l.b16 %v183
      %v264 = vunpack.c.l.b16 %v184
      %v265 = vunpack.c.l.b16 %v185
      %v266 = vunpack.c.l.b16 %v186
      %v267 = vunpack.c.l.b16 %v187
      %v268 = vunpack.c.l.b16 %v188
      %v269 = vunpack.c.l.b16 %v189
      %v270 = vunpack.c.l.b16 %v190
      %v271 = vunpack.c.l.b16 %v191
      %v272 = vunpack.c.l.b16 %v192
      %v273 = vunpack.c.l.b16 %v193
      %v274 = vunpack.c.l.b16 %v194
      %v275 = vunpack.c.l.b16 %v195
      %v276 = vunpack.c.l.b16 %v196
      %v277 = vunpack.c.l.b16 %v197
      %v278 = vunpack.c.l.b16 %v198
      %v279 = vunpack.c.l.b16 %v199
      %v280 = vunpack.c.l.b16 %v200
      %v281 = vunpack.c.l.b16 %v201
      %v282 = vunpack.c.l.b16 %v202
      %v283 = vunpack.c.l.b16 %v203
      %v284 = vunpack.c.l.b16 %v204
      %v285 = vpack.c.b16 %v254, %v253
      %v286 = vpack.c.b16 %v256, %v255
      %v287 = vpack.c.b16 %v258, %v257
      %v288 = vpack.c.b16 %v260, %v259
      %v289 = vpack.c.b16 %v262, %v261
      %v290 = vpack.c.b16 %v264, %v263
      %v291 = vpack.c.b16 %v266, %v265
      %v292 = vpack.c.b16 %v268, %v267
      %v293 = vpack.c.b16 %v270, %v269
      %v294 = vpack.c.b16 %v272, %v271
      %v295 = vpack.c.b16 %v274, %v273
      %v296 = vpack.c.b16 %v276, %v275
      %v297 = vpack.c.b16 %v278, %v277
      %v298 = vpack.c.b16 %v280, %v279
      %v299 = vpack.c.b16 %v282, %v281
      %v300 = vpack.c.b16 %v284, %v283
      %v333 = vunpack.c.l.b16 %v205
      %v334 = vunpack.c.l.b16 %v206
      %v335 = vunpack.c.l.b16 %v207
      %v336 = vunpack.c.l.b16 %v208
      %v337 = vunpack.c.l.b16 %v209
      %v338 = vunpack.c.l.b16 %v210
      %v339 = vunpack.c.l.b16 %v211
      %v340 = vunpack.c.l.b16 %v212
      %v341 = vunpack.c.l.b16 %v213
      %v342 = vunpack.c.l.b16 %v214
      %v343 = vunpack.c.l.b16 %v215
      %v344 = vunpack.c.l.b16 %v216
      %v345 = vunpack.c.l.b16 %v217
      %v346 = vunpack.c.l.b16 %v218
      %v347 = vunpack.c.l.b16 %v219
      %v348 = vunpack.c.l.b16 %v220
      %v349 = vpack.c.b16 %v334, %v333
      %v350 = vpack.c.b16 %v336, %v335
      %v351 = vpack.c.b16 %v338, %v337
      %v352 = vpack.c.b16 %v340, %v339
      %v353 = vpack.c.b16 %v342, %v341
      %v354 = vpack.c.b16 %v344, %v343
      %v355 = vpack.c.b16 %v346, %v345
      %v356 = vpack.c.b16 %v348, %v347
      %365 = vmatprep.subr.bf16.mxu0 0
      %366 = vmatpush1.bf16.msra.mxu0 %v349
      %367 = vmatprep.subr.bf16.mxu0 0
      %368 = vmatpush1.bf16.msra.mxu0 %v350
      %369 = vmatprep.subr.bf16.mxu0 0
      %370 = vmatpush1.bf16.msra.mxu0 %v351
      %371 = vmatprep.subr.bf16.mxu0 0
      %372 = vmatpush1.bf16.msra.mxu0 %v352
      %373 = vmatprep.subr.bf16.mxu0 0
      %374 = vmatpush1.bf16.msra.mxu0 %v353
      %375 = vmatprep.subr.bf16.mxu0 0
      %376 = vmatpush1.bf16.msra.mxu0 %v354
      %377 = vmatprep.subr.bf16.mxu0 0
      %378 = vmatpush1.bf16.msra.mxu0 %v355
      %379 = vmatprep.subr.bf16.mxu0 0
      %380 = vmatpush1.bf16.msra.mxu0 %v356
      %381 = vmatprep.subr.bf16.mxu0 0
      %382 = vmatpush1.bf16.msra.mxu0 0
      %383 = vmatprep.subr.bf16.mxu0 0
      %384 = vmatpush1.bf16.msra.mxu0 0
      %385 = vmatprep.subr.bf16.mxu0 0
      %386 = vmatpush1.bf16.msra.mxu0 0
      %387 = vmatprep.subr.bf16.mxu0 0
      %388 = vmatpush1.bf16.msra.mxu0 0
      %389 = vmatprep.subr.bf16.mxu0 0
      %390 = vmatpush1.bf16.msra.mxu0 0
      %391 = vmatprep.subr.bf16.mxu0 0
      %392 = vmatpush1.bf16.msra.mxu0 0
      %393 = vmatprep.subr.bf16.mxu0 0
      %394 = vmatpush1.bf16.msra.mxu0 0
      %395 = vmatprep.subr.bf16.mxu0 0
      %396 = vmatpush1.bf16.msra.mxu0 0
      %397 = vmatprep.mubr.bf16.mxu0 0
      %398 = vmatmul.mubr.bf16.gmra.mrb[0].mxu0 %v285
      %v399 = vpop.f32.mrb[0].mxu0
      %v400 = vadd.f32 0.0, %v399
      %v401 = vpop.f32.mrb[0].mxu0
      %v402 = vpop.f32.mrb[0].mxu0
      %v403 = vadd.f32 0.0, %v402
      %v404 = vpop.f32.mrb[0].mxu0
      %405 = vmatprep.mubr.bf16.mxu0 0
      %406 = vmatmul.mubr.bf16.gmra.mrb[0].mxu0 %v286
      %v407 = vpop.f32.mrb[0].mxu0
      %v408 = vadd.f32 0.0, %v407
      %v409 = vpop.f32.mrb[0].mxu0
      %v410 = vpop.f32.mrb[0].mxu0
      %v411 = vadd.f32 0.0, %v410
      %v412 = vpop.f32.mrb[0].mxu0
      %413 = vmatprep.mubr.bf16.mxu0 0
      %414 = vmatmul.mubr.bf16.gmra.mrb[0].mxu0 %v287
      %v415 = vpop.f32.mrb[0].mxu0
      %v416 = vadd.f32 0.0, %v415
      %v417 = vpop.f32.mrb[0].mxu0
      %v418 = vpop.f32.mrb[0].mxu0
      %v419 = vadd.f32 0.0, %v418
      %v420 = vpop.f32.mrb[0].mxu0
      %421 = vmatprep.mubr.bf16.mxu0 0
      %422 = vmatmul.mubr.bf16.gmra.mrb[0].mxu0 %v288
      %v423 = vpop.f32.mrb[0].mxu0
      %v424 = vadd.f32 0.0, %v423
      %v425 = vpop.f32.mrb[0].mxu0
      %v426 = vpop.f32.mrb[0].mxu0
      %v427 = vadd.f32 0.0, %v426
      %v428 = vpop.f32.mrb[0].mxu0
      %429 = vmatprep.mubr.bf16.mxu0 0
      %430 = vmatmul.mubr.bf16.gmra.mrb[0].mxu0 %v289
      %v431 = vpop.f32.mrb[0].mxu0
      %v432 = vadd.f32 0.0, %v431
      %v433 = vpop.f32.mrb[0].mxu0
      %v434 = vpop.f32.mrb[0].mxu0
      %v435 = vadd.f32 0.0, %v434
      %v436 = vpop.f32.mrb[0].mxu0
      %437 = vmatprep.mubr.bf16.mxu0 0
      %438 = vmatmul.mubr.bf16.gmra.mrb[0].mxu0 %v290
      %v439 = vpop.f32.mrb[0].mxu0
      %v440 = vadd.f32 0.0, %v439
      %v441 = vpop.f32.mrb[0].mxu0
      %v442 = vpop.f32.mrb[0].mxu0
      %v443 = vadd.f32 0.0, %v442
      %v444 = vpop.f32.mrb[0].mxu0
      %445 = vmatprep.mubr.bf16.mxu0 0
      %446 = vmatmul.mubr.bf16.gmra.mrb[0].mxu0 %v291
      %v447 = vpop.f32.mrb[0].mxu0
      %v448 = vadd.f32 0.0, %v447
      %v449 = vpop.f32.mrb[0].mxu0
      %v450 = vpop.f32.mrb[0].mxu0
      %v451 = vadd.f32 0.0, %v450
      %v452 = vpop.f32.mrb[0].mxu0
      %453 = vmatprep.mubr.bf16.mxu0 0
      %454 = vmatmul.mubr.bf16.gmra.mrb[0].mxu0 %v292
      %v455 = vpop.f32.mrb[0].mxu0
      %v456 = vadd.f32 0.0, %v455
      %v457 = vpop.f32.mrb[0].mxu0
      %v458 = vpop.f32.mrb[0].mxu0
      %v459 = vadd.f32 0.0, %v458
      %v460 = vpop.f32.mrb[0].mxu0
      %461 = vmatprep.mubr.bf16.mxu0 0
      %462 = vmatmul.mubr.bf16.gmra.mrb[0].mxu0 %v293
      %v463 = vpop.f32.mrb[0].mxu0
      %v464 = vadd.f32 0.0, %v463
      %v465 = vpop.f32.mrb[0].mxu0
      %v466 = vpop.f32.mrb[0].mxu0
      %v467 = vadd.f32 0.0, %v466
      %v468 = vpop.f32.mrb[0].mxu0
      %469 = vmatprep.mubr.bf16.mxu0 0
      %470 = vmatmul.mubr.bf16.gmra.mrb[0].mxu0 %v294
      %v471 = vpop.f32.mrb[0].mxu0
      %v472 = vadd.f32 0.0, %v471
      %v473 = vpop.f32.mrb[0].mxu0
      %v474 = vpop.f32.mrb[0].mxu0
      %v475 = vadd.f32 0.0, %v474
      %v476 = vpop.f32.mrb[0].mxu0
      %477 = vmatprep.mubr.bf16.mxu0 0
      %478 = vmatmul.mubr.bf16.gmra.mrb[0].mxu0 %v295
      %v479 = vpop.f32.mrb[0].mxu0
      %v480 = vadd.f32 0.0, %v479
      %v481 = vpop.f32.mrb[0].mxu0
      %v482 = vpop.f32.mrb[0].mxu0
      %v483 = vadd.f32 0.0, %v482
      %v484 = vpop.f32.mrb[0].mxu0
      %485 = vmatprep.mubr.bf16.mxu0 0
      %486 = vmatmul.mubr.bf16.gmra.mrb[0].mxu0 %v296
      %v487 = vpop.f32.mrb[0].mxu0
      %v488 = vadd.f32 0.0, %v487
      %v489 = vpop.f32.mrb[0].mxu0
      %v490 = vpop.f32.mrb[0].mxu0
      %v491 = vadd.f32 0.0, %v490
      %v492 = vpop.f32.mrb[0].mxu0
      %493 = vmatprep.mubr.bf16.mxu0 0
      %494 = vmatmul.mubr.bf16.gmra.mrb[0].mxu0 %v297
      %v495 = vpop.f32.mrb[0].mxu0
      %v496 = vadd.f32 0.0, %v495
      %v497 = vpop.f32.mrb[0].mxu0
      %v498 = vpop.f32.mrb[0].mxu0
      %v499 = vadd.f32 0.0, %v498
      %v500 = vpop.f32.mrb[0].mxu0
      %501 = vmatprep.mubr.bf16.mxu0 0
      %502 = vmatmul.mubr.bf16.gmra.mrb[0].mxu0 %v298
      %v503 = vpop.f32.mrb[0].mxu0
      %v504 = vadd.f32 0.0, %v503
      %v505 = vpop.f32.mrb[0].mxu0
      %v506 = vpop.f32.mrb[0].mxu0
      %v507 = vadd.f32 0.0, %v506
      %v508 = vpop.f32.mrb[0].mxu0
      %509 = vmatprep.mubr.bf16.mxu0 0
      %510 = vmatmul.mubr.bf16.gmra.mrb[0].mxu0 %v299
      %v511 = vpop.f32.mrb[0].mxu0
      %v512 = vadd.f32 0.0, %v511
      %v513 = vpop.f32.mrb[0].mxu0
      %v514 = vpop.f32.mrb[0].mxu0
      %v515 = vadd.f32 0.0, %v514
      %v516 = vpop.f32.mrb[0].mxu0
      %517 = vmatprep.mubr.bf16.mxu0 0
      %518 = vmatmul.mubr.bf16.gmra.mrb[0].mxu0 %v300
      %v519 = vpop.f32.mrb[0].mxu0
      %v520 = vadd.f32 0.0, %v519
      %v521 = vpop.f32.mrb[0].mxu0
      %v522 = vpop.f32.mrb[0].mxu0
      %v523 = vadd.f32 0.0, %v522
      %v524 = vpop.f32.mrb[0].mxu0
      %525 = vdwg.mxu0
      %526 = vst [vmem:[%s170] sm:$0xff] %v400
      %527 = vst [vmem:[%s170 + $0x8] sm:$0xff] %v403
      %528 = vst [vmem:[%s170 + $0x10] sm:$0xff] %v408
      %529 = vst [vmem:[%s170 + $0x18] sm:$0xff] %v411
      %530 = vst [vmem:[%s170 + $0x20] sm:$0xff] %v416
      %531 = vst [vmem:[%s170 + $0x28] sm:$0xff] %v419
      %532 = vst [vmem:[%s170 + $0x30] sm:$0xff] %v424
      %533 = vst [vmem:[%s170 + $0x38] sm:$0xff] %v427
      %534 = vst [vmem:[%s170 + $0x40] sm:$0xff] %v432
      %535 = vst [vmem:[%s170 + $0x48] sm:$0xff] %v435
      %536 = vst [vmem:[%s170 + $0x50] sm:$0xff] %v440
      %537 = vst [vmem:[%s170 + $0x58] sm:$0xff] %v443
      %538 = vst [vmem:[%s170 + $0x60] sm:$0xff] %v448
      %539 = vst [vmem:[%s170 + $0x68] sm:$0xff] %v451
      %540 = vst [vmem:[%s170 + $0x70] sm:$0xff] %v456
      %541 = vst [vmem:[%s170 + $0x78] sm:$0xff] %v459
      %542 = vst [vmem:[%s170 + $0x80] sm:$0xff] %v464
      %543 = vst [vmem:[%s170 + $0x88] sm:$0xff] %v467
      %544 = vst [vmem:[%s170 + $0x90] sm:$0xff] %v472
      %545 = vst [vmem:[%s170 + $0x98] sm:$0xff] %v475
      %546 = vst [vmem:[%s170 + $0xa0] sm:$0xff] %v480
      %547 = vst [vmem:[%s170 + $0xa8] sm:$0xff] %v483
      %548 = vst [vmem:[%s170 + $0xb0] sm:$0xff] %v488
      %549 = vst [vmem:[%s170 + $0xb8] sm:$0xff] %v491
      %550 = vst [vmem:[%s170 + $0xc0] sm:$0xff] %v496
      %551 = vst [vmem:[%s170 + $0xc8] sm:$0xff] %v499
      %552 = vst [vmem:[%s170 + $0xd0] sm:$0xff] %v504
      %553 = vst [vmem:[%s170 + $0xd8] sm:$0xff] %v507
      %554 = vst [vmem:[%s170 + $0xe0] sm:$0xff] %v512
      %555 = vst [vmem:[%s170 + $0xe8] sm:$0xff] %v515
      %556 = vst [vmem:[%s170 + $0xf0] sm:$0xff] %v520
      %557 = vst [vmem:[%s170 + $0xf8] sm:$0xff] %v523
      %p558 = scmp.eq.s32.totalorder %s15, 0
      // Predicated region
      $region29: #{bottleneck_forward.8} parent=27 // pred_check
        %p559 = pneg %p558
      $region30: #{bottleneck_forward.8} parent=27 // pred_check_branch
        %561 = sbr.rel (%p559) target = $region32
      $region31: #{bottleneck_forward.8} parent=27 // pred_region
        %562 = vst [vmem:[%s3] sm:$0x3] 0.0
      $region32: #{bottleneck_forward.8} parent=27 // pred_fallthru
        _
      %v563 = vld [vmem:[%s3] sm:$0x1]
      %v564 = vadd.f32 %v400, %v403
      %v565 = vadd.f32 %v564, %v408
      %v566 = vadd.f32 %v565, %v411
      %v567 = vadd.f32 %v566, %v416
      %v568 = vadd.f32 %v567, %v419
      %v569 = vadd.f32 %v568, %v424
      %v570 = vadd.f32 %v569, %v427
      %v571 = vadd.f32 %v570, %v432
      %v572 = vadd.f32 %v571, %v435
      %v573 = vadd.f32 %v572, %v440
      %v574 = vadd.f32 %v573, %v443
      %v575 = vadd.f32 %v574, %v448
      %v576 = vadd.f32 %v575, %v451
      %v577 = vadd.f32 %v576, %v456
      %v578 = vadd.f32 %v577, %v459
      %v579 = vadd.f32 %v578, %v464
      %v580 = vadd.f32 %v579, %v467
      %v581 = vadd.f32 %v580, %v472
      %v582 = vadd.f32 %v581, %v475
      %v583 = vadd.f32 %v582, %v480
      %v584 = vadd.f32 %v583, %v483
      %v585 = vadd.f32 %v584, %v488
      %v586 = vadd.f32 %v585, %v491
      %v587 = vadd.f32 %v586, %v496
      %v588 = vadd.f32 %v587, %v499
      %v589 = vadd.f32 %v588, %v504
      %v590 = vadd.f32 %v589, %v507
      %v591 = vadd.f32 %v590, %v512
      %v592 = vadd.f32 %v591, %v515
      %v593 = vadd.f32 %v592, %v520
      %v594 = vadd.f32 %v593, %v523
      %v595 = vrot.slane %v594, 4
      %v596 = vadd.f32 %v594, %v595
      %v597 = vrot.slane %v596, 2
      %v598 = vadd.f32 %v596, %v597
      %v599 = vrot.slane %v598, 1
      %v600 = vadd.f32 %v598, %v599
      %v601 = vadd.f32 %v563, %v600
      %602 = vst [vmem:[%s3] sm:$0x1] %v601
      %v603 = vld [vmem:[%s3 + $0x1] sm:$0x1]
      %v604 = vmul.f32 %v400, %v400
      %v605 = vmul.f32 %v403, %v403
      %v606 = vmul.f32 %v408, %v408
      %v607 = vmul.f32 %v411, %v411
      %v608 = vmul.f32 %v416, %v416
      %v609 = vmul.f32 %v419, %v419
      %v610 = vmul.f32 %v424, %v424
      %v611 = vmul.f32 %v427, %v427
      %v612 = vmul.f32 %v432, %v432
      %v613 = vmul.f32 %v435, %v435
      %v614 = vmul.f32 %v440, %v440
      %v615 = vmul.f32 %v443, %v443
      %v616 = vmul.f32 %v448, %v448
      %v617 = vmul.f32 %v451, %v451
      %v618 = vmul.f32 %v456, %v456
      %v619 = vmul.f32 %v459, %v459
      %v620 = vmul.f32 %v464, %v464
      %v621 = vmul.f32 %v467, %v467
      %v622 = vmul.f32 %v472, %v472
      %v623 = vmul.f32 %v475, %v475
      %v624 = vmul.f32 %v480, %v480
      %v625 = vmul.f32 %v483, %v483
      %v626 = vmul.f32 %v488, %v488
      %v627 = vmul.f32 %v491, %v491
      %v628 = vmul.f32 %v496, %v496
      %v629 = vmul.f32 %v499, %v499
      %v630 = vmul.f32 %v504, %v504
      %v631 = vmul.f32 %v507, %v507
      %v632 = vmul.f32 %v512, %v512
      %v633 = vmul.f32 %v515, %v515
      %v634 = vmul.f32 %v520, %v520
      %v635 = vmul.f32 %v523, %v523
      %v636 = vadd.f32 %v604, %v605
      %v637 = vadd.f32 %v636, %v606
      %v638 = vadd.f32 %v637, %v607
      %v639 = vadd.f32 %v638, %v608
      %v640 = vadd.f32 %v639, %v609
      %v641 = vadd.f32 %v640, %v610
      %v642 = vadd.f32 %v641, %v611
      %v643 = vadd.f32 %v642, %v612
      %v644 = vadd.f32 %v643, %v613
      %v645 = vadd.f32 %v644, %v614
      %v646 = vadd.f32 %v645, %v615
      %v647 = vadd.f32 %v646, %v616
      %v648 = vadd.f32 %v647, %v617
      %v649 = vadd.f32 %v648, %v618
      %v650 = vadd.f32 %v649, %v619
      %v651 = vadd.f32 %v650, %v620
      %v652 = vadd.f32 %v651, %v621
      %v653 = vadd.f32 %v652, %v622
      %v654 = vadd.f32 %v653, %v623
      %v655 = vadd.f32 %v654, %v624
      %v656 = vadd.f32 %v655, %v625
      %v657 = vadd.f32 %v656, %v626
      %v658 = vadd.f32 %v657, %v627
      %v659 = vadd.f32 %v658, %v628
      %v660 = vadd.f32 %v659, %v629
      %v661 = vadd.f32 %v660, %v630
      %v662 = vadd.f32 %v661, %v631
      %v663 = vadd.f32 %v662, %v632
      %v664 = vadd.f32 %v663, %v633
      %v665 = vadd.f32 %v664, %v634
      %v666 = vadd.f32 %v665, %v635
      %v667 = vrot.slane %v666, 4
      %v668 = vadd.f32 %v666, %v667
      %v669 = vrot.slane %v668, 2
      %v670 = vadd.f32 %v668, %v669
      %v671 = vrot.slane %v670, 1
      %v672 = vadd.f32 %v670, %v671
      %v673 = vadd.f32 %v603, %v672
      %674 = vst [vmem:[%s3 + $0x1] sm:$0x1] %v673
      %s675 = smul.u32 32, %s15
      %p676 = scmp.lt.s32.totalorder %s675, 63
      %s677 = scalar_select %p676, %s675, 63
      %s678 = smul.addr %s677, 8
      %s679 = scalar_lea.vmem %s2, %s678
      // Predicated region
      $region33: #{bottleneck_forward.8} parent=27 // pred_check
        %p680 = pneg %p80
      $region34: #{bottleneck_forward.8} parent=27 // pred_check_branch
        %682 = sbr.rel (%p680) target = $region36
      $region35: #{bottleneck_forward.8} parent=27 // pred_region
        %s683 = smul.u32 32, %s15
      $region36: #{bottleneck_forward.8} parent=27 // pred_fallthru
        _
      // Predicated region
      $region37: #{bottleneck_forward.8} parent=27 // pred_check
        %p684 = pneg %p101
      $region38: #{bottleneck_forward.8} parent=27 // pred_check_branch
        %686 = sbr.rel (%p684) target = $region40
      $region39: #{bottleneck_forward.8} parent=27 // pred_region
        _
      $region40: #{bottleneck_forward.8} parent=27 // pred_fallthru
        _
      // Predicated region
      $region41: #{bottleneck_forward.8} parent=27 // pred_check
        %p687 = pneg %p101
      $region42: #{bottleneck_forward.8} parent=27 // pred_check_branch
        %689 = sbr.rel (%p687) target = $region44
      $region43: #{bottleneck_forward.8} parent=27 // pred_region
        _
      $region44: #{bottleneck_forward.8} parent=27 // pred_fallthru
        _
    $region28: #{bottleneck_forward.8} parent=5 // pred_fallthru
      _
    %p690 = scmp.le.s32.totalorder 2, %s10
    // Predicated region
    $region45: #{bottleneck_forward.8} parent=5 // pred_check
      %p691 = pneg %p690
    $region46: #{bottleneck_forward.8} parent=5 // pred_check_branch
      %693 = sbr.rel (%p691) target = $region48
    $region47: #{bottleneck_forward.8} parent=5 // pred_region
      %s694 = ssub.s32 %s10, 2
      // Predicated region
      $region49: #{bottleneck_forward.8} parent=47 // pred_check
        %p695 = pneg %p86
      $region50: #{bottleneck_forward.8} parent=47 // pred_check_branch
        %697 = sbr.rel (%p695) target = $region52
      $region51: #{bottleneck_forward.8} parent=47 // pred_region
        %s698 = smul.u32 32, %s16
        %p699 = scmp.lt.s32.totalorder %s698, 63
        %s700 = scalar_select %p699, %s698, 63
        %s701 = smul.addr %s700, 8
        %s702 = scalar_lea.vmem %s2, %s701
      $region52: #{bottleneck_forward.8} parent=47 // pred_fallthru
        _
    $region48: #{bottleneck_forward.8} parent=5 // pred_fallthru
      _
  $region6: #{bottleneck_forward.8} parent=0 // loop_footer
    %s14 = sadd.s32 1, %s10
  $region7: #{bottleneck_forward.8} parent=0 // loop_footer_branch
    %9 = sbr.rel target = $region3
  $region8: #{bottleneck_forward.8} parent=0 // loop_exit
    _

// kernel: bottleneck_forward.15
$region0: #{bottleneck_forward.15}
  #allocation0 [shape = 'u32[]', space=smem, size = 0x4, offset = 0x4, fixed_abs, tag = 'smem constant byte address 0x4 - core index']
  #allocation1 [shape = 'u32[144,128]{1,0:T(1,128)}', space=vmem, size = 0x12000, scoped, tag = 'internal scratch']
  %s0 = inlined_call_operand.vmem [shape: f32[512,128], index: 0, kind: input, shape index: {}]
  %s1 = inlined_call_operand.vmem [shape: f32[2,128], index: 1, kind: input, shape index: {}]
  %s2 = inlined_call_operand.vmem [shape: f32[1,128], index: 2, kind: input, shape index: {}]
  %s3 = inlined_call_operand.vmem [shape: f32[1,128], index: 3, kind: input, shape index: {}]
  %s4 = inlined_call_operand.vmem [shape: f32[512,128], index: 4, kind: input, shape index: {}]
  %s5 = inlined_call_operand.vmem [shape: f32[512,128], index: 5, kind: output, shape index: {}]
  %s6 = sld [smem:[#allocation0]]
  $region53: #{bottleneck_forward.15} parent=0
    _
  %s8 = ssub.s32 1, %s6
  %s9 = scalar_select 0, %s8, %s6
  loop: start=0, step=1, limit=4
  $region2: #{bottleneck_forward.15} parent=0 // loop_pre_header
    _
  $region3: #{bottleneck_forward.15} parent=0 // loop_header
    %s11 = sphi 0, %s15
    %p12 = scmp.ge.s32.totalorder %s11, 4
    %s21 = sphi 0, %s23
    %s24 = sphi 0, %s21
    %s25 = sphi 0, %s24
    %s41 = sphi 0, %s25
    %s45 = sphi 0, %s45
    %s47 = sphi 0, %s45
    %s48 = sphi 0, %s47
    %s62 = sphi 0, %s48
    %s66 = sphi 0, %s66
    %s68 = sphi 0, %s66
    %s69 = sphi 0, %s68
    %s83 = sphi 0, %s69
    %s87 = sphi 0, %s87
    %s89 = sphi 0, %s87
    %s90 = sphi 0, %s89
    %s104 = sphi 0, %s90
    %s110 = sphi 0, %s112
    %s113 = sphi 0, %s110
    %s114 = sphi 0, %s113
    %s130 = sphi 0, %s114
    %s136 = sphi 0, %s138
    %s139 = sphi 0, %s136
    %s140 = sphi 0, %s139
    %s156 = sphi 0, %s140
  $region4: #{bottleneck_forward.15} parent=0 // loop_header_branch
    %14 = sbr.rel (%p12) target = $region8
  $region5: #{bottleneck_forward.15} parent=0 // loop_body
    %s16 = ssub.s32 %s11, 1
    %s17 = ssub.s32 %s11, 2
    %s18 = sadd.s32 %s11, 1
    %s19 = ssub.s32 %s11, %s18
    %p20 = scmp.eq.s32.totalorder %s19, 0
    %s22 = sadd.s32 %s21, 1
    %s23 = scalar_select %p20, %s21, %s22
    %p26 = pneg %p20
    %p27 = scmp.eq.s32.totalorder %s11, 1
    %p28 = por %p26, %p27
    %p29 = scmp.ne.s32.totalorder %s21, %s24
    %p30 = scmp.eq.s32.totalorder %s11, 0
    %p31 = por %p29, %p30
    %p32 = scmp.ne.s32.totalorder %s21, %s24
    %p33 = scmp.eq.s32.totalorder %s16, 1
    %p34 = por %p32, %p33
    %p35 = scmp.ne.s32.totalorder %s24, %s25
    %p36 = scmp.eq.s32.totalorder %s16, 0
    %p37 = por %p35, %p36
    %p38 = scmp.ne.s32.totalorder %s24, %s25
    %p39 = scmp.eq.s32.totalorder %s17, 1
    %p40 = por %p38, %p39
    %p42 = scmp.ne.s32.totalorder %s25, %s41
    %p43 = scmp.eq.s32.totalorder %s17, 0
    %p44 = por %p42, %p43
    %s46 = sadd.s32 %s45, 1
    %p49 = scmp.eq.s32.totalorder %s11, 1
    %p50 = scmp.ne.s32.totalorder %s45, %s47
    %p51 = scmp.eq.s32.totalorder %s11, 0
    %p52 = por %p50, %p51
    %p53 = scmp.ne.s32.totalorder %s45, %s47
    %p54 = scmp.eq.s32.totalorder %s16, 1
    %p55 = por %p53, %p54
    %p56 = scmp.ne.s32.totalorder %s47, %s48
    %p57 = scmp.eq.s32.totalorder %s16, 0
    %p58 = por %p56, %p57
    %p59 = scmp.ne.s32.totalorder %s47, %s48
    %p60 = scmp.eq.s32.totalorder %s17, 1
    %p61 = por %p59, %p60
    %p63 = scmp.ne.s32.totalorder %s48, %s62
    %p64 = scmp.eq.s32.totalorder %s17, 0
    %p65 = por %p63, %p64
    %s67 = sadd.s32 %s66, 1
    %p70 = scmp.eq.s32.totalorder %s11, 1
    %p71 = scmp.ne.s32.totalorder %s66, %s68
    %p72 = scmp.eq.s32.totalorder %s11, 0
    %p73 = por %p71, %p72
    %p74 = scmp.ne.s32.totalorder %s66, %s68
    %p75 = scmp.eq.s32.totalorder %s16, 1
    %p76 = por %p74, %p75
    %p77 = scmp.ne.s32.totalorder %s68, %s69
    %p78 = scmp.eq.s32.totalorder %s16, 0
    %p79 = por %p77, %p78
    %p80 = scmp.ne.s32.totalorder %s68, %s69
    %p81 = scmp.eq.s32.totalorder %s17, 1
    %p82 = por %p80, %p81
    %p84 = scmp.ne.s32.totalorder %s69, %s83
    %p85 = scmp.eq.s32.totalorder %s17, 0
    %p86 = por %p84, %p85
    %s88 = sadd.s32 %s87, 1
    %p91 = scmp.eq.s32.totalorder %s11, 1
    %p92 = scmp.ne.s32.totalorder %s87, %s89
    %p93 = scmp.eq.s32.totalorder %s11, 0
    %p94 = por %p92, %p93
    %p95 = scmp.ne.s32.totalorder %s87, %s89
    %p96 = scmp.eq.s32.totalorder %s16, 1
    %p97 = por %p95, %p96
    %p98 = scmp.ne.s32.totalorder %s89, %s90
    %p99 = scmp.eq.s32.totalorder %s16, 0
    %p100 = por %p98, %p99
    %p101 = scmp.ne.s32.totalorder %s89, %s90
    %p102 = scmp.eq.s32.totalorder %s17, 1
    %p103 = por %p101, %p102
    %p105 = scmp.ne.s32.totalorder %s90, %s104
    %p106 = scmp.eq.s32.totalorder %s17, 0
    %p107 = por %p105, %p106
    %s108 = ssub.s32 %s11, %s18
    %p109 = scmp.eq.s32.totalorder %s108, 0
    %s111 = sadd.s32 %s110, 1
    %s112 = scalar_select %p109, %s110, %s111
    %p115 = pneg %p109
    %p116 = scmp.eq.s32.totalorder %s11, 1
    %p117 = por %p115, %p116
    %p118 = scmp.ne.s32.totalorder %s110, %s113
    %p119 = scmp.eq.s32.totalorder %s11, 0
    %p120 = por %p118, %p119
    %p121 = scmp.ne.s32.totalorder %s110, %s113
    %p122 = scmp.eq.s32.totalorder %s16, 1
    %p123 = por %p121, %p122
    %p124 = scmp.ne.s32.totalorder %s113, %s114
    %p125 = scmp.eq.s32.totalorder %s16, 0
    %p126 = por %p124, %p125
    %p127 = scmp.ne.s32.totalorder %s113, %s114
    %p128 = scmp.eq.s32.totalorder %s17, 1
    %p129 = por %p127, %p128
    %p131 = scmp.ne.s32.totalorder %s114, %s130
    %p132 = scmp.eq.s32.totalorder %s17, 0
    %p133 = por %p131, %p132
    %s134 = ssub.s32 %s11, %s18
    %p135 = scmp.eq.s32.totalorder %s134, 0
    %s137 = sadd.s32 %s136, 1
    %s138 = scalar_select %p135, %s136, %s137
    %p141 = pneg %p135
    %p142 = scmp.eq.s32.totalorder %s11, 1
    %p143 = por %p141, %p142
    %p144 = scmp.ne.s32.totalorder %s136, %s139
    %p145 = scmp.eq.s32.totalorder %s11, 0
    %p146 = por %p144, %p145
    %p147 = scmp.ne.s32.totalorder %s136, %s139
    %p148 = scmp.eq.s32.totalorder %s16, 1
    %p149 = por %p147, %p148
    %p150 = scmp.ne.s32.totalorder %s139, %s140
    %p151 = scmp.eq.s32.totalorder %s16, 0
    %p152 = por %p150, %p151
    %p153 = scmp.ne.s32.totalorder %s139, %s140
    %p154 = scmp.eq.s32.totalorder %s17, 1
    %p155 = por %p153, %p154
    %p157 = scmp.ne.s32.totalorder %s140, %s156
    %p158 = scmp.eq.s32.totalorder %s17, 0
    %p159 = por %p157, %p158
    %p160 = scmp.le.s32.totalorder 1, %s11
    %p161 = scmp.lt.s32.totalorder %s11, 3
    %p162 = pnand %p160, %p161
    %p163 = pneg %p162
    // Predicated region
    $region9: #{bottleneck_forward.15} parent=5 // pred_check
      _
    $region10: #{bottleneck_forward.15} parent=5 // pred_check_branch
      %165 = sbr.rel (%p162) target = $region12
    $region11: #{bottleneck_forward.15} parent=5 // pred_region
      %s166 = ssub.s32 %s11, 1
      // Predicated region
      $region13: #{bottleneck_forward.15} parent=11 // pred_check
        %p167 = pneg %p58
      $region14: #{bottleneck_forward.15} parent=11 // pred_check_branch
        %169 = sbr.rel (%p167) target = $region16
      $region15: #{bottleneck_forward.15} parent=11 // pred_region
        _
      $region16: #{bottleneck_forward.15} parent=11 // pred_fallthru
        _
      // Predicated region
      $region17: #{bottleneck_forward.15} parent=11 // pred_check
        %p170 = pneg %p79
      $region18: #{bottleneck_forward.15} parent=11 // pred_check_branch
        %172 = sbr.rel (%p170) target = $region20
      $region19: #{bottleneck_forward.15} parent=11 // pred_region
        _
      $region20: #{bottleneck_forward.15} parent=11 // pred_fallthru
        _
      // Predicated region
      $region21: #{bottleneck_forward.15} parent=11 // pred_check
        %p173 = pneg %p100
      $region22: #{bottleneck_forward.15} parent=11 // pred_check_branch
        %175 = sbr.rel (%p173) target = $region24
      $region23: #{bottleneck_forward.15} parent=11 // pred_region
        _
      $region24: #{bottleneck_forward.15} parent=11 // pred_fallthru
        _
    $region12: #{bottleneck_forward.15} parent=5 // pred_fallthru
      _
    %p176 = scmp.lt.s32.totalorder %s11, 2
    // Predicated region
    $region25: #{bottleneck_forward.15} parent=5 // pred_check
      %p177 = pneg %p176
    $region26: #{bottleneck_forward.15} parent=5 // pred_check_branch
      %179 = sbr.rel (%p177) target = $region28
    $region27: #{bottleneck_forward.15} parent=5 // pred_region
      // Predicated region
      $region29: #{bottleneck_forward.15} parent=27 // pred_check
        %p180 = pneg %p31
      $region30: #{bottleneck_forward.15} parent=27 // pred_check_branch
        %182 = sbr.rel (%p180) target = $region32
      $region31: #{bottleneck_forward.15} parent=27 // pred_region
        %s183 = smul.u32 32, %s11
        %p184 = scmp.lt.s32.totalorder %s183, 63
        %s185 = scalar_select %p184, %s183, 63
        %s186 = smul.addr %s185, 8
        %s187 = scalar_lea.vmem %s0, %s186
        %s188 = smul.u32 32, %s11
      $region32: #{bottleneck_forward.15} parent=27 // pred_fallthru
        _
      // Predicated region
      $region33: #{bottleneck_forward.15} parent=27 // pred_check
        %p189 = pneg %p120
      $region34: #{bottleneck_forward.15} parent=27 // pred_check_branch
        %191 = sbr.rel (%p189) target = $region36
      $region35: #{bottleneck_forward.15} parent=27 // pred_region
        %s192 = smul.u32 32, %s11
        %p193 = scmp.lt.s32.totalorder %s192, 63
        %s194 = scalar_select %p193, %s192, 63
        %s195 = smul.addr %s194, 8
        %s196 = scalar_lea.vmem %s4, %s195
        %s197 = smul.u32 32, %s11
      $region36: #{bottleneck_forward.15} parent=27 // pred_fallthru
        _
    $region28: #{bottleneck_forward.15} parent=5 // pred_fallthru
      _
    %p198 = scmp.le.s32.totalorder 1, %s11
    %p199 = scmp.lt.s32.totalorder %s11, 3
    %p200 = pnand %p198, %p199
    %p201 = pneg %p200
    // Predicated region
    $region37: #{bottleneck_forward.15} parent=5 // pred_check
      _
    $region38: #{bottleneck_forward.15} parent=5 // pred_check_branch
      %203 = sbr.rel (%p200) target = $region40
    $region39: #{bottleneck_forward.15} parent=5 // pred_region
      %s204 = ssub.s32 %s11, 1
      %s205 = smul.u32 32, %s16
      %p206 = scmp.lt.s32.totalorder %s205, 63
      %s207 = scalar_select %p206, %s205, 63
      %s208 = smul.addr %s207, 8
      %s209 = scalar_lea.vmem %s0, %s208
      %p210 = pneg %p37
      %p211 = pneg %p34
      %p212 = pneg %p58
      %p213 = pneg %p55
      %p214 = pneg %p79
      %p215 = pneg %p76
      %p216 = pneg %p100
      %p217 = pneg %p97
      %s218 = smul.u32 32, %s16
      %p219 = scmp.lt.s32.totalorder %s218, 63
      %s220 = scalar_select %p219, %s218, 63
      %s221 = smul.addr %s220, 8
      %s222 = scalar_lea.vmem %s4, %s221
      %p223 = pneg %p126
      %p224 = pneg %p123
      %p225 = pneg %p152
      %p226 = pneg %p149
      %s227 = smul.u32 32, %s16
      %p228 = scmp.lt.s32.totalorder %s227, 63
      %s229 = scalar_select %p228, %s227, 63
      %s230 = smul.addr %s229, 8
      %s231 = scalar_lea.vmem %s5, %s230
      %s232 = smul.u32 32, %s16
      %p233 = scmp.lt.s32.totalorder %s232, 63
      %s234 = scalar_select %p233, %s232, 63
      %s235 = smul.addr %s234, 8
      %s236 = scalar_lea.vmem %s0, %s235
      %s237 = smul.u32 32, %s16
      %s238 = smul.u32 32, %s16
      %p239 = scmp.lt.s32.totalorder %s238, 63
      %s240 = scalar_select %p239, %s238, 63
      %s241 = smul.addr %s240, 8
      %s242 = scalar_lea.vmem %s4, %s241
      %s243 = smul.u32 32, %s16
      %s244 = smul.u32 32, %s16
      %p245 = scmp.lt.s32.totalorder %s244, 63
      %s246 = scalar_select %p245, %s244, 63
      %s247 = smul.addr %s246, 8
      %s248 = scalar_lea.vmem %s5, %s247
      %s249 = smul.u32 32, %s16
      %v250 = vld [vmem:[%s1] sm:$0x1]
      %v251 = vmul.f32 %v250, 0.001953125
      %v252 = vld [vmem:[%s1 + $0x1] sm:$0x1]
      %v253 = vmul.f32 %v252, 0.001953125
      %v254 = vmul.f32 %v251, %v251
      %v255 = vsub.f32 %v253, %v254
      %v256 = vmax.f32 %v255, 0.0
      %v257 = vadd.f32 %v256, 1e-05
      %v258 = vrsqrt.pop %v257
      %v259 = vld [vmem:[%s2] sm:$0x1]
      %v260 = vmul.f32 %v258, %v259
      %v261 = vld [vmem:[%s3] sm:$0x1]
      %v262 = vmul.f32 %v251, %v260
      %v263 = vsub.f32 %v261, %v262
      %v264 = vld [vmem:[%s236] sm:$0xff]
      %v265 = vld [vmem:[%s236 + $0x8] sm:$0xff]
      %v266 = vld [vmem:[%s236 + $0x10] sm:$0xff]
      %v267 = vld [vmem:[%s236 + $0x18] sm:$0xff]
      %v268 = vld [vmem:[%s236 + $0x20] sm:$0xff]
      %v269 = vld [vmem:[%s236 + $0x28] sm:$0xff]
      %v270 = vld [vmem:[%s236 + $0x30] sm:$0xff]
      %v271 = vld [vmem:[%s236 + $0x38] sm:$0xff]
      %v272 = vld [vmem:[%s236 + $0x40] sm:$0xff]
      %v273 = vld [vmem:[%s236 + $0x48] sm:$0xff]
      %v274 = vld [vmem:[%s236 + $0x50] sm:$0xff]
      %v275 = vld [vmem:[%s236 + $0x58] sm:$0xff]
      %v276 = vld [vmem:[%s236 + $0x60] sm:$0xff]
      %v277 = vld [vmem:[%s236 + $0x68] sm:$0xff]
      %v278 = vld [vmem:[%s236 + $0x70] sm:$0xff]
      %v279 = vld [vmem:[%s236 + $0x78] sm:$0xff]
      %v280 = vld [vmem:[%s236 + $0x80] sm:$0xff]
      %v281 = vld [vmem:[%s236 + $0x88] sm:$0xff]
      %v282 = vld [vmem:[%s236 + $0x90] sm:$0xff]
      %v283 = vld [vmem:[%s236 + $0x98] sm:$0xff]
      %v284 = vld [vmem:[%s236 + $0xa0] sm:$0xff]
      %v285 = vld [vmem:[%s236 + $0xa8] sm:$0xff]
      %v286 = vld [vmem:[%s236 + $0xb0] sm:$0xff]
      %v287 = vld [vmem:[%s236 + $0xb8] sm:$0xff]
      %v288 = vld [vmem:[%s236 + $0xc0] sm:$0xff]
      %v289 = vld [vmem:[%s236 + $0xc8] sm:$0xff]
      %v290 = vld [vmem:[%s236 + $0xd0] sm:$0xff]
      %v291 = vld [vmem:[%s236 + $0xd8] sm:$0xff]
      %v292 = vld [vmem:[%s236 + $0xe0] sm:$0xff]
      %v293 = vld [vmem:[%s236 + $0xe8] sm:$0xff]
      %v294 = vld [vmem:[%s236 + $0xf0] sm:$0xff]
      %v295 = vld [vmem:[%s236 + $0xf8] sm:$0xff]
      %v296 = vlaneseq
      %v297 = vshrl.u32 %v296, 7
      %v298 = vsub.s32 0, %v297
      %v299 = vrot.slane %v260, %v298
      %v300 = vmul.f32 %v264, %v299
      %v301 = vmul.f32 %v265, %v299
      %v302 = vmul.f32 %v266, %v299
      %v303 = vmul.f32 %v267, %v299
      %v304 = vmul.f32 %v268, %v299
      %v305 = vmul.f32 %v269, %v299
      %v306 = vmul.f32 %v270, %v299
      %v307 = vmul.f32 %v271, %v299
      %v308 = vmul.f32 %v272, %v299
      %v309 = vmul.f32 %v273, %v299
      %v310 = vmul.f32 %v274, %v299
      %v311 = vmul.f32 %v275, %v299
      %v312 = vmul.f32 %v276, %v299
      %v313 = vmul.f32 %v277, %v299
      %v314 = vmul.f32 %v278, %v299
      %v315 = vmul.f32 %v279, %v299
      %v316 = vmul.f32 %v280, %v299
      %v317 = vmul.f32 %v281, %v299
      %v318 = vmul.f32 %v282, %v299
      %v319 = vmul.f32 %v283, %v299
      %v320 = vmul.f32 %v284, %v299
      %v321 = vmul.f32 %v285, %v299
      %v322 = vmul.f32 %v286, %v299
      %v323 = vmul.f32 %v287, %v299
      %v324 = vmul.f32 %v288, %v299
      %v325 = vmul.f32 %v289, %v299
      %v326 = vmul.f32 %v290, %v299
      %v327 = vmul.f32 %v291, %v299
      %v328 = vmul.f32 %v292, %v299
      %v329 = vmul.f32 %v293, %v299
      %v330 = vmul.f32 %v294, %v299
      %v331 = vmul.f32 %v295, %v299
      %v333 = vlaneseq
      %v334 = vshrl.u32 %v333, 7
      %v335 = vsub.s32 0, %v334
      %v336 = vrot.slane %v263, %v335
      %v338 = vadd.f32 %v300, %v336
      %v339 = vadd.f32 %v301, %v336
      %v340 = vadd.f32 %v302, %v336
      %v341 = vadd.f32 %v303, %v336
      %v342 = vadd.f32 %v304, %v336
      %v343 = vadd.f32 %v305, %v336
      %v344 = vadd.f32 %v306, %v336
      %v345 = vadd.f32 %v307, %v336
      %v346 = vadd.f32 %v308, %v336
      %v347 = vadd.f32 %v309, %v336
      %v348 = vadd.f32 %v310, %v336
      %v349 = vadd.f32 %v311, %v336
      %v350 = vadd.f32 %v312, %v336
      %v351 = vadd.f32 %v313, %v336
      %v352 = vadd.f32 %v314, %v336
      %v353 = vadd.f32 %v315, %v336
      %v354 = vadd.f32 %v316, %v336
      %v355 = vadd.f32 %v317, %v336
      %v356 = vadd.f32 %v318, %v336
      %v357 = vadd.f32 %v319, %v336
      %v358 = vadd.f32 %v320, %v336
      %v359 = vadd.f32 %v321, %v336
      %v360 = vadd.f32 %v322, %v336
      %v361 = vadd.f32 %v323, %v336
      %v362 = vadd.f32 %v324, %v336
      %v363 = vadd.f32 %v325, %v336
      %v364 = vadd.f32 %v326, %v336
      %v365 = vadd.f32 %v327, %v336
      %v366 = vadd.f32 %v328, %v336
      %v367 = vadd.f32 %v329, %v336
      %v368 = vadd.f32 %v330, %v336
      %v369 = vadd.f32 %v331, %v336
      %v370 = vld [vmem:[%s242] sm:$0xff]
      %v371 = vld [vmem:[%s242 + $0x8] sm:$0xff]
      %v372 = vld [vmem:[%s242 + $0x10] sm:$0xff]
      %v373 = vld [vmem:[%s242 + $0x18] sm:$0xff]
      %v374 = vld [vmem:[%s242 + $0x20] sm:$0xff]
      %v375 = vld [vmem:[%s242 + $0x28] sm:$0xff]
      %v376 = vld [vmem:[%s242 + $0x30] sm:$0xff]
      %v377 = vld [vmem:[%s242 + $0x38] sm:$0xff]
      %v378 = vld [vmem:[%s242 + $0x40] sm:$0xff]
      %v379 = vld [vmem:[%s242 + $0x48] sm:$0xff]
      %v380 = vld [vmem:[%s242 + $0x50] sm:$0xff]
      %v381 = vld [vmem:[%s242 + $0x58] sm:$0xff]
      %v382 = vld [vmem:[%s242 + $0x60] sm:$0xff]
      %v383 = vld [vmem:[%s242 + $0x68] sm:$0xff]
      %v384 = vld [vmem:[%s242 + $0x70] sm:$0xff]
      %v385 = vld [vmem:[%s242 + $0x78] sm:$0xff]
      %v386 = vld [vmem:[%s242 + $0x80] sm:$0xff]
      %v387 = vld [vmem:[%s242 + $0x88] sm:$0xff]
      %v388 = vld [vmem:[%s242 + $0x90] sm:$0xff]
      %v389 = vld [vmem:[%s242 + $0x98] sm:$0xff]
      %v390 = vld [vmem:[%s242 + $0xa0] sm:$0xff]
      %v391 = vld [vmem:[%s242 + $0xa8] sm:$0xff]
      %v392 = vld [vmem:[%s242 + $0xb0] sm:$0xff]
      %v393 = vld [vmem:[%s242 + $0xb8] sm:$0xff]
      %v394 = vld [vmem:[%s242 + $0xc0] sm:$0xff]
      %v395 = vld [vmem:[%s242 + $0xc8] sm:$0xff]
      %v396 = vld [vmem:[%s242 + $0xd0] sm:$0xff]
      %v397 = vld [vmem:[%s242 + $0xd8] sm:$0xff]
      %v398 = vld [vmem:[%s242 + $0xe0] sm:$0xff]
      %v399 = vld [vmem:[%s242 + $0xe8] sm:$0xff]
      %v400 = vld [vmem:[%s242 + $0xf0] sm:$0xff]
      %v401 = vld [vmem:[%s242 + $0xf8] sm:$0xff]
      %v402 = vadd.f32 %v338, %v370
      %v403 = vadd.f32 %v339, %v371
      %v404 = vadd.f32 %v340, %v372
      %v405 = vadd.f32 %v341, %v373
      %v406 = vadd.f32 %v342, %v374
      %v407 = vadd.f32 %v343, %v375
      %v408 = vadd.f32 %v344, %v376
      %v409 = vadd.f32 %v345, %v377
      %v410 = vadd.f32 %v346, %v378
      %v411 = vadd.f32 %v347, %v379
      %v412 = vadd.f32 %v348, %v380
      %v413 = vadd.f32 %v349, %v381
      %v414 = vadd.f32 %v350, %v382
      %v415 = vadd.f32 %v351, %v383
      %v416 = vadd.f32 %v352, %v384
      %v417 = vadd.f32 %v353, %v385
      %v418 = vadd.f32 %v354, %v386
      %v419 = vadd.f32 %v355, %v387
      %v420 = vadd.f32 %v356, %v388
      %v421 = vadd.f32 %v357, %v389
      %v422 = vadd.f32 %v358, %v390
      %v423 = vadd.f32 %v359, %v391
      %v424 = vadd.f32 %v360, %v392
      %v425 = vadd.f32 %v361, %v393
      %v426 = vadd.f32 %v362, %v394
      %v427 = vadd.f32 %v363, %v395
      %v428 = vadd.f32 %v364, %v396
      %v429 = vadd.f32 %v365, %v397
      %v430 = vadd.f32 %v366, %v398
      %v431 = vadd.f32 %v367, %v399
      %v432 = vadd.f32 %v368, %v400
      %v433 = vadd.f32 %v369, %v401
      %v434 = vmax.f32 %v402, 0.0
      %v435 = vmax.f32 %v403, 0.0
      %v436 = vmax.f32 %v404, 0.0
      %v437 = vmax.f32 %v405, 0.0
      %v438 = vmax.f32 %v406, 0.0
      %v439 = vmax.f32 %v407, 0.0
      %v440 = vmax.f32 %v408, 0.0
      %v441 = vmax.f32 %v409, 0.0
      %v442 = vmax.f32 %v410, 0.0
      %v443 = vmax.f32 %v411, 0.0
      %v444 = vmax.f32 %v412, 0.0
      %v445 = vmax.f32 %v413, 0.0
      %v446 = vmax.f32 %v414, 0.0
      %v447 = vmax.f32 %v415, 0.0
      %v448 = vmax.f32 %v416, 0.0
      %v449 = vmax.f32 %v417, 0.0
      %v450 = vmax.f32 %v418, 0.0
      %v451 = vmax.f32 %v419, 0.0
      %v452 = vmax.f32 %v420, 0.0
      %v453 = vmax.f32 %v421, 0.0
      %v454 = vmax.f32 %v422, 0.0
      %v455 = vmax.f32 %v423, 0.0
      %v456 = vmax.f32 %v424, 0.0
      %v457 = vmax.f32 %v425, 0.0
      %v458 = vmax.f32 %v426, 0.0
      %v459 = vmax.f32 %v427, 0.0
      %v460 = vmax.f32 %v428, 0.0
      %v461 = vmax.f32 %v429, 0.0
      %v462 = vmax.f32 %v430, 0.0
      %v463 = vmax.f32 %v431, 0.0
      %v464 = vmax.f32 %v432, 0.0
      %v465 = vmax.f32 %v433, 0.0
      %466 = vst [vmem:[%s248] sm:$0xff] %v434
      %467 = vst [vmem:[%s248 + $0x8] sm:$0xff] %v435
      %468 = vst [vmem:[%s248 + $0x10] sm:$0xff] %v436
      %469 = vst [vmem:[%s248 + $0x18] sm:$0xff] %v437
      %470 = vst [vmem:[%s248 + $0x20] sm:$0xff] %v438
      %471 = vst [vmem:[%s248 + $0x28] sm:$0xff] %v439
      %472 = vst [vmem:[%s248 + $0x30] sm:$0xff] %v440
      %473 = vst [vmem:[%s248 + $0x38] sm:$0xff] %v441
      %474 = vst [vmem:[%s248 + $0x40] sm:$0xff] %v442
      %475 = vst [vmem:[%s248 + $0x48] sm:$0xff] %v443
      %476 = vst [vmem:[%s248 + $0x50] sm:$0xff] %v444
      %477 = vst [vmem:[%s248 + $0x58] sm:$0xff] %v445
      %478 = vst [vmem:[%s248 + $0x60] sm:$0xff] %v446
      %479 = vst [vmem:[%s248 + $0x68] sm:$0xff] %v447
      %480 = vst [vmem:[%s248 + $0x70] sm:$0xff] %v448
      %481 = vst [vmem:[%s248 + $0x78] sm:$0xff] %v449
      %482 = vst [vmem:[%s248 + $0x80] sm:$0xff] %v450
      %483 = vst [vmem:[%s248 + $0x88] sm:$0xff] %v451
      %484 = vst [vmem:[%s248 + $0x90] sm:$0xff] %v452
      %485 = vst [vmem:[%s248 + $0x98] sm:$0xff] %v453
      %486 = vst [vmem:[%s248 + $0xa0] sm:$0xff] %v454
      %487 = vst [vmem:[%s248 + $0xa8] sm:$0xff] %v455
      %488 = vst [vmem:[%s248 + $0xb0] sm:$0xff] %v456
      %489 = vst [vmem:[%s248 + $0xb8] sm:$0xff] %v457
      %490 = vst [vmem:[%s248 + $0xc0] sm:$0xff] %v458
      %491 = vst [vmem:[%s248 + $0xc8] sm:$0xff] %v459
      %492 = vst [vmem:[%s248 + $0xd0] sm:$0xff] %v460
      %493 = vst [vmem:[%s248 + $0xd8] sm:$0xff] %v461
      %494 = vst [vmem:[%s248 + $0xe0] sm:$0xff] %v462
      %495 = vst [vmem:[%s248 + $0xe8] sm:$0xff] %v463
      %496 = vst [vmem:[%s248 + $0xf0] sm:$0xff] %v464
      %497 = vst [vmem:[%s248 + $0xf8] sm:$0xff] %v465
      %s498 = smul.u32 32, %s16
      %p499 = scmp.lt.s32.totalorder %s498, 63
      %s500 = scalar_select %p499, %s498, 63
      %s501 = smul.addr %s500, 8
      %s502 = scalar_lea.vmem %s5, %s501
      // Predicated region
      $region41: #{bottleneck_forward.15} parent=39 // pred_check
        %p503 = pneg %p149
      $region42: #{bottleneck_forward.15} parent=39 // pred_check_branch
        %505 = sbr.rel (%p503) target = $region44
      $region43: #{bottleneck_forward.15} parent=39 // pred_region
        %s506 = smul.u32 32, %s16
      $region44: #{bottleneck_forward.15} parent=39 // pred_fallthru
        _
    $region40: #{bottleneck_forward.15} parent=5 // pred_fallthru
      _
    %p507 = scmp.le.s32.totalorder 2, %s11
    // Predicated region
    $region45: #{bottleneck_forward.15} parent=5 // pred_check
      %p508 = pneg %p507
    $region46: #{bottleneck_forward.15} parent=5 // pred_check_branch
      %510 = sbr.rel (%p508) target = $region48
    $region47: #{bottleneck_forward.15} parent=5 // pred_region
      %s511 = ssub.s32 %s11, 2
      // Predicated region
      $region49: #{bottleneck_forward.15} parent=47 // pred_check
        %p512 = pneg %p155
      $region50: #{bottleneck_forward.15} parent=47 // pred_check_branch
        %514 = sbr.rel (%p512) target = $region52
      $region51: #{bottleneck_forward.15} parent=47 // pred_region
        %s515 = smul.u32 32, %s17
        %p516 = scmp.lt.s32.totalorder %s515, 63
        %s517 = scalar_select %p516, %s515, 63
        %s518 = smul.addr %s517, 8
        %s519 = scalar_lea.vmem %s5, %s518
      $region52: #{bottleneck_forward.15} parent=47 // pred_fallthru
        _
    $region48: #{bottleneck_forward.15} parent=5 // pred_fallthru
      _
  $region6: #{bottleneck_forward.15} parent=0 // loop_footer
    %s15 = sadd.s32 1, %s11
  $region7: #{bottleneck_forward.15} parent=0 // loop_footer_branch
    %10 = sbr.rel target = $region3
  $region8: #{bottleneck_forward.15} parent=0 // loop_exit
    _

// kernel: bottleneck_forward.10
$region0: #{bottleneck_forward.10}
  #allocation0 [shape = 'u32[]', space=smem, size = 0x4, offset = 0x4, fixed_abs, tag = 'smem constant byte address 0x4 - core index']
  #allocation1 [shape = 'u32[144,128]{1,0:T(1,128)}', space=vmem, size = 0x12000, scoped, tag = 'internal scratch']
  #allocation2 [shape = 'f32[256,128]{1,0:T(8,128)}', space=vmem, size = 0x20000, scoped, tag = 'scratch operand']
  %s0 = inlined_call_operand.vmem [shape: bf16[2,18,18,128], index: 0, kind: input, shape index: {}]
  %s1 = inlined_call_operand.vmem [shape: bf16[9,128,128], index: 1, kind: input, shape index: {}]
  %s2 = inlined_call_operand.vmem [shape: f32[2,16,16,128], index: 2, kind: output, shape index: {0}]
  %s3 = inlined_call_operand.vmem [shape: f32[2,128], index: 3, kind: output, shape index: {1}]
  %4 = xla_tuple %s2, %s3
  %s5 = sld [smem:[#allocation0]]
  $region53: #{bottleneck_forward.10} parent=0
    _
  %s7 = ssub.s32 1, %s5
  %s8 = scalar_select 0, %s7, %s5
  loop: start=0, step=1, limit=4
  $region2: #{bottleneck_forward.10} parent=0 // loop_pre_header
    _
  $region3: #{bottleneck_forward.10} parent=0 // loop_header
    %s10 = sphi 0, %s14
    %p11 = scmp.ge.s32.totalorder %s10, 4
    %s20 = sphi 0, %s22
    %s23 = sphi 0, %s20
    %s24 = sphi 0, %s23
    %s40 = sphi 0, %s24
    %s44 = sphi 0, %s44
    %s46 = sphi 0, %s44
    %s47 = sphi 0, %s46
    %s61 = sphi 0, %s47
    %s67 = sphi 0, %s69
    %s70 = sphi 0, %s67
    %s71 = sphi 0, %s70
    %s87 = sphi 0, %s71
    %s91 = sphi 0, %s91
    %s93 = sphi 0, %s91
    %s94 = sphi 0, %s93
    %s108 = sphi 0, %s94
  $region4: #{bottleneck_forward.10} parent=0 // loop_header_branch
    %13 = sbr.rel (%p11) target = $region8
  $region5: #{bottleneck_forward.10} parent=0 // loop_body
    %s15 = ssub.s32 %s10, 1
    %s16 = ssub.s32 %s10, 2
    %s17 = sadd.s32 %s10, 1
    %s18 = ssub.s32 %s10, %s17
    %p19 = scmp.eq.s32.totalorder %s18, 0
    %s21 = sadd.s32 %s20, 1
    %s22 = scalar_select %p19, %s20, %s21
    %p25 = pneg %p19
    %p26 = scmp.eq.s32.totalorder %s10, 1
    %p27 = por %p25, %p26
    %p28 = scmp.ne.s32.totalorder %s20, %s23
    %p29 = scmp.eq.s32.totalorder %s10, 0
    %p30 = por %p28, %p29
    %p31 = scmp.ne.s32.totalorder %s20, %s23
    %p32 = scmp.eq.s32.totalorder %s15, 1
    %p33 = por %p31, %p32
    %p34 = scmp.ne.s32.totalorder %s23, %s24
    %p35 = scmp.eq.s32.totalorder %s15, 0
    %p36 = por %p34, %p35
    %p37 = scmp.ne.s32.totalorder %s23, %s24
    %p38 = scmp.eq.s32.totalorder %s16, 1
    %p39 = por %p37, %p38
    %p41 = scmp.ne.s32.totalorder %s24, %s40
    %p42 = scmp.eq.s32.totalorder %s16, 0
    %p43 = por %p41, %p42
    %s45 = sadd.s32 %s44, 1
    %p48 = scmp.eq.s32.totalorder %s10, 1
    %p49 = scmp.ne.s32.totalorder %s44, %s46
    %p50 = scmp.eq.s32.totalorder %s10, 0
    %p51 = por %p49, %p50
    %p52 = scmp.ne.s32.totalorder %s44, %s46
    %p53 = scmp.eq.s32.totalorder %s15, 1
    %p54 = por %p52, %p53
    %p55 = scmp.ne.s32.totalorder %s46, %s47
    %p56 = scmp.eq.s32.totalorder %s15, 0
    %p57 = por %p55, %p56
    %p58 = scmp.ne.s32.totalorder %s46, %s47
    %p59 = scmp.eq.s32.totalorder %s16, 1
    %p60 = por %p58, %p59
    %p62 = scmp.ne.s32.totalorder %s47, %s61
    %p63 = scmp.eq.s32.totalorder %s16, 0
    %p64 = por %p62, %p63
    %s65 = ssub.s32 %s10, %s17
    %p66 = scmp.eq.s32.totalorder %s65, 0
    %s68 = sadd.s32 %s67, 1
    %s69 = scalar_select %p66, %s67, %s68
    %p72 = pneg %p66
    %p73 = scmp.eq.s32.totalorder %s10, 1
    %p74 = por %p72, %p73
    %p75 = scmp.ne.s32.totalorder %s67, %s70
    %p76 = scmp.eq.s32.totalorder %s10, 0
    %p77 = por %p75, %p76
    %p78 = scmp.ne.s32.totalorder %s67, %s70
    %p79 = scmp.eq.s32.totalorder %s15, 1
    %p80 = por %p78, %p79
    %p81 = scmp.ne.s32.totalorder %s70, %s71
    %p82 = scmp.eq.s32.totalorder %s15, 0
    %p83 = por %p81, %p82
    %p84 = scmp.ne.s32.totalorder %s70, %s71
    %p85 = scmp.eq.s32.totalorder %s16, 1
    %p86 = por %p84, %p85
    %p88 = scmp.ne.s32.totalorder %s71, %s87
    %p89 = scmp.eq.s32.totalorder %s16, 0
    %p90 = por %p88, %p89
    %s92 = sadd.s32 %s91, 1
    %p95 = scmp.eq.s32.totalorder %s10, 1
    %p96 = scmp.ne.s32.totalorder %s91, %s93
    %p97 = scmp.eq.s32.totalorder %s10, 0
    %p98 = por %p96, %p97
    %p99 = scmp.ne.s32.totalorder %s91, %s93
    %p100 = scmp.eq.s32.totalorder %s15, 1
    %p101 = por %p99, %p100
    %p102 = scmp.ne.s32.totalorder %s93, %s94
    %p103 = scmp.eq.s32.totalorder %s15, 0
    %p104 = por %p102, %p103
    %p105 = scmp.ne.s32.totalorder %s93, %s94
    %p106 = scmp.eq.s32.totalorder %s16, 1
    %p107 = por %p105, %p106
    %p109 = scmp.ne.s32.totalorder %s94, %s108
    %p110 = scmp.eq.s32.totalorder %s16, 0
    %p111 = por %p109, %p110
    %p112 = scmp.le.s32.totalorder 1, %s10
    %p113 = scmp.lt.s32.totalorder %s10, 3
    %p114 = pnand %p112, %p113
    %p115 = pneg %p114
    // Predicated region
    $region9: #{bottleneck_forward.10} parent=5 // pred_check
      _
    $region10: #{bottleneck_forward.10} parent=5 // pred_check_branch
      %117 = sbr.rel (%p114) target = $region12
    $region11: #{bottleneck_forward.10} parent=5 // pred_region
      %s118 = ssub.s32 %s10, 1
      // Predicated region
      $region13: #{bottleneck_forward.10} parent=11 // pred_check
        %p119 = pneg %p57
      $region14: #{bottleneck_forward.10} parent=11 // pred_check_branch
        %121 = sbr.rel (%p119) target = $region16
      $region15: #{bottleneck_forward.10} parent=11 // pred_region
        _
      $region16: #{bottleneck_forward.10} parent=11 // pred_fallthru
        _
    $region12: #{bottleneck_forward.10} parent=5 // pred_fallthru
      _
    %p122 = scmp.lt.s32.totalorder %s10, 2
    // Predicated region
    $region17: #{bottleneck_forward.10} parent=5 // pred_check
      %p123 = pneg %p122
    $region18: #{bottleneck_forward.10} parent=5 // pred_check_branch
      %125 = sbr.rel (%p123) target = $region20
    $region19: #{bottleneck_forward.10} parent=5 // pred_region
      // Predicated region
      $region21: #{bottleneck_forward.10} parent=19 // pred_check
        %p126 = pneg %p30
      $region22: #{bottleneck_forward.10} parent=19 // pred_check_branch
        %128 = sbr.rel (%p126) target = $region24
      $region23: #{bottleneck_forward.10} parent=19 // pred_region
        %p129 = scmp.lt.s32.totalorder %s10, 1
        %s130 = scalar_select %p129, %s10, 1
        %s131 = smul.addr %s130, 54
        %s132 = smul.addr %s131, 4
        %s133 = scalar_lea.vmem %s0, %s132
      $region24: #{bottleneck_forward.10} parent=19 // pred_fallthru
        _
    $region20: #{bottleneck_forward.10} parent=5 // pred_fallthru
      _
    %p134 = scmp.le.s32.totalorder 1, %s10
    %p135 = scmp.lt.s32.totalorder %s10, 3
    %p136 = pnand %p134, %p135
    %p137 = pneg %p136
    // Predicated region
    $region25: #{bottleneck_forward.10} parent=5 // pred_check
      _
    $region26: #{bottleneck_forward.10} parent=5 // pred_check_branch
      %139 = sbr.rel (%p136) target = $region28
    $region27: #{bottleneck_forward.10} parent=5 // pred_region
      %s140 = ssub.s32 %s10, 1
      %p141 = scmp.lt.s32.totalorder %s15, 1
      %s142 = scalar_select %p141, %s15, 1
      %s143 = smul.addr %s142, 54
      %s144 = smul.addr %s143, 4
      %s145 = scalar_lea.vmem %s0, %s144
      %p146 = pneg %p36
      %p147 = pneg %p33
      %p148 = pneg %p57
      %p149 = pneg %p54
      %p150 = pneg %p83
      %p151 = pneg %p80
      %p152 = scmp.lt.s32.totalorder %s15, 1
      %s153 = scalar_select %p152, %s15, 1
      %s154 = smul.addr %s153, 32
      %s155 = smul.addr %s154, 8
      %s156 = scalar_lea.vmem %s2, %s155
      %p157 = pneg %p104
      %p158 = pneg %p101
      %p159 = scmp.lt.s32.totalorder %s15, 1
      %s160 = scalar_select %p159, %s15, 1
      %s161 = smul.addr %s160, 54
      %s162 = smul.addr %s161, 4
      %s163 = scalar_lea.vmem %s0, %s162
      %p164 = scmp.lt.s32.totalorder %s15, 1
      %s165 = scalar_select %p164, %s15, 1
      %s166 = smul.addr %s165, 32
      %s167 = smul.addr %s166, 8
      %s168 = scalar_lea.vmem %s2, %s167
      %170 = vst [vmem:[#allocation2] sm:$0xff] 0.0
      %171 = vst [vmem:[#allocation2 + $0x8] sm:$0xff] 0.0
      %172 = vst [vmem:[#allocation2 + $0x10] sm:$0xff] 0.0
      %173 = vst [vmem:[#allocation2 + $0x18] sm:$0xff] 0.0
      %174 = vst [vmem:[#allocation2 + $0x20] sm:$0xff] 0.0
      %175 = vst [vmem:[#allocation2 + $0x28] sm:$0xff] 0.0
      %176 = vst [vmem:[#allocation2 + $0x30] sm:$0xff] 0.0
      %177 = vst [vmem:[#allocation2 + $0x38] sm:$0xff] 0.0
      %178 = vst [vmem:[#allocation2 + $0x40] sm:$0xff] 0.0
      %179 = vst [vmem:[#allocation2 + $0x48] sm:$0xff] 0.0
      %180 = vst [vmem:[#allocation2 + $0x50] sm:$0xff] 0.0
      %181 = vst [vmem:[#allocation2 + $0x58] sm:$0xff] 0.0
      %182 = vst [vmem:[#allocation2 + $0x60] sm:$0xff] 0.0
      %183 = vst [vmem:[#allocation2 + $0x68] sm:$0xff] 0.0
      %184 = vst [vmem:[#allocation2 + $0x70] sm:$0xff] 0.0
      %185 = vst [vmem:[#allocation2 + $0x78] sm:$0xff] 0.0
      %186 = vst [vmem:[#allocation2 + $0x80] sm:$0xff] 0.0
      %187 = vst [vmem:[#allocation2 + $0x88] sm:$0xff] 0.0
      %188 = vst [vmem:[#allocation2 + $0x90] sm:$0xff] 0.0
      %189 = vst [vmem:[#allocation2 + $0x98] sm:$0xff] 0.0
      %190 = vst [vmem:[#allocation2 + $0xa0] sm:$0xff] 0.0
      %191 = vst [vmem:[#allocation2 + $0xa8] sm:$0xff] 0.0
      %192 = vst [vmem:[#allocation2 + $0xb0] sm:$0xff] 0.0
      %193 = vst [vmem:[#allocation2 + $0xb8] sm:$0xff] 0.0
      %194 = vst [vmem:[#allocation2 + $0xc0] sm:$0xff] 0.0
      %195 = vst [vmem:[#allocation2 + $0xc8] sm:$0xff] 0.0
      %196 = vst [vmem:[#allocation2 + $0xd0] sm:$0xff] 0.0
      %197 = vst [vmem:[#allocation2 + $0xd8] sm:$0xff] 0.0
      %198 = vst [vmem:[#allocation2 + $0xe0] sm:$0xff] 0.0
      %199 = vst [vmem:[#allocation2 + $0xe8] sm:$0xff] 0.0
      %200 = vst [vmem:[#allocation2 + $0xf0] sm:$0xff] 0.0
      %201 = vst [vmem:[#allocation2 + $0xf8] sm:$0xff] 0.0
      %v202 = vld [vmem:[%s163] sm:$0xf]
      %v203 = vld [vmem:[%s163 + $0x4] sm:$0xf]
      %v204 = vld [vmem:[%s163 + $0xc] sm:$0xf]
      %v205 = vld [vmem:[%s163 + $0x10] sm:$0xf]
      %v206 = vld [vmem:[%s163 + $0x18] sm:$0xf]
      %v207 = vld [vmem:[%s163 + $0x1c] sm:$0xf]
      %v208 = vld [vmem:[%s163 + $0x24] sm:$0xf]
      %v209 = vld [vmem:[%s163 + $0x28] sm:$0xf]
      %v210 = vld [vmem:[%s163 + $0x30] sm:$0xf]
      %v211 = vld [vmem:[%s163 + $0x34] sm:$0xf]
      %v212 = vld [vmem:[%s163 + $0x3c] sm:$0xf]
      %v213 = vld [vmem:[%s163 + $0x40] sm:$0xf]
      %v214 = vld [vmem:[%s163 + $0x48] sm:$0xf]
      %v215 = vld [vmem:[%s163 + $0x4c] sm:$0xf]
      %v216 = vld [vmem:[%s163 + $0x54] sm:$0xf]
      %v217 = vld [vmem:[%s163 + $0x58] sm:$0xf]
      %v218 = vld [vmem:[%s163 + $0x60] sm:$0xf]
      %v219 = vld [vmem:[%s163 + $0x64] sm:$0xf]
      %v220 = vld [vmem:[%s163 + $0x6c] sm:$0xf]
      %v221 = vld [vmem:[%s163 + $0x70] sm:$0xf]
      %v222 = vld [vmem:[%s163 + $0x78] sm:$0xf]
      %v223 = vld [vmem:[%s163 + $0x7c] sm:$0xf]
      %v224 = vld [vmem:[%s163 + $0x84] sm:$0xf]
      %v225 = vld [vmem:[%s163 + $0x88] sm:$0xf]
      %v226 = vld [vmem:[%s163 + $0x90] sm:$0xf]
      %v227 = vld [vmem:[%s163 + $0x94] sm:$0xf]
      %v228 = vld [vmem:[%s163 + $0x9c] sm:$0xf]
      %v229 = vld [vmem:[%s163 + $0xa0] sm:$0xf]
      %v230 = vld [vmem:[%s163 + $0xa8] sm:$0xf]
      %v231 = vld [vmem:[%s163 + $0xac] sm:$0xf]
      %v232 = vld [vmem:[%s163 + $0xb4] sm:$0xf]
      %v233 = vld [vmem:[%s163 + $0xb8] sm:$0xf]
      %v234 = vld [vmem:[#allocation2] sm:$0xff]
      %v235 = vld [vmem:[#allocation2 + $0x8] sm:$0xff]
      %v236 = vld [vmem:[#allocation2 + $0x10] sm:$0xff]
      %v237 = vld [vmem:[#allocation2 + $0x18] sm:$0xff]
      %v238 = vld [vmem:[#allocation2 + $0x20] sm:$0xff]
      %v239 = vld [vmem:[#allocation2 + $0x28] sm:$0xff]
      %v240 = vld [vmem:[#allocation2 + $0x30] sm:$0xff]
      %v241 = vld [vmem:[#allocation2 + $0x38] sm:$0xff]
      %v242 = vld [vmem:[#allocation2 + $0x40] sm:$0xff]
      %v243 = vld [vmem:[#allocation2 + $0x48] sm:$0xff]
      %v244 = vld [vmem:[#allocation2 + $0x50] sm:$0xff]
      %v245 = vld [vmem:[#allocation2 + $0x58] sm:$0xff]
      %v246 = vld [vmem:[#allocation2 + $0x60] sm:$0xff]
      %v247 = vld [vmem:[#allocation2 + $0x68] sm:$0xff]
      %v248 = vld [vmem:[#allocation2 + $0x70] sm:$0xff]
      %v249 = vld [vmem:[#allocation2 + $0x78] sm:$0xff]
      %v250 = vld [vmem:[#allocation2 + $0x80] sm:$0xff]
      %v251 = vld [vmem:[#allocation2 + $0x88] sm:$0xff]
      %v252 = vld [vmem:[#allocation2 + $0x90] sm:$0xff]
      %v253 = vld [vmem:[#allocation2 + $0x98] sm:$0xff]
      %v254 = vld [vmem:[#allocation2 + $0xa0] sm:$0xff]
      %v255 = vld [vmem:[#allocation2 + $0xa8] sm:$0xff]
      %v256 = vld [vmem:[#allocation2 + $0xb0] sm:$0xff]
      %v257 = vld [vmem:[#allocation2 + $0xb8] sm:$0xff]
      %v258 = vld [vmem:[#allocation2 + $0xc0] sm:$0xff]
      %v259 = vld [vmem:[#allocation2 + $0xc8] sm:$0xff]
      %v260 = vld [vmem:[#allocation2 + $0xd0] sm:$0xff]
      %v261 = vld [vmem:[#allocation2 + $0xd8] sm:$0xff]
      %v262 = vld [vmem:[#allocation2 + $0xe0] sm:$0xff]
      %v263 = vld [vmem:[#allocation2 + $0xe8] sm:$0xff]
      %v264 = vld [vmem:[#allocation2 + $0xf0] sm:$0xff]
      %v265 = vld [vmem:[#allocation2 + $0xf8] sm:$0xff]
      %v266 = vld [vmem:[%s1] sm:$0xf]
      %v267 = vld [vmem:[%s1 + $0x4] sm:$0xf]
      %v268 = vld [vmem:[%s1 + $0x8] sm:$0xf]
      %v269 = vld [vmem:[%s1 + $0xc] sm:$0xf]
      %v270 = vld [vmem:[%s1 + $0x10] sm:$0xf]
      %v271 = vld [vmem:[%s1 + $0x14] sm:$0xf]
      %v272 = vld [vmem:[%s1 + $0x18] sm:$0xf]
      %v273 = vld [vmem:[%s1 + $0x1c] sm:$0xf]
      %v274 = vld [vmem:[%s1 + $0x20] sm:$0xf]
      %v275 = vld [vmem:[%s1 + $0x24] sm:$0xf]
      %v276 = vld [vmem:[%s1 + $0x28] sm:$0xf]
      %v277 = vld [vmem:[%s1 + $0x2c] sm:$0xf]
      %v278 = vld [vmem:[%s1 + $0x30] sm:$0xf]
      %v279 = vld [vmem:[%s1 + $0x34] sm:$0xf]
      %v280 = vld [vmem:[%s1 + $0x38] sm:$0xf]
      %v281 = vld [vmem:[%s1 + $0x3c] sm:$0xf]
      %v314 = vunpack.c.l.b16 %v202
      %v315 = vunpack.c.l.b16 %v203
      %v316 = vunpack.c.l.b16 %v204
      %v317 = vunpack.c.l.b16 %v205
      %v318 = vunpack.c.l.b16 %v206
      %v319 = vunpack.c.l.b16 %v207
      %v320 = vunpack.c.l.b16 %v208
      %v321 = vunpack.c.l.b16 %v209
      %v322 = vunpack.c.l.b16 %v210
      %v323 = vunpack.c.l.b16 %v211
      %v324 = vunpack.c.l.b16 %v212
      %v325 = vunpack.c.l.b16 %v213
      %v326 = vunpack.c.l.b16 %v214
      %v327 = vunpack.c.l.b16 %v215
      %v328 = vunpack.c.l.b16 %v216
      %v329 = vunpack.c.l.b16 %v217
      %v330 = vunpack.c.l.b16 %v218
      %v331 = vunpack.c.l.b16 %v219
      %v332 = vunpack.c.l.b16 %v220
      %v333 = vunpack.c.l.b16 %v221
      %v334 = vunpack.c.l.b16 %v222
      %v335 = vunpack.c.l.b16 %v223
      %v336 = vunpack.c.l.b16 %v224
      %v337 = vunpack.c.l.b16 %v225
      %v338 = vunpack.c.l.b16 %v226
      %v339 = vunpack.c.l.b16 %v227
      %v340 = vunpack.c.l.b16 %v228
      %v341 = vunpack.c.l.b16 %v229
      %v342 = vunpack.c.l.b16 %v230
      %v343 = vunpack.c.l.b16 %v231
      %v344 = vunpack.c.l.b16 %v232
      %v345 = vunpack.c.l.b16 %v233
      %v346 = vpack.c.b16 %v315, %v314
      %v347 = vpack.c.b16 %v317, %v316
      %v348 = vpack.c.b16 %v319, %v318
      %v349 = vpack.c.b16 %v321, %v320
      %v350 = vpack.c.b16 %v323, %v322
      %v351 = vpack.c.b16 %v325, %v324
      %v352 = vpack.c.b16 %v327, %v326
      %v353 = vpack.c.b16 %v329, %v328
      %v354 = vpack.c.b16 %v331, %v330
      %v355 = vpack.c.b16 %v333, %v332
      %v356 = vpack.c.b16 %v335, %v334
      %v357 = vpack.c.b16 %v337, %v336
      %v358 = vpack.c.b16 %v339, %v338
      %v359 = vpack.c.b16 %v341, %v340
      %v360 = vpack.c.b16 %v343, %v342
      %v361 = vpack.c.b16 %v345, %v344
      %v394 = vunpack.c.l.b16 %v266
      %v395 = vunpack.c.l.b16 %v267
      %v396 = vunpack.c.l.b16 %v268
      %v397 = vunpack.c.l.b16 %v269
      %v398 = vunpack.c.l.b16 %v270
      %v399 = vunpack.c.l.b16 %v271
      %v400 = vunpack.c.l.b16 %v272
      %v401 = vunpack.c.l.b16 %v273
      %v402 = vunpack.c.l.b16 %v274
      %v403 = vunpack.c.l.b16 %v275
      %v404 = vunpack.c.l.b16 %v276
      %v405 = vunpack.c.l.b16 %v277
      %v406 = vunpack.c.l.b16 %v278
      %v407 = vunpack.c.l.b16 %v279
      %v408 = vunpack.c.l.b16 %v280
      %v409 = vunpack.c.l.b16 %v281
      %v410 = vpack.c.b16 %v395, %v394
      %v411 = vpack.c.b16 %v397, %v396
      %v412 = vpack.c.b16 %v399, %v398
      %v413 = vpack.c.b16 %v401, %v400
      %v414 = vpack.c.b16 %v403, %v402
      %v415 = vpack.c.b16 %v405, %v404
      %v416 = vpack.c.b16 %v407, %v406
      %v417 = vpack.c.b16 %v409, %v408
      %426 = vmatprep.subr.bf16.mxu0 0
      %427 = vmatpush1.bf16.msra.mxu0 %v410
      %428 = vmatprep.subr.bf16.mxu0 0
      %429 = vmatpush1.bf16.msra.mxu0 %v411
      %430 = vmatprep.subr.bf16.mxu0 0
      %431 = vmatpush1.bf16.msra.mxu0 %v412
      %432 = vmatprep.subr.bf16.mxu0 0
      %433 = vmatpush1.bf16.msra.mxu0 %v413
      %434 = vmatprep.subr.bf16.mxu0 0
      %435 = vmatpush1.bf16.msra.mxu0 %v414
      %436 = vmatprep.subr.bf16.mxu0 0
      %437 = vmatpush1.bf16.msra.mxu0 %v415
      %438 = vmatprep.subr.bf16.mxu0 0
      %439 = vmatpush1.bf16.msra.mxu0 %v416
      %440 = vmatprep.subr.bf16.mxu0 0
      %441 = vmatpush1.bf16.msra.mxu0 %v417
      %442 = vmatprep.subr.bf16.mxu0 0
      %443 = vmatpush1.bf16.msra.mxu0 0
      %444 = vmatprep.subr.bf16.mxu0 0
      %445 = vmatpush1.bf16.msra.mxu0 0
      %446 = vmatprep.subr.bf16.mxu0 0
      %447 = vmatpush1.bf16.msra.mxu0 0
      %448 = vmatprep.subr.bf16.mxu0 0
      %449 = vmatpush1.bf16.msra.mxu0 0
      %450 = vmatprep.subr.bf16.mxu0 0
      %451 = vmatpush1.bf16.msra.mxu0 0
      %452 = vmatprep.subr.bf16.mxu0 0
      %453 = vmatpush1.bf16.msra.mxu0 0
      %454 = vmatprep.subr.bf16.mxu0 0
      %455 = vmatpush1.bf16.msra.mxu0 0
      %456 = vmatprep.subr.bf16.mxu0 0
      %457 = vmatpush1.bf16.msra.mxu0 0
      %458 = vmatprep.mubr.bf16.mxu0 0
      %459 = vmatmul.mubr.bf16.gmra.mrb[0].mxu0 %v346
      %v460 = vpop.f32.mrb[0].mxu0
      %v461 = vadd.f32 0.0, %v460
      %v462 = vpop.f32.mrb[0].mxu0
      %v463 = vpop.f32.mrb[0].mxu0
      %v464 = vadd.f32 0.0, %v463
      %v465 = vpop.f32.mrb[0].mxu0
      %466 = vmatprep.mubr.bf16.mxu0 0
      %467 = vmatmul.mubr.bf16.gmra.mrb[0].mxu0 %v347
      %v468 = vpop.f32.mrb[0].mxu0
      %v469 = vadd.f32 0.0, %v468
      %v470 = vpop.f32.mrb[0].mxu0
      %v471 = vpop.f32.mrb[0].mxu0
      %v472 = vadd.f32 0.0, %v471
      %v473 = vpop.f32.mrb[0].mxu0
      %474 = vmatprep.mubr.bf16.mxu0 0
      %475 = vmatmul.mubr.bf16.gmra.mrb[0].mxu0 %v348
      %v476 = vpop.f32.mrb[0].mxu0
      %v477 = vadd.f32 0.0, %v476
      %v478 = vpop.f32.mrb[0].mxu0
      %v479 = vpop.f32.mrb[0].mxu0
      %v480 = vadd.f32 0.0, %v479
      %v481 = vpop.f32.mrb[0].mxu0
      %482 = vmatprep.mubr.bf16.mxu0 0
      %483 = vmatmul.mubr.bf16.gmra.mrb[0].mxu0 %v349
      %v484 = vpop.f32.mrb[0].mxu0
      %v485 = vadd.f32 0.0, %v484
      %v486 = vpop.f32.mrb[0].mxu0
      %v487 = vpop.f32.mrb[0].mxu0
      %v488 = vadd.f32 0.0, %v487
      %v489 = vpop.f32.mrb[0].mxu0
      %490 = vmatprep.mubr.bf16.mxu0 0
      %491 = vmatmul.mubr.bf16.gmra.mrb[0].mxu0 %v350
      %v492 = vpop.f32.mrb[0].mxu0
      %v493 = vadd.f32 0.0, %v492
      %v494 = vpop.f32.mrb[0].mxu0
      %v495 = vpop.f32.mrb[0].mxu0
      %v496 = vadd.f32 0.0, %v495
      %v497 = vpop.f32.mrb[0].mxu0
      %498 = vmatprep.mubr.bf16.mxu0 0
      %499 = vmatmul.mubr.bf16.gmra.mrb[0].mxu0 %v351
      %v500 = vpop.f32.mrb[0].mxu0
      %v501 = vadd.f32 0.0, %v500
      %v502 = vpop.f32.mrb[0].mxu0
      %v503 = vpop.f32.mrb[0].mxu0
      %v504 = vadd.f32 0.0, %v503
      %v505 = vpop.f32.mrb[0].mxu0
      %506 = vmatprep.mubr.bf16.mxu0 0
      %507 = vmatmul.mubr.bf16.gmra.mrb[0].mxu0 %v352
      %v508 = vpop.f32.mrb[0].mxu0
      %v509 = vadd.f32 0.0, %v508
      %v510 = vpop.f32.mrb[0].mxu0
      %v511 = vpop.f32.mrb[0].mxu0
      %v512 = vadd.f32 0.0, %v511
      %v513 = vpop.f32.mrb[0].mxu0
      %514 = vmatprep.mubr.bf16.mxu0 0
      %515 = vmatmul.mubr.bf16.gmra.mrb[0].mxu0 %v353
      %v516 = vpop.f32.mrb[0].mxu0
      %v517 = vadd.f32 0.0, %v516
      %v518 = vpop.f32.mrb[0].mxu0
      %v519 = vpop.f32.mrb[0].mxu0
      %v520 = vadd.f32 0.0, %v519
      %v521 = vpop.f32.mrb[0].mxu0
      %522 = vmatprep.mubr.bf16.mxu0 0
      %523 = vmatmul.mubr.bf16.gmra.mrb[0].mxu0 %v354
      %v524 = vpop.f32.mrb[0].mxu0
      %v525 = vadd.f32 0.0, %v524
      %v526 = vpop.f32.mrb[0].mxu0
      %v527 = vpop.f32.mrb[0].mxu0
      %v528 = vadd.f32 0.0, %v527
      %v529 = vpop.f32.mrb[0].mxu0
      %530 = vmatprep.mubr.bf16.mxu0 0
      %531 = vmatmul.mubr.bf16.gmra.mrb[0].mxu0 %v355
      %v532 = vpop.f32.mrb[0].mxu0
      %v533 = vadd.f32 0.0, %v532
      %v534 = vpop.f32.mrb[0].mxu0
      %v535 = vpop.f32.mrb[0].mxu0
      %v536 = vadd.f32 0.0, %v535
      %v537 = vpop.f32.mrb[0].mxu0
      %538 = vmatprep.mubr.bf16.mxu0 0
      %539 = vmatmul.mubr.bf16.gmra.mrb[0].mxu0 %v356
      %v540 = vpop.f32.mrb[0].mxu0
      %v541 = vadd.f32 0.0, %v540
      %v542 = vpop.f32.mrb[0].mxu0
      %v543 = vpop.f32.mrb[0].mxu0
      %v544 = vadd.f32 0.0, %v543
      %v545 = vpop.f32.mrb[0].mxu0
      %546 = vmatprep.mubr.bf16.mxu0 0
      %547 = vmatmul.mubr.bf16.gmra.mrb[0].mxu0 %v357
      %v548 = vpop.f32.mrb[0].mxu0
      %v549 = vadd.f32 0.0, %v548
      %v550 = vpop.f32.mrb[0].mxu0
      %v551 = vpop.f32.mrb[0].mxu0
      %v552 = vadd.f32 0.0, %v551
      %v553 = vpop.f32.mrb[0].mxu0
      %554 = vmatprep.mubr.bf16.mxu0 0
      %555 = vmatmul.mubr.bf16.gmra.mrb[0].mxu0 %v358
      %v556 = vpop.f32.mrb[0].mxu0
      %v557 = vadd.f32 0.0, %v556
      %v558 = vpop.f32.mrb[0].mxu0
      %v559 = vpop.f32.mrb[0].mxu0
      %v560 = vadd.f32 0.0, %v559
      %v561 = vpop.f32.mrb[0].mxu0
      %562 = vmatprep.mubr.bf16.mxu0 0
      %563 = vmatmul.mubr.bf16.gmra.mrb[0].mxu0 %v359
      %v564 = vpop.f32.mrb[0].mxu0
      %v565 = vadd.f32 0.0, %v564
      %v566 = vpop.f32.mrb[0].mxu0
      %v567 = vpop.f32.mrb[0].mxu0
      %v568 = vadd.f32 0.0, %v567
      %v569 = vpop.f32.mrb[0].mxu0
      %570 = vmatprep.mubr.bf16.mxu0 0
      %571 = vmatmul.mubr.bf16.gmra.mrb[0].mxu0 %v360
      %v572 = vpop.f32.mrb[0].mxu0
      %v573 = vadd.f32 0.0, %v572
      %v574 = vpop.f32.mrb[0].mxu0
      %v575 = vpop.f32.mrb[0].mxu0
      %v576 = vadd.f32 0.0, %v575
      %v577 = vpop.f32.mrb[0].mxu0
      %578 = vmatprep.mubr.bf16.mxu0 0
      %579 = vmatmul.mubr.bf16.gmra.mrb[0].mxu0 %v361
      %v580 = vpop.f32.mrb[0].mxu0
      %v581 = vadd.f32 0.0, %v580
      %v582 = vpop.f32.mrb[0].mxu0
      %v583 = vpop.f32.mrb[0].mxu0
      %v584 = vadd.f32 0.0, %v583
      %v585 = vpop.f32.mrb[0].mxu0
      %586 = vdwg.mxu0
      %v587 = vadd.f32 %v234, %v461
      %v588 = vadd.f32 %v235, %v464
      %v589 = vadd.f32 %v236, %v469
      %v590 = vadd.f32 %v237, %v472
      %v591 = vadd.f32 %v238, %v477
      %v592 = vadd.f32 %v239, %v480
      %v593 = vadd.f32 %v240, %v485
      %v594 = vadd.f32 %v241, %v488
      %v595 = vadd.f32 %v242, %v493
      %v596 = vadd.f32 %v243, %v496
      %v597 = vadd.f32 %v244, %v501
      %v598 = vadd.f32 %v245, %v504
      %v599 = vadd.f32 %v246, %v509
      %v600 = vadd.f32 %v247, %v512
      %v601 = vadd.f32 %v248, %v517
      %v602 = vadd.f32 %v249, %v520
      %v603 = vadd.f32 %v250, %v525
      %v604 = vadd.f32 %v251, %v528
      %v605 = vadd.f32 %v252, %v533
      %v606 = vadd.f32 %v253, %v536
      %v607 = vadd.f32 %v254, %v541
      %v608 = vadd.f32 %v255, %v544
      %v609 = vadd.f32 %v256, %v549
      %v610 = vadd.f32 %v257, %v552
      %v611 = vadd.f32 %v258, %v557
      %v612 = vadd.f32 %v259, %v560
      %v613 = vadd.f32 %v260, %v565
      %v614 = vadd.f32 %v261, %v568
      %v615 = vadd.f32 %v262, %v573
      %v616 = vadd.f32 %v263, %v576
      %v617 = vadd.f32 %v264, %v581
      %v618 = vadd.f32 %v265, %v584
      %619 = vst [vmem:[#allocation2] sm:$0xff] %v587
      %620 = vst [vmem:[#allocation2 + $0x8] sm:$0xff] %v588
      %621 = vst [vmem:[#allocation2 + $0x10] sm:$0xff] %v589
      %622 = vst [vmem:[#allocation2 + $0x18] sm:$0xff] %v590
      %623 = vst [vmem:[#allocation2 + $0x20] sm:$0xff] %v591
      %624 = vst [vmem:[#allocation2 + $0x28] sm:$0xff] %v592
      %625 = vst [vmem:[#allocation2 + $0x30] sm:$0xff] %v593
      %626 = vst [vmem:[#allocation2 + $0x38] sm:$0xff] %v594
      %627 = vst [vmem:[#allocation2 + $0x40] sm:$0xff] %v595
      %628 = vst [vmem:[#allocation2 + $0x48] sm:$0xff] %v596
      %629 = vst [vmem:[#allocation2 + $0x50] sm:$0xff] %v597
      %630 = vst [vmem:[#allocation2 + $0x58] sm:$0xff] %v598
      %631 = vst [vmem:[#allocation2 + $0x60] sm:$0xff] %v599
      %632 = vst [vmem:[#allocation2 + $0x68] sm:$0xff] %v600
      %633 = vst [vmem:[#allocation2 + $0x70] sm:$0xff] %v601
      %634 = vst [vmem:[#allocation2 + $0x78] sm:$0xff] %v602
      %635 = vst [vmem:[#allocation2 + $0x80] sm:$0xff] %v603
      %636 = vst [vmem:[#allocation2 + $0x88] sm:$0xff] %v604
      %637 = vst [vmem:[#allocation2 + $0x90] sm:$0xff] %v605
      %638 = vst [vmem:[#allocation2 + $0x98] sm:$0xff] %v606
      %639 = vst [vmem:[#allocation2 + $0xa0] sm:$0xff] %v607
      %640 = vst [vmem:[#allocation2 + $0xa8] sm:$0xff] %v608
      %641 = vst [vmem:[#allocation2 + $0xb0] sm:$0xff] %v609
      %642 = vst [vmem:[#allocation2 + $0xb8] sm:$0xff] %v610
      %643 = vst [vmem:[#allocation2 + $0xc0] sm:$0xff] %v611
      %644 = vst [vmem:[#allocation2 + $0xc8] sm:$0xff] %v612
      %645 = vst [vmem:[#allocation2 + $0xd0] sm:$0xff] %v613
      %646 = vst [vmem:[#allocation2 + $0xd8] sm:$0xff] %v614
      %647 = vst [vmem:[#allocation2 + $0xe0] sm:$0xff] %v615
      %648 = vst [vmem:[#allocation2 + $0xe8] sm:$0xff] %v616
      %649 = vst [vmem:[#allocation2 + $0xf0] sm:$0xff] %v617
      %650 = vst [vmem:[#allocation2 + $0xf8] sm:$0xff] %v618
      %v651 = vld [vmem:[%s163] sm:$0xf]
      %v652 = vld [vmem:[%s163 + $0x4] sm:$0xf]
      %v653 = vld [vmem:[%s163 + $0x8] sm:$0x1]
      %v654 = vld [vmem:[%s163 + $0xc] sm:$0xf]
      %v655 = vld [vmem:[%s163 + $0x10] sm:$0xf]
      %v656 = vld [vmem:[%s163 + $0x14] sm:$0x1]
      %v657 = vld [vmem:[%s163 + $0x18] sm:$0xf]
      %v658 = vld [vmem:[%s163 + $0x1c] sm:$0xf]
      %v659 = vld [vmem:[%s163 + $0x20] sm:$0x1]
      %v660 = vld [vmem:[%s163 + $0x24] sm:$0xf]
      %v661 = vld [vmem:[%s163 + $0x28] sm:$0xf]
      %v662 = vld [vmem:[%s163 + $0x2c] sm:$0x1]
      %v663 = vld [vmem:[%s163 + $0x30] sm:$0xf]
      %v664 = vld [vmem:[%s163 + $0x34] sm:$0xf]
      %v665 = vld [vmem:[%s163 + $0x38] sm:$0x1]
      %v666 = vld [vmem:[%s163 + $0x3c] sm:$0xf]
      %v667 = vld [vmem:[%s163 + $0x40] sm:$0xf]
      %v668 = vld [vmem:[%s163 + $0x44] sm:$0x1]
      %v669 = vld [vmem:[%s163 + $0x48] sm:$0xf]
      %v670 = vld [vmem:[%s163 + $0x4c] sm:$0xf]
      %v671 = vld [vmem:[%s163 + $0x50] sm:$0x1]
      %v672 = vld [vmem:[%s163 + $0x54] sm:$0xf]
      %v673 = vld [vmem:[%s163 + $0x58] sm:$0xf]
      %v674 = vld [vmem:[%s163 + $0x5c] sm:$0x1]
      %v675 = vld [vmem:[%s163 + $0x60] sm:$0xf]
      %v676 = vld [vmem:[%s163 + $0x64] sm:$0xf]
      %v677 = vld [vmem:[%s163 + $0x68] sm:$0x1]
      %v678 = vld [vmem:[%s163 + $0x6c] sm:$0xf]
      %v679 = vld [vmem:[%s163 + $0x70] sm:$0xf]
      %v680 = vld [vmem:[%s163 + $0x74] sm:$0x1]
      %v681 = vld [vmem:[%s163 + $0x78] sm:$0xf]
      %v682 = vld [vmem:[%s163 + $0x7c] sm:$0xf]
      %v683 = vld [vmem:[%s163 + $0x80] sm:$0x1]
      %v684 = vld [vmem:[%s163 + $0x84] sm:$0xf]
      %v685 = vld [vmem:[%s163 + $0x88] sm:$0xf]
      %v686 = vld [vmem:[%s163 + $0x8c] sm:$0x1]
      %v687 = vld [vmem:[%s163 + $0x90] sm:$0xf]
      %v688 = vld [vmem:[%s163 + $0x94] sm:$0xf]
      %v689 = vld [vmem:[%s163 + $0x98] sm:$0x1]
      %v690 = vld [vmem:[%s163 + $0x9c] sm:$0xf]
      %v691 = vld [vmem:[%s163 + $0xa0] sm:$0xf]
      %v692 = vld [vmem:[%s163 + $0xa4] sm:$0x1]
      %v693 = vld [vmem:[%s163 + $0xa8] sm:$0xf]
      %v694 = vld [vmem:[%s163 + $0xac] sm:$0xf]
      %v695 = vld [vmem:[%s163 + $0xb0] sm:$0x1]
      %v696 = vld [vmem:[%s163 + $0xb4] sm:$0xf]
      %v697 = vld [vmem:[%s163 + $0xb8] sm:$0xf]
      %v698 = vld [vmem:[%s163 + $0xbc] sm:$0x1]
      %v699 = vld [vmem:[#allocation2] sm:$0xff]
      %v700 = vld [vmem:[#allocation2 + $0x8] sm:$0xff]
      %v701 = vld [vmem:[#allocation2 + $0x10] sm:$0xff]
      %v702 = vld [vmem:[#allocation2 + $0x18] sm:$0xff]
      %v703 = vld [vmem:[#allocation2 + $0x20] sm:$0xff]
      %v704 = vld [vmem:[#allocation2 + $0x28] sm:$0xff]
      %v705 = vld [vmem:[#allocation2 + $0x30] sm:$0xff]
      %v706 = vld [vmem:[#allocation2 + $0x38] sm:$0xff]
      %v707 = vld [vmem:[#allocation2 + $0x40] sm:$0xff]
      %v708 = vld [vmem:[#allocation2 + $0x48] sm:$0xff]
      %v709 = vld [vmem:[#allocation2 + $0x50] sm:$0xff]
      %v710 = vld [vmem:[#allocation2 + $0x58] sm:$0xff]
      %v711 = vld [vmem:[#allocation2 + $0x60] sm:$0xff]
      %v712 = vld [vmem:[#allocation2 + $0x68] sm:$0xff]
      %v713 = vld [vmem:[#allocation2 + $0x70] sm:$0xff]
      %v714 = vld [vmem:[#allocation2 + $0x78] sm:$0xff]
      %v715 = vld [vmem:[#allocation2 + $0x80] sm:$0xff]
      %v716 = vld [vmem:[#allocation2 + $0x88] sm:$0xff]
      %v717 = vld [vmem:[#allocation2 + $0x90] sm:$0xff]
      %v718 = vld [vmem:[#allocation2 + $0x98] sm:$0xff]
      %v719 = vld [vmem:[#allocation2 + $0xa0] sm:$0xff]
      %v720 = vld [vmem:[#allocation2 + $0xa8] sm:$0xff]
      %v721 = vld [vmem:[#allocation2 + $0xb0] sm:$0xff]
      %v722 = vld [vmem:[#allocation2 + $0xb8] sm:$0xff]
      %v723 = vld [vmem:[#allocation2 + $0xc0] sm:$0xff]
      %v724 = vld [vmem:[#allocation2 + $0xc8] sm:$0xff]
      %v725 = vld [vmem:[#allocation2 + $0xd0] sm:$0xff]
      %v726 = vld [vmem:[#allocation2 + $0xd8] sm:$0xff]
      %v727 = vld [vmem:[#allocation2 + $0xe0] sm:$0xff]
      %v728 = vld [vmem:[#allocation2 + $0xe8] sm:$0xff]
      %v729 = vld [vmem:[#allocation2 + $0xf0] sm:$0xff]
      %v730 = vld [vmem:[#allocation2 + $0xf8] sm:$0xff]
      %vm731 = vsmask.f32 3328
      %vm732 = vsmask.f32 7440
      %vm733 = vmor %vm731, %vm732
      %v735 = vshrl.u32 %v651, 16
      %v737 = vrot.slane %v735, 4
      %v738 = vshll.u32 %v651, 16
      %v740 = vrot.slane %v738, 5
      %v741 = vor.u32 %v737, %v740
      %v742 = vrot.slane %v741, 4
      %v744 = vshll.u32 %v652, 16
      %v746 = vrot.slane %v744, 5
      %v747 = vsel %vm733, %v742, %v746
      %v748 = vshrl.u32 %v652, 16
      %v750 = vrot.slane %v748, 4
      %v751 = vor.u32 %v750, %v746
      %v752 = vrot.slane %v751, 4
      %v754 = vshll.u32 %v653, 16
      %v756 = vrot.slane %v754, 5
      %v757 = vsel %vm733, %v752, %v756
      %v759 = vshrl.u32 %v654, 16
      %v761 = vrot.slane %v759, 4
      %v762 = vshll.u32 %v654, 16
      %v764 = vrot.slane %v762, 5
      %v765 = vor.u32 %v761, %v764
      %v766 = vrot.slane %v765, 4
      %v768 = vshll.u32 %v655, 16
      %v770 = vrot.slane %v768, 5
      %v771 = vsel %vm733, %v766, %v770
      %v772 = vshrl.u32 %v655, 16
      %v774 = vrot.slane %v772, 4
      %v775 = vor.u32 %v774, %v770
      %v776 = vrot.slane %v775, 4
      %v778 = vshll.u32 %v656, 16
      %v780 = vrot.slane %v778, 5
      %v781 = vsel %vm733, %v776, %v780
      %v783 = vshrl.u32 %v657, 16
      %v785 = vrot.slane %v783, 4
      %v786 = vshll.u32 %v657, 16
      %v788 = vrot.slane %v786, 5
      %v789 = vor.u32 %v785, %v788
      %v790 = vrot.slane %v789, 4
      %v792 = vshll.u32 %v658, 16
      %v794 = vrot.slane %v792, 5
      %v795 = vsel %vm733, %v790, %v794
      %v796 = vshrl.u32 %v658, 16
      %v798 = vrot.slane %v796, 4
      %v799 = vor.u32 %v798, %v794
      %v800 = vrot.slane %v799, 4
      %v802 = vshll.u32 %v659, 16
      %v804 = vrot.slane %v802, 5
      %v805 = vsel %vm733, %v800, %v804
      %v807 = vshrl.u32 %v660, 16
      %v809 = vrot.slane %v807, 4
      %v810 = vshll.u32 %v660, 16
      %v812 = vrot.slane %v810, 5
      %v813 = vor.u32 %v809, %v812
      %v814 = vrot.slane %v813, 4
      %v816 = vshll.u32 %v661, 16
      %v818 = vrot.slane %v816, 5
      %v819 = vsel %vm733, %v814, %v818
      %v820 = vshrl.u32 %v661, 16
      %v822 = vrot.slane %v820, 4
      %v823 = vor.u32 %v822, %v818
      %v824 = vrot.slane %v823, 4
      %v826 = vshll.u32 %v662, 16
      %v828 = vrot.slane %v826, 5
      %v829 = vsel %vm733, %v824, %v828
      %v831 = vshrl.u32 %v663, 16
      %v833 = vrot.slane %v831, 4
      %v834 = vshll.u32 %v663, 16
      %v836 = vrot.slane %v834, 5
      %v837 = vor.u32 %v833, %v836
      %v838 = vrot.slane %v837, 4
      %v840 = vshll.u32 %v664, 16
      %v842 = vrot.slane %v840, 5
      %v843 = vsel %vm733, %v838, %v842
      %v844 = vshrl.u32 %v664, 16
      %v846 = vrot.slane %v844, 4
      %v847 = vor.u32 %v846, %v842
      %v848 = vrot.slane %v847, 4
      %v850 = vshll.u32 %v665, 16
      %v852 = vrot.slane %v850, 5
      %v853 = vsel %vm733, %v848, %v852
      %v855 = vshrl.u32 %v666, 16
      %v857 = vrot.slane %v855, 4
      %v858 = vshll.u32 %v666, 16
      %v860 = vrot.slane %v858, 5
      %v861 = vor.u32 %v857, %v860
      %v862 = vrot.slane %v861, 4
      %v864 = vshll.u32 %v667, 16
      %v866 = vrot.slane %v864, 5
      %v867 = vsel %vm733, %v862, %v866
      %v868 = vshrl.u32 %v667, 16
      %v870 = vrot.slane %v868, 4
      %v871 = vor.u32 %v870, %v866
      %v872 = vrot.slane %v871, 4
      %v874 = vshll.u32 %v668, 16
      %v876 = vrot.slane %v874, 5
      %v877 = vsel %vm733, %v872, %v876
      %v879 = vshrl.u32 %v669, 16
      %v881 = vrot.slane %v879, 4
      %v882 = vshll.u32 %v669, 16
      %v884 = vrot.slane %v882, 5
      %v885 = vor.u32 %v881, %v884
      %v886 = vrot.slane %v885, 4
      %v888 = vshll.u32 %v670, 16
      %v890 = vrot.slane %v888, 5
      %v891 = vsel %vm733, %v886, %v890
      %v892 = vshrl.u32 %v670, 16
      %v894 = vrot.slane %v892, 4
      %v895 = vor.u32 %v894, %v890
      %v896 = vrot.slane %v895, 4
      %v898 = vshll.u32 %v671, 16
      %v900 = vrot.slane %v898, 5
      %v901 = vsel %vm733, %v896, %v900
      %v903 = vshrl.u32 %v672, 16
      %v905 = vrot.slane %v903, 4
      %v906 = vshll.u32 %v672, 16
      %v908 = vrot.slane %v906, 5
      %v909 = vor.u32 %v905, %v908
      %v910 = vrot.slane %v909, 4
      %v912 = vshll.u32 %v673, 16
      %v914 = vrot.slane %v912, 5
      %v915 = vsel %vm733, %v910, %v914
      %v916 = vshrl.u32 %v673, 16
      %v918 = vrot.slane %v916, 4
      %v919 = vor.u32 %v918, %v914
      %v920 = vrot.slane %v919, 4
      %v922 = vshll.u32 %v674, 16
      %v924 = vrot.slane %v922, 5
      %v925 = vsel %vm733, %v920, %v924
      %v927 = vshrl.u32 %v675, 16
      %v929 = vrot.slane %v927, 4
      %v930 = vshll.u32 %v675, 16
      %v932 = vrot.slane %v930, 5
      %v933 = vor.u32 %v929, %v932
      %v934 = vrot.slane %v933, 4
      %v936 = vshll.u32 %v676, 16
      %v938 = vrot.slane %v936, 5
      %v939 = vsel %vm733, %v934, %v938
      %v940 = vshrl.u32 %v676, 16
      %v942 = vrot.slane %v940, 4
      %v943 = vor.u32 %v942, %v938
      %v944 = vrot.slane %v943, 4
      %v946 = vshll.u32 %v677, 16
      %v948 = vrot.slane %v946, 5
      %v949 = vsel %vm733, %v944, %v948
      %v951 = vshrl.u32 %v678, 16
      %v953 = vrot.slane %v951, 4
      %v954 = vshll.u32 %v678, 16
      %v956 = vrot.slane %v954, 5
      %v957 = vor.u32 %v953, %v956
      %v958 = vrot.slane %v957, 4
      %v960 = vshll.u32 %v679, 16
      %v962 = vrot.slane %v960, 5
      %v963 = vsel %vm733, %v958, %v962
      %v964 = vshrl.u32 %v679, 16
      %v966 = vrot.slane %v964, 4
      %v967 = vor.u32 %v966, %v962
      %v968 = vrot.slane %v967, 4
      %v970 = vshll.u32 %v680, 16
      %v972 = vrot.slane %v970, 5
      %v973 = vsel %vm733, %v968, %v972
      %v975 = vshrl.u32 %v681, 16
      %v977 = vrot.slane %v975, 4
      %v978 = vshll.u32 %v681, 16
      %v980 = vrot.slane %v978, 5
      %v981 = vor.u32 %v977, %v980
      %v982 = vrot.slane %v981, 4
      %v984 = vshll.u32 %v682, 16
      %v986 = vrot.slane %v984, 5
      %v987 = vsel %vm733, %v982, %v986
      %v988 = vshrl.u32 %v682, 16
      %v990 = vrot.slane %v988, 4
      %v991 = vor.u32 %v990, %v986
      %v992 = vrot.slane %v991, 4
      %v994 = vshll.u32 %v683, 16
      %v996 = vrot.slane %v994, 5
      %v997 = vsel %vm733, %v992, %v996
      %v999 = vshrl.u32 %v684, 16
      %v1001 = vrot.slane %v999, 4
      %v1002 = vshll.u32 %v684, 16
      %v1004 = vrot.slane %v1002, 5
      %v1005 = vor.u32 %v1001, %v1004
      %v1006 = vrot.slane %v1005, 4
      %v1008 = vshll.u32 %v685, 16
      %v1010 = vrot.slane %v1008, 5
      %v1011 = vsel %vm733, %v1006, %v1010
      %v1012 = vshrl.u32 %v685, 16
      %v1014 = vrot.slane %v1012, 4
      %v1015 = vor.u32 %v1014, %v1010
      %v1016 = vrot.slane %v1015, 4
      %v1018 = vshll.u32 %v686, 16
      %v1020 = vrot.slane %v1018, 5
      %v1021 = vsel %vm733, %v1016, %v1020
      %v1023 = vshrl.u32 %v687, 16
      %v1025 = vrot.slane %v1023, 4
      %v1026 = vshll.u32 %v687, 16
      %v1028 = vrot.slane %v1026, 5
      %v1029 = vor.u32 %v1025, %v1028
      %v1030 = vrot.slane %v1029, 4
      %v1032 = vshll.u32 %v688, 16
      %v1034 = vrot.slane %v1032, 5
      %v1035 = vsel %vm733, %v1030, %v1034
      %v1036 = vshrl.u32 %v688, 16
      %v1038 = vrot.slane %v1036, 4
      %v1039 = vor.u32 %v1038, %v1034
      %v1040 = vrot.slane %v1039, 4
      %v1042 = vshll.u32 %v689, 16
      %v1044 = vrot.slane %v1042, 5
      %v1045 = vsel %vm733, %v1040, %v1044
      %v1047 = vshrl.u32 %v690, 16
      %v1049 = vrot.slane %v1047, 4
      %v1050 = vshll.u32 %v690, 16
      %v1052 = vrot.slane %v1050, 5
      %v1053 = vor.u32 %v1049, %v1052
      %v1054 = vrot.slane %v1053, 4
      %v1056 = vshll.u32 %v691, 16
      %v1058 = vrot.slane %v1056, 5
      %v1059 = vsel %vm733, %v1054, %v1058
      %v1060 = vshrl.u32 %v691, 16
      %v1062 = vrot.slane %v1060, 4
      %v1063 = vor.u32 %v1062, %v1058
      %v1064 = vrot.slane %v1063, 4
      %v1066 = vshll.u32 %v692, 16
      %v1068 = vrot.slane %v1066, 5
      %v1069 = vsel %vm733, %v1064, %v1068
      %v1071 = vshrl.u32 %v693, 16
      %v1073 = vrot.slane %v1071, 4
      %v1074 = vshll.u32 %v693, 16
      %v1076 = vrot.slane %v1074, 5
      %v1077 = vor.u32 %v1073, %v1076
      %v1078 = vrot.slane %v1077, 4
      %v1080 = vshll.u32 %v694, 16
      %v1082 = vrot.slane %v1080, 5
      %v1083 = vsel %vm733, %v1078, %v1082
      %v1084 = vshrl.u32 %v694, 16
      %v1086 = vrot.slane %v1084, 4
      %v1087 = vor.u32 %v1086, %v1082
      %v1088 = vrot.slane %v1087, 4
      %v1090 = vshll.u32 %v695, 16
      %v1092 = vrot.slane %v1090, 5
      %v1093 = vsel %vm733, %v1088, %v1092
      %v1095 = vshrl.u32 %v696, 16
      %v1097 = vrot.slane %v1095, 4
      %v1098 = vshll.u32 %v696, 16
      %v1100 = vrot.slane %v1098, 5
      %v1101 = vor.u32 %v1097, %v1100
      %v1102 = vrot.slane %v1101, 4
      %v1104 = vshll.u32 %v697, 16
      %v1106 = vrot.slane %v1104, 5
      %v1107 = vsel %vm733, %v1102, %v1106
      %v1108 = vshrl.u32 %v697, 16
      %v1110 = vrot.slane %v1108, 4
      %v1111 = vor.u32 %v1110, %v1106
      %v1112 = vrot.slane %v1111, 4
      %v1114 = vshll.u32 %v698, 16
      %v1116 = vrot.slane %v1114, 5
      %v1117 = vsel %vm733, %v1112, %v1116
      %s1118 = scalar_lea.vmem %s1, 64
      %v1119 = vld [vmem:[%s1118] sm:$0xf]
      %v1120 = vld [vmem:[%s1118 + $0x4] sm:$0xf]
      %v1121 = vld [vmem:[%s1118 + $0x8] sm:$0xf]
      %v1122 = vld [vmem:[%s1118 + $0xc] sm:$0xf]
      %v1123 = vld [vmem:[%s1118 + $0x10] sm:$0xf]
      %v1124 = vld [vmem:[%s1118 + $0x14] sm:$0xf]
      %v1125 = vld [vmem:[%s1118 + $0x18] sm:$0xf]
      %v1126 = vld [vmem:[%s1118 + $0x1c] sm:$0xf]
      %v1127 = vld [vmem:[%s1118 + $0x20] sm:$0xf]
      %v1128 = vld [vmem:[%s1118 + $0x24] sm:$0xf]
      %v1129 = vld [vmem:[%s1118 + $0x28] sm:$0xf]
      %v1130 = vld [vmem:[%s1118 + $0x2c] sm:$0xf]
      %v1131 = vld [vmem:[%s1118 + $0x30] sm:$0xf]
      %v1132 = vld [vmem:[%s1118 + $0x34] sm:$0xf]
      %v1133 = vld [vmem:[%s1118 + $0x38] sm:$0xf]
      %v1134 = vld [vmem:[%s1118 + $0x3c] sm:$0xf]
      %v1135 = vunpack.c.l.b16 %v747
      %v1136 = vunpack.c.l.b16 %v757
      %v1137 = vunpack.c.l.b16 %v771
      %v1138 = vunpack.c.l.b16 %v781
      %v1139 = vunpack.c.l.b16 %v795
      %v1140 = vunpack.c.l.b16 %v805
      %v1141 = vunpack.c.l.b16 %v819
      %v1142 = vunpack.c.l.b16 %v829
      %v1143 = vunpack.c.l.b16 %v843
      %v1144 = vunpack.c.l.b16 %v853
      %v1145 = vunpack.c.l.b16 %v867
      %v1146 = vunpack.c.l.b16 %v877
      %v1147 = vunpack.c.l.b16 %v891
      %v1148 = vunpack.c.l.b16 %v901
      %v1149 = vunpack.c.l.b16 %v915
      %v1150 = vunpack.c.l.b16 %v925
      %v1151 = vunpack.c.l.b16 %v939
      %v1152 = vunpack.c.l.b16 %v949
      %v1153 = vunpack.c.l.b16 %v963
      %v1154 = vunpack.c.l.b16 %v973
      %v1155 = vunpack.c.l.b16 %v987
      %v1156 = vunpack.c.l.b16 %v997
      %v1157 = vunpack.c.l.b16 %v1011
      %v1158 = vunpack.c.l.b16 %v1021
      %v1159 = vunpack.c.l.b16 %v1035
      %v1160 = vunpack.c.l.b16 %v1045
      %v1161 = vunpack.c.l.b16 %v1059
      %v1162 = vunpack.c.l.b16 %v1069
      %v1163 = vunpack.c.l.b16 %v1083
      %v1164 = vunpack.c.l.b16 %v1093
      %v1165 = vunpack.c.l.b16 %v1107
      %v1166 = vunpack.c.l.b16 %v1117
      %v1167 = vpack.c.b16 %v1136, %v1135
      %v1168 = vpack.c.b16 %v1138, %v1137
      %v1169 = vpack.c.b16 %v1140, %v1139
      %v1170 = vpack.c.b16 %v1142, %v1141
      %v1171 = vpack.c.b16 %v1144, %v1143
      %v1172 = vpack.c.b16 %v1146, %v1145
      %v1173 = vpack.c.b16 %v1148, %v1147
      %v1174 = vpack.c.b16 %v1150, %v1149
      %v1175 = vpack.c.b16 %v1152, %v1151
      %v1176 = vpack.c.b16 %v1154, %v1153
      %v1177 = vpack.c.b16 %v1156, %v1155
      %v1178 = vpack.c.b16 %v1158, %v1157
      %v1179 = vpack.c.b16 %v1160, %v1159
      %v1180 = vpack.c.b16 %v1162, %v1161
      %v1181 = vpack.c.b16 %v1164, %v1163
      %v1182 = vpack.c.b16 %v1166, %v1165
      %v1215 = vunpack.c.l.b16 %v1119
      %v1216 = vunpack.c.l.b16 %v1120
      %v1217 = vunpack.c.l.b16 %v1121
      %v1218 = vunpack.c.l.b16 %v1122
      %v1219 = vunpack.c.l.b16 %v1123
      %v1220 = vunpack.c.l.b16 %v1124
      %v1221 = vunpack.c.l.b16 %v1125
      %v1222 = vunpack.c.l.b16 %v1126
      %v1223 = vunpack.c.l.b16 %v1127
      %v1224 = vunpack.c.l.b16 %v1128
      %v1225 = vunpack.c.l.b16 %v1129
      %v1226 = vunpack.c.l.b16 %v1130
      %v1227 = vunpack.c.l.b16 %v1131
      %v1228 = vunpack.c.l.b16 %v1132
      %v1229 = vunpack.c.l.b16 %v1133
      %v1230 = vunpack.c.l.b16 %v1134
      %v1231 = vpack.c.b16 %v1216, %v1215
      %v1232 = vpack.c.b16 %v1218, %v1217
      %v1233 = vpack.c.b16 %v1220, %v1219
      %v1234 = vpack.c.b16 %v1222, %v1221
      %v1235 = vpack.c.b16 %v1224, %v1223
      %v1236 = vpack.c.b16 %v1226, %v1225
      %v1237 = vpack.c.b16 %v1228, %v1227
      %v1238 = vpack.c.b16 %v1230, %v1229
      %1247 = vmatprep.subr.bf16.mxu0 0
      %1248 = vmatpush1.bf16.msra.mxu0 %v1231
      %1249 = vmatprep.subr.bf16.mxu0 0
      %1250 = vmatpush1.bf16.msra.mxu0 %v1232
      %1251 = vmatprep.subr.bf16.mxu0 0
      %1252 = vmatpush1.bf16.msra.mxu0 %v1233
      %1253 = vmatprep.subr.bf16.mxu0 0
      %1254 = vmatpush1.bf16.msra.mxu0 %v1234
      %1255 = vmatprep.subr.bf16.mxu0 0
      %1256 = vmatpush1.bf16.msra.mxu0 %v1235
      %1257 = vmatprep.subr.bf16.mxu0 0
      %1258 = vmatpush1.bf16.msra.mxu0 %v1236
      %1259 = vmatprep.subr.bf16.mxu0 0
      %1260 = vmatpush1.bf16.msra.mxu0 %v1237
      %1261 = vmatprep.subr.bf16.mxu0 0
      %1262 = vmatpush1.bf16.msra.mxu0 %v1238
      %1263 = vmatprep.subr.bf16.mxu0 0
      %1264 = vmatpush1.bf16.msra.mxu0 0
      %1265 = vmatprep.subr.bf16.mxu0 0
      %1266 = vmatpush1.bf16.msra.mxu0 0
      %1267 = vmatprep.subr.bf16.mxu0 0
      %1268 = vmatpush1.bf16.msra.mxu0 0
      %1269 = vmatprep.subr.bf16.mxu0 0
      %1270 = vmatpush1.bf16.msra.mxu0 0
      %1271 = vmatprep.subr.bf16.mxu0 0
      %1272 = vmatpush1.bf16.msra.mxu0 0
      %1273 = vmatprep.subr.bf16.mxu0 0
      %1274 = vmatpush1.bf16.msra.mxu0 0
      %1275 = vmatprep.subr.bf16.mxu0 0
      %1276 = vmatpush1.bf16.msra.mxu0 0
      %1277 = vmatprep.subr.bf16.mxu0 0
      %1278 = vmatpush1.bf16.msra.mxu0 0
      %1279 = vmatprep.mubr.bf16.mxu0 0
      %1280 = vmatmul.mubr.bf16.gmra.mrb[0].mxu0 %v1167
      %v1281 = vpop.f32.mrb[0].mxu0
      %v1282 = vadd.f32 0.0, %v1281
      %v1283 = vpop.f32.mrb[0].mxu0
      %v1284 = vpop.f32.mrb[0].mxu0
      %v1285 = vadd.f32 0.0, %v1284
      %v1286 = vpop.f32.mrb[0].mxu0
      %1287 = vmatprep.mubr.bf16.mxu0 0
      %1288 = vmatmul.mubr.bf16.gmra.mrb[0].mxu0 %v1168
      %v1289 = vpop.f32.mrb[0].mxu0
      %v1290 = vadd.f32 0.0, %v1289
      %v1291 = vpop.f32.mrb[0].mxu0
      %v1292 = vpop.f32.mrb[0].mxu0
      %v1293 = vadd.f32 0.0, %v1292
      %v1294 = vpop.f32.mrb[0].mxu0
      %1295 = vmatprep.mubr.bf16.mxu0 0
      %1296 = vmatmul.mubr.bf16.gmra.mrb[0].mxu0 %v1169
      %v1297 = vpop.f32.mrb[0].mxu0
      %v1298 = vadd.f32 0.0, %v1297
      %v1299 = vpop.f32.mrb[0].mxu0
      %v1300 = vpop.f32.mrb[0].mxu0
      %v1301 = vadd.f32 0.0, %v1300
      %v1302 = vpop.f32.mrb[0].mxu0
      %1303 = vmatprep.mubr.bf16.mxu0 0
      %1304 = vmatmul.mubr.bf16.gmra.mrb[0].mxu0 %v1170
      %v1305 = vpop.f32.mrb[0].mxu0
      %v1306 = vadd.f32 0.0, %v1305
      %v1307 = vpop.f32.mrb[0].mxu0
      %v1308 = vpop.f32.mrb[0].mxu0
      %v1309 = vadd.f32 0.0, %v1308
      %v1310 = vpop.f32.mrb[0].mxu0
      %1311 = vmatprep.mubr.bf16.mxu0 0
      %1312 = vmatmul.mubr.bf16.gmra.mrb[0].mxu0 %v1171
      %v1313 = vpop.f32.mrb[0].mxu0
      %v1314 = vadd.f32 0.0, %v1313
      %v1315 = vpop.f32.mrb[0].mxu0
      %v1316 = vpop.f32.mrb[0].mxu0
      %v1317 = vadd.f32 0.0, %v1316
      %v1318 = vpop.f32.mrb[0].mxu0
      %1319 = vmatprep.mubr.bf16.mxu0 0
      %1320 = vmatmul.mubr.bf16.gmra.mrb[0].mxu0 %v1172
      %v1321 = vpop.f32.mrb[0].mxu0
      %v1322 = vadd.f32 0.0, %v1321
      %v1323 = vpop.f32.mrb[0].mxu0
      %v1324 = vpop.f32.mrb[0].mxu0
      %v1325 = vadd.f32 0.0, %v1324
      %v1326 = vpop.f32.mrb[0].mxu0
      %1327 = vmatprep.mubr.bf16.mxu0 0
      %1328 = vmatmul.mubr.bf16.gmra.mrb[0].mxu0 %v1173
      %v1329 = vpop.f32.mrb[0].mxu0
      %v1330 = vadd.f32 0.0, %v1329
      %v1331 = vpop.f32.mrb[0].mxu0
      %v1332 = vpop.f32.mrb[0].mxu0
      %v1333 = vadd.f32 0.0, %v1332
      %v1334 = vpop.f32.mrb[0].mxu0
      %1335 = vmatprep.mubr.bf16.mxu0 0
      %1336 = vmatmul.mubr.bf16.gmra.mrb[0].mxu0 %v1174
      %v1337 = vpop.f32.mrb[0].mxu0
      %v1338 = vadd.f32 0.0, %v1337
      %v1339 = vpop.f32.mrb[0].mxu0
      %v1340 = vpop.f32.mrb[0].mxu0
      %v1341 = vadd.f32 0.0, %v1340
      %v1342 = vpop.f32.mrb[0].mxu0
      %1343 = vmatprep.mubr.bf16.mxu0 0
      %1344 = vmatmul.mubr.bf16.gmra.mrb[0].mxu0 %v1175
      %v1345 = vpop.f32.mrb[0].mxu0
      %v1346 = vadd.f32 0.0, %v1345
      %v1347 = vpop.f32.mrb[0].mxu0
      %v1348 = vpop.f32.mrb[0].mxu0
      %v1349 = vadd.f32 0.0, %v1348
      %v1350 = vpop.f32.mrb[0].mxu0
      %1351 = vmatprep.mubr.bf16.mxu0 0
      %1352 = vmatmul.mubr.bf16.gmra.mrb[0].mxu0 %v1176
      %v1353 = vpop.f32.mrb[0].mxu0
      %v1354 = vadd.f32 0.0, %v1353
      %v1355 = vpop.f32.mrb[0].mxu0
      %v1356 = vpop.f32.mrb[0].mxu0
      %v1357 = vadd.f32 0.0, %v1356
      %v1358 = vpop.f32.mrb[0].mxu0
      %1359 = vmatprep.mubr.bf16.mxu0 0
      %1360 = vmatmul.mubr.bf16.gmra.mrb[0].mxu0 %v1177
      %v1361 = vpop.f32.mrb[0].mxu0
      %v1362 = vadd.f32 0.0, %v1361
      %v1363 = vpop.f32.mrb[0].mxu0
      %v1364 = vpop.f32.mrb[0].mxu0
      %v1365 = vadd.f32 0.0, %v1364
      %v1366 = vpop.f32.mrb[0].mxu0
      %1367 = vmatprep.mubr.bf16.mxu0 0
      %1368 = vmatmul.mubr.bf16.gmra.mrb[0].mxu0 %v1178
      %v1369 = vpop.f32.mrb[0].mxu0
      %v1370 = vadd.f32 0.0, %v1369
      %v1371 = vpop.f32.mrb[0].mxu0
      %v1372 = vpop.f32.mrb[0].mxu0
      %v1373 = vadd.f32 0.0, %v1372
      %v1374 = vpop.f32.mrb[0].mxu0
      %1375 = vmatprep.mubr.bf16.mxu0 0
      %1376 = vmatmul.mubr.bf16.gmra.mrb[0].mxu0 %v1179
      %v1377 = vpop.f32.mrb[0].mxu0
      %v1378 = vadd.f32 0.0, %v1377
      %v1379 = vpop.f32.mrb[0].mxu0
      %v1380 = vpop.f32.mrb[0].mxu0
      %v1381 = vadd.f32 0.0, %v1380
      %v1382 = vpop.f32.mrb[0].mxu0
      %1383 = vmatprep.mubr.bf16.mxu0 0
      %1384 = vmatmul.mubr.bf16.gmra.mrb[0].mxu0 %v1180
      %v1385 = vpop.f32.mrb[0].mxu0
      %v1386 = vadd.f32 0.0, %v1385
      %v1387 = vpop.f32.mrb[0].mxu0
      %v1388 = vpop.f32.mrb[0].mxu0
      %v1389 = vadd.f32 0.0, %v1388
      %v1390 = vpop.f32.mrb[0].mxu0
      %1391 = vmatprep.mubr.bf16.mxu0 0
      %1392 = vmatmul.mubr.bf16.gmra.mrb[0].mxu0 %v1181
      %v1393 = vpop.f32.mrb[0].mxu0
      %v1394 = vadd.f32 0.0, %v1393
      %v1395 = vpop.f32.mrb[0].mxu0
      %v1396 = vpop.f32.mrb[0].mxu0
      %v1397 = vadd.f32 0.0, %v1396
      %v1398 = vpop.f32.mrb[0].mxu0
      %1399 = vmatprep.mubr.bf16.mxu0 0
      %1400 = vmatmul.mubr.bf16.gmra.mrb[0].mxu0 %v1182
      %v1401 = vpop.f32.mrb[0].mxu0
      %v1402 = vadd.f32 0.0, %v1401
      %v1403 = vpop.f32.mrb[0].mxu0
      %v1404 = vpop.f32.mrb[0].mxu0
      %v1405 = vadd.f32 0.0, %v1404
      %v1406 = vpop.f32.mrb[0].mxu0
      %1407 = vdwg.mxu0
      %v1408 = vadd.f32 %v699, %v1282
      %v1409 = vadd.f32 %v700, %v1285
      %v1410 = vadd.f32 %v701, %v1290
      %v1411 = vadd.f32 %v702, %v1293
      %v1412 = vadd.f32 %v703, %v1298
      %v1413 = vadd.f32 %v704, %v1301
      %v1414 = vadd.f32 %v705, %v1306
      %v1415 = vadd.f32 %v706, %v1309
      %v1416 = vadd.f32 %v707, %v1314
      %v1417 = vadd.f32 %v708, %v1317
      %v1418 = vadd.f32 %v709, %v1322
      %v1419 = vadd.f32 %v710, %v1325
      %v1420 = vadd.f32 %v711, %v1330
      %v1421 = vadd.f32 %v712, %v1333
      %v1422 = vadd.f32 %v713, %v1338
      %v1423 = vadd.f32 %v714, %v1341
      %v1424 = vadd.f32 %v715, %v1346
      %v1425 = vadd.f32 %v716, %v1349
      %v1426 = vadd.f32 %v717, %v1354
      %v1427 = vadd.f32 %v718, %v1357
      %v1428 = vadd.f32 %v719, %v1362
      %v1429 = vadd.f32 %v720, %v1365
      %v1430 = vadd.f32 %v721, %v1370
      %v1431 = vadd.f32 %v722, %v1373
      %v1432 = vadd.f32 %v723, %v1378
      %v1433 = vadd.f32 %v724, %v1381
      %v1434 = vadd.f32 %v725, %v1386
      %v1435 = vadd.f32 %v726, %v1389
      %v1436 = vadd.f32 %v727, %v1394
      %v1437 = vadd.f32 %v728, %v1397
      %v1438 = vadd.f32 %v729, %v1402
      %v1439 = vadd.f32 %v730, %v1405
      %1440 = vst [vmem:[#allocation2] sm:$0xff] %v1408
      %1441 = vst [vmem:[#allocation2 + $0x8] sm:$0xff] %v1409
      %1442 = vst [vmem:[#allocation2 + $0x10] sm:$0xff] %v1410
      %1443 = vst [vmem:[#allocation2 + $0x18] sm:$0xff] %v1411
      %1444 = vst [vmem:[#allocation2 + $0x20] sm:$0xff] %v1412
      %1445 = vst [vmem:[#allocation2 + $0x28] sm:$0xff] %v1413
      %1446 = vst [vmem:[#allocation2 + $0x30] sm:$0xff] %v1414
      %1447 = vst [vmem:[#allocation2 + $0x38] sm:$0xff] %v1415
      %1448 = vst [vmem:[#allocation2 + $0x40] sm:$0xff] %v1416
      %1449 = vst [vmem:[#allocation2 + $0x48] sm:$0xff] %v1417
      %1450 = vst [vmem:[#allocation2 + $0x50] sm:$0xff] %v1418
      %1451 = vst [vmem:[#allocation2 + $0x58] sm:$0xff] %v1419
      %1452 = vst [vmem:[#allocation2 + $0x60] sm:$0xff] %v1420
      %1453 = vst [vmem:[#allocation2 + $0x68] sm:$0xff] %v1421
      %1454 = vst [vmem:[#allocation2 + $0x70] sm:$0xff] %v1422
      %1455 = vst [vmem:[#allocation2 + $0x78] sm:$0xff] %v1423
      %1456 = vst [vmem:[#allocation2 + $0x80] sm:$0xff] %v1424
      %1457 = vst [vmem:[#allocation2 + $0x88] sm:$0xff] %v1425
      %1458 = vst [vmem:[#allocation2 + $0x90] sm:$0xff] %v1426
      %1459 = vst [vmem:[#allocation2 + $0x98] sm:$0xff] %v1427
      %1460 = vst [vmem:[#allocation2 + $0xa0] sm:$0xff] %v1428
      %1461 = vst [vmem:[#allocation2 + $0xa8] sm:$0xff] %v1429
      %1462 = vst [vmem:[#allocation2 + $0xb0] sm:$0xff] %v1430
      %1463 = vst [vmem:[#allocation2 + $0xb8] sm:$0xff] %v1431
      %1464 = vst [vmem:[#allocation2 + $0xc0] sm:$0xff] %v1432
      %1465 = vst [vmem:[#allocation2 + $0xc8] sm:$0xff] %v1433
      %1466 = vst [vmem:[#allocation2 + $0xd0] sm:$0xff] %v1434
      %1467 = vst [vmem:[#allocation2 + $0xd8] sm:$0xff] %v1435
      %1468 = vst [vmem:[#allocation2 + $0xe0] sm:$0xff] %v1436
      %1469 = vst [vmem:[#allocation2 + $0xe8] sm:$0xff] %v1437
      %1470 = vst [vmem:[#allocation2 + $0xf0] sm:$0xff] %v1438
      %1471 = vst [vmem:[#allocation2 + $0xf8] sm:$0xff] %v1439
      %v1472 = vld [vmem:[%s163] sm:$0xe]
      %v1473 = vld [vmem:[%s163 + $0x4] sm:$0xf]
      %v1474 = vld [vmem:[%s163 + $0x8] sm:$0x1]
      %v1475 = vld [vmem:[%s163 + $0xc] sm:$0xe]
      %v1476 = vld [vmem:[%s163 + $0x10] sm:$0xf]
      %v1477 = vld [vmem:[%s163 + $0x14] sm:$0x1]
      %v1478 = vld [vmem:[%s163 + $0x18] sm:$0xe]
      %v1479 = vld [vmem:[%s163 + $0x1c] sm:$0xf]
      %v1480 = vld [vmem:[%s163 + $0x20] sm:$0x1]
      %v1481 = vld [vmem:[%s163 + $0x24] sm:$0xe]
      %v1482 = vld [vmem:[%s163 + $0x28] sm:$0xf]
      %v1483 = vld [vmem:[%s163 + $0x2c] sm:$0x1]
      %v1484 = vld [vmem:[%s163 + $0x30] sm:$0xe]
      %v1485 = vld [vmem:[%s163 + $0x34] sm:$0xf]
      %v1486 = vld [vmem:[%s163 + $0x38] sm:$0x1]
      %v1487 = vld [vmem:[%s163 + $0x3c] sm:$0xe]
      %v1488 = vld [vmem:[%s163 + $0x40] sm:$0xf]
      %v1489 = vld [vmem:[%s163 + $0x44] sm:$0x1]
      %v1490 = vld [vmem:[%s163 + $0x48] sm:$0xe]
      %v1491 = vld [vmem:[%s163 + $0x4c] sm:$0xf]
      %v1492 = vld [vmem:[%s163 + $0x50] sm:$0x1]
      %v1493 = vld [vmem:[%s163 + $0x54] sm:$0xe]
      %v1494 = vld [vmem:[%s163 + $0x58] sm:$0xf]
      %v1495 = vld [vmem:[%s163 + $0x5c] sm:$0x1]
      %v1496 = vld [vmem:[%s163 + $0x60] sm:$0xe]
      %v1497 = vld [vmem:[%s163 + $0x64] sm:$0xf]
      %v1498 = vld [vmem:[%s163 + $0x68] sm:$0x1]
      %v1499 = vld [vmem:[%s163 + $0x6c] sm:$0xe]
      %v1500 = vld [vmem:[%s163 + $0x70] sm:$0xf]
      %v1501 = vld [vmem:[%s163 + $0x74] sm:$0x1]
      %v1502 = vld [vmem:[%s163 + $0x78] sm:$0xe]
      %v1503 = vld [vmem:[%s163 + $0x7c] sm:$0xf]
      %v1504 = vld [vmem:[%s163 + $0x80] sm:$0x1]
      %v1505 = vld [vmem:[%s163 + $0x84] sm:$0xe]
      %v1506 = vld [vmem:[%s163 + $0x88] sm:$0xf]
      %v1507 = vld [vmem:[%s163 + $0x8c] sm:$0x1]
      %v1508 = vld [vmem:[%s163 + $0x90] sm:$0xe]
      %v1509 = vld [vmem:[%s163 + $0x94] sm:$0xf]
      %v1510 = vld [vmem:[%s163 + $0x98] sm:$0x1]
      %v1511 = vld [vmem:[%s163 + $0x9c] sm:$0xe]
      %v1512 = vld [vmem:[%s163 + $0xa0] sm:$0xf]
      %v1513 = vld [vmem:[%s163 + $0xa4] sm:$0x1]
      %v1514 = vld [vmem:[%s163 + $0xa8] sm:$0xe]
      %v1515 = vld [vmem:[%s163 + $0xac] sm:$0xf]
      %v1516 = vld [vmem:[%s163 + $0xb0] sm:$0x1]
      %v1517 = vld [vmem:[%s163 + $0xb4] sm:$0xe]
      %v1518 = vld [vmem:[%s163 + $0xb8] sm:$0xf]
      %v1519 = vld [vmem:[%s163 + $0xbc] sm:$0x1]
      %v1520 = vld [vmem:[#allocation2] sm:$0xff]
      %v1521 = vld [vmem:[#allocation2 + $0x8] sm:$0xff]
      %v1522 = vld [vmem:[#allocation2 + $0x10] sm:$0xff]
      %v1523 = vld [vmem:[#allocation2 + $0x18] sm:$0xff]
      %v1524 = vld [vmem:[#allocation2 + $0x20] sm:$0xff]
      %v1525 = vld [vmem:[#allocation2 + $0x28] sm:$0xff]
      %v1526 = vld [vmem:[#allocation2 + $0x30] sm:$0xff]
      %v1527 = vld [vmem:[#allocation2 + $0x38] sm:$0xff]
      %v1528 = vld [vmem:[#allocation2 + $0x40] sm:$0xff]
      %v1529 = vld [vmem:[#allocation2 + $0x48] sm:$0xff]
      %v1530 = vld [vmem:[#allocation2 + $0x50] sm:$0xff]
      %v1531 = vld [vmem:[#allocation2 + $0x58] sm:$0xff]
      %v1532 = vld [vmem:[#allocation2 + $0x60] sm:$0xff]
      %v1533 = vld [vmem:[#allocation2 + $0x68] sm:$0xff]
      %v1534 = vld [vmem:[#allocation2 + $0x70] sm:$0xff]
      %v1535 = vld [vmem:[#allocation2 + $0x78] sm:$0xff]
      %v1536 = vld [vmem:[#allocation2 + $0x80] sm:$0xff]
      %v1537 = vld [vmem:[#allocation2 + $0x88] sm:$0xff]
      %v1538 = vld [vmem:[#allocation2 + $0x90] sm:$0xff]
      %v1539 = vld [vmem:[#allocation2 + $0x98] sm:$0xff]
      %v1540 = vld [vmem:[#allocation2 + $0xa0] sm:$0xff]
      %v1541 = vld [vmem:[#allocation2 + $0xa8] sm:$0xff]
      %v1542 = vld [vmem:[#allocation2 + $0xb0] sm:$0xff]
      %v1543 = vld [vmem:[#allocation2 + $0xb8] sm:$0xff]
      %v1544 = vld [vmem:[#allocation2 + $0xc0] sm:$0xff]
      %v1545 = vld [vmem:[#allocation2 + $0xc8] sm:$0xff]
      %v1546 = vld [vmem:[#allocation2 + $0xd0] sm:$0xff]
      %v1547 = vld [vmem:[#allocation2 + $0xd8] sm:$0xff]
      %v1548 = vld [vmem:[#allocation2 + $0xe0] sm:$0xff]
      %v1549 = vld [vmem:[#allocation2 + $0xe8] sm:$0xff]
      %v1550 = vld [vmem:[#allocation2 + $0xf0] sm:$0xff]
      %v1551 = vld [vmem:[#allocation2 + $0xf8] sm:$0xff]
      %vm1600 = vcmask 1042432
      %vm1601 = vcmask 1046532
      %vm1602 = vmor %vm1600, %vm1601
      %v1603 = vrot.slane %v1472, 5
      %v1604 = vrot.slane %v1603, 4
      %v1605 = vrot.slane %v1473, 5
      %v1606 = vsel %vm1602, %v1604, %v1605
      %v1607 = vrot.slane %v1605, 4
      %v1608 = vrot.slane %v1474, 5
      %v1609 = vsel %vm1602, %v1607, %v1608
      %v1610 = vrot.slane %v1475, 5
      %v1611 = vrot.slane %v1610, 4
      %v1612 = vrot.slane %v1476, 5
      %v1613 = vsel %vm1602, %v1611, %v1612
      %v1614 = vrot.slane %v1612, 4
      %v1615 = vrot.slane %v1477, 5
      %v1616 = vsel %vm1602, %v1614, %v1615
      %v1617 = vrot.slane %v1478, 5
      %v1618 = vrot.slane %v1617, 4
      %v1619 = vrot.slane %v1479, 5
      %v1620 = vsel %vm1602, %v1618, %v1619
      %v1621 = vrot.slane %v1619, 4
      %v1622 = vrot.slane %v1480, 5
      %v1623 = vsel %vm1602, %v1621, %v1622
      %v1624 = vrot.slane %v1481, 5
      %v1625 = vrot.slane %v1624, 4
      %v1626 = vrot.slane %v1482, 5
      %v1627 = vsel %vm1602, %v1625, %v1626
      %v1628 = vrot.slane %v1626, 4
      %v1629 = vrot.slane %v1483, 5
      %v1630 = vsel %vm1602, %v1628, %v1629
      %v1631 = vrot.slane %v1484, 5
      %v1632 = vrot.slane %v1631, 4
      %v1633 = vrot.slane %v1485, 5
      %v1634 = vsel %vm1602, %v1632, %v1633
      %v1635 = vrot.slane %v1633, 4
      %v1636 = vrot.slane %v1486, 5
      %v1637 = vsel %vm1602, %v1635, %v1636
      %v1638 = vrot.slane %v1487, 5
      %v1639 = vrot.slane %v1638, 4
      %v1640 = vrot.slane %v1488, 5
      %v1641 = vsel %vm1602, %v1639, %v1640
      %v1642 = vrot.slane %v1640, 4
      %v1643 = vrot.slane %v1489, 5
      %v1644 = vsel %vm1602, %v1642, %v1643
      %v1645 = vrot.slane %v1490, 5
      %v1646 = vrot.slane %v1645, 4
      %v1647 = vrot.slane %v1491, 5
      %v1648 = vsel %vm1602, %v1646, %v1647
      %v1649 = vrot.slane %v1647, 4
      %v1650 = vrot.slane %v1492, 5
      %v1651 = vsel %vm1602, %v1649, %v1650
      %v1652 = vrot.slane %v1493, 5
      %v1653 = vrot.slane %v1652, 4
      %v1654 = vrot.slane %v1494, 5
      %v1655 = vsel %vm1602, %v1653, %v1654
      %v1656 = vrot.slane %v1654, 4
      %v1657 = vrot.slane %v1495, 5
      %v1658 = vsel %vm1602, %v1656, %v1657
      %v1659 = vrot.slane %v1496, 5
      %v1660 = vrot.slane %v1659, 4
      %v1661 = vrot.slane %v1497, 5
      %v1662 = vsel %vm1602, %v1660, %v1661
      %v1663 = vrot.slane %v1661, 4
      %v1664 = vrot.slane %v1498, 5
      %v1665 = vsel %vm1602, %v1663, %v1664
      %v1666 = vrot.slane %v1499, 5
      %v1667 = vrot.slane %v1666, 4
      %v1668 = vrot.slane %v1500, 5
      %v1669 = vsel %vm1602, %v1667, %v1668
      %v1670 = vrot.slane %v1668, 4
      %v1671 = vrot.slane %v1501, 5
      %v1672 = vsel %vm1602, %v1670, %v1671
      %v1673 = vrot.slane %v1502, 5
      %v1674 = vrot.slane %v1673, 4
      %v1675 = vrot.slane %v1503, 5
      %v1676 = vsel %vm1602, %v1674, %v1675
      %v1677 = vrot.slane %v1675, 4
      %v1678 = vrot.slane %v1504, 5
      %v1679 = vsel %vm1602, %v1677, %v1678
      %v1680 = vrot.slane %v1505, 5
      %v1681 = vrot.slane %v1680, 4
      %v1682 = vrot.slane %v1506, 5
      %v1683 = vsel %vm1602, %v1681, %v1682
      %v1684 = vrot.slane %v1682, 4
      %v1685 = vrot.slane %v1507, 5
      %v1686 = vsel %vm1602, %v1684, %v1685
      %v1687 = vrot.slane %v1508, 5
      %v1688 = vrot.slane %v1687, 4
      %v1689 = vrot.slane %v1509, 5
      %v1690 = vsel %vm1602, %v1688, %v1689
      %v1691 = vrot.slane %v1689, 4
      %v1692 = vrot.slane %v1510, 5
      %v1693 = vsel %vm1602, %v1691, %v1692
      %v1694 = vrot.slane %v1511, 5
      %v1695 = vrot.slane %v1694, 4
      %v1696 = vrot.slane %v1512, 5
      %v1697 = vsel %vm1602, %v1695, %v1696
      %v1698 = vrot.slane %v1696, 4
      %v1699 = vrot.slane %v1513, 5
      %v1700 = vsel %vm1602, %v1698, %v1699
      %v1701 = vrot.slane %v1514, 5
      %v1702 = vrot.slane %v1701, 4
      %v1703 = vrot.slane %v1515, 5
      %v1704 = vsel %vm1602, %v1702, %v1703
      %v1705 = vrot.slane %v1703, 4
      %v1706 = vrot.slane %v1516, 5
      %v1707 = vsel %vm1602, %v1705, %v1706
      %v1708 = vrot.slane %v1517, 5
      %v1709 = vrot.slane %v1708, 4
      %v1710 = vrot.slane %v1518, 5
      %v1711 = vsel %vm1602, %v1709, %v1710
      %v1712 = vrot.slane %v1710, 4
      %v1713 = vrot.slane %v1519, 5
      %v1714 = vsel %vm1602, %v1712, %v1713
      %s1715 = scalar_lea.vmem %s1, 128
      %v1716 = vld [vmem:[%s1715] sm:$0xf]
      %v1717 = vld [vmem:[%s1715 + $0x4] sm:$0xf]
      %v1718 = vld [vmem:[%s1715 + $0x8] sm:$0xf]
      %v1719 = vld [vmem:[%s1715 + $0xc] sm:$0xf]
      %v1720 = vld [vmem:[%s1715 + $0x10] sm:$0xf]
      %v1721 = vld [vmem:[%s1715 + $0x14] sm:$0xf]
      %v1722 = vld [vmem:[%s1715 + $0x18] sm:$0xf]
      %v1723 = vld [vmem:[%s1715 + $0x1c] sm:$0xf]
      %v1724 = vld [vmem:[%s1715 + $0x20] sm:$0xf]
      %v1725 = vld [vmem:[%s1715 + $0x24] sm:$0xf]
      %v1726 = vld [vmem:[%s1715 + $0x28] sm:$0xf]
      %v1727 = vld [vmem:[%s1715 + $0x2c] sm:$0xf]
      %v1728 = vld [vmem:[%s1715 + $0x30] sm:$0xf]
      %v1729 = vld [vmem:[%s1715 + $0x34] sm:$0xf]
      %v1730 = vld [vmem:[%s1715 + $0x38] sm:$0xf]
      %v1731 = vld [vmem:[%s1715 + $0x3c] sm:$0xf]
      %v1732 = vunpack.c.l.b16 %v1606
      %v1733 = vunpack.c.l.b16 %v1609
      %v1734 = vunpack.c.l.b16 %v1613
      %v1735 = vunpack.c.l.b16 %v1616
      %v1736 = vunpack.c.l.b16 %v1620
      %v1737 = vunpack.c.l.b16 %v1623
      %v1738 = vunpack.c.l.b16 %v1627
      %v1739 = vunpack.c.l.b16 %v1630
      %v1740 = vunpack.c.l.b16 %v1634
      %v1741 = vunpack.c.l.b16 %v1637
      %v1742 = vunpack.c.l.b16 %v1641
      %v1743 = vunpack.c.l.b16 %v1644
      %v1744 = vunpack.c.l.b16 %v1648
      %v1745 = vunpack.c.l.b16 %v1651
      %v1746 = vunpack.c.l.b16 %v1655
      %v1747 = vunpack.c.l.b16 %v1658
      %v1748 = vunpack.c.l.b16 %v1662
      %v1749 = vunpack.c.l.b16 %v1665
      %v1750 = vunpack.c.l.b16 %v1669
      %v1751 = vunpack.c.l.b16 %v1672
      %v1752 = vunpack.c.l.b16 %v1676
      %v1753 = vunpack.c.l.b16 %v1679
      %v1754 = vunpack.c.l.b16 %v1683
      %v1755 = vunpack.c.l.b16 %v1686
      %v1756 = vunpack.c.l.b16 %v1690
      %v1757 = vunpack.c.l.b16 %v1693
      %v1758 = vunpack.c.l.b16 %v1697
      %v1759 = vunpack.c.l.b16 %v1700
      %v1760 = vunpack.c.l.b16 %v1704
      %v1761 = vunpack.c.l.b16 %v1707
      %v1762 = vunpack.c.l.b16 %v1711
      %v1763 = vunpack.c.l.b16 %v1714
      %v1764 = vpack.c.b16 %v1733, %v1732
      %v1765 = vpack.c.b16 %v1735, %v1734
      %v1766 = vpack.c.b16 %v1737, %v1736
      %v1767 = vpack.c.b16 %v1739, %v1738
      %v1768 = vpack.c.b16 %v1741, %v1740
      %v1769 = vpack.c.b16 %v1743, %v1742
      %v1770 = vpack.c.b16 %v1745, %v1744
      %v1771 = vpack.c.b16 %v1747, %v1746
      %v1772 = vpack.c.b16 %v1749, %v1748
      %v1773 = vpack.c.b16 %v1751, %v1750
      %v1774 = vpack.c.b16 %v1753, %v1752
      %v1775 = vpack.c.b16 %v1755, %v1754
      %v1776 = vpack.c.b16 %v1757, %v1756
      %v1777 = vpack.c.b16 %v1759, %v1758
      %v1778 = vpack.c.b16 %v1761, %v1760
      %v1779 = vpack.c.b16 %v1763, %v1762
      %v1812 = vunpack.c.l.b16 %v1716
      %v1813 = vunpack.c.l.b16 %v1717
      %v1814 = vunpack.c.l.b16 %v1718
      %v1815 = vunpack.c.l.b16 %v1719
      %v1816 = vunpack.c.l.b16 %v1720
      %v1817 = vunpack.c.l.b16 %v1721
      %v1818 = vunpack.c.l.b16 %v1722
      %v1819 = vunpack.c.l.b16 %v1723
      %v1820 = vunpack.c.l.b16 %v1724
      %v1821 = vunpack.c.l.b16 %v1725
      %v1822 = vunpack.c.l.b16 %v1726
      %v1823 = vunpack.c.l.b16 %v1727
      %v1824 = vunpack.c.l.b16 %v1728
      %v1825 = vunpack.c.l.b16 %v1729
      %v1826 = vunpack.c.l.b16 %v1730
      %v1827 = vunpack.c.l.b16 %v1731
      %v1828 = vpack.c.b16 %v1813, %v1812
      %v1829 = vpack.c.b16 %v1815, %v1814
      %v1830 = vpack.c.b16 %v1817, %v1816
      %v1831 = vpack.c.b16 %v1819, %v1818
      %v1832 = vpack.c.b16 %v1821, %v1820
      %v1833 = vpack.c.b16 %v1823, %v1822
      %v1834 = vpack.c.b16 %v1825, %v1824
      %v1835 = vpack.c.b16 %v1827, %v1826
      %1844 = vmatprep.subr.bf16.mxu0 0
      %1845 = vmatpush1.bf16.msra.mxu0 %v1828
      %1846 = vmatprep.subr.bf16.mxu0 0
      %1847 = vmatpush1.bf16.msra.mxu0 %v1829
      %1848 = vmatprep.subr.bf16.mxu0 0
      %1849 = vmatpush1.bf16.msra.mxu0 %v1830
      %1850 = vmatprep.subr.bf16.mxu0 0
      %1851 = vmatpush1.bf16.msra.mxu0 %v1831
      %1852 = vmatprep.subr.bf16.mxu0 0
      %1853 = vmatpush1.bf16.msra.mxu0 %v1832
      %1854 = vmatprep.subr.bf16.mxu0 0
      %1855 = vmatpush1.bf16.msra.mxu0 %v1833
      %1856 = vmatprep.subr.bf16.mxu0 0
      %1857 = vmatpush1.bf16.msra.mxu0 %v1834
      %1858 = vmatprep.subr.bf16.mxu0 0
      %1859 = vmatpush1.bf16.msra.mxu0 %v1835
      %1860 = vmatprep.subr.bf16.mxu0 0
      %1861 = vmatpush1.bf16.msra.mxu0 0
      %1862 = vmatprep.subr.bf16.mxu0 0
      %1863 = vmatpush1.bf16.msra.mxu0 0
      %1864 = vmatprep.subr.bf16.mxu0 0
      %1865 = vmatpush1.bf16.msra.mxu0 0
      %1866 = vmatprep.subr.bf16.mxu0 0
      %1867 = vmatpush1.bf16.msra.mxu0 0
      %1868 = vmatprep.subr.bf16.mxu0 0
      %1869 = vmatpush1.bf16.msra.mxu0 0
      %1870 = vmatprep.subr.bf16.mxu0 0
      %1871 = vmatpush1.bf16.msra.mxu0 0
      %1872 = vmatprep.subr.bf16.mxu0 0
      %1873 = vmatpush1.bf16.msra.mxu0 0
      %1874 = vmatprep.subr.bf16.mxu0 0
      %1875 = vmatpush1.bf16.msra.mxu0 0
      %1876 = vmatprep.mubr.bf16.mxu0 0
      %1877 = vmatmul.mubr.bf16.gmra.mrb[0].mxu0 %v1764
      %v1878 = vpop.f32.mrb[0].mxu0
      %v1879 = vadd.f32 0.0, %v1878
      %v1880 = vpop.f32.mrb[0].mxu0
      %v1881 = vpop.f32.mrb[0].mxu0
      %v1882 = vadd.f32 0.0, %v1881
      %v1883 = vpop.f32.mrb[0].mxu0
      %1884 = vmatprep.mubr.bf16.mxu0 0
      %1885 = vmatmul.mubr.bf16.gmra.mrb[0].mxu0 %v1765
      %v1886 = vpop.f32.mrb[0].mxu0
      %v1887 = vadd.f32 0.0, %v1886
      %v1888 = vpop.f32.mrb[0].mxu0
      %v1889 = vpop.f32.mrb[0].mxu0
      %v1890 = vadd.f32 0.0, %v1889
      %v1891 = vpop.f32.mrb[0].mxu0
      %1892 = vmatprep.mubr.bf16.mxu0 0
      %1893 = vmatmul.mubr.bf16.gmra.mrb[0].mxu0 %v1766
      %v1894 = vpop.f32.mrb[0].mxu0
      %v1895 = vadd.f32 0.0, %v1894
      %v1896 = vpop.f32.mrb[0].mxu0
      %v1897 = vpop.f32.mrb[0].mxu0
      %v1898 = vadd.f32 0.0, %v1897
      %v1899 = vpop.f32.mrb[0].mxu0
      %1900 = vmatprep.mubr.bf16.mxu0 0
      %1901 = vmatmul.mubr.bf16.gmra.mrb[0].mxu0 %v1767
      %v1902 = vpop.f32.mrb[0].mxu0
      %v1903 = vadd.f32 0.0, %v1902
      %v1904 = vpop.f32.mrb[0].mxu0
      %v1905 = vpop.f32.mrb[0].mxu0
      %v1906 = vadd.f32 0.0, %v1905
      %v1907 = vpop.f32.mrb[0].mxu0
      %1908 = vmatprep.mubr.bf16.mxu0 0
      %1909 = vmatmul.mubr.bf16.gmra.mrb[0].mxu0 %v1768
      %v1910 = vpop.f32.mrb[0].mxu0
      %v1911 = vadd.f32 0.0, %v1910
      %v1912 = vpop.f32.mrb[0].mxu0
      %v1913 = vpop.f32.mrb[0].mxu0
      %v1914 = vadd.f32 0.0, %v1913
      %v1915 = vpop.f32.mrb[0].mxu0
      %1916 = vmatprep.mubr.bf16.mxu0 0
      %1917 = vmatmul.mubr.bf16.gmra.mrb[0].mxu0 %v1769
      %v1918 = vpop.f32.mrb[0].mxu0
      %v1919 = vadd.f32 0.0, %v1918
      %v1920 = vpop.f32.mrb[0].mxu0
      %v1921 = vpop.f32.mrb[0].mxu0
      %v1922 = vadd.f32 0.0, %v1921
      %v1923 = vpop.f32.mrb[0].mxu0
      %1924 = vmatprep.mubr.bf16.mxu0 0
      %1925 = vmatmul.mubr.bf16.gmra.mrb[0].mxu0 %v1770
      %v1926 = vpop.f32.mrb[0].mxu0
      %v1927 = vadd.f32 0.0, %v1926
      %v1928 = vpop.f32.mrb[0].mxu0
      %v1929 = vpop.f32.mrb[0].mxu0
      %v1930 = vadd.f32 0.0, %v1929
      %v1931 = vpop.f32.mrb[0].mxu0
      %1932 = vmatprep.mubr.bf16.mxu0 0
      %1933 = vmatmul.mubr.bf16.gmra.mrb[0].mxu0 %v1771
      %v1934 = vpop.f32.mrb[0].mxu0
      %v1935 = vadd.f32 0.0, %v1934
      %v1936 = vpop.f32.mrb[0].mxu0
      %v1937 = vpop.f32.mrb[0].mxu0
      %v1938 = vadd.f32 0.0, %v1937
      %v1939 = vpop.f32.mrb[0].mxu0
      %1940 = vmatprep.mubr.bf16.mxu0 0
      %1941 = vmatmul.mubr.bf16.gmra.mrb[0].mxu0 %v1772
      %v1942 = vpop.f32.mrb[0].mxu0
      %v1943 = vadd.f32 0.0, %v1942
      %v1944 = vpop.f32.mrb[0].mxu0
      %v1945 = vpop.f32.mrb[0].mxu0
      %v1946 = vadd.f32 0.0, %v1945
      %v1947 = vpop.f32.mrb[0].mxu0
      %1948 = vmatprep.mubr.bf16.mxu0 0
      %1949 = vmatmul.mubr.bf16.gmra.mrb[0].mxu0 %v1773
      %v1950 = vpop.f32.mrb[0].mxu0
      %v1951 = vadd.f32 0.0, %v1950
      %v1952 = vpop.f32.mrb[0].mxu0
      %v1953 = vpop.f32.mrb[0].mxu0
      %v1954 = vadd.f32 0.0, %v1953
      %v1955 = vpop.f32.mrb[0].mxu0
      %1956 = vmatprep.mubr.bf16.mxu0 0
      %1957 = vmatmul.mubr.bf16.gmra.mrb[0].mxu0 %v1774
      %v1958 = vpop.f32.mrb[0].mxu0
      %v1959 = vadd.f32 0.0, %v1958
      %v1960 = vpop.f32.mrb[0].mxu0
      %v1961 = vpop.f32.mrb[0].mxu0
      %v1962 = vadd.f32 0.0, %v1961
      %v1963 = vpop.f32.mrb[0].mxu0
      %1964 = vmatprep.mubr.bf16.mxu0 0
      %1965 = vmatmul.mubr.bf16.gmra.mrb[0].mxu0 %v1775
      %v1966 = vpop.f32.mrb[0].mxu0
      %v1967 = vadd.f32 0.0, %v1966
      %v1968 = vpop.f32.mrb[0].mxu0
      %v1969 = vpop.f32.mrb[0].mxu0
      %v1970 = vadd.f32 0.0, %v1969
      %v1971 = vpop.f32.mrb[0].mxu0
      %1972 = vmatprep.mubr.bf16.mxu0 0
      %1973 = vmatmul.mubr.bf16.gmra.mrb[0].mxu0 %v1776
      %v1974 = vpop.f32.mrb[0].mxu0
      %v1975 = vadd.f32 0.0, %v1974
      %v1976 = vpop.f32.mrb[0].mxu0
      %v1977 = vpop.f32.mrb[0].mxu0
      %v1978 = vadd.f32 0.0, %v1977
      %v1979 = vpop.f32.mrb[0].mxu0
      %1980 = vmatprep.mubr.bf16.mxu0 0
      %1981 = vmatmul.mubr.bf16.gmra.mrb[0].mxu0 %v1777
      %v1982 = vpop.f32.mrb[0].mxu0
      %v1983 = vadd.f32 0.0, %v1982
      %v1984 = vpop.f32.mrb[0].mxu0
      %v1985 = vpop.f32.mrb[0].mxu0
      %v1986 = vadd.f32 0.0, %v1985
      %v1987 = vpop.f32.mrb[0].mxu0
      %1988 = vmatprep.mubr.bf16.mxu0 0
      %1989 = vmatmul.mubr.bf16.gmra.mrb[0].mxu0 %v1778
      %v1990 = vpop.f32.mrb[0].mxu0
      %v1991 = vadd.f32 0.0, %v1990
      %v1992 = vpop.f32.mrb[0].mxu0
      %v1993 = vpop.f32.mrb[0].mxu0
      %v1994 = vadd.f32 0.0, %v1993
      %v1995 = vpop.f32.mrb[0].mxu0
      %1996 = vmatprep.mubr.bf16.mxu0 0
      %1997 = vmatmul.mubr.bf16.gmra.mrb[0].mxu0 %v1779
      %v1998 = vpop.f32.mrb[0].mxu0
      %v1999 = vadd.f32 0.0, %v1998
      %v2000 = vpop.f32.mrb[0].mxu0
      %v2001 = vpop.f32.mrb[0].mxu0
      %v2002 = vadd.f32 0.0, %v2001
      %v2003 = vpop.f32.mrb[0].mxu0
      %2004 = vdwg.mxu0
      %v2005 = vadd.f32 %v1520, %v1879
      %v2006 = vadd.f32 %v1521, %v1882
      %v2007 = vadd.f32 %v1522, %v1887
      %v2008 = vadd.f32 %v1523, %v1890
      %v2009 = vadd.f32 %v1524, %v1895
      %v2010 = vadd.f32 %v1525, %v1898
      %v2011 = vadd.f32 %v1526, %v1903
      %v2012 = vadd.f32 %v1527, %v1906
      %v2013 = vadd.f32 %v1528, %v1911
      %v2014 = vadd.f32 %v1529, %v1914
      %v2015 = vadd.f32 %v1530, %v1919
      %v2016 = vadd.f32 %v1531, %v1922
      %v2017 = vadd.f32 %v1532, %v1927
      %v2018 = vadd.f32 %v1533, %v1930
      %v2019 = vadd.f32 %v1534, %v1935
      %v2020 = vadd.f32 %v1535, %v1938
      %v2021 = vadd.f32 %v1536, %v1943
      %v2022 = vadd.f32 %v1537, %v1946
      %v2023 = vadd.f32 %v1538, %v1951
      %v2024 = vadd.f32 %v1539, %v1954
      %v2025 = vadd.f32 %v1540, %v1959
      %v2026 = vadd.f32 %v1541, %v1962
      %v2027 = vadd.f32 %v1542, %v1967
      %v2028 = vadd.f32 %v1543, %v1970
      %v2029 = vadd.f32 %v1544, %v1975
      %v2030 = vadd.f32 %v1545, %v1978
      %v2031 = vadd.f32 %v1546, %v1983
      %v2032 = vadd.f32 %v1547, %v1986
      %v2033 = vadd.f32 %v1548, %v1991
      %v2034 = vadd.f32 %v1549, %v1994
      %v2035 = vadd.f32 %v1550, %v1999
      %v2036 = vadd.f32 %v1551, %v2002
      %2037 = vst [vmem:[#allocation2] sm:$0xff] %v2005
      %2038 = vst [vmem:[#allocation2 + $0x8] sm:$0xff] %v2006
      %2039 = vst [vmem:[#allocation2 + $0x10] sm:$0xff] %v2007
      %2040 = vst [vmem:[#allocation2 + $0x18] sm:$0xff] %v2008
      %2041 = vst [vmem:[#allocation2 + $0x20] sm:$0xff] %v2009
      %2042 = vst [vmem:[#allocation2 + $0x28] sm:$0xff] %v2010
      %2043 = vst [vmem:[#allocation2 + $0x30] sm:$0xff] %v2011
      %2044 = vst [vmem:[#allocation2 + $0x38] sm:$0xff] %v2012
      %2045 = vst [vmem:[#allocation2 + $0x40] sm:$0xff] %v2013
      %2046 = vst [vmem:[#allocation2 + $0x48] sm:$0xff] %v2014
      %2047 = vst [vmem:[#allocation2 + $0x50] sm:$0xff] %v2015
      %2048 = vst [vmem:[#allocation2 + $0x58] sm:$0xff] %v2016
      %2049 = vst [vmem:[#allocation2 + $0x60] sm:$0xff] %v2017
      %2050 = vst [vmem:[#allocation2 + $0x68] sm:$0xff] %v2018
      %2051 = vst [vmem:[#allocation2 + $0x70] sm:$0xff] %v2019
      %2052 = vst [vmem:[#allocation2 + $0x78] sm:$0xff] %v2020
      %2053 = vst [vmem:[#allocation2 + $0x80] sm:$0xff] %v2021
      %2054 = vst [vmem:[#allocation2 + $0x88] sm:$0xff] %v2022
      %2055 = vst [vmem:[#allocation2 + $0x90] sm:$0xff] %v2023
      %2056 = vst [vmem:[#allocation2 + $0x98] sm:$0xff] %v2024
      %2057 = vst [vmem:[#allocation2 + $0xa0] sm:$0xff] %v2025
      %2058 = vst [vmem:[#allocation2 + $0xa8] sm:$0xff] %v2026
      %2059 = vst [vmem:[#allocation2 + $0xb0] sm:$0xff] %v2027
      %2060 = vst [vmem:[#allocation2 + $0xb8] sm:$0xff] %v2028
      %2061 = vst [vmem:[#allocation2 + $0xc0] sm:$0xff] %v2029
      %2062 = vst [vmem:[#allocation2 + $0xc8] sm:$0xff] %v2030
      %2063 = vst [vmem:[#allocation2 + $0xd0] sm:$0xff] %v2031
      %2064 = vst [vmem:[#allocation2 + $0xd8] sm:$0xff] %v2032
      %2065 = vst [vmem:[#allocation2 + $0xe0] sm:$0xff] %v2033
      %2066 = vst [vmem:[#allocation2 + $0xe8] sm:$0xff] %v2034
      %2067 = vst [vmem:[#allocation2 + $0xf0] sm:$0xff] %v2035
      %2068 = vst [vmem:[#allocation2 + $0xf8] sm:$0xff] %v2036
      %s2069 = scalar_lea.vmem %s163, 12
      %v2070 = vld [vmem:[%s2069] sm:$0xf]
      %v2071 = vld [vmem:[%s2069 + $0x4] sm:$0xf]
      %v2072 = vld [vmem:[%s2069 + $0xc] sm:$0xf]
      %v2073 = vld [vmem:[%s2069 + $0x10] sm:$0xf]
      %v2074 = vld [vmem:[%s2069 + $0x18] sm:$0xf]
      %v2075 = vld [vmem:[%s2069 + $0x1c] sm:$0xf]
      %v2076 = vld [vmem:[%s2069 + $0x24] sm:$0xf]
      %v2077 = vld [vmem:[%s2069 + $0x28] sm:$0xf]
      %v2078 = vld [vmem:[%s2069 + $0x30] sm:$0xf]
      %v2079 = vld [vmem:[%s2069 + $0x34] sm:$0xf]
      %v2080 = vld [vmem:[%s2069 + $0x3c] sm:$0xf]
      %v2081 = vld [vmem:[%s2069 + $0x40] sm:$0xf]
      %v2082 = vld [vmem:[%s2069 + $0x48] sm:$0xf]
      %v2083 = vld [vmem:[%s2069 + $0x4c] sm:$0xf]
      %v2084 = vld [vmem:[%s2069 + $0x54] sm:$0xf]
      %v2085 = vld [vmem:[%s2069 + $0x58] sm:$0xf]
      %v2086 = vld [vmem:[%s2069 + $0x60] sm:$0xf]
      %v2087 = vld [vmem:[%s2069 + $0x64] sm:$0xf]
      %v2088 = vld [vmem:[%s2069 + $0x6c] sm:$0xf]
      %v2089 = vld [vmem:[%s2069 + $0x70] sm:$0xf]
      %v2090 = vld [vmem:[%s2069 + $0x78] sm:$0xf]
      %v2091 = vld [vmem:[%s2069 + $0x7c] sm:$0xf]
      %v2092 = vld [vmem:[%s2069 + $0x84] sm:$0xf]
      %v2093 = vld [vmem:[%s2069 + $0x88] sm:$0xf]
      %v2094 = vld [vmem:[%s2069 + $0x90] sm:$0xf]
      %v2095 = vld [vmem:[%s2069 + $0x94] sm:$0xf]
      %v2096 = vld [vmem:[%s2069 + $0x9c] sm:$0xf]
      %v2097 = vld [vmem:[%s2069 + $0xa0] sm:$0xf]
      %v2098 = vld [vmem:[%s2069 + $0xa8] sm:$0xf]
      %v2099 = vld [vmem:[%s2069 + $0xac] sm:$0xf]
      %v2100 = vld [vmem:[%s2069 + $0xb4] sm:$0xf]
      %v2101 = vld [vmem:[%s2069 + $0xb8] sm:$0xf]
      %v2102 = vld [vmem:[#allocation2] sm:$0xff]
      %v2103 = vld [vmem:[#allocation2 + $0x8] sm:$0xff]
      %v2104 = vld [vmem:[#allocation2 + $0x10] sm:$0xff]
      %v2105 = vld [vmem:[#allocation2 + $0x18] sm:$0xff]
      %v2106 = vld [vmem:[#allocation2 + $0x20] sm:$0xff]
      %v2107 = vld [vmem:[#allocation2 + $0x28] sm:$0xff]
      %v2108 = vld [vmem:[#allocation2 + $0x30] sm:$0xff]
      %v2109 = vld [vmem:[#allocation2 + $0x38] sm:$0xff]
      %v2110 = vld [vmem:[#allocation2 + $0x40] sm:$0xff]
      %v2111 = vld [vmem:[#allocation2 + $0x48] sm:$0xff]
      %v2112 = vld [vmem:[#allocation2 + $0x50] sm:$0xff]
      %v2113 = vld [vmem:[#allocation2 + $0x58] sm:$0xff]
      %v2114 = vld [vmem:[#allocation2 + $0x60] sm:$0xff]
      %v2115 = vld [vmem:[#allocation2 + $0x68] sm:$0xff]
      %v2116 = vld [vmem:[#allocation2 + $0x70] sm:$0xff]
      %v2117 = vld [vmem:[#allocation2 + $0x78] sm:$0xff]
      %v2118 = vld [vmem:[#allocation2 + $0x80] sm:$0xff]
      %v2119 = vld [vmem:[#allocation2 + $0x88] sm:$0xff]
      %v2120 = vld [vmem:[#allocation2 + $0x90] sm:$0xff]
      %v2121 = vld [vmem:[#allocation2 + $0x98] sm:$0xff]
      %v2122 = vld [vmem:[#allocation2 + $0xa0] sm:$0xff]
      %v2123 = vld [vmem:[#allocation2 + $0xa8] sm:$0xff]
      %v2124 = vld [vmem:[#allocation2 + $0xb0] sm:$0xff]
      %v2125 = vld [vmem:[#allocation2 + $0xb8] sm:$0xff]
      %v2126 = vld [vmem:[#allocation2 + $0xc0] sm:$0xff]
      %v2127 = vld [vmem:[#allocation2 + $0xc8] sm:$0xff]
      %v2128 = vld [vmem:[#allocation2 + $0xd0] sm:$0xff]
      %v2129 = vld [vmem:[#allocation2 + $0xd8] sm:$0xff]
      %v2130 = vld [vmem:[#allocation2 + $0xe0] sm:$0xff]
      %v2131 = vld [vmem:[#allocation2 + $0xe8] sm:$0xff]
      %v2132 = vld [vmem:[#allocation2 + $0xf0] sm:$0xff]
      %v2133 = vld [vmem:[#allocation2 + $0xf8] sm:$0xff]
      %s2134 = scalar_lea.vmem %s1, 192
      %v2135 = vld [vmem:[%s2134] sm:$0xf]
      %v2136 = vld [vmem:[%s2134 + $0x4] sm:$0xf]
      %v2137 = vld [vmem:[%s2134 + $0x8] sm:$0xf]
      %v2138 = vld [vmem:[%s2134 + $0xc] sm:$0xf]
      %v2139 = vld [vmem:[%s2134 + $0x10] sm:$0xf]
      %v2140 = vld [vmem:[%s2134 + $0x14] sm:$0xf]
      %v2141 = vld [vmem:[%s2134 + $0x18] sm:$0xf]
      %v2142 = vld [vmem:[%s2134 + $0x1c] sm:$0xf]
      %v2143 = vld [vmem:[%s2134 + $0x20] sm:$0xf]
      %v2144 = vld [vmem:[%s2134 + $0x24] sm:$0xf]
      %v2145 = vld [vmem:[%s2134 + $0x28] sm:$0xf]
      %v2146 = vld [vmem:[%s2134 + $0x2c] sm:$0xf]
      %v2147 = vld [vmem:[%s2134 + $0x30] sm:$0xf]
      %v2148 = vld [vmem:[%s2134 + $0x34] sm:$0xf]
      %v2149 = vld [vmem:[%s2134 + $0x38] sm:$0xf]
      %v2150 = vld [vmem:[%s2134 + $0x3c] sm:$0xf]
      %v2183 = vunpack.c.l.b16 %v2070
      %v2184 = vunpack.c.l.b16 %v2071
      %v2185 = vunpack.c.l.b16 %v2072
      %v2186 = vunpack.c.l.b16 %v2073
      %v2187 = vunpack.c.l.b16 %v2074
      %v2188 = vunpack.c.l.b16 %v2075
      %v2189 = vunpack.c.l.b16 %v2076
      %v2190 = vunpack.c.l.b16 %v2077
      %v2191 = vunpack.c.l.b16 %v2078
      %v2192 = vunpack.c.l.b16 %v2079
      %v2193 = vunpack.c.l.b16 %v2080
      %v2194 = vunpack.c.l.b16 %v2081
      %v2195 = vunpack.c.l.b16 %v2082
      %v2196 = vunpack.c.l.b16 %v2083
      %v2197 = vunpack.c.l.b16 %v2084
      %v2198 = vunpack.c.l.b16 %v2085
      %v2199 = vunpack.c.l.b16 %v2086
      %v2200 = vunpack.c.l.b16 %v2087
      %v2201 = vunpack.c.l.b16 %v2088
      %v2202 = vunpack.c.l.b16 %v2089
      %v2203 = vunpack.c.l.b16 %v2090
      %v2204 = vunpack.c.l.b16 %v2091
      %v2205 = vunpack.c.l.b16 %v2092
      %v2206 = vunpack.c.l.b16 %v2093
      %v2207 = vunpack.c.l.b16 %v2094
      %v2208 = vunpack.c.l.b16 %v2095
      %v2209 = vunpack.c.l.b16 %v2096
      %v2210 = vunpack.c.l.b16 %v2097
      %v2211 = vunpack.c.l.b16 %v2098
      %v2212 = vunpack.c.l.b16 %v2099
      %v2213 = vunpack.c.l.b16 %v2100
      %v2214 = vunpack.c.l.b16 %v2101
      %v2215 = vpack.c.b16 %v2184, %v2183
      %v2216 = vpack.c.b16 %v2186, %v2185
      %v2217 = vpack.c.b16 %v2188, %v2187
      %v2218 = vpack.c.b16 %v2190, %v2189
      %v2219 = vpack.c.b16 %v2192, %v2191
      %v2220 = vpack.c.b16 %v2194, %v2193
      %v2221 = vpack.c.b16 %v2196, %v2195
      %v2222 = vpack.c.b16 %v2198, %v2197
      %v2223 = vpack.c.b16 %v2200, %v2199
      %v2224 = vpack.c.b16 %v2202, %v2201
      %v2225 = vpack.c.b16 %v2204, %v2203
      %v2226 = vpack.c.b16 %v2206, %v2205
      %v2227 = vpack.c.b16 %v2208, %v2207
      %v2228 = vpack.c.b16 %v2210, %v2209
      %v2229 = vpack.c.b16 %v2212, %v2211
      %v2230 = vpack.c.b16 %v2214, %v2213
      %v2263 = vunpack.c.l.b16 %v2135
      %v2264 = vunpack.c.l.b16 %v2136
      %v2265 = vunpack.c.l.b16 %v2137
      %v2266 = vunpack.c.l.b16 %v2138
      %v2267 = vunpack.c.l.b16 %v2139
      %v2268 = vunpack.c.l.b16 %v2140
      %v2269 = vunpack.c.l.b16 %v2141
      %v2270 = vunpack.c.l.b16 %v2142
      %v2271 = vunpack.c.l.b16 %v2143
      %v2272 = vunpack.c.l.b16 %v2144
      %v2273 = vunpack.c.l.b16 %v2145
      %v2274 = vunpack.c.l.b16 %v2146
      %v2275 = vunpack.c.l.b16 %v2147
      %v2276 = vunpack.c.l.b16 %v2148
      %v2277 = vunpack.c.l.b16 %v2149
      %v2278 = vunpack.c.l.b16 %v2150
      %v2279 = vpack.c.b16 %v2264, %v2263
      %v2280 = vpack.c.b16 %v2266, %v2265
      %v2281 = vpack.c.b16 %v2268, %v2267
      %v2282 = vpack.c.b16 %v2270, %v2269
      %v2283 = vpack.c.b16 %v2272, %v2271
      %v2284 = vpack.c.b16 %v2274, %v2273
      %v2285 = vpack.c.b16 %v2276, %v2275
      %v2286 = vpack.c.b16 %v2278, %v2277
      %2295 = vmatprep.subr.bf16.mxu0 0
      %2296 = vmatpush1.bf16.msra.mxu0 %v2279
      %2297 = vmatprep.subr.bf16.mxu0 0
      %2298 = vmatpush1.bf16.msra.mxu0 %v2280
      %2299 = vmatprep.subr.bf16.mxu0 0
      %2300 = vmatpush1.bf16.msra.mxu0 %v2281
      %2301 = vmatprep.subr.bf16.mxu0 0
      %2302 = vmatpush1.bf16.msra.mxu0 %v2282
      %2303 = vmatprep.subr.bf16.mxu0 0
      %2304 = vmatpush1.bf16.msra.mxu0 %v2283
      %2305 = vmatprep.subr.bf16.mxu0 0
      %2306 = vmatpush1.bf16.msra.mxu0 %v2284
      %2307 = vmatprep.subr.bf16.mxu0 0
      %2308 = vmatpush1.bf16.msra.mxu0 %v2285
      %2309 = vmatprep.subr.bf16.mxu0 0
      %2310 = vmatpush1.bf16.msra.mxu0 %v2286
      %2311 = vmatprep.subr.bf16.mxu0 0
      %2312 = vmatpush1.bf16.msra.mxu0 0
      %2313 = vmatprep.subr.bf16.mxu0 0
      %2314 = vmatpush1.bf16.msra.mxu0 0
      %2315 = vmatprep.subr.bf16.mxu0 0
      %2316 = vmatpush1.bf16.msra.mxu0 0
      %2317 = vmatprep.subr.bf16.mxu0 0
      %2318 = vmatpush1.bf16.msra.mxu0 0
      %2319 = vmatprep.subr.bf16.mxu0 0
      %2320 = vmatpush1.bf16.msra.mxu0 0
      %2321 = vmatprep.subr.bf16.mxu0 0
      %2322 = vmatpush1.bf16.msra.mxu0 0
      %2323 = vmatprep.subr.bf16.mxu0 0
      %2324 = vmatpush1.bf16.msra.mxu0 0
      %2325 = vmatprep.subr.bf16.mxu0 0
      %2326 = vmatpush1.bf16.msra.mxu0 0
      %2327 = vmatprep.mubr.bf16.mxu0 0
      %2328 = vmatmul.mubr.bf16.gmra.mrb[0].mxu0 %v2215
      %v2329 = vpop.f32.mrb[0].mxu0
      %v2330 = vadd.f32 0.0, %v2329
      %v2331 = vpop.f32.mrb[0].mxu0
      %v2332 = vpop.f32.mrb[0].mxu0
      %v2333 = vadd.f32 0.0, %v2332
      %v2334 = vpop.f32.mrb[0].mxu0
      %2335 = vmatprep.mubr.bf16.mxu0 0
      %2336 = vmatmul.mubr.bf16.gmra.mrb[0].mxu0 %v2216
      %v2337 = vpop.f32.mrb[0].mxu0
      %v2338 = vadd.f32 0.0, %v2337
      %v2339 = vpop.f32.mrb[0].mxu0
      %v2340 = vpop.f32.mrb[0].mxu0
      %v2341 = vadd.f32 0.0, %v2340
      %v2342 = vpop.f32.mrb[0].mxu0
      %2343 = vmatprep.mubr.bf16.mxu0 0
      %2344 = vmatmul.mubr.bf16.gmra.mrb[0].mxu0 %v2217
      %v2345 = vpop.f32.mrb[0].mxu0
      %v2346 = vadd.f32 0.0, %v2345
      %v2347 = vpop.f32.mrb[0].mxu0
      %v2348 = vpop.f32.mrb[0].mxu0
      %v2349 = vadd.f32 0.0, %v2348
      %v2350 = vpop.f32.mrb[0].mxu0
      %2351 = vmatprep.mubr.bf16.mxu0 0
      %2352 = vmatmul.mubr.bf16.gmra.mrb[0].mxu0 %v2218
      %v2353 = vpop.f32.mrb[0].mxu0
      %v2354 = vadd.f32 0.0, %v2353
      %v2355 = vpop.f32.mrb[0].mxu0
      %v2356 = vpop.f32.mrb[0].mxu0
      %v2357 = vadd.f32 0.0, %v2356
      %v2358 = vpop.f32.mrb[0].mxu0
      %2359 = vmatprep.mubr.bf16.mxu0 0
      %2360 = vmatmul.mubr.bf16.gmra.mrb[0].mxu0 %v2219
      %v2361 = vpop.f32.mrb[0].mxu0
      %v2362 = vadd.f32 0.0, %v2361
      %v2363 = vpop.f32.mrb[0].mxu0
      %v2364 = vpop.f32.mrb[0].mxu0
      %v2365 = vadd.f32 0.0, %v2364
      %v2366 = vpop.f32.mrb[0].mxu0
      %2367 = vmatprep.mubr.bf16.mxu0 0
      %2368 = vmatmul.mubr.bf16.gmra.mrb[0].mxu0 %v2220
      %v2369 = vpop.f32.mrb[0].mxu0
      %v2370 = vadd.f32 0.0, %v2369
      %v2371 = vpop.f32.mrb[0].mxu0
      %v2372 = vpop.f32.mrb[0].mxu0
      %v2373 = vadd.f32 0.0, %v2372
      %v2374 = vpop.f32.mrb[0].mxu0
      %2375 = vmatprep.mubr.bf16.mxu0 0
      %2376 = vmatmul.mubr.bf16.gmra.mrb[0].mxu0 %v2221
      %v2377 = vpop.f32.mrb[0].mxu0
      %v2378 = vadd.f32 0.0, %v2377
      %v2379 = vpop.f32.mrb[0].mxu0
      %v2380 = vpop.f32.mrb[0].mxu0
      %v2381 = vadd.f32 0.0, %v2380
      %v2382 = vpop.f32.mrb[0].mxu0
      %2383 = vmatprep.mubr.bf16.mxu0 0
      %2384 = vmatmul.mubr.bf16.gmra.mrb[0].mxu0 %v2222
      %v2385 = vpop.f32.mrb[0].mxu0
      %v2386 = vadd.f32 0.0, %v2385
      %v2387 = vpop.f32.mrb[0].mxu0
      %v2388 = vpop.f32.mrb[0].mxu0
      %v2389 = vadd.f32 0.0, %v2388
      %v2390 = vpop.f32.mrb[0].mxu0
      %2391 = vmatprep.mubr.bf16.mxu0 0
      %2392 = vmatmul.mubr.bf16.gmra.mrb[0].mxu0 %v2223
      %v2393 = vpop.f32.mrb[0].mxu0
      %v2394 = vadd.f32 0.0, %v2393
      %v2395 = vpop.f32.mrb[0].mxu0
      %v2396 = vpop.f32.mrb[0].mxu0
      %v2397 = vadd.f32 0.0, %v2396
      %v2398 = vpop.f32.mrb[0].mxu0
      %2399 = vmatprep.mubr.bf16.mxu0 0
      %2400 = vmatmul.mubr.bf16.gmra.mrb[0].mxu0 %v2224
      %v2401 = vpop.f32.mrb[0].mxu0
      %v2402 = vadd.f32 0.0, %v2401
      %v2403 = vpop.f32.mrb[0].mxu0
      %v2404 = vpop.f32.mrb[0].mxu0
      %v2405 = vadd.f32 0.0, %v2404
      %v2406 = vpop.f32.mrb[0].mxu0
      %2407 = vmatprep.mubr.bf16.mxu0 0
      %2408 = vmatmul.mubr.bf16.gmra.mrb[0].mxu0 %v2225
      %v2409 = vpop.f32.mrb[0].mxu0
      %v2410 = vadd.f32 0.0, %v2409
      %v2411 = vpop.f32.mrb[0].mxu0
      %v2412 = vpop.f32.mrb[0].mxu0
      %v2413 = vadd.f32 0.0, %v2412
      %v2414 = vpop.f32.mrb[0].mxu0
      %2415 = vmatprep.mubr.bf16.mxu0 0
      %2416 = vmatmul.mubr.bf16.gmra.mrb[0].mxu0 %v2226
      %v2417 = vpop.f32.mrb[0].mxu0
      %v2418 = vadd.f32 0.0, %v2417
      %v2419 = vpop.f32.mrb[0].mxu0
      %v2420 = vpop.f32.mrb[0].mxu0
      %v2421 = vadd.f32 0.0, %v2420
      %v2422 = vpop.f32.mrb[0].mxu0
      %2423 = vmatprep.mubr.bf16.mxu0 0
      %2424 = vmatmul.mubr.bf16.gmra.mrb[0].mxu0 %v2227
      %v2425 = vpop.f32.mrb[0].mxu0
      %v2426 = vadd.f32 0.0, %v2425
      %v2427 = vpop.f32.mrb[0].mxu0
      %v2428 = vpop.f32.mrb[0].mxu0
      %v2429 = vadd.f32 0.0, %v2428
      %v2430 = vpop.f32.mrb[0].mxu0
      %2431 = vmatprep.mubr.bf16.mxu0 0
      %2432 = vmatmul.mubr.bf16.gmra.mrb[0].mxu0 %v2228
      %v2433 = vpop.f32.mrb[0].mxu0
      %v2434 = vadd.f32 0.0, %v2433
      %v2435 = vpop.f32.mrb[0].mxu0
      %v2436 = vpop.f32.mrb[0].mxu0
      %v2437 = vadd.f32 0.0, %v2436
      %v2438 = vpop.f32.mrb[0].mxu0
      %2439 = vmatprep.mubr.bf16.mxu0 0
      %2440 = vmatmul.mubr.bf16.gmra.mrb[0].mxu0 %v2229
      %v2441 = vpop.f32.mrb[0].mxu0
      %v2442 = vadd.f32 0.0, %v2441
      %v2443 = vpop.f32.mrb[0].mxu0
      %v2444 = vpop.f32.mrb[0].mxu0
      %v2445 = vadd.f32 0.0, %v2444
      %v2446 = vpop.f32.mrb[0].mxu0
      %2447 = vmatprep.mubr.bf16.mxu0 0
      %2448 = vmatmul.mubr.bf16.gmra.mrb[0].mxu0 %v2230
      %v2449 = vpop.f32.mrb[0].mxu0
      %v2450 = vadd.f32 0.0, %v2449
      %v2451 = vpop.f32.mrb[0].mxu0
      %v2452 = vpop.f32.mrb[0].mxu0
      %v2453 = vadd.f32 0.0, %v2452
      %v2454 = vpop.f32.mrb[0].mxu0
      %2455 = vdwg.mxu0
      %v2456 = vadd.f32 %v2102, %v2330
      %v2457 = vadd.f32 %v2103, %v2333
      %v2458 = vadd.f32 %v2104, %v2338
      %v2459 = vadd.f32 %v2105, %v2341
      %v2460 = vadd.f32 %v2106, %v2346
      %v2461 = vadd.f32 %v2107, %v2349
      %v2462 = vadd.f32 %v2108, %v2354
      %v2463 = vadd.f32 %v2109, %v2357
      %v2464 = vadd.f32 %v2110, %v2362
      %v2465 = vadd.f32 %v2111, %v2365
      %v2466 = vadd.f32 %v2112, %v2370
      %v2467 = vadd.f32 %v2113, %v2373
      %v2468 = vadd.f32 %v2114, %v2378
      %v2469 = vadd.f32 %v2115, %v2381
      %v2470 = vadd.f32 %v2116, %v2386
      %v2471 = vadd.f32 %v2117, %v2389
      %v2472 = vadd.f32 %v2118, %v2394
      %v2473 = vadd.f32 %v2119, %v2397
      %v2474 = vadd.f32 %v2120, %v2402
      %v2475 = vadd.f32 %v2121, %v2405
      %v2476 = vadd.f32 %v2122, %v2410
      %v2477 = vadd.f32 %v2123, %v2413
      %v2478 = vadd.f32 %v2124, %v2418
      %v2479 = vadd.f32 %v2125, %v2421
      %v2480 = vadd.f32 %v2126, %v2426
      %v2481 = vadd.f32 %v2127, %v2429
      %v2482 = vadd.f32 %v2128, %v2434
      %v2483 = vadd.f32 %v2129, %v2437
      %v2484 = vadd.f32 %v2130, %v2442
      %v2485 = vadd.f32 %v2131, %v2445
      %v2486 = vadd.f32 %v2132, %v2450
      %v2487 = vadd.f32 %v2133, %v2453
      %2488 = vst [vmem:[#allocation2] sm:$0xff] %v2456
      %2489 = vst [vmem:[#allocation2 + $0x8] sm:$0xff] %v2457
      %2490 = vst [vmem:[#allocation2 + $0x10] sm:$0xff] %v2458
      %2491 = vst [vmem:[#allocation2 + $0x18] sm:$0xff] %v2459
      %2492 = vst [vmem:[#allocation2 + $0x20] sm:$0xff] %v2460
      %2493 = vst [vmem:[#allocation2 + $0x28] sm:$0xff] %v2461
      %2494 = vst [vmem:[#allocation2 + $0x30] sm:$0xff] %v2462
      %2495 = vst [vmem:[#allocation2 + $0x38] sm:$0xff] %v2463
      %2496 = vst [vmem:[#allocation2 + $0x40] sm:$0xff] %v2464
      %2497 = vst [vmem:[#allocation2 + $0x48] sm:$0xff] %v2465
      %2498 = vst [vmem:[#allocation2 + $0x50] sm:$0xff] %v2466
      %2499 = vst [vmem:[#allocation2 + $0x58] sm:$0xff] %v2467
      %2500 = vst [vmem:[#allocation2 + $0x60] sm:$0xff] %v2468
      %2501 = vst [vmem:[#allocation2 + $0x68] sm:$0xff] %v2469
      %2502 = vst [vmem:[#allocation2 + $0x70] sm:$0xff] %v2470
      %2503 = vst [vmem:[#allocation2 + $0x78] sm:$0xff] %v2471
      %2504 = vst [vmem:[#allocation2 + $0x80] sm:$0xff] %v2472
      %2505 = vst [vmem:[#allocation2 + $0x88] sm:$0xff] %v2473
      %2506 = vst [vmem:[#allocation2 + $0x90] sm:$0xff] %v2474
      %2507 = vst [vmem:[#allocation2 + $0x98] sm:$0xff] %v2475
      %2508 = vst [vmem:[#allocation2 + $0xa0] sm:$0xff] %v2476
      %2509 = vst [vmem:[#allocation2 + $0xa8] sm:$0xff] %v2477
      %2510 = vst [vmem:[#allocation2 + $0xb0] sm:$0xff] %v2478
      %2511 = vst [vmem:[#allocation2 + $0xb8] sm:$0xff] %v2479
      %2512 = vst [vmem:[#allocation2 + $0xc0] sm:$0xff] %v2480
      %2513 = vst [vmem:[#allocation2 + $0xc8] sm:$0xff] %v2481
      %2514 = vst [vmem:[#allocation2 + $0xd0] sm:$0xff] %v2482
      %2515 = vst [vmem:[#allocation2 + $0xd8] sm:$0xff] %v2483
      %2516 = vst [vmem:[#allocation2 + $0xe0] sm:$0xff] %v2484
      %2517 = vst [vmem:[#allocation2 + $0xe8] sm:$0xff] %v2485
      %2518 = vst [vmem:[#allocation2 + $0xf0] sm:$0xff] %v2486
      %2519 = vst [vmem:[#allocation2 + $0xf8] sm:$0xff] %v2487
      %v2520 = vld [vmem:[%s2069] sm:$0xf]
      %v2521 = vld [vmem:[%s2069 + $0x4] sm:$0xf]
      %v2522 = vld [vmem:[%s2069 + $0x8] sm:$0x1]
      %v2523 = vld [vmem:[%s2069 + $0xc] sm:$0xf]
      %v2524 = vld [vmem:[%s2069 + $0x10] sm:$0xf]
      %v2525 = vld [vmem:[%s2069 + $0x14] sm:$0x1]
      %v2526 = vld [vmem:[%s2069 + $0x18] sm:$0xf]
      %v2527 = vld [vmem:[%s2069 + $0x1c] sm:$0xf]
      %v2528 = vld [vmem:[%s2069 + $0x20] sm:$0x1]
      %v2529 = vld [vmem:[%s2069 + $0x24] sm:$0xf]
      %v2530 = vld [vmem:[%s2069 + $0x28] sm:$0xf]
      %v2531 = vld [vmem:[%s2069 + $0x2c] sm:$0x1]
      %v2532 = vld [vmem:[%s2069 + $0x30] sm:$0xf]
      %v2533 = vld [vmem:[%s2069 + $0x34] sm:$0xf]
      %v2534 = vld [vmem:[%s2069 + $0x38] sm:$0x1]
      %v2535 = vld [vmem:[%s2069 + $0x3c] sm:$0xf]
      %v2536 = vld [vmem:[%s2069 + $0x40] sm:$0xf]
      %v2537 = vld [vmem:[%s2069 + $0x44] sm:$0x1]
      %v2538 = vld [vmem:[%s2069 + $0x48] sm:$0xf]
      %v2539 = vld [vmem:[%s2069 + $0x4c] sm:$0xf]
      %v2540 = vld [vmem:[%s2069 + $0x50] sm:$0x1]
      %v2541 = vld [vmem:[%s2069 + $0x54] sm:$0xf]
      %v2542 = vld [vmem:[%s2069 + $0x58] sm:$0xf]
      %v2543 = vld [vmem:[%s2069 + $0x5c] sm:$0x1]
      %v2544 = vld [vmem:[%s2069 + $0x60] sm:$0xf]
      %v2545 = vld [vmem:[%s2069 + $0x64] sm:$0xf]
      %v2546 = vld [vmem:[%s2069 + $0x68] sm:$0x1]
      %v2547 = vld [vmem:[%s2069 + $0x6c] sm:$0xf]
      %v2548 = vld [vmem:[%s2069 + $0x70] sm:$0xf]
      %v2549 = vld [vmem:[%s2069 + $0x74] sm:$0x1]
      %v2550 = vld [vmem:[%s2069 + $0x78] sm:$0xf]
      %v2551 = vld [vmem:[%s2069 + $0x7c] sm:$0xf]
      %v2552 = vld [vmem:[%s2069 + $0x80] sm:$0x1]
      %v2553 = vld [vmem:[%s2069 + $0x84] sm:$0xf]
      %v2554 = vld [vmem:[%s2069 + $0x88] sm:$0xf]
      %v2555 = vld [vmem:[%s2069 + $0x8c] sm:$0x1]
      %v2556 = vld [vmem:[%s2069 + $0x90] sm:$0xf]
      %v2557 = vld [vmem:[%s2069 + $0x94] sm:$0xf]
      %v2558 = vld [vmem:[%s2069 + $0x98] sm:$0x1]
      %v2559 = vld [vmem:[%s2069 + $0x9c] sm:$0xf]
      %v2560 = vld [vmem:[%s2069 + $0xa0] sm:$0xf]
      %v2561 = vld [vmem:[%s2069 + $0xa4] sm:$0x1]
      %v2562 = vld [vmem:[%s2069 + $0xa8] sm:$0xf]
      %v2563 = vld [vmem:[%s2069 + $0xac] sm:$0xf]
      %v2564 = vld [vmem:[%s2069 + $0xb0] sm:$0x1]
      %v2565 = vld [vmem:[%s2069 + $0xb4] sm:$0xf]
      %v2566 = vld [vmem:[%s2069 + $0xb8] sm:$0xf]
      %v2567 = vld [vmem:[%s2069 + $0xbc] sm:$0x1]
      %v2568 = vld [vmem:[#allocation2] sm:$0xff]
      %v2569 = vld [vmem:[#allocation2 + $0x8] sm:$0xff]
      %v2570 = vld [vmem:[#allocation2 + $0x10] sm:$0xff]
      %v2571 = vld [vmem:[#allocation2 + $0x18] sm:$0xff]
      %v2572 = vld [vmem:[#allocation2 + $0x20] sm:$0xff]
      %v2573 = vld [vmem:[#allocation2 + $0x28] sm:$0xff]
      %v2574 = vld [vmem:[#allocation2 + $0x30] sm:$0xff]
      %v2575 = vld [vmem:[#allocation2 + $0x38] sm:$0xff]
      %v2576 = vld [vmem:[#allocation2 + $0x40] sm:$0xff]
      %v2577 = vld [vmem:[#allocation2 + $0x48] sm:$0xff]
      %v2578 = vld [vmem:[#allocation2 + $0x50] sm:$0xff]
      %v2579 = vld [vmem:[#allocation2 + $0x58] sm:$0xff]
      %v2580 = vld [vmem:[#allocation2 + $0x60] sm:$0xff]
      %v2581 = vld [vmem:[#allocation2 + $0x68] sm:$0xff]
      %v2582 = vld [vmem:[#allocation2 + $0x70] sm:$0xff]
      %v2583 = vld [vmem:[#allocation2 + $0x78] sm:$0xff]
      %v2584 = vld [vmem:[#allocation2 + $0x80] sm:$0xff]
      %v2585 = vld [vmem:[#allocation2 + $0x88] sm:$0xff]
      %v2586 = vld [vmem:[#allocation2 + $0x90] sm:$0xff]
      %v2587 = vld [vmem:[#allocation2 + $0x98] sm:$0xff]
      %v2588 = vld [vmem:[#allocation2 + $0xa0] sm:$0xff]
      %v2589 = vld [vmem:[#allocation2 + $0xa8] sm:$0xff]
      %v2590 = vld [vmem:[#allocation2 + $0xb0] sm:$0xff]
      %v2591 = vld [vmem:[#allocation2 + $0xb8] sm:$0xff]
      %v2592 = vld [vmem:[#allocation2 + $0xc0] sm:$0xff]
      %v2593 = vld [vmem:[#allocation2 + $0xc8] sm:$0xff]
      %v2594 = vld [vmem:[#allocation2 + $0xd0] sm:$0xff]
      %v2595 = vld [vmem:[#allocation2 + $0xd8] sm:$0xff]
      %v2596 = vld [vmem:[#allocation2 + $0xe0] sm:$0xff]
      %v2597 = vld [vmem:[#allocation2 + $0xe8] sm:$0xff]
      %v2598 = vld [vmem:[#allocation2 + $0xf0] sm:$0xff]
      %v2599 = vld [vmem:[#allocation2 + $0xf8] sm:$0xff]
      %v2601 = vshrl.u32 %v2520, 16
      %v2603 = vrot.slane %v2601, 4
      %v2604 = vshll.u32 %v2520, 16
      %v2606 = vrot.slane %v2604, 5
      %v2607 = vor.u32 %v2603, %v2606
      %v2608 = vrot.slane %v2607, 4
      %v2610 = vshll.u32 %v2521, 16
      %v2612 = vrot.slane %v2610, 5
      %v2613 = vsel %vm733, %v2608, %v2612
      %v2614 = vshrl.u32 %v2521, 16
      %v2616 = vrot.slane %v2614, 4
      %v2617 = vor.u32 %v2616, %v2612
      %v2618 = vrot.slane %v2617, 4
      %v2620 = vshll.u32 %v2522, 16
      %v2622 = vrot.slane %v2620, 5
      %v2623 = vsel %vm733, %v2618, %v2622
      %v2625 = vshrl.u32 %v2523, 16
      %v2627 = vrot.slane %v2625, 4
      %v2628 = vshll.u32 %v2523, 16
      %v2630 = vrot.slane %v2628, 5
      %v2631 = vor.u32 %v2627, %v2630
      %v2632 = vrot.slane %v2631, 4
      %v2634 = vshll.u32 %v2524, 16
      %v2636 = vrot.slane %v2634, 5
      %v2637 = vsel %vm733, %v2632, %v2636
      %v2638 = vshrl.u32 %v2524, 16
      %v2640 = vrot.slane %v2638, 4
      %v2641 = vor.u32 %v2640, %v2636
      %v2642 = vrot.slane %v2641, 4
      %v2644 = vshll.u32 %v2525, 16
      %v2646 = vrot.slane %v2644, 5
      %v2647 = vsel %vm733, %v2642, %v2646
      %v2649 = vshrl.u32 %v2526, 16
      %v2651 = vrot.slane %v2649, 4
      %v2652 = vshll.u32 %v2526, 16
      %v2654 = vrot.slane %v2652, 5
      %v2655 = vor.u32 %v2651, %v2654
      %v2656 = vrot.slane %v2655, 4
      %v2658 = vshll.u32 %v2527, 16
      %v2660 = vrot.slane %v2658, 5
      %v2661 = vsel %vm733, %v2656, %v2660
      %v2662 = vshrl.u32 %v2527, 16
      %v2664 = vrot.slane %v2662, 4
      %v2665 = vor.u32 %v2664, %v2660
      %v2666 = vrot.slane %v2665, 4
      %v2668 = vshll.u32 %v2528, 16
      %v2670 = vrot.slane %v2668, 5
      %v2671 = vsel %vm733, %v2666, %v2670
      %v2673 = vshrl.u32 %v2529, 16
      %v2675 = vrot.slane %v2673, 4
      %v2676 = vshll.u32 %v2529, 16
      %v2678 = vrot.slane %v2676, 5
      %v2679 = vor.u32 %v2675, %v2678
      %v2680 = vrot.slane %v2679, 4
      %v2682 = vshll.u32 %v2530, 16
      %v2684 = vrot.slane %v2682, 5
      %v2685 = vsel %vm733, %v2680, %v2684
      %v2686 = vshrl.u32 %v2530, 16
      %v2688 = vrot.slane %v2686, 4
      %v2689 = vor.u32 %v2688, %v2684
      %v2690 = vrot.slane %v2689, 4
      %v2692 = vshll.u32 %v2531, 16
      %v2694 = vrot.slane %v2692, 5
      %v2695 = vsel %vm733, %v2690, %v2694
      %v2697 = vshrl.u32 %v2532, 16
      %v2699 = vrot.slane %v2697, 4
      %v2700 = vshll.u32 %v2532, 16
      %v2702 = vrot.slane %v2700, 5
      %v2703 = vor.u32 %v2699, %v2702
      %v2704 = vrot.slane %v2703, 4
      %v2706 = vshll.u32 %v2533, 16
      %v2708 = vrot.slane %v2706, 5
      %v2709 = vsel %vm733, %v2704, %v2708
      %v2710 = vshrl.u32 %v2533, 16
      %v2712 = vrot.slane %v2710, 4
      %v2713 = vor.u32 %v2712, %v2708
      %v2714 = vrot.slane %v2713, 4
      %v2716 = vshll.u32 %v2534, 16
      %v2718 = vrot.slane %v2716, 5
      %v2719 = vsel %vm733, %v2714, %v2718
      %v2721 = vshrl.u32 %v2535, 16
      %v2723 = vrot.slane %v2721, 4
      %v2724 = vshll.u32 %v2535, 16
      %v2726 = vrot.slane %v2724, 5
      %v2727 = vor.u32 %v2723, %v2726
      %v2728 = vrot.slane %v2727, 4
      %v2730 = vshll.u32 %v2536, 16
      %v2732 = vrot.slane %v2730, 5
      %v2733 = vsel %vm733, %v2728, %v2732
      %v2734 = vshrl.u32 %v2536, 16
      %v2736 = vrot.slane %v2734, 4
      %v2737 = vor.u32 %v2736, %v2732
      %v2738 = vrot.slane %v2737, 4
      %v2740 = vshll.u32 %v2537, 16
      %v2742 = vrot.slane %v2740, 5
      %v2743 = vsel %vm733, %v2738, %v2742
      %v2745 = vshrl.u32 %v2538, 16
      %v2747 = vrot.slane %v2745, 4
      %v2748 = vshll.u32 %v2538, 16
      %v2750 = vrot.slane %v2748, 5
      %v2751 = vor.u32 %v2747, %v2750
      %v2752 = vrot.slane %v2751, 4
      %v2754 = vshll.u32 %v2539, 16
      %v2756 = vrot.slane %v2754, 5
      %v2757 = vsel %vm733, %v2752, %v2756
      %v2758 = vshrl.u32 %v2539, 16
      %v2760 = vrot.slane %v2758, 4
      %v2761 = vor.u32 %v2760, %v2756
      %v2762 = vrot.slane %v2761, 4
      %v2764 = vshll.u32 %v2540, 16
      %v2766 = vrot.slane %v2764, 5
      %v2767 = vsel %vm733, %v2762, %v2766
      %v2769 = vshrl.u32 %v2541, 16
      %v2771 = vrot.slane %v2769, 4
      %v2772 = vshll.u32 %v2541, 16
      %v2774 = vrot.slane %v2772, 5
      %v2775 = vor.u32 %v2771, %v2774
      %v2776 = vrot.slane %v2775, 4
      %v2778 = vshll.u32 %v2542, 16
      %v2780 = vrot.slane %v2778, 5
      %v2781 = vsel %vm733, %v2776, %v2780
      %v2782 = vshrl.u32 %v2542, 16
      %v2784 = vrot.slane %v2782, 4
      %v2785 = vor.u32 %v2784, %v2780
      %v2786 = vrot.slane %v2785, 4
      %v2788 = vshll.u32 %v2543, 16
      %v2790 = vrot.slane %v2788, 5
      %v2791 = vsel %vm733, %v2786, %v2790
      %v2793 = vshrl.u32 %v2544, 16
      %v2795 = vrot.slane %v2793, 4
      %v2796 = vshll.u32 %v2544, 16
      %v2798 = vrot.slane %v2796, 5
      %v2799 = vor.u32 %v2795, %v2798
      %v2800 = vrot.slane %v2799, 4
      %v2802 = vshll.u32 %v2545, 16
      %v2804 = vrot.slane %v2802, 5
      %v2805 = vsel %vm733, %v2800, %v2804
      %v2806 = vshrl.u32 %v2545, 16
      %v2808 = vrot.slane %v2806, 4
      %v2809 = vor.u32 %v2808, %v2804
      %v2810 = vrot.slane %v2809, 4
      %v2812 = vshll.u32 %v2546, 16
      %v2814 = vrot.slane %v2812, 5
      %v2815 = vsel %vm733, %v2810, %v2814
      %v2817 = vshrl.u32 %v2547, 16
      %v2819 = vrot.slane %v2817, 4
      %v2820 = vshll.u32 %v2547, 16
      %v2822 = vrot.slane %v2820, 5
      %v2823 = vor.u32 %v2819, %v2822
      %v2824 = vrot.slane %v2823, 4
      %v2826 = vshll.u32 %v2548, 16
      %v2828 = vrot.slane %v2826, 5
      %v2829 = vsel %vm733, %v2824, %v2828
      %v2830 = vshrl.u32 %v2548, 16
      %v2832 = vrot.slane %v2830, 4
      %v2833 = vor.u32 %v2832, %v2828
      %v2834 = vrot.slane %v2833, 4
      %v2836 = vshll.u32 %v2549, 16
      %v2838 = vrot.slane %v2836, 5
      %v2839 = vsel %vm733, %v2834, %v2838
      %v2841 = vshrl.u32 %v2550, 16
      %v2843 = vrot.slane %v2841, 4
      %v2844 = vshll.u32 %v2550, 16
      %v2846 = vrot.slane %v2844, 5
      %v2847 = vor.u32 %v2843, %v2846
      %v2848 = vrot.slane %v2847, 4
      %v2850 = vshll.u32 %v2551, 16
      %v2852 = vrot.slane %v2850, 5
      %v2853 = vsel %vm733, %v2848, %v2852
      %v2854 = vshrl.u32 %v2551, 16
      %v2856 = vrot.slane %v2854, 4
      %v2857 = vor.u32 %v2856, %v2852
      %v2858 = vrot.slane %v2857, 4
      %v2860 = vshll.u32 %v2552, 16
      %v2862 = vrot.slane %v2860, 5
      %v2863 = vsel %vm733, %v2858, %v2862
      %v2865 = vshrl.u32 %v2553, 16
      %v2867 = vrot.slane %v2865, 4
      %v2868 = vshll.u32 %v2553, 16
      %v2870 = vrot.slane %v2868, 5
      %v2871 = vor.u32 %v2867, %v2870
      %v2872 = vrot.slane %v2871, 4
      %v2874 = vshll.u32 %v2554, 16
      %v2876 = vrot.slane %v2874, 5
      %v2877 = vsel %vm733, %v2872, %v2876
      %v2878 = vshrl.u32 %v2554, 16
      %v2880 = vrot.slane %v2878, 4
      %v2881 = vor.u32 %v2880, %v2876
      %v2882 = vrot.slane %v2881, 4
      %v2884 = vshll.u32 %v2555, 16
      %v2886 = vrot.slane %v2884, 5
      %v2887 = vsel %vm733, %v2882, %v2886
      %v2889 = vshrl.u32 %v2556, 16
      %v2891 = vrot.slane %v2889, 4
      %v2892 = vshll.u32 %v2556, 16
      %v2894 = vrot.slane %v2892, 5
      %v2895 = vor.u32 %v2891, %v2894
      %v2896 = vrot.slane %v2895, 4
      %v2898 = vshll.u32 %v2557, 16
      %v2900 = vrot.slane %v2898, 5
      %v2901 = vsel %vm733, %v2896, %v2900
      %v2902 = vshrl.u32 %v2557, 16
      %v2904 = vrot.slane %v2902, 4
      %v2905 = vor.u32 %v2904, %v2900
      %v2906 = vrot.slane %v2905, 4
      %v2908 = vshll.u32 %v2558, 16
      %v2910 = vrot.slane %v2908, 5
      %v2911 = vsel %vm733, %v2906, %v2910
      %v2913 = vshrl.u32 %v2559, 16
      %v2915 = vrot.slane %v2913, 4
      %v2916 = vshll.u32 %v2559, 16
      %v2918 = vrot.slane %v2916, 5
      %v2919 = vor.u32 %v2915, %v2918
      %v2920 = vrot.slane %v2919, 4
      %v2922 = vshll.u32 %v2560, 16
      %v2924 = vrot.slane %v2922, 5
      %v2925 = vsel %vm733, %v2920, %v2924
      %v2926 = vshrl.u32 %v2560, 16
      %v2928 = vrot.slane %v2926, 4
      %v2929 = vor.u32 %v2928, %v2924
      %v2930 = vrot.slane %v2929, 4
      %v2932 = vshll.u32 %v2561, 16
      %v2934 = vrot.slane %v2932, 5
      %v2935 = vsel %vm733, %v2930, %v2934
      %v2937 = vshrl.u32 %v2562, 16
      %v2939 = vrot.slane %v2937, 4
      %v2940 = vshll.u32 %v2562, 16
      %v2942 = vrot.slane %v2940, 5
      %v2943 = vor.u32 %v2939, %v2942
      %v2944 = vrot.slane %v2943, 4
      %v2946 = vshll.u32 %v2563, 16
      %v2948 = vrot.slane %v2946, 5
      %v2949 = vsel %vm733, %v2944, %v2948
      %v2950 = vshrl.u32 %v2563, 16
      %v2952 = vrot.slane %v2950, 4
      %v2953 = vor.u32 %v2952, %v2948
      %v2954 = vrot.slane %v2953, 4
      %v2956 = vshll.u32 %v2564, 16
      %v2958 = vrot.slane %v2956, 5
      %v2959 = vsel %vm733, %v2954, %v2958
      %v2961 = vshrl.u32 %v2565, 16
      %v2963 = vrot.slane %v2961, 4
      %v2964 = vshll.u32 %v2565, 16
      %v2966 = vrot.slane %v2964, 5
      %v2967 = vor.u32 %v2963, %v2966
      %v2968 = vrot.slane %v2967, 4
      %v2970 = vshll.u32 %v2566, 16
      %v2972 = vrot.slane %v2970, 5
      %v2973 = vsel %vm733, %v2968, %v2972
      %v2974 = vshrl.u32 %v2566, 16
      %v2976 = vrot.slane %v2974, 4
      %v2977 = vor.u32 %v2976, %v2972
      %v2978 = vrot.slane %v2977, 4
      %v2980 = vshll.u32 %v2567, 16
      %v2982 = vrot.slane %v2980, 5
      %v2983 = vsel %vm733, %v2978, %v2982
      %s2984 = scalar_lea.vmem %s1, 256
      %v2985 = vld [vmem:[%s2984] sm:$0xf]
      %v2986 = vld [vmem:[%s2984 + $0x4] sm:$0xf]
      %v2987 = vld [vmem:[%s2984 + $0x8] sm:$0xf]
      %v2988 = vld [vmem:[%s2984 + $0xc] sm:$0xf]
      %v2989 = vld [vmem:[%s2984 + $0x10] sm:$0xf]
      %v2990 = vld [vmem:[%s2984 + $0x14] sm:$0xf]
      %v2991 = vld [vmem:[%s2984 + $0x18] sm:$0xf]
      %v2992 = vld [vmem:[%s2984 + $0x1c] sm:$0xf]
      %v2993 = vld [vmem:[%s2984 + $0x20] sm:$0xf]
      %v2994 = vld [vmem:[%s2984 + $0x24] sm:$0xf]
      %v2995 = vld [vmem:[%s2984 + $0x28] sm:$0xf]
      %v2996 = vld [vmem:[%s2984 + $0x2c] sm:$0xf]
      %v2997 = vld [vmem:[%s2984 + $0x30] sm:$0xf]
      %v2998 = vld [vmem:[%s2984 + $0x34] sm:$0xf]
      %v2999 = vld [vmem:[%s2984 + $0x38] sm:$0xf]
      %v3000 = vld [vmem:[%s2984 + $0x3c] sm:$0xf]
      %v3001 = vunpack.c.l.b16 %v2613
      %v3002 = vunpack.c.l.b16 %v2623
      %v3003 = vunpack.c.l.b16 %v2637
      %v3004 = vunpack.c.l.b16 %v2647
      %v3005 = vunpack.c.l.b16 %v2661
      %v3006 = vunpack.c.l.b16 %v2671
      %v3007 = vunpack.c.l.b16 %v2685
      %v3008 = vunpack.c.l.b16 %v2695
      %v3009 = vunpack.c.l.b16 %v2709
      %v3010 = vunpack.c.l.b16 %v2719
      %v3011 = vunpack.c.l.b16 %v2733
      %v3012 = vunpack.c.l.b16 %v2743
      %v3013 = vunpack.c.l.b16 %v2757
      %v3014 = vunpack.c.l.b16 %v2767
      %v3015 = vunpack.c.l.b16 %v2781
      %v3016 = vunpack.c.l.b16 %v2791
      %v3017 = vunpack.c.l.b16 %v2805
      %v3018 = vunpack.c.l.b16 %v2815
      %v3019 = vunpack.c.l.b16 %v2829
      %v3020 = vunpack.c.l.b16 %v2839
      %v3021 = vunpack.c.l.b16 %v2853
      %v3022 = vunpack.c.l.b16 %v2863
      %v3023 = vunpack.c.l.b16 %v2877
      %v3024 = vunpack.c.l.b16 %v2887
      %v3025 = vunpack.c.l.b16 %v2901
      %v3026 = vunpack.c.l.b16 %v2911
      %v3027 = vunpack.c.l.b16 %v2925
      %v3028 = vunpack.c.l.b16 %v2935
      %v3029 = vunpack.c.l.b16 %v2949
      %v3030 = vunpack.c.l.b16 %v2959
      %v3031 = vunpack.c.l.b16 %v2973
      %v3032 = vunpack.c.l.b16 %v2983
      %v3033 = vpack.c.b16 %v3002, %v3001
      %v3034 = vpack.c.b16 %v3004, %v3003
      %v3035 = vpack.c.b16 %v3006, %v3005
      %v3036 = vpack.c.b16 %v3008, %v3007
      %v3037 = vpack.c.b16 %v3010, %v3009
      %v3038 = vpack.c.b16 %v3012, %v3011
      %v3039 = vpack.c.b16 %v3014, %v3013
      %v3040 = vpack.c.b16 %v3016, %v3015
      %v3041 = vpack.c.b16 %v3018, %v3017
      %v3042 = vpack.c.b16 %v3020, %v3019
      %v3043 = vpack.c.b16 %v3022, %v3021
      %v3044 = vpack.c.b16 %v3024, %v3023
      %v3045 = vpack.c.b16 %v3026, %v3025
      %v3046 = vpack.c.b16 %v3028, %v3027
      %v3047 = vpack.c.b16 %v3030, %v3029
      %v3048 = vpack.c.b16 %v3032, %v3031
      %v3081 = vunpack.c.l.b16 %v2985
      %v3082 = vunpack.c.l.b16 %v2986
      %v3083 = vunpack.c.l.b16 %v2987
      %v3084 = vunpack.c.l.b16 %v2988
      %v3085 = vunpack.c.l.b16 %v2989
      %v3086 = vunpack.c.l.b16 %v2990
      %v3087 = vunpack.c.l.b16 %v2991
      %v3088 = vunpack.c.l.b16 %v2992
      %v3089 = vunpack.c.l.b16 %v2993
      %v3090 = vunpack.c.l.b16 %v2994
      %v3091 = vunpack.c.l.b16 %v2995
      %v3092 = vunpack.c.l.b16 %v2996
      %v3093 = vunpack.c.l.b16 %v2997
      %v3094 = vunpack.c.l.b16 %v2998
      %v3095 = vunpack.c.l.b16 %v2999
      %v3096 = vunpack.c.l.b16 %v3000
      %v3097 = vpack.c.b16 %v3082, %v3081
      %v3098 = vpack.c.b16 %v3084, %v3083
      %v3099 = vpack.c.b16 %v3086, %v3085
      %v3100 = vpack.c.b16 %v3088, %v3087
      %v3101 = vpack.c.b16 %v3090, %v3089
      %v3102 = vpack.c.b16 %v3092, %v3091
      %v3103 = vpack.c.b16 %v3094, %v3093
      %v3104 = vpack.c.b16 %v3096, %v3095
      %3113 = vmatprep.subr.bf16.mxu0 0
      %3114 = vmatpush1.bf16.msra.mxu0 %v3097
      %3115 = vmatprep.subr.bf16.mxu0 0
      %3116 = vmatpush1.bf16.msra.mxu0 %v3098
      %3117 = vmatprep.subr.bf16.mxu0 0
      %3118 = vmatpush1.bf16.msra.mxu0 %v3099
      %3119 = vmatprep.subr.bf16.mxu0 0
      %3120 = vmatpush1.bf16.msra.mxu0 %v3100
      %3121 = vmatprep.subr.bf16.mxu0 0
      %3122 = vmatpush1.bf16.msra.mxu0 %v3101
      %3123 = vmatprep.subr.bf16.mxu0 0
      %3124 = vmatpush1.bf16.msra.mxu0 %v3102
      %3125 = vmatprep.subr.bf16.mxu0 0
      %3126 = vmatpush1.bf16.msra.mxu0 %v3103
      %3127 = vmatprep.subr.bf16.mxu0 0
      %3128 = vmatpush1.bf16.msra.mxu0 %v3104
      %3129 = vmatprep.subr.bf16.mxu0 0
      %3130 = vmatpush1.bf16.msra.mxu0 0
      %3131 = vmatprep.subr.bf16.mxu0 0
      %3132 = vmatpush1.bf16.msra.mxu0 0
      %3133 = vmatprep.subr.bf16.mxu0 0
      %3134 = vmatpush1.bf16.msra.mxu0 0
      %3135 = vmatprep.subr.bf16.mxu0 0
      %3136 = vmatpush1.bf16.msra.mxu0 0
      %3137 = vmatprep.subr.bf16.mxu0 0
      %3138 = vmatpush1.bf16.msra.mxu0 0
      %3139 = vmatprep.subr.bf16.mxu0 0
      %3140 = vmatpush1.bf16.msra.mxu0 0
      %3141 = vmatprep.subr.bf16.mxu0 0
      %3142 = vmatpush1.bf16.msra.mxu0 0
      %3143 = vmatprep.subr.bf16.mxu0 0
      %3144 = vmatpush1.bf16.msra.mxu0 0
      %3145 = vmatprep.mubr.bf16.mxu0 0
      %3146 = vmatmul.mubr.bf16.gmra.mrb[0].mxu0 %v3033
      %v3147 = vpop.f32.mrb[0].mxu0
      %v3148 = vadd.f32 0.0, %v3147
      %v3149 = vpop.f32.mrb[0].mxu0
      %v3150 = vpop.f32.mrb[0].mxu0
      %v3151 = vadd.f32 0.0, %v3150
      %v3152 = vpop.f32.mrb[0].mxu0
      %3153 = vmatprep.mubr.bf16.mxu0 0
      %3154 = vmatmul.mubr.bf16.gmra.mrb[0].mxu0 %v3034
      %v3155 = vpop.f32.mrb[0].mxu0
      %v3156 = vadd.f32 0.0, %v3155
      %v3157 = vpop.f32.mrb[0].mxu0
      %v3158 = vpop.f32.mrb[0].mxu0
      %v3159 = vadd.f32 0.0, %v3158
      %v3160 = vpop.f32.mrb[0].mxu0
      %3161 = vmatprep.mubr.bf16.mxu0 0
      %3162 = vmatmul.mubr.bf16.gmra.mrb[0].mxu0 %v3035
      %v3163 = vpop.f32.mrb[0].mxu0
      %v3164 = vadd.f32 0.0, %v3163
      %v3165 = vpop.f32.mrb[0].mxu0
      %v3166 = vpop.f32.mrb[0].mxu0
      %v3167 = vadd.f32 0.0, %v3166
      %v3168 = vpop.f32.mrb[0].mxu0
      %3169 = vmatprep.mubr.bf16.mxu0 0
      %3170 = vmatmul.mubr.bf16.gmra.mrb[0].mxu0 %v3036
      %v3171 = vpop.f32.mrb[0].mxu0
      %v3172 = vadd.f32 0.0, %v3171
      %v3173 = vpop.f32.mrb[0].mxu0
      %v3174 = vpop.f32.mrb[0].mxu0
      %v3175 = vadd.f32 0.0, %v3174
      %v3176 = vpop.f32.mrb[0].mxu0
      %3177 = vmatprep.mubr.bf16.mxu0 0
      %3178 = vmatmul.mubr.bf16.gmra.mrb[0].mxu0 %v3037
      %v3179 = vpop.f32.mrb[0].mxu0
      %v3180 = vadd.f32 0.0, %v3179
      %v3181 = vpop.f32.mrb[0].mxu0
      %v3182 = vpop.f32.mrb[0].mxu0
      %v3183 = vadd.f32 0.0, %v3182
      %v3184 = vpop.f32.mrb[0].mxu0
      %3185 = vmatprep.mubr.bf16.mxu0 0
      %3186 = vmatmul.mubr.bf16.gmra.mrb[0].mxu0 %v3038
      %v3187 = vpop.f32.mrb[0].mxu0
      %v3188 = vadd.f32 0.0, %v3187
      %v3189 = vpop.f32.mrb[0].mxu0
      %v3190 = vpop.f32.mrb[0].mxu0
      %v3191 = vadd.f32 0.0, %v3190
      %v3192 = vpop.f32.mrb[0].mxu0
      %3193 = vmatprep.mubr.bf16.mxu0 0
      %3194 = vmatmul.mubr.bf16.gmra.mrb[0].mxu0 %v3039
      %v3195 = vpop.f32.mrb[0].mxu0
      %v3196 = vadd.f32 0.0, %v3195
      %v3197 = vpop.f32.mrb[0].mxu0
      %v3198 = vpop.f32.mrb[0].mxu0
      %v3199 = vadd.f32 0.0, %v3198
      %v3200 = vpop.f32.mrb[0].mxu0
      %3201 = vmatprep.mubr.bf16.mxu0 0
      %3202 = vmatmul.mubr.bf16.gmra.mrb[0].mxu0 %v3040
      %v3203 = vpop.f32.mrb[0].mxu0
      %v3204 = vadd.f32 0.0, %v3203
      %v3205 = vpop.f32.mrb[0].mxu0
      %v3206 = vpop.f32.mrb[0].mxu0
      %v3207 = vadd.f32 0.0, %v3206
      %v3208 = vpop.f32.mrb[0].mxu0
      %3209 = vmatprep.mubr.bf16.mxu0 0
      %3210 = vmatmul.mubr.bf16.gmra.mrb[0].mxu0 %v3041
      %v3211 = vpop.f32.mrb[0].mxu0
      %v3212 = vadd.f32 0.0, %v3211
      %v3213 = vpop.f32.mrb[0].mxu0
      %v3214 = vpop.f32.mrb[0].mxu0
      %v3215 = vadd.f32 0.0, %v3214
      %v3216 = vpop.f32.mrb[0].mxu0
      %3217 = vmatprep.mubr.bf16.mxu0 0
      %3218 = vmatmul.mubr.bf16.gmra.mrb[0].mxu0 %v3042
      %v3219 = vpop.f32.mrb[0].mxu0
      %v3220 = vadd.f32 0.0, %v3219
      %v3221 = vpop.f32.mrb[0].mxu0
      %v3222 = vpop.f32.mrb[0].mxu0
      %v3223 = vadd.f32 0.0, %v3222
      %v3224 = vpop.f32.mrb[0].mxu0
      %3225 = vmatprep.mubr.bf16.mxu0 0
      %3226 = vmatmul.mubr.bf16.gmra.mrb[0].mxu0 %v3043
      %v3227 = vpop.f32.mrb[0].mxu0
      %v3228 = vadd.f32 0.0, %v3227
      %v3229 = vpop.f32.mrb[0].mxu0
      %v3230 = vpop.f32.mrb[0].mxu0
      %v3231 = vadd.f32 0.0, %v3230
      %v3232 = vpop.f32.mrb[0].mxu0
      %3233 = vmatprep.mubr.bf16.mxu0 0
      %3234 = vmatmul.mubr.bf16.gmra.mrb[0].mxu0 %v3044
      %v3235 = vpop.f32.mrb[0].mxu0
      %v3236 = vadd.f32 0.0, %v3235
      %v3237 = vpop.f32.mrb[0].mxu0
      %v3238 = vpop.f32.mrb[0].mxu0
      %v3239 = vadd.f32 0.0, %v3238
      %v3240 = vpop.f32.mrb[0].mxu0
      %3241 = vmatprep.mubr.bf16.mxu0 0
      %3242 = vmatmul.mubr.bf16.gmra.mrb[0].mxu0 %v3045
      %v3243 = vpop.f32.mrb[0].mxu0
      %v3244 = vadd.f32 0.0, %v3243
      %v3245 = vpop.f32.mrb[0].mxu0
      %v3246 = vpop.f32.mrb[0].mxu0
      %v3247 = vadd.f32 0.0, %v3246
      %v3248 = vpop.f32.mrb[0].mxu0
      %3249 = vmatprep.mubr.bf16.mxu0 0
      %3250 = vmatmul.mubr.bf16.gmra.mrb[0].mxu0 %v3046
      %v3251 = vpop.f32.mrb[0].mxu0
      %v3252 = vadd.f32 0.0, %v3251
      %v3253 = vpop.f32.mrb[0].mxu0
      %v3254 = vpop.f32.mrb[0].mxu0
      %v3255 = vadd.f32 0.0, %v3254
      %v3256 = vpop.f32.mrb[0].mxu0
      %3257 = vmatprep.mubr.bf16.mxu0 0
      %3258 = vmatmul.mubr.bf16.gmra.mrb[0].mxu0 %v3047
      %v3259 = vpop.f32.mrb[0].mxu0
      %v3260 = vadd.f32 0.0, %v3259
      %v3261 = vpop.f32.mrb[0].mxu0
      %v3262 = vpop.f32.mrb[0].mxu0
      %v3263 = vadd.f32 0.0, %v3262
      %v3264 = vpop.f32.mrb[0].mxu0
      %3265 = vmatprep.mubr.bf16.mxu0 0
      %3266 = vmatmul.mubr.bf16.gmra.mrb[0].mxu0 %v3048
      %v3267 = vpop.f32.mrb[0].mxu0
      %v3268 = vadd.f32 0.0, %v3267
      %v3269 = vpop.f32.mrb[0].mxu0
      %v3270 = vpop.f32.mrb[0].mxu0
      %v3271 = vadd.f32 0.0, %v3270
      %v3272 = vpop.f32.mrb[0].mxu0
      %3273 = vdwg.mxu0
      %v3274 = vadd.f32 %v2568, %v3148
      %v3275 = vadd.f32 %v2569, %v3151
      %v3276 = vadd.f32 %v2570, %v3156
      %v3277 = vadd.f32 %v2571, %v3159
      %v3278 = vadd.f32 %v2572, %v3164
      %v3279 = vadd.f32 %v2573, %v3167
      %v3280 = vadd.f32 %v2574, %v3172
      %v3281 = vadd.f32 %v2575, %v3175
      %v3282 = vadd.f32 %v2576, %v3180
      %v3283 = vadd.f32 %v2577, %v3183
      %v3284 = vadd.f32 %v2578, %v3188
      %v3285 = vadd.f32 %v2579, %v3191
      %v3286 = vadd.f32 %v2580, %v3196
      %v3287 = vadd.f32 %v2581, %v3199
      %v3288 = vadd.f32 %v2582, %v3204
      %v3289 = vadd.f32 %v2583, %v3207
      %v3290 = vadd.f32 %v2584, %v3212
      %v3291 = vadd.f32 %v2585, %v3215
      %v3292 = vadd.f32 %v2586, %v3220
      %v3293 = vadd.f32 %v2587, %v3223
      %v3294 = vadd.f32 %v2588, %v3228
      %v3295 = vadd.f32 %v2589, %v3231
      %v3296 = vadd.f32 %v2590, %v3236
      %v3297 = vadd.f32 %v2591, %v3239
      %v3298 = vadd.f32 %v2592, %v3244
      %v3299 = vadd.f32 %v2593, %v3247
      %v3300 = vadd.f32 %v2594, %v3252
      %v3301 = vadd.f32 %v2595, %v3255
      %v3302 = vadd.f32 %v2596, %v3260
      %v3303 = vadd.f32 %v2597, %v3263
      %v3304 = vadd.f32 %v2598, %v3268
      %v3305 = vadd.f32 %v2599, %v3271
      %3306 = vst [vmem:[#allocation2] sm:$0xff] %v3274
      %3307 = vst [vmem:[#allocation2 + $0x8] sm:$0xff] %v3275
      %3308 = vst [vmem:[#allocation2 + $0x10] sm:$0xff] %v3276
      %3309 = vst [vmem:[#allocation2 + $0x18] sm:$0xff] %v3277
      %3310 = vst [vmem:[#allocation2 + $0x20] sm:$0xff] %v3278
      %3311 = vst [vmem:[#allocation2 + $0x28] sm:$0xff] %v3279
      %3312 = vst [vmem:[#allocation2 + $0x30] sm:$0xff] %v3280
      %3313 = vst [vmem:[#allocation2 + $0x38] sm:$0xff] %v3281
      %3314 = vst [vmem:[#allocation2 + $0x40] sm:$0xff] %v3282
      %3315 = vst [vmem:[#allocation2 + $0x48] sm:$0xff] %v3283
      %3316 = vst [vmem:[#allocation2 + $0x50] sm:$0xff] %v3284
      %3317 = vst [vmem:[#allocation2 + $0x58] sm:$0xff] %v3285
      %3318 = vst [vmem:[#allocation2 + $0x60] sm:$0xff] %v3286
      %3319 = vst [vmem:[#allocation2 + $0x68] sm:$0xff] %v3287
      %3320 = vst [vmem:[#allocation2 + $0x70] sm:$0xff] %v3288
      %3321 = vst [vmem:[#allocation2 + $0x78] sm:$0xff] %v3289
      %3322 = vst [vmem:[#allocation2 + $0x80] sm:$0xff] %v3290
      %3323 = vst [vmem:[#allocation2 + $0x88] sm:$0xff] %v3291
      %3324 = vst [vmem:[#allocation2 + $0x90] sm:$0xff] %v3292
      %3325 = vst [vmem:[#allocation2 + $0x98] sm:$0xff] %v3293
      %3326 = vst [vmem:[#allocation2 + $0xa0] sm:$0xff] %v3294
      %3327 = vst [vmem:[#allocation2 + $0xa8] sm:$0xff] %v3295
      %3328 = vst [vmem:[#allocation2 + $0xb0] sm:$0xff] %v3296
      %3329 = vst [vmem:[#allocation2 + $0xb8] sm:$0xff] %v3297
      %3330 = vst [vmem:[#allocation2 + $0xc0] sm:$0xff] %v3298
      %3331 = vst [vmem:[#allocation2 + $0xc8] sm:$0xff] %v3299
      %3332 = vst [vmem:[#allocation2 + $0xd0] sm:$0xff] %v3300
      %3333 = vst [vmem:[#allocation2 + $0xd8] sm:$0xff] %v3301
      %3334 = vst [vmem:[#allocation2 + $0xe0] sm:$0xff] %v3302
      %3335 = vst [vmem:[#allocation2 + $0xe8] sm:$0xff] %v3303
      %3336 = vst [vmem:[#allocation2 + $0xf0] sm:$0xff] %v3304
      %3337 = vst [vmem:[#allocation2 + $0xf8] sm:$0xff] %v3305
      %v3338 = vld [vmem:[%s2069] sm:$0xe]
      %v3339 = vld [vmem:[%s2069 + $0x4] sm:$0xf]
      %v3340 = vld [vmem:[%s2069 + $0x8] sm:$0x1]
      %v3341 = vld [vmem:[%s2069 + $0xc] sm:$0xe]
      %v3342 = vld [vmem:[%s2069 + $0x10] sm:$0xf]
      %v3343 = vld [vmem:[%s2069 + $0x14] sm:$0x1]
      %v3344 = vld [vmem:[%s2069 + $0x18] sm:$0xe]
      %v3345 = vld [vmem:[%s2069 + $0x1c] sm:$0xf]
      %v3346 = vld [vmem:[%s2069 + $0x20] sm:$0x1]
      %v3347 = vld [vmem:[%s2069 + $0x24] sm:$0xe]
      %v3348 = vld [vmem:[%s2069 + $0x28] sm:$0xf]
      %v3349 = vld [vmem:[%s2069 + $0x2c] sm:$0x1]
      %v3350 = vld [vmem:[%s2069 + $0x30] sm:$0xe]
      %v3351 = vld [vmem:[%s2069 + $0x34] sm:$0xf]
      %v3352 = vld [vmem:[%s2069 + $0x38] sm:$0x1]
      %v3353 = vld [vmem:[%s2069 + $0x3c] sm:$0xe]
      %v3354 = vld [vmem:[%s2069 + $0x40] sm:$0xf]
      %v3355 = vld [vmem:[%s2069 + $0x44] sm:$0x1]
      %v3356 = vld [vmem:[%s2069 + $0x48] sm:$0xe]
      %v3357 = vld [vmem:[%s2069 + $0x4c] sm:$0xf]
      %v3358 = vld [vmem:[%s2069 + $0x50] sm:$0x1]
      %v3359 = vld [vmem:[%s2069 + $0x54] sm:$0xe]
      %v3360 = vld [vmem:[%s2069 + $0x58] sm:$0xf]
      %v3361 = vld [vmem:[%s2069 + $0x5c] sm:$0x1]
      %v3362 = vld [vmem:[%s2069 + $0x60] sm:$0xe]
      %v3363 = vld [vmem:[%s2069 + $0x64] sm:$0xf]
      %v3364 = vld [vmem:[%s2069 + $0x68] sm:$0x1]
      %v3365 = vld [vmem:[%s2069 + $0x6c] sm:$0xe]
      %v3366 = vld [vmem:[%s2069 + $0x70] sm:$0xf]
      %v3367 = vld [vmem:[%s2069 + $0x74] sm:$0x1]
      %v3368 = vld [vmem:[%s2069 + $0x78] sm:$0xe]
      %v3369 = vld [vmem:[%s2069 + $0x7c] sm:$0xf]
      %v3370 = vld [vmem:[%s2069 + $0x80] sm:$0x1]
      %v3371 = vld [vmem:[%s2069 + $0x84] sm:$0xe]
      %v3372 = vld [vmem:[%s2069 + $0x88] sm:$0xf]
      %v3373 = vld [vmem:[%s2069 + $0x8c] sm:$0x1]
      %v3374 = vld [vmem:[%s2069 + $0x90] sm:$0xe]
      %v3375 = vld [vmem:[%s2069 + $0x94] sm:$0xf]
      %v3376 = vld [vmem:[%s2069 + $0x98] sm:$0x1]
      %v3377 = vld [vmem:[%s2069 + $0x9c] sm:$0xe]
      %v3378 = vld [vmem:[%s2069 + $0xa0] sm:$0xf]
      %v3379 = vld [vmem:[%s2069 + $0xa4] sm:$0x1]
      %v3380 = vld [vmem:[%s2069 + $0xa8] sm:$0xe]
      %v3381 = vld [vmem:[%s2069 + $0xac] sm:$0xf]
      %v3382 = vld [vmem:[%s2069 + $0xb0] sm:$0x1]
      %v3383 = vld [vmem:[%s2069 + $0xb4] sm:$0xe]
      %v3384 = vld [vmem:[%s2069 + $0xb8] sm:$0xf]
      %v3385 = vld [vmem:[%s2069 + $0xbc] sm:$0x1]
      %v3386 = vld [vmem:[#allocation2] sm:$0xff]
      %v3387 = vld [vmem:[#allocation2 + $0x8] sm:$0xff]
      %v3388 = vld [vmem:[#allocation2 + $0x10] sm:$0xff]
      %v3389 = vld [vmem:[#allocation2 + $0x18] sm:$0xff]
      %v3390 = vld [vmem:[#allocation2 + $0x20] sm:$0xff]
      %v3391 = vld [vmem:[#allocation2 + $0x28] sm:$0xff]
      %v3392 = vld [vmem:[#allocation2 + $0x30] sm:$0xff]
      %v3393 = vld [vmem:[#allocation2 + $0x38] sm:$0xff]
      %v3394 = vld [vmem:[#allocation2 + $0x40] sm:$0xff]
      %v3395 = vld [vmem:[#allocation2 + $0x48] sm:$0xff]
      %v3396 = vld [vmem:[#allocation2 + $0x50] sm:$0xff]
      %v3397 = vld [vmem:[#allocation2 + $0x58] sm:$0xff]
      %v3398 = vld [vmem:[#allocation2 + $0x60] sm:$0xff]
      %v3399 = vld [vmem:[#allocation2 + $0x68] sm:$0xff]
      %v3400 = vld [vmem:[#allocation2 + $0x70] sm:$0xff]
      %v3401 = vld [vmem:[#allocation2 + $0x78] sm:$0xff]
      %v3402 = vld [vmem:[#allocation2 + $0x80] sm:$0xff]
      %v3403 = vld [vmem:[#allocation2 + $0x88] sm:$0xff]
      %v3404 = vld [vmem:[#allocation2 + $0x90] sm:$0xff]
      %v3405 = vld [vmem:[#allocation2 + $0x98] sm:$0xff]
      %v3406 = vld [vmem:[#allocation2 + $0xa0] sm:$0xff]
      %v3407 = vld [vmem:[#allocation2 + $0xa8] sm:$0xff]
      %v3408 = vld [vmem:[#allocation2 + $0xb0] sm:$0xff]
      %v3409 = vld [vmem:[#allocation2 + $0xb8] sm:$0xff]
      %v3410 = vld [vmem:[#allocation2 + $0xc0] sm:$0xff]
      %v3411 = vld [vmem:[#allocation2 + $0xc8] sm:$0xff]
      %v3412 = vld [vmem:[#allocation2 + $0xd0] sm:$0xff]
      %v3413 = vld [vmem:[#allocation2 + $0xd8] sm:$0xff]
      %v3414 = vld [vmem:[#allocation2 + $0xe0] sm:$0xff]
      %v3415 = vld [vmem:[#allocation2 + $0xe8] sm:$0xff]
      %v3416 = vld [vmem:[#allocation2 + $0xf0] sm:$0xff]
      %v3417 = vld [vmem:[#allocation2 + $0xf8] sm:$0xff]
      %v3466 = vrot.slane %v3338, 5
      %v3467 = vrot.slane %v3466, 4
      %v3468 = vrot.slane %v3339, 5
      %v3469 = vsel %vm1602, %v3467, %v3468
      %v3470 = vrot.slane %v3468, 4
      %v3471 = vrot.slane %v3340, 5
      %v3472 = vsel %vm1602, %v3470, %v3471
      %v3473 = vrot.slane %v3341, 5
      %v3474 = vrot.slane %v3473, 4
      %v3475 = vrot.slane %v3342, 5
      %v3476 = vsel %vm1602, %v3474, %v3475
      %v3477 = vrot.slane %v3475, 4
      %v3478 = vrot.slane %v3343, 5
      %v3479 = vsel %vm1602, %v3477, %v3478
      %v3480 = vrot.slane %v3344, 5
      %v3481 = vrot.slane %v3480, 4
      %v3482 = vrot.slane %v3345, 5
      %v3483 = vsel %vm1602, %v3481, %v3482
      %v3484 = vrot.slane %v3482, 4
      %v3485 = vrot.slane %v3346, 5
      %v3486 = vsel %vm1602, %v3484, %v3485
      %v3487 = vrot.slane %v3347, 5
      %v3488 = vrot.slane %v3487, 4
      %v3489 = vrot.slane %v3348, 5
      %v3490 = vsel %vm1602, %v3488, %v3489
      %v3491 = vrot.slane %v3489, 4
      %v3492 = vrot.slane %v3349, 5
      %v3493 = vsel %vm1602, %v3491, %v3492
      %v3494 = vrot.slane %v3350, 5
      %v3495 = vrot.slane %v3494, 4
      %v3496 = vrot.slane %v3351, 5
      %v3497 = vsel %vm1602, %v3495, %v3496
      %v3498 = vrot.slane %v3496, 4
      %v3499 = vrot.slane %v3352, 5
      %v3500 = vsel %vm1602, %v3498, %v3499
      %v3501 = vrot.slane %v3353, 5
      %v3502 = vrot.slane %v3501, 4
      %v3503 = vrot.slane %v3354, 5
      %v3504 = vsel %vm1602, %v3502, %v3503
      %v3505 = vrot.slane %v3503, 4
      %v3506 = vrot.slane %v3355, 5
      %v3507 = vsel %vm1602, %v3505, %v3506
      %v3508 = vrot.slane %v3356, 5
      %v3509 = vrot.slane %v3508, 4
      %v3510 = vrot.slane %v3357, 5
      %v3511 = vsel %vm1602, %v3509, %v3510
      %v3512 = vrot.slane %v3510, 4
      %v3513 = vrot.slane %v3358, 5
      %v3514 = vsel %vm1602, %v3512, %v3513
      %v3515 = vrot.slane %v3359, 5
      %v3516 = vrot.slane %v3515, 4
      %v3517 = vrot.slane %v3360, 5
      %v3518 = vsel %vm1602, %v3516, %v3517
      %v3519 = vrot.slane %v3517, 4
      %v3520 = vrot.slane %v3361, 5
      %v3521 = vsel %vm1602, %v3519, %v3520
      %v3522 = vrot.slane %v3362, 5
      %v3523 = vrot.slane %v3522, 4
      %v3524 = vrot.slane %v3363, 5
      %v3525 = vsel %vm1602, %v3523, %v3524
      %v3526 = vrot.slane %v3524, 4
      %v3527 = vrot.slane %v3364, 5
      %v3528 = vsel %vm1602, %v3526, %v3527
      %v3529 = vrot.slane %v3365, 5
      %v3530 = vrot.slane %v3529, 4
      %v3531 = vrot.slane %v3366, 5
      %v3532 = vsel %vm1602, %v3530, %v3531
      %v3533 = vrot.slane %v3531, 4
      %v3534 = vrot.slane %v3367, 5
      %v3535 = vsel %vm1602, %v3533, %v3534
      %v3536 = vrot.slane %v3368, 5
      %v3537 = vrot.slane %v3536, 4
      %v3538 = vrot.slane %v3369, 5
      %v3539 = vsel %vm1602, %v3537, %v3538
      %v3540 = vrot.slane %v3538, 4
      %v3541 = vrot.slane %v3370, 5
      %v3542 = vsel %vm1602, %v3540, %v3541
      %v3543 = vrot.slane %v3371, 5
      %v3544 = vrot.slane %v3543, 4
      %v3545 = vrot.slane %v3372, 5
      %v3546 = vsel %vm1602, %v3544, %v3545
      %v3547 = vrot.slane %v3545, 4
      %v3548 = vrot.slane %v3373, 5
      %v3549 = vsel %vm1602, %v3547, %v3548
      %v3550 = vrot.slane %v3374, 5
      %v3551 = vrot.slane %v3550, 4
      %v3552 = vrot.slane %v3375, 5
      %v3553 = vsel %vm1602, %v3551, %v3552
      %v3554 = vrot.slane %v3552, 4
      %v3555 = vrot.slane %v3376, 5
      %v3556 = vsel %vm1602, %v3554, %v3555
      %v3557 = vrot.slane %v3377, 5
      %v3558 = vrot.slane %v3557, 4
      %v3559 = vrot.slane %v3378, 5
      %v3560 = vsel %vm1602, %v3558, %v3559
      %v3561 = vrot.slane %v3559, 4
      %v3562 = vrot.slane %v3379, 5
      %v3563 = vsel %vm1602, %v3561, %v3562
      %v3564 = vrot.slane %v3380, 5
      %v3565 = vrot.slane %v3564, 4
      %v3566 = vrot.slane %v3381, 5
      %v3567 = vsel %vm1602, %v3565, %v3566
      %v3568 = vrot.slane %v3566, 4
      %v3569 = vrot.slane %v3382, 5
      %v3570 = vsel %vm1602, %v3568, %v3569
      %v3571 = vrot.slane %v3383, 5
      %v3572 = vrot.slane %v3571, 4
      %v3573 = vrot.slane %v3384, 5
      %v3574 = vsel %vm1602, %v3572, %v3573
      %v3575 = vrot.slane %v3573, 4
      %v3576 = vrot.slane %v3385, 5
      %v3577 = vsel %vm1602, %v3575, %v3576
      %s3578 = scalar_lea.vmem %s1, 320
      %v3579 = vld [vmem:[%s3578] sm:$0xf]
      %v3580 = vld [vmem:[%s3578 + $0x4] sm:$0xf]
      %v3581 = vld [vmem:[%s3578 + $0x8] sm:$0xf]
      %v3582 = vld [vmem:[%s3578 + $0xc] sm:$0xf]
      %v3583 = vld [vmem:[%s3578 + $0x10] sm:$0xf]
      %v3584 = vld [vmem:[%s3578 + $0x14] sm:$0xf]
      %v3585 = vld [vmem:[%s3578 + $0x18] sm:$0xf]
      %v3586 = vld [vmem:[%s3578 + $0x1c] sm:$0xf]
      %v3587 = vld [vmem:[%s3578 + $0x20] sm:$0xf]
      %v3588 = vld [vmem:[%s3578 + $0x24] sm:$0xf]
      %v3589 = vld [vmem:[%s3578 + $0x28] sm:$0xf]
      %v3590 = vld [vmem:[%s3578 + $0x2c] sm:$0xf]
      %v3591 = vld [vmem:[%s3578 + $0x30] sm:$0xf]
      %v3592 = vld [vmem:[%s3578 + $0x34] sm:$0xf]
      %v3593 = vld [vmem:[%s3578 + $0x38] sm:$0xf]
      %v3594 = vld [vmem:[%s3578 + $0x3c] sm:$0xf]
      %v3595 = vunpack.c.l.b16 %v3469
      %v3596 = vunpack.c.l.b16 %v3472
      %v3597 = vunpack.c.l.b16 %v3476
      %v3598 = vunpack.c.l.b16 %v3479
      %v3599 = vunpack.c.l.b16 %v3483
      %v3600 = vunpack.c.l.b16 %v3486
      %v3601 = vunpack.c.l.b16 %v3490
      %v3602 = vunpack.c.l.b16 %v3493
      %v3603 = vunpack.c.l.b16 %v3497
      %v3604 = vunpack.c.l.b16 %v3500
      %v3605 = vunpack.c.l.b16 %v3504
      %v3606 = vunpack.c.l.b16 %v3507
      %v3607 = vunpack.c.l.b16 %v3511
      %v3608 = vunpack.c.l.b16 %v3514
      %v3609 = vunpack.c.l.b16 %v3518
      %v3610 = vunpack.c.l.b16 %v3521
      %v3611 = vunpack.c.l.b16 %v3525
      %v3612 = vunpack.c.l.b16 %v3528
      %v3613 = vunpack.c.l.b16 %v3532
      %v3614 = vunpack.c.l.b16 %v3535
      %v3615 = vunpack.c.l.b16 %v3539
      %v3616 = vunpack.c.l.b16 %v3542
      %v3617 = vunpack.c.l.b16 %v3546
      %v3618 = vunpack.c.l.b16 %v3549
      %v3619 = vunpack.c.l.b16 %v3553
      %v3620 = vunpack.c.l.b16 %v3556
      %v3621 = vunpack.c.l.b16 %v3560
      %v3622 = vunpack.c.l.b16 %v3563
      %v3623 = vunpack.c.l.b16 %v3567
      %v3624 = vunpack.c.l.b16 %v3570
      %v3625 = vunpack.c.l.b16 %v3574
      %v3626 = vunpack.c.l.b16 %v3577
      %v3627 = vpack.c.b16 %v3596, %v3595
      %v3628 = vpack.c.b16 %v3598, %v3597
      %v3629 = vpack.c.b16 %v3600, %v3599
      %v3630 = vpack.c.b16 %v3602, %v3601
      %v3631 = vpack.c.b16 %v3604, %v3603
      %v3632 = vpack.c.b16 %v3606, %v3605
      %v3633 = vpack.c.b16 %v3608, %v3607
      %v3634 = vpack.c.b16 %v3610, %v3609
      %v3635 = vpack.c.b16 %v3612, %v3611
      %v3636 = vpack.c.b16 %v3614, %v3613
      %v3637 = vpack.c.b16 %v3616, %v3615
      %v3638 = vpack.c.b16 %v3618, %v3617
      %v3639 = vpack.c.b16 %v3620, %v3619
      %v3640 = vpack.c.b16 %v3622, %v3621
      %v3641 = vpack.c.b16 %v3624, %v3623
      %v3642 = vpack.c.b16 %v3626, %v3625
      %v3675 = vunpack.c.l.b16 %v3579
      %v3676 = vunpack.c.l.b16 %v3580
      %v3677 = vunpack.c.l.b16 %v3581
      %v3678 = vunpack.c.l.b16 %v3582
      %v3679 = vunpack.c.l.b16 %v3583
      %v3680 = vunpack.c.l.b16 %v3584
      %v3681 = vunpack.c.l.b16 %v3585
      %v3682 = vunpack.c.l.b16 %v3586
      %v3683 = vunpack.c.l.b16 %v3587
      %v3684 = vunpack.c.l.b16 %v3588
      %v3685 = vunpack.c.l.b16 %v3589
      %v3686 = vunpack.c.l.b16 %v3590
      %v3687 = vunpack.c.l.b16 %v3591
      %v3688 = vunpack.c.l.b16 %v3592
      %v3689 = vunpack.c.l.b16 %v3593
      %v3690 = vunpack.c.l.b16 %v3594
      %v3691 = vpack.c.b16 %v3676, %v3675
      %v3692 = vpack.c.b16 %v3678, %v3677
      %v3693 = vpack.c.b16 %v3680, %v3679
      %v3694 = vpack.c.b16 %v3682, %v3681
      %v3695 = vpack.c.b16 %v3684, %v3683
      %v3696 = vpack.c.b16 %v3686, %v3685
      %v3697 = vpack.c.b16 %v3688, %v3687
      %v3698 = vpack.c.b16 %v3690, %v3689
      %3707 = vmatprep.subr.bf16.mxu0 0
      %3708 = vmatpush1.bf16.msra.mxu0 %v3691
      %3709 = vmatprep.subr.bf16.mxu0 0
      %3710 = vmatpush1.bf16.msra.mxu0 %v3692
      %3711 = vmatprep.subr.bf16.mxu0 0
      %3712 = vmatpush1.bf16.msra.mxu0 %v3693
      %3713 = vmatprep.subr.bf16.mxu0 0
      %3714 = vmatpush1.bf16.msra.mxu0 %v3694
      %3715 = vmatprep.subr.bf16.mxu0 0
      %3716 = vmatpush1.bf16.msra.mxu0 %v3695
      %3717 = vmatprep.subr.bf16.mxu0 0
      %3718 = vmatpush1.bf16.msra.mxu0 %v3696
      %3719 = vmatprep.subr.bf16.mxu0 0
      %3720 = vmatpush1.bf16.msra.mxu0 %v3697
      %3721 = vmatprep.subr.bf16.mxu0 0
      %3722 = vmatpush1.bf16.msra.mxu0 %v3698
      %3723 = vmatprep.subr.bf16.mxu0 0
      %3724 = vmatpush1.bf16.msra.mxu0 0
      %3725 = vmatprep.subr.bf16.mxu0 0
      %3726 = vmatpush1.bf16.msra.mxu0 0
      %3727 = vmatprep.subr.bf16.mxu0 0
      %3728 = vmatpush1.bf16.msra.mxu0 0
      %3729 = vmatprep.subr.bf16.mxu0 0
      %3730 = vmatpush1.bf16.msra.mxu0 0
      %3731 = vmatprep.subr.bf16.mxu0 0
      %3732 = vmatpush1.bf16.msra.mxu0 0
      %3733 = vmatprep.subr.bf16.mxu0 0
      %3734 = vmatpush1.bf16.msra.mxu0 0
      %3735 = vmatprep.subr.bf16.mxu0 0
      %3736 = vmatpush1.bf16.msra.mxu0 0
      %3737 = vmatprep.subr.bf16.mxu0 0
      %3738 = vmatpush1.bf16.msra.mxu0 0
      %3739 = vmatprep.mubr.bf16.mxu0 0
      %3740 = vmatmul.mubr.bf16.gmra.mrb[0].mxu0 %v3627
      %v3741 = vpop.f32.mrb[0].mxu0
      %v3742 = vadd.f32 0.0, %v3741
      %v3743 = vpop.f32.mrb[0].mxu0
      %v3744 = vpop.f32.mrb[0].mxu0
      %v3745 = vadd.f32 0.0, %v3744
      %v3746 = vpop.f32.mrb[0].mxu0
      %3747 = vmatprep.mubr.bf16.mxu0 0
      %3748 = vmatmul.mubr.bf16.gmra.mrb[0].mxu0 %v3628
      %v3749 = vpop.f32.mrb[0].mxu0
      %v3750 = vadd.f32 0.0, %v3749
      %v3751 = vpop.f32.mrb[0].mxu0
      %v3752 = vpop.f32.mrb[0].mxu0
      %v3753 = vadd.f32 0.0, %v3752
      %v3754 = vpop.f32.mrb[0].mxu0
      %3755 = vmatprep.mubr.bf16.mxu0 0
      %3756 = vmatmul.mubr.bf16.gmra.mrb[0].mxu0 %v3629
      %v3757 = vpop.f32.mrb[0].mxu0
      %v3758 = vadd.f32 0.0, %v3757
      %v3759 = vpop.f32.mrb[0].mxu0
      %v3760 = vpop.f32.mrb[0].mxu0
      %v3761 = vadd.f32 0.0, %v3760
      %v3762 = vpop.f32.mrb[0].mxu0
      %3763 = vmatprep.mubr.bf16.mxu0 0
      %3764 = vmatmul.mubr.bf16.gmra.mrb[0].mxu0 %v3630
      %v3765 = vpop.f32.mrb[0].mxu0
      %v3766 = vadd.f32 0.0, %v3765
      %v3767 = vpop.f32.mrb[0].mxu0
      %v3768 = vpop.f32.mrb[0].mxu0
      %v3769 = vadd.f32 0.0, %v3768
      %v3770 = vpop.f32.mrb[0].mxu0
      %3771 = vmatprep.mubr.bf16.mxu0 0
      %3772 = vmatmul.mubr.bf16.gmra.mrb[0].mxu0 %v3631
      %v3773 = vpop.f32.mrb[0].mxu0
      %v3774 = vadd.f32 0.0, %v3773
      %v3775 = vpop.f32.mrb[0].mxu0
      %v3776 = vpop.f32.mrb[0].mxu0
      %v3777 = vadd.f32 0.0, %v3776
      %v3778 = vpop.f32.mrb[0].mxu0
      %3779 = vmatprep.mubr.bf16.mxu0 0
      %3780 = vmatmul.mubr.bf16.gmra.mrb[0].mxu0 %v3632
      %v3781 = vpop.f32.mrb[0].mxu0
      %v3782 = vadd.f32 0.0, %v3781
      %v3783 = vpop.f32.mrb[0].mxu0
      %v3784 = vpop.f32.mrb[0].mxu0
      %v3785 = vadd.f32 0.0, %v3784
      %v3786 = vpop.f32.mrb[0].mxu0
      %3787 = vmatprep.mubr.bf16.mxu0 0
      %3788 = vmatmul.mubr.bf16.gmra.mrb[0].mxu0 %v3633
      %v3789 = vpop.f32.mrb[0].mxu0
      %v3790 = vadd.f32 0.0, %v3789
      %v3791 = vpop.f32.mrb[0].mxu0
      %v3792 = vpop.f32.mrb[0].mxu0
      %v3793 = vadd.f32 0.0, %v3792
      %v3794 = vpop.f32.mrb[0].mxu0
      %3795 = vmatprep.mubr.bf16.mxu0 0
      %3796 = vmatmul.mubr.bf16.gmra.mrb[0].mxu0 %v3634
      %v3797 = vpop.f32.mrb[0].mxu0
      %v3798 = vadd.f32 0.0, %v3797
      %v3799 = vpop.f32.mrb[0].mxu0
      %v3800 = vpop.f32.mrb[0].mxu0
      %v3801 = vadd.f32 0.0, %v3800
      %v3802 = vpop.f32.mrb[0].mxu0
      %3803 = vmatprep.mubr.bf16.mxu0 0
      %3804 = vmatmul.mubr.bf16.gmra.mrb[0].mxu0 %v3635
      %v3805 = vpop.f32.mrb[0].mxu0
      %v3806 = vadd.f32 0.0, %v3805
      %v3807 = vpop.f32.mrb[0].mxu0
      %v3808 = vpop.f32.mrb[0].mxu0
      %v3809 = vadd.f32 0.0, %v3808
      %v3810 = vpop.f32.mrb[0].mxu0
      %3811 = vmatprep.mubr.bf16.mxu0 0
      %3812 = vmatmul.mubr.bf16.gmra.mrb[0].mxu0 %v3636
      %v3813 = vpop.f32.mrb[0].mxu0
      %v3814 = vadd.f32 0.0, %v3813
      %v3815 = vpop.f32.mrb[0].mxu0
      %v3816 = vpop.f32.mrb[0].mxu0
      %v3817 = vadd.f32 0.0, %v3816
      %v3818 = vpop.f32.mrb[0].mxu0
      %3819 = vmatprep.mubr.bf16.mxu0 0
      %3820 = vmatmul.mubr.bf16.gmra.mrb[0].mxu0 %v3637
      %v3821 = vpop.f32.mrb[0].mxu0
      %v3822 = vadd.f32 0.0, %v3821
      %v3823 = vpop.f32.mrb[0].mxu0
      %v3824 = vpop.f32.mrb[0].mxu0
      %v3825 = vadd.f32 0.0, %v3824
      %v3826 = vpop.f32.mrb[0].mxu0
      %3827 = vmatprep.mubr.bf16.mxu0 0
      %3828 = vmatmul.mubr.bf16.gmra.mrb[0].mxu0 %v3638
      %v3829 = vpop.f32.mrb[0].mxu0
      %v3830 = vadd.f32 0.0, %v3829
      %v3831 = vpop.f32.mrb[0].mxu0
      %v3832 = vpop.f32.mrb[0].mxu0
      %v3833 = vadd.f32 0.0, %v3832
      %v3834 = vpop.f32.mrb[0].mxu0
      %3835 = vmatprep.mubr.bf16.mxu0 0
      %3836 = vmatmul.mubr.bf16.gmra.mrb[0].mxu0 %v3639
      %v3837 = vpop.f32.mrb[0].mxu0
      %v3838 = vadd.f32 0.0, %v3837
      %v3839 = vpop.f32.mrb[0].mxu0
      %v3840 = vpop.f32.mrb[0].mxu0
      %v3841 = vadd.f32 0.0, %v3840
      %v3842 = vpop.f32.mrb[0].mxu0
      %3843 = vmatprep.mubr.bf16.mxu0 0
      %3844 = vmatmul.mubr.bf16.gmra.mrb[0].mxu0 %v3640
      %v3845 = vpop.f32.mrb[0].mxu0
      %v3846 = vadd.f32 0.0, %v3845
      %v3847 = vpop.f32.mrb[0].mxu0
      %v3848 = vpop.f32.mrb[0].mxu0
      %v3849 = vadd.f32 0.0, %v3848
      %v3850 = vpop.f32.mrb[0].mxu0
      %3851 = vmatprep.mubr.bf16.mxu0 0
      %3852 = vmatmul.mubr.bf16.gmra.mrb[0].mxu0 %v3641
      %v3853 = vpop.f32.mrb[0].mxu0
      %v3854 = vadd.f32 0.0, %v3853
      %v3855 = vpop.f32.mrb[0].mxu0
      %v3856 = vpop.f32.mrb[0].mxu0
      %v3857 = vadd.f32 0.0, %v3856
      %v3858 = vpop.f32.mrb[0].mxu0
      %3859 = vmatprep.mubr.bf16.mxu0 0
      %3860 = vmatmul.mubr.bf16.gmra.mrb[0].mxu0 %v3642
      %v3861 = vpop.f32.mrb[0].mxu0
      %v3862 = vadd.f32 0.0, %v3861
      %v3863 = vpop.f32.mrb[0].mxu0
      %v3864 = vpop.f32.mrb[0].mxu0
      %v3865 = vadd.f32 0.0, %v3864
      %v3866 = vpop.f32.mrb[0].mxu0
      %3867 = vdwg.mxu0
      %v3868 = vadd.f32 %v3386, %v3742
      %v3869 = vadd.f32 %v3387, %v3745
      %v3870 = vadd.f32 %v3388, %v3750
      %v3871 = vadd.f32 %v3389, %v3753
      %v3872 = vadd.f32 %v3390, %v3758
      %v3873 = vadd.f32 %v3391, %v3761
      %v3874 = vadd.f32 %v3392, %v3766
      %v3875 = vadd.f32 %v3393, %v3769
      %v3876 = vadd.f32 %v3394, %v3774
      %v3877 = vadd.f32 %v3395, %v3777
      %v3878 = vadd.f32 %v3396, %v3782
      %v3879 = vadd.f32 %v3397, %v3785
      %v3880 = vadd.f32 %v3398, %v3790
      %v3881 = vadd.f32 %v3399, %v3793
      %v3882 = vadd.f32 %v3400, %v3798
      %v3883 = vadd.f32 %v3401, %v3801
      %v3884 = vadd.f32 %v3402, %v3806
      %v3885 = vadd.f32 %v3403, %v3809
      %v3886 = vadd.f32 %v3404, %v3814
      %v3887 = vadd.f32 %v3405, %v3817
      %v3888 = vadd.f32 %v3406, %v3822
      %v3889 = vadd.f32 %v3407, %v3825
      %v3890 = vadd.f32 %v3408, %v3830
      %v3891 = vadd.f32 %v3409, %v3833
      %v3892 = vadd.f32 %v3410, %v3838
      %v3893 = vadd.f32 %v3411, %v3841
      %v3894 = vadd.f32 %v3412, %v3846
      %v3895 = vadd.f32 %v3413, %v3849
      %v3896 = vadd.f32 %v3414, %v3854
      %v3897 = vadd.f32 %v3415, %v3857
      %v3898 = vadd.f32 %v3416, %v3862
      %v3899 = vadd.f32 %v3417, %v3865
      %3900 = vst [vmem:[#allocation2] sm:$0xff] %v3868
      %3901 = vst [vmem:[#allocation2 + $0x8] sm:$0xff] %v3869
      %3902 = vst [vmem:[#allocation2 + $0x10] sm:$0xff] %v3870
      %3903 = vst [vmem:[#allocation2 + $0x18] sm:$0xff] %v3871
      %3904 = vst [vmem:[#allocation2 + $0x20] sm:$0xff] %v3872
      %3905 = vst [vmem:[#allocation2 + $0x28] sm:$0xff] %v3873
      %3906 = vst [vmem:[#allocation2 + $0x30] sm:$0xff] %v3874
      %3907 = vst [vmem:[#allocation2 + $0x38] sm:$0xff] %v3875
      %3908 = vst [vmem:[#allocation2 + $0x40] sm:$0xff] %v3876
      %3909 = vst [vmem:[#allocation2 + $0x48] sm:$0xff] %v3877
      %3910 = vst [vmem:[#allocation2 + $0x50] sm:$0xff] %v3878
      %3911 = vst [vmem:[#allocation2 + $0x58] sm:$0xff] %v3879
      %3912 = vst [vmem:[#allocation2 + $0x60] sm:$0xff] %v3880
      %3913 = vst [vmem:[#allocation2 + $0x68] sm:$0xff] %v3881
      %3914 = vst [vmem:[#allocation2 + $0x70] sm:$0xff] %v3882
      %3915 = vst [vmem:[#allocation2 + $0x78] sm:$0xff] %v3883
      %3916 = vst [vmem:[#allocation2 + $0x80] sm:$0xff] %v3884
      %3917 = vst [vmem:[#allocation2 + $0x88] sm:$0xff] %v3885
      %3918 = vst [vmem:[#allocation2 + $0x90] sm:$0xff] %v3886
      %3919 = vst [vmem:[#allocation2 + $0x98] sm:$0xff] %v3887
      %3920 = vst [vmem:[#allocation2 + $0xa0] sm:$0xff] %v3888
      %3921 = vst [vmem:[#allocation2 + $0xa8] sm:$0xff] %v3889
      %3922 = vst [vmem:[#allocation2 + $0xb0] sm:$0xff] %v3890
      %3923 = vst [vmem:[#allocation2 + $0xb8] sm:$0xff] %v3891
      %3924 = vst [vmem:[#allocation2 + $0xc0] sm:$0xff] %v3892
      %3925 = vst [vmem:[#allocation2 + $0xc8] sm:$0xff] %v3893
      %3926 = vst [vmem:[#allocation2 + $0xd0] sm:$0xff] %v3894
      %3927 = vst [vmem:[#allocation2 + $0xd8] sm:$0xff] %v3895
      %3928 = vst [vmem:[#allocation2 + $0xe0] sm:$0xff] %v3896
      %3929 = vst [vmem:[#allocation2 + $0xe8] sm:$0xff] %v3897
      %3930 = vst [vmem:[#allocation2 + $0xf0] sm:$0xff] %v3898
      %3931 = vst [vmem:[#allocation2 + $0xf8] sm:$0xff] %v3899
      %s3932 = scalar_lea.vmem %s163, 24
      %v3933 = vld [vmem:[%s3932] sm:$0xf]
      %v3934 = vld [vmem:[%s3932 + $0x4] sm:$0xf]
      %v3935 = vld [vmem:[%s3932 + $0xc] sm:$0xf]
      %v3936 = vld [vmem:[%s3932 + $0x10] sm:$0xf]
      %v3937 = vld [vmem:[%s3932 + $0x18] sm:$0xf]
      %v3938 = vld [vmem:[%s3932 + $0x1c] sm:$0xf]
      %v3939 = vld [vmem:[%s3932 + $0x24] sm:$0xf]
      %v3940 = vld [vmem:[%s3932 + $0x28] sm:$0xf]
      %v3941 = vld [vmem:[%s3932 + $0x30] sm:$0xf]
      %v3942 = vld [vmem:[%s3932 + $0x34] sm:$0xf]
      %v3943 = vld [vmem:[%s3932 + $0x3c] sm:$0xf]
      %v3944 = vld [vmem:[%s3932 + $0x40] sm:$0xf]
      %v3945 = vld [vmem:[%s3932 + $0x48] sm:$0xf]
      %v3946 = vld [vmem:[%s3932 + $0x4c] sm:$0xf]
      %v3947 = vld [vmem:[%s3932 + $0x54] sm:$0xf]
      %v3948 = vld [vmem:[%s3932 + $0x58] sm:$0xf]
      %v3949 = vld [vmem:[%s3932 + $0x60] sm:$0xf]
      %v3950 = vld [vmem:[%s3932 + $0x64] sm:$0xf]
      %v3951 = vld [vmem:[%s3932 + $0x6c] sm:$0xf]
      %v3952 = vld [vmem:[%s3932 + $0x70] sm:$0xf]
      %v3953 = vld [vmem:[%s3932 + $0x78] sm:$0xf]
      %v3954 = vld [vmem:[%s3932 + $0x7c] sm:$0xf]
      %v3955 = vld [vmem:[%s3932 + $0x84] sm:$0xf]
      %v3956 = vld [vmem:[%s3932 + $0x88] sm:$0xf]
      %v3957 = vld [vmem:[%s3932 + $0x90] sm:$0xf]
      %v3958 = vld [vmem:[%s3932 + $0x94] sm:$0xf]
      %v3959 = vld [vmem:[%s3932 + $0x9c] sm:$0xf]
      %v3960 = vld [vmem:[%s3932 + $0xa0] sm:$0xf]
      %v3961 = vld [vmem:[%s3932 + $0xa8] sm:$0xf]
      %v3962 = vld [vmem:[%s3932 + $0xac] sm:$0xf]
      %v3963 = vld [vmem:[%s3932 + $0xb4] sm:$0xf]
      %v3964 = vld [vmem:[%s3932 + $0xb8] sm:$0xf]
      %v3965 = vld [vmem:[#allocation2] sm:$0xff]
      %v3966 = vld [vmem:[#allocation2 + $0x8] sm:$0xff]
      %v3967 = vld [vmem:[#allocation2 + $0x10] sm:$0xff]
      %v3968 = vld [vmem:[#allocation2 + $0x18] sm:$0xff]
      %v3969 = vld [vmem:[#allocation2 + $0x20] sm:$0xff]
      %v3970 = vld [vmem:[#allocation2 + $0x28] sm:$0xff]
      %v3971 = vld [vmem:[#allocation2 + $0x30] sm:$0xff]
      %v3972 = vld [vmem:[#allocation2 + $0x38] sm:$0xff]
      %v3973 = vld [vmem:[#allocation2 + $0x40] sm:$0xff]
      %v3974 = vld [vmem:[#allocation2 + $0x48] sm:$0xff]
      %v3975 = vld [vmem:[#allocation2 + $0x50] sm:$0xff]
      %v3976 = vld [vmem:[#allocation2 + $0x58] sm:$0xff]
      %v3977 = vld [vmem:[#allocation2 + $0x60] sm:$0xff]
      %v3978 = vld [vmem:[#allocation2 + $0x68] sm:$0xff]
      %v3979 = vld [vmem:[#allocation2 + $0x70] sm:$0xff]
      %v3980 = vld [vmem:[#allocation2 + $0x78] sm:$0xff]
      %v3981 = vld [vmem:[#allocation2 + $0x80] sm:$0xff]
      %v3982 = vld [vmem:[#allocation2 + $0x88] sm:$0xff]
      %v3983 = vld [vmem:[#allocation2 + $0x90] sm:$0xff]
      %v3984 = vld [vmem:[#allocation2 + $0x98] sm:$0xff]
      %v3985 = vld [vmem:[#allocation2 + $0xa0] sm:$0xff]
      %v3986 = vld [vmem:[#allocation2 + $0xa8] sm:$0xff]
      %v3987 = vld [vmem:[#allocation2 + $0xb0] sm:$0xff]
      %v3988 = vld [vmem:[#allocation2 + $0xb8] sm:$0xff]
      %v3989 = vld [vmem:[#allocation2 + $0xc0] sm:$0xff]
      %v3990 = vld [vmem:[#allocation2 + $0xc8] sm:$0xff]
      %v3991 = vld [vmem:[#allocation2 + $0xd0] sm:$0xff]
      %v3992 = vld [vmem:[#allocation2 + $0xd8] sm:$0xff]
      %v3993 = vld [vmem:[#allocation2 + $0xe0] sm:$0xff]
      %v3994 = vld [vmem:[#allocation2 + $0xe8] sm:$0xff]
      %v3995 = vld [vmem:[#allocation2 + $0xf0] sm:$0xff]
      %v3996 = vld [vmem:[#allocation2 + $0xf8] sm:$0xff]
      %s3997 = scalar_lea.vmem %s1, 384
      %v3998 = vld [vmem:[%s3997] sm:$0xf]
      %v3999 = vld [vmem:[%s3997 + $0x4] sm:$0xf]
      %v4000 = vld [vmem:[%s3997 + $0x8] sm:$0xf]
      %v4001 = vld [vmem:[%s3997 + $0xc] sm:$0xf]
      %v4002 = vld [vmem:[%s3997 + $0x10] sm:$0xf]
      %v4003 = vld [vmem:[%s3997 + $0x14] sm:$0xf]
      %v4004 = vld [vmem:[%s3997 + $0x18] sm:$0xf]
      %v4005 = vld [vmem:[%s3997 + $0x1c] sm:$0xf]
      %v4006 = vld [vmem:[%s3997 + $0x20] sm:$0xf]
      %v4007 = vld [vmem:[%s3997 + $0x24] sm:$0xf]
      %v4008 = vld [vmem:[%s3997 + $0x28] sm:$0xf]
      %v4009 = vld [vmem:[%s3997 + $0x2c] sm:$0xf]
      %v4010 = vld [vmem:[%s3997 + $0x30] sm:$0xf]
      %v4011 = vld [vmem:[%s3997 + $0x34] sm:$0xf]
      %v4012 = vld [vmem:[%s3997 + $0x38] sm:$0xf]
      %v4013 = vld [vmem:[%s3997 + $0x3c] sm:$0xf]
      %v4046 = vunpack.c.l.b16 %v3933
      %v4047 = vunpack.c.l.b16 %v3934
      %v4048 = vunpack.c.l.b16 %v3935
      %v4049 = vunpack.c.l.b16 %v3936
      %v4050 = vunpack.c.l.b16 %v3937
      %v4051 = vunpack.c.l.b16 %v3938
      %v4052 = vunpack.c.l.b16 %v3939
      %v4053 = vunpack.c.l.b16 %v3940
      %v4054 = vunpack.c.l.b16 %v3941
      %v4055 = vunpack.c.l.b16 %v3942
      %v4056 = vunpack.c.l.b16 %v3943
      %v4057 = vunpack.c.l.b16 %v3944
      %v4058 = vunpack.c.l.b16 %v3945
      %v4059 = vunpack.c.l.b16 %v3946
      %v4060 = vunpack.c.l.b16 %v3947
      %v4061 = vunpack.c.l.b16 %v3948
      %v4062 = vunpack.c.l.b16 %v3949
      %v4063 = vunpack.c.l.b16 %v3950
      %v4064 = vunpack.c.l.b16 %v3951
      %v4065 = vunpack.c.l.b16 %v3952
      %v4066 = vunpack.c.l.b16 %v3953
      %v4067 = vunpack.c.l.b16 %v3954
      %v4068 = vunpack.c.l.b16 %v3955
      %v4069 = vunpack.c.l.b16 %v3956
      %v4070 = vunpack.c.l.b16 %v3957
      %v4071 = vunpack.c.l.b16 %v3958
      %v4072 = vunpack.c.l.b16 %v3959
      %v4073 = vunpack.c.l.b16 %v3960
      %v4074 = vunpack.c.l.b16 %v3961
      %v4075 = vunpack.c.l.b16 %v3962
      %v4076 = vunpack.c.l.b16 %v3963
      %v4077 = vunpack.c.l.b16 %v3964
      %v4078 = vpack.c.b16 %v4047, %v4046
      %v4079 = vpack.c.b16 %v4049, %v4048
      %v4080 = vpack.c.b16 %v4051, %v4050
      %v4081 = vpack.c.b16 %v4053, %v4052
      %v4082 = vpack.c.b16 %v4055, %v4054
      %v4083 = vpack.c.b16 %v4057, %v4056
      %v4084 = vpack.c.b16 %v4059, %v4058
      %v4085 = vpack.c.b16 %v4061, %v4060
      %v4086 = vpack.c.b16 %v4063, %v4062
      %v4087 = vpack.c.b16 %v4065, %v4064
      %v4088 = vpack.c.b16 %v4067, %v4066
      %v4089 = vpack.c.b16 %v4069, %v4068
      %v4090 = vpack.c.b16 %v4071, %v4070
      %v4091 = vpack.c.b16 %v4073, %v4072
      %v4092 = vpack.c.b16 %v4075, %v4074
      %v4093 = vpack.c.b16 %v4077, %v4076
      %v4126 = vunpack.c.l.b16 %v3998
      %v4127 = vunpack.c.l.b16 %v3999
      %v4128 = vunpack.c.l.b16 %v4000
      %v4129 = vunpack.c.l.b16 %v4001
      %v4130 = vunpack.c.l.b16 %v4002
      %v4131 = vunpack.c.l.b16 %v4003
      %v4132 = vunpack.c.l.b16 %v4004
      %v4133 = vunpack.c.l.b16 %v4005
      %v4134 = vunpack.c.l.b16 %v4006
      %v4135 = vunpack.c.l.b16 %v4007
      %v4136 = vunpack.c.l.b16 %v4008
      %v4137 = vunpack.c.l.b16 %v4009
      %v4138 = vunpack.c.l.b16 %v4010
      %v4139 = vunpack.c.l.b16 %v4011
      %v4140 = vunpack.c.l.b16 %v4012
      %v4141 = vunpack.c.l.b16 %v4013
      %v4142 = vpack.c.b16 %v4127, %v4126
      %v4143 = vpack.c.b16 %v4129, %v4128
      %v4144 = vpack.c.b16 %v4131, %v4130
      %v4145 = vpack.c.b16 %v4133, %v4132
      %v4146 = vpack.c.b16 %v4135, %v4134
      %v4147 = vpack.c.b16 %v4137, %v4136
      %v4148 = vpack.c.b16 %v4139, %v4138
      %v4149 = vpack.c.b16 %v4141, %v4140
      %4158 = vmatprep.subr.bf16.mxu0 0
      %4159 = vmatpush1.bf16.msra.mxu0 %v4142
      %4160 = vmatprep.subr.bf16.mxu0 0
      %4161 = vmatpush1.bf16.msra.mxu0 %v4143
      %4162 = vmatprep.subr.bf16.mxu0 0
      %4163 = vmatpush1.bf16.msra.mxu0 %v4144
      %4164 = vmatprep.subr.bf16.mxu0 0
      %4165 = vmatpush1.bf16.msra.mxu0 %v4145
      %4166 = vmatprep.subr.bf16.mxu0 0
      %4167 = vmatpush1.bf16.msra.mxu0 %v4146
      %4168 = vmatprep.subr.bf16.mxu0 0
      %4169 = vmatpush1.bf16.msra.mxu0 %v4147
      %4170 = vmatprep.subr.bf16.mxu0 0
      %4171 = vmatpush1.bf16.msra.mxu0 %v4148
      %4172 = vmatprep.subr.bf16.mxu0 0
      %4173 = vmatpush1.bf16.msra.mxu0 %v4149
      %4174 = vmatprep.subr.bf16.mxu0 0
      %4175 = vmatpush1.bf16.msra.mxu0 0
      %4176 = vmatprep.subr.bf16.mxu0 0
      %4177 = vmatpush1.bf16.msra.mxu0 0
      %4178 = vmatprep.subr.bf16.mxu0 0
      %4179 = vmatpush1.bf16.msra.mxu0 0
      %4180 = vmatprep.subr.bf16.mxu0 0
      %4181 = vmatpush1.bf16.msra.mxu0 0
      %4182 = vmatprep.subr.bf16.mxu0 0
      %4183 = vmatpush1.bf16.msra.mxu0 0
      %4184 = vmatprep.subr.bf16.mxu0 0
      %4185 = vmatpush1.bf16.msra.mxu0 0
      %4186 = vmatprep.subr.bf16.mxu0 0
      %4187 = vmatpush1.bf16.msra.mxu0 0
      %4188 = vmatprep.subr.bf16.mxu0 0
      %4189 = vmatpush1.bf16.msra.mxu0 0
      %4190 = vmatprep.mubr.bf16.mxu0 0
      %4191 = vmatmul.mubr.bf16.gmra.mrb[0].mxu0 %v4078
      %v4192 = vpop.f32.mrb[0].mxu0
      %v4193 = vadd.f32 0.0, %v4192
      %v4194 = vpop.f32.mrb[0].mxu0
      %v4195 = vpop.f32.mrb[0].mxu0
      %v4196 = vadd.f32 0.0, %v4195
      %v4197 = vpop.f32.mrb[0].mxu0
      %4198 = vmatprep.mubr.bf16.mxu0 0
      %4199 = vmatmul.mubr.bf16.gmra.mrb[0].mxu0 %v4079
      %v4200 = vpop.f32.mrb[0].mxu0
      %v4201 = vadd.f32 0.0, %v4200
      %v4202 = vpop.f32.mrb[0].mxu0
      %v4203 = vpop.f32.mrb[0].mxu0
      %v4204 = vadd.f32 0.0, %v4203
      %v4205 = vpop.f32.mrb[0].mxu0
      %4206 = vmatprep.mubr.bf16.mxu0 0
      %4207 = vmatmul.mubr.bf16.gmra.mrb[0].mxu0 %v4080
      %v4208 = vpop.f32.mrb[0].mxu0
      %v4209 = vadd.f32 0.0, %v4208
      %v4210 = vpop.f32.mrb[0].mxu0
      %v4211 = vpop.f32.mrb[0].mxu0
      %v4212 = vadd.f32 0.0, %v4211
      %v4213 = vpop.f32.mrb[0].mxu0
      %4214 = vmatprep.mubr.bf16.mxu0 0
      %4215 = vmatmul.mubr.bf16.gmra.mrb[0].mxu0 %v4081
      %v4216 = vpop.f32.mrb[0].mxu0
      %v4217 = vadd.f32 0.0, %v4216
      %v4218 = vpop.f32.mrb[0].mxu0
      %v4219 = vpop.f32.mrb[0].mxu0
      %v4220 = vadd.f32 0.0, %v4219
      %v4221 = vpop.f32.mrb[0].mxu0
      %4222 = vmatprep.mubr.bf16.mxu0 0
      %4223 = vmatmul.mubr.bf16.gmra.mrb[0].mxu0 %v4082
      %v4224 = vpop.f32.mrb[0].mxu0
      %v4225 = vadd.f32 0.0, %v4224
      %v4226 = vpop.f32.mrb[0].mxu0
      %v4227 = vpop.f32.mrb[0].mxu0
      %v4228 = vadd.f32 0.0, %v4227
      %v4229 = vpop.f32.mrb[0].mxu0
      %4230 = vmatprep.mubr.bf16.mxu0 0
      %4231 = vmatmul.mubr.bf16.gmra.mrb[0].mxu0 %v4083
      %v4232 = vpop.f32.mrb[0].mxu0
      %v4233 = vadd.f32 0.0, %v4232
      %v4234 = vpop.f32.mrb[0].mxu0
      %v4235 = vpop.f32.mrb[0].mxu0
      %v4236 = vadd.f32 0.0, %v4235
      %v4237 = vpop.f32.mrb[0].mxu0
      %4238 = vmatprep.mubr.bf16.mxu0 0
      %4239 = vmatmul.mubr.bf16.gmra.mrb[0].mxu0 %v4084
      %v4240 = vpop.f32.mrb[0].mxu0
      %v4241 = vadd.f32 0.0, %v4240
      %v4242 = vpop.f32.mrb[0].mxu0
      %v4243 = vpop.f32.mrb[0].mxu0
      %v4244 = vadd.f32 0.0, %v4243
      %v4245 = vpop.f32.mrb[0].mxu0
      %4246 = vmatprep.mubr.bf16.mxu0 0
      %4247 = vmatmul.mubr.bf16.gmra.mrb[0].mxu0 %v4085
      %v4248 = vpop.f32.mrb[0].mxu0
      %v4249 = vadd.f32 0.0, %v4248
      %v4250 = vpop.f32.mrb[0].mxu0
      %v4251 = vpop.f32.mrb[0].mxu0
      %v4252 = vadd.f32 0.0, %v4251
      %v4253 = vpop.f32.mrb[0].mxu0
      %4254 = vmatprep.mubr.bf16.mxu0 0
      %4255 = vmatmul.mubr.bf16.gmra.mrb[0].mxu0 %v4086
      %v4256 = vpop.f32.mrb[0].mxu0
      %v4257 = vadd.f32 0.0, %v4256
      %v4258 = vpop.f32.mrb[0].mxu0
      %v4259 = vpop.f32.mrb[0].mxu0
      %v4260 = vadd.f32 0.0, %v4259
      %v4261 = vpop.f32.mrb[0].mxu0
      %4262 = vmatprep.mubr.bf16.mxu0 0
      %4263 = vmatmul.mubr.bf16.gmra.mrb[0].mxu0 %v4087
      %v4264 = vpop.f32.mrb[0].mxu0
      %v4265 = vadd.f32 0.0, %v4264
      %v4266 = vpop.f32.mrb[0].mxu0
      %v4267 = vpop.f32.mrb[0].mxu0
      %v4268 = vadd.f32 0.0, %v4267
      %v4269 = vpop.f32.mrb[0].mxu0
      %4270 = vmatprep.mubr.bf16.mxu0 0
      %4271 = vmatmul.mubr.bf16.gmra.mrb[0].mxu0 %v4088
      %v4272 = vpop.f32.mrb[0].mxu0
      %v4273 = vadd.f32 0.0, %v4272
      %v4274 = vpop.f32.mrb[0].mxu0
      %v4275 = vpop.f32.mrb[0].mxu0
      %v4276 = vadd.f32 0.0, %v4275
      %v4277 = vpop.f32.mrb[0].mxu0
      %4278 = vmatprep.mubr.bf16.mxu0 0
      %4279 = vmatmul.mubr.bf16.gmra.mrb[0].mxu0 %v4089
      %v4280 = vpop.f32.mrb[0].mxu0
      %v4281 = vadd.f32 0.0, %v4280
      %v4282 = vpop.f32.mrb[0].mxu0
      %v4283 = vpop.f32.mrb[0].mxu0
      %v4284 = vadd.f32 0.0, %v4283
      %v4285 = vpop.f32.mrb[0].mxu0
      %4286 = vmatprep.mubr.bf16.mxu0 0
      %4287 = vmatmul.mubr.bf16.gmra.mrb[0].mxu0 %v4090
      %v4288 = vpop.f32.mrb[0].mxu0
      %v4289 = vadd.f32 0.0, %v4288
      %v4290 = vpop.f32.mrb[0].mxu0
      %v4291 = vpop.f32.mrb[0].mxu0
      %v4292 = vadd.f32 0.0, %v4291
      %v4293 = vpop.f32.mrb[0].mxu0
      %4294 = vmatprep.mubr.bf16.mxu0 0
      %4295 = vmatmul.mubr.bf16.gmra.mrb[0].mxu0 %v4091
      %v4296 = vpop.f32.mrb[0].mxu0
      %v4297 = vadd.f32 0.0, %v4296
      %v4298 = vpop.f32.mrb[0].mxu0
      %v4299 = vpop.f32.mrb[0].mxu0
      %v4300 = vadd.f32 0.0, %v4299
      %v4301 = vpop.f32.mrb[0].mxu0
      %4302 = vmatprep.mubr.bf16.mxu0 0
      %4303 = vmatmul.mubr.bf16.gmra.mrb[0].mxu0 %v4092
      %v4304 = vpop.f32.mrb[0].mxu0
      %v4305 = vadd.f32 0.0, %v4304
      %v4306 = vpop.f32.mrb[0].mxu0
      %v4307 = vpop.f32.mrb[0].mxu0
      %v4308 = vadd.f32 0.0, %v4307
      %v4309 = vpop.f32.mrb[0].mxu0
      %4310 = vmatprep.mubr.bf16.mxu0 0
      %4311 = vmatmul.mubr.bf16.gmra.mrb[0].mxu0 %v4093
      %v4312 = vpop.f32.mrb[0].mxu0
      %v4313 = vadd.f32 0.0, %v4312
      %v4314 = vpop.f32.mrb[0].mxu0
      %v4315 = vpop.f32.mrb[0].mxu0
      %v4316 = vadd.f32 0.0, %v4315
      %v4317 = vpop.f32.mrb[0].mxu0
      %4318 = vdwg.mxu0
      %v4319 = vadd.f32 %v3965, %v4193
      %v4320 = vadd.f32 %v3966, %v4196
      %v4321 = vadd.f32 %v3967, %v4201
      %v4322 = vadd.f32 %v3968, %v4204
      %v4323 = vadd.f32 %v3969, %v4209
      %v4324 = vadd.f32 %v3970, %v4212
      %v4325 = vadd.f32 %v3971, %v4217
      %v4326 = vadd.f32 %v3972, %v4220
      %v4327 = vadd.f32 %v3973, %v4225
      %v4328 = vadd.f32 %v3974, %v4228
      %v4329 = vadd.f32 %v3975, %v4233
      %v4330 = vadd.f32 %v3976, %v4236
      %v4331 = vadd.f32 %v3977, %v4241
      %v4332 = vadd.f32 %v3978, %v4244
      %v4333 = vadd.f32 %v3979, %v4249
      %v4334 = vadd.f32 %v3980, %v4252
      %v4335 = vadd.f32 %v3981, %v4257
      %v4336 = vadd.f32 %v3982, %v4260
      %v4337 = vadd.f32 %v3983, %v4265
      %v4338 = vadd.f32 %v3984, %v4268
      %v4339 = vadd.f32 %v3985, %v4273
      %v4340 = vadd.f32 %v3986, %v4276
      %v4341 = vadd.f32 %v3987, %v4281
      %v4342 = vadd.f32 %v3988, %v4284
      %v4343 = vadd.f32 %v3989, %v4289
      %v4344 = vadd.f32 %v3990, %v4292
      %v4345 = vadd.f32 %v3991, %v4297
      %v4346 = vadd.f32 %v3992, %v4300
      %v4347 = vadd.f32 %v3993, %v4305
      %v4348 = vadd.f32 %v3994, %v4308
      %v4349 = vadd.f32 %v3995, %v4313
      %v4350 = vadd.f32 %v3996, %v4316
      %4351 = vst [vmem:[#allocation2] sm:$0xff] %v4319
      %4352 = vst [vmem:[#allocation2 + $0x8] sm:$0xff] %v4320
      %4353 = vst [vmem:[#allocation2 + $0x10] sm:$0xff] %v4321
      %4354 = vst [vmem:[#allocation2 + $0x18] sm:$0xff] %v4322
      %4355 = vst [vmem:[#allocation2 + $0x20] sm:$0xff] %v4323
      %4356 = vst [vmem:[#allocation2 + $0x28] sm:$0xff] %v4324
      %4357 = vst [vmem:[#allocation2 + $0x30] sm:$0xff] %v4325
      %4358 = vst [vmem:[#allocation2 + $0x38] sm:$0xff] %v4326
      %4359 = vst [vmem:[#allocation2 + $0x40] sm:$0xff] %v4327
      %4360 = vst [vmem:[#allocation2 + $0x48] sm:$0xff] %v4328
      %4361 = vst [vmem:[#allocation2 + $0x50] sm:$0xff] %v4329
      %4362 = vst [vmem:[#allocation2 + $0x58] sm:$0xff] %v4330
      %4363 = vst [vmem:[#allocation2 + $0x60] sm:$0xff] %v4331
      %4364 = vst [vmem:[#allocation2 + $0x68] sm:$0xff] %v4332
      %4365 = vst [vmem:[#allocation2 + $0x70] sm:$0xff] %v4333
      %4366 = vst [vmem:[#allocation2 + $0x78] sm:$0xff] %v4334
      %4367 = vst [vmem:[#allocation2 + $0x80] sm:$0xff] %v4335
      %4368 = vst [vmem:[#allocation2 + $0x88] sm:$0xff] %v4336
      %4369 = vst [vmem:[#allocation2 + $0x90] sm:$0xff] %v4337
      %4370 = vst [vmem:[#allocation2 + $0x98] sm:$0xff] %v4338
      %4371 = vst [vmem:[#allocation2 + $0xa0] sm:$0xff] %v4339
      %4372 = vst [vmem:[#allocation2 + $0xa8] sm:$0xff] %v4340
      %4373 = vst [vmem:[#allocation2 + $0xb0] sm:$0xff] %v4341
      %4374 = vst [vmem:[#allocation2 + $0xb8] sm:$0xff] %v4342
      %4375 = vst [vmem:[#allocation2 + $0xc0] sm:$0xff] %v4343
      %4376 = vst [vmem:[#allocation2 + $0xc8] sm:$0xff] %v4344
      %4377 = vst [vmem:[#allocation2 + $0xd0] sm:$0xff] %v4345
      %4378 = vst [vmem:[#allocation2 + $0xd8] sm:$0xff] %v4346
      %4379 = vst [vmem:[#allocation2 + $0xe0] sm:$0xff] %v4347
      %4380 = vst [vmem:[#allocation2 + $0xe8] sm:$0xff] %v4348
      %4381 = vst [vmem:[#allocation2 + $0xf0] sm:$0xff] %v4349
      %4382 = vst [vmem:[#allocation2 + $0xf8] sm:$0xff] %v4350
      %v4383 = vld [vmem:[%s3932] sm:$0xf]
      %v4384 = vld [vmem:[%s3932 + $0x4] sm:$0xf]
      %v4385 = vld [vmem:[%s3932 + $0x8] sm:$0x1]
      %v4386 = vld [vmem:[%s3932 + $0xc] sm:$0xf]
      %v4387 = vld [vmem:[%s3932 + $0x10] sm:$0xf]
      %v4388 = vld [vmem:[%s3932 + $0x14] sm:$0x1]
      %v4389 = vld [vmem:[%s3932 + $0x18] sm:$0xf]
      %v4390 = vld [vmem:[%s3932 + $0x1c] sm:$0xf]
      %v4391 = vld [vmem:[%s3932 + $0x20] sm:$0x1]
      %v4392 = vld [vmem:[%s3932 + $0x24] sm:$0xf]
      %v4393 = vld [vmem:[%s3932 + $0x28] sm:$0xf]
      %v4394 = vld [vmem:[%s3932 + $0x2c] sm:$0x1]
      %v4395 = vld [vmem:[%s3932 + $0x30] sm:$0xf]
      %v4396 = vld [vmem:[%s3932 + $0x34] sm:$0xf]
      %v4397 = vld [vmem:[%s3932 + $0x38] sm:$0x1]
      %v4398 = vld [vmem:[%s3932 + $0x3c] sm:$0xf]
      %v4399 = vld [vmem:[%s3932 + $0x40] sm:$0xf]
      %v4400 = vld [vmem:[%s3932 + $0x44] sm:$0x1]
      %v4401 = vld [vmem:[%s3932 + $0x48] sm:$0xf]
      %v4402 = vld [vmem:[%s3932 + $0x4c] sm:$0xf]
      %v4403 = vld [vmem:[%s3932 + $0x50] sm:$0x1]
      %v4404 = vld [vmem:[%s3932 + $0x54] sm:$0xf]
      %v4405 = vld [vmem:[%s3932 + $0x58] sm:$0xf]
      %v4406 = vld [vmem:[%s3932 + $0x5c] sm:$0x1]
      %v4407 = vld [vmem:[%s3932 + $0x60] sm:$0xf]
      %v4408 = vld [vmem:[%s3932 + $0x64] sm:$0xf]
      %v4409 = vld [vmem:[%s3932 + $0x68] sm:$0x1]
      %v4410 = vld [vmem:[%s3932 + $0x6c] sm:$0xf]
      %v4411 = vld [vmem:[%s3932 + $0x70] sm:$0xf]
      %v4412 = vld [vmem:[%s3932 + $0x74] sm:$0x1]
      %v4413 = vld [vmem:[%s3932 + $0x78] sm:$0xf]
      %v4414 = vld [vmem:[%s3932 + $0x7c] sm:$0xf]
      %v4415 = vld [vmem:[%s3932 + $0x80] sm:$0x1]
      %v4416 = vld [vmem:[%s3932 + $0x84] sm:$0xf]
      %v4417 = vld [vmem:[%s3932 + $0x88] sm:$0xf]
      %v4418 = vld [vmem:[%s3932 + $0x8c] sm:$0x1]
      %v4419 = vld [vmem:[%s3932 + $0x90] sm:$0xf]
      %v4420 = vld [vmem:[%s3932 + $0x94] sm:$0xf]
      %v4421 = vld [vmem:[%s3932 + $0x98] sm:$0x1]
      %v4422 = vld [vmem:[%s3932 + $0x9c] sm:$0xf]
      %v4423 = vld [vmem:[%s3932 + $0xa0] sm:$0xf]
      %v4424 = vld [vmem:[%s3932 + $0xa4] sm:$0x1]
      %v4425 = vld [vmem:[%s3932 + $0xa8] sm:$0xf]
      %v4426 = vld [vmem:[%s3932 + $0xac] sm:$0xf]
      %v4427 = vld [vmem:[%s3932 + $0xb0] sm:$0x1]
      %v4428 = vld [vmem:[%s3932 + $0xb4] sm:$0xf]
      %v4429 = vld [vmem:[%s3932 + $0xb8] sm:$0xf]
      %v4430 = vld [vmem:[%s3932 + $0xbc] sm:$0x1]
      %v4431 = vld [vmem:[#allocation2] sm:$0xff]
      %v4432 = vld [vmem:[#allocation2 + $0x8] sm:$0xff]
      %v4433 = vld [vmem:[#allocation2 + $0x10] sm:$0xff]
      %v4434 = vld [vmem:[#allocation2 + $0x18] sm:$0xff]
      %v4435 = vld [vmem:[#allocation2 + $0x20] sm:$0xff]
      %v4436 = vld [vmem:[#allocation2 + $0x28] sm:$0xff]
      %v4437 = vld [vmem:[#allocation2 + $0x30] sm:$0xff]
      %v4438 = vld [vmem:[#allocation2 + $0x38] sm:$0xff]
      %v4439 = vld [vmem:[#allocation2 + $0x40] sm:$0xff]
      %v4440 = vld [vmem:[#allocation2 + $0x48] sm:$0xff]
      %v4441 = vld [vmem:[#allocation2 + $0x50] sm:$0xff]
      %v4442 = vld [vmem:[#allocation2 + $0x58] sm:$0xff]
      %v4443 = vld [vmem:[#allocation2 + $0x60] sm:$0xff]
      %v4444 = vld [vmem:[#allocation2 + $0x68] sm:$0xff]
      %v4445 = vld [vmem:[#allocation2 + $0x70] sm:$0xff]
      %v4446 = vld [vmem:[#allocation2 + $0x78] sm:$0xff]
      %v4447 = vld [vmem:[#allocation2 + $0x80] sm:$0xff]
      %v4448 = vld [vmem:[#allocation2 + $0x88] sm:$0xff]
      %v4449 = vld [vmem:[#allocation2 + $0x90] sm:$0xff]
      %v4450 = vld [vmem:[#allocation2 + $0x98] sm:$0xff]
      %v4451 = vld [vmem:[#allocation2 + $0xa0] sm:$0xff]
      %v4452 = vld [vmem:[#allocation2 + $0xa8] sm:$0xff]
      %v4453 = vld [vmem:[#allocation2 + $0xb0] sm:$0xff]
      %v4454 = vld [vmem:[#allocation2 + $0xb8] sm:$0xff]
      %v4455 = vld [vmem:[#allocation2 + $0xc0] sm:$0xff]
      %v4456 = vld [vmem:[#allocation2 + $0xc8] sm:$0xff]
      %v4457 = vld [vmem:[#allocation2 + $0xd0] sm:$0xff]
      %v4458 = vld [vmem:[#allocation2 + $0xd8] sm:$0xff]
      %v4459 = vld [vmem:[#allocation2 + $0xe0] sm:$0xff]
      %v4460 = vld [vmem:[#allocation2 + $0xe8] sm:$0xff]
      %v4461 = vld [vmem:[#allocation2 + $0xf0] sm:$0xff]
      %v4462 = vld [vmem:[#allocation2 + $0xf8] sm:$0xff]
      %v4464 = vshrl.u32 %v4383, 16
      %v4466 = vrot.slane %v4464, 4
      %v4467 = vshll.u32 %v4383, 16
      %v4469 = vrot.slane %v4467, 5
      %v4470 = vor.u32 %v4466, %v4469
      %v4471 = vrot.slane %v4470, 4
      %v4473 = vshll.u32 %v4384, 16
      %v4475 = vrot.slane %v4473, 5
      %v4476 = vsel %vm733, %v4471, %v4475
      %v4477 = vshrl.u32 %v4384, 16
      %v4479 = vrot.slane %v4477, 4
      %v4480 = vor.u32 %v4479, %v4475
      %v4481 = vrot.slane %v4480, 4
      %v4483 = vshll.u32 %v4385, 16
      %v4485 = vrot.slane %v4483, 5
      %v4486 = vsel %vm733, %v4481, %v4485
      %v4488 = vshrl.u32 %v4386, 16
      %v4490 = vrot.slane %v4488, 4
      %v4491 = vshll.u32 %v4386, 16
      %v4493 = vrot.slane %v4491, 5
      %v4494 = vor.u32 %v4490, %v4493
      %v4495 = vrot.slane %v4494, 4
      %v4497 = vshll.u32 %v4387, 16
      %v4499 = vrot.slane %v4497, 5
      %v4500 = vsel %vm733, %v4495, %v4499
      %v4501 = vshrl.u32 %v4387, 16
      %v4503 = vrot.slane %v4501, 4
      %v4504 = vor.u32 %v4503, %v4499
      %v4505 = vrot.slane %v4504, 4
      %v4507 = vshll.u32 %v4388, 16
      %v4509 = vrot.slane %v4507, 5
      %v4510 = vsel %vm733, %v4505, %v4509
      %v4512 = vshrl.u32 %v4389, 16
      %v4514 = vrot.slane %v4512, 4
      %v4515 = vshll.u32 %v4389, 16
      %v4517 = vrot.slane %v4515, 5
      %v4518 = vor.u32 %v4514, %v4517
      %v4519 = vrot.slane %v4518, 4
      %v4521 = vshll.u32 %v4390, 16
      %v4523 = vrot.slane %v4521, 5
      %v4524 = vsel %vm733, %v4519, %v4523
      %v4525 = vshrl.u32 %v4390, 16
      %v4527 = vrot.slane %v4525, 4
      %v4528 = vor.u32 %v4527, %v4523
      %v4529 = vrot.slane %v4528, 4
      %v4531 = vshll.u32 %v4391, 16
      %v4533 = vrot.slane %v4531, 5
      %v4534 = vsel %vm733, %v4529, %v4533
      %v4536 = vshrl.u32 %v4392, 16
      %v4538 = vrot.slane %v4536, 4
      %v4539 = vshll.u32 %v4392, 16
      %v4541 = vrot.slane %v4539, 5
      %v4542 = vor.u32 %v4538, %v4541
      %v4543 = vrot.slane %v4542, 4
      %v4545 = vshll.u32 %v4393, 16
      %v4547 = vrot.slane %v4545, 5
      %v4548 = vsel %vm733, %v4543, %v4547
      %v4549 = vshrl.u32 %v4393, 16
      %v4551 = vrot.slane %v4549, 4
      %v4552 = vor.u32 %v4551, %v4547
      %v4553 = vrot.slane %v4552, 4
      %v4555 = vshll.u32 %v4394, 16
      %v4557 = vrot.slane %v4555, 5
      %v4558 = vsel %vm733, %v4553, %v4557
      %v4560 = vshrl.u32 %v4395, 16
      %v4562 = vrot.slane %v4560, 4
      %v4563 = vshll.u32 %v4395, 16
      %v4565 = vrot.slane %v4563, 5
      %v4566 = vor.u32 %v4562, %v4565
      %v4567 = vrot.slane %v4566, 4
      %v4569 = vshll.u32 %v4396, 16
      %v4571 = vrot.slane %v4569, 5
      %v4572 = vsel %vm733, %v4567, %v4571
      %v4573 = vshrl.u32 %v4396, 16
      %v4575 = vrot.slane %v4573, 4
      %v4576 = vor.u32 %v4575, %v4571
      %v4577 = vrot.slane %v4576, 4
      %v4579 = vshll.u32 %v4397, 16
      %v4581 = vrot.slane %v4579, 5
      %v4582 = vsel %vm733, %v4577, %v4581
      %v4584 = vshrl.u32 %v4398, 16
      %v4586 = vrot.slane %v4584, 4
      %v4587 = vshll.u32 %v4398, 16
      %v4589 = vrot.slane %v4587, 5
      %v4590 = vor.u32 %v4586, %v4589
      %v4591 = vrot.slane %v4590, 4
      %v4593 = vshll.u32 %v4399, 16
      %v4595 = vrot.slane %v4593, 5
      %v4596 = vsel %vm733, %v4591, %v4595
      %v4597 = vshrl.u32 %v4399, 16
      %v4599 = vrot.slane %v4597, 4
      %v4600 = vor.u32 %v4599, %v4595
      %v4601 = vrot.slane %v4600, 4
      %v4603 = vshll.u32 %v4400, 16
      %v4605 = vrot.slane %v4603, 5
      %v4606 = vsel %vm733, %v4601, %v4605
      %v4608 = vshrl.u32 %v4401, 16
      %v4610 = vrot.slane %v4608, 4
      %v4611 = vshll.u32 %v4401, 16
      %v4613 = vrot.slane %v4611, 5
      %v4614 = vor.u32 %v4610, %v4613
      %v4615 = vrot.slane %v4614, 4
      %v4617 = vshll.u32 %v4402, 16
      %v4619 = vrot.slane %v4617, 5
      %v4620 = vsel %vm733, %v4615, %v4619
      %v4621 = vshrl.u32 %v4402, 16
      %v4623 = vrot.slane %v4621, 4
      %v4624 = vor.u32 %v4623, %v4619
      %v4625 = vrot.slane %v4624, 4
      %v4627 = vshll.u32 %v4403, 16
      %v4629 = vrot.slane %v4627, 5
      %v4630 = vsel %vm733, %v4625, %v4629
      %v4632 = vshrl.u32 %v4404, 16
      %v4634 = vrot.slane %v4632, 4
      %v4635 = vshll.u32 %v4404, 16
      %v4637 = vrot.slane %v4635, 5
      %v4638 = vor.u32 %v4634, %v4637
      %v4639 = vrot.slane %v4638, 4
      %v4641 = vshll.u32 %v4405, 16
      %v4643 = vrot.slane %v4641, 5
      %v4644 = vsel %vm733, %v4639, %v4643
      %v4645 = vshrl.u32 %v4405, 16
      %v4647 = vrot.slane %v4645, 4
      %v4648 = vor.u32 %v4647, %v4643
      %v4649 = vrot.slane %v4648, 4
      %v4651 = vshll.u32 %v4406, 16
      %v4653 = vrot.slane %v4651, 5
      %v4654 = vsel %vm733, %v4649, %v4653
      %v4656 = vshrl.u32 %v4407, 16
      %v4658 = vrot.slane %v4656, 4
      %v4659 = vshll.u32 %v4407, 16
      %v4661 = vrot.slane %v4659, 5
      %v4662 = vor.u32 %v4658, %v4661
      %v4663 = vrot.slane %v4662, 4
      %v4665 = vshll.u32 %v4408, 16
      %v4667 = vrot.slane %v4665, 5
      %v4668 = vsel %vm733, %v4663, %v4667
      %v4669 = vshrl.u32 %v4408, 16
      %v4671 = vrot.slane %v4669, 4
      %v4672 = vor.u32 %v4671, %v4667
      %v4673 = vrot.slane %v4672, 4
      %v4675 = vshll.u32 %v4409, 16
      %v4677 = vrot.slane %v4675, 5
      %v4678 = vsel %vm733, %v4673, %v4677
      %v4680 = vshrl.u32 %v4410, 16
      %v4682 = vrot.slane %v4680, 4
      %v4683 = vshll.u32 %v4410, 16
      %v4685 = vrot.slane %v4683, 5
      %v4686 = vor.u32 %v4682, %v4685
      %v4687 = vrot.slane %v4686, 4
      %v4689 = vshll.u32 %v4411, 16
      %v4691 = vrot.slane %v4689, 5
      %v4692 = vsel %vm733, %v4687, %v4691
      %v4693 = vshrl.u32 %v4411, 16
      %v4695 = vrot.slane %v4693, 4
      %v4696 = vor.u32 %v4695, %v4691
      %v4697 = vrot.slane %v4696, 4
      %v4699 = vshll.u32 %v4412, 16
      %v4701 = vrot.slane %v4699, 5
      %v4702 = vsel %vm733, %v4697, %v4701
      %v4704 = vshrl.u32 %v4413, 16
      %v4706 = vrot.slane %v4704, 4
      %v4707 = vshll.u32 %v4413, 16
      %v4709 = vrot.slane %v4707, 5
      %v4710 = vor.u32 %v4706, %v4709
      %v4711 = vrot.slane %v4710, 4
      %v4713 = vshll.u32 %v4414, 16
      %v4715 = vrot.slane %v4713, 5
      %v4716 = vsel %vm733, %v4711, %v4715
      %v4717 = vshrl.u32 %v4414, 16
      %v4719 = vrot.slane %v4717, 4
      %v4720 = vor.u32 %v4719, %v4715
      %v4721 = vrot.slane %v4720, 4
      %v4723 = vshll.u32 %v4415, 16
      %v4725 = vrot.slane %v4723, 5
      %v4726 = vsel %vm733, %v4721, %v4725
      %v4728 = vshrl.u32 %v4416, 16
      %v4730 = vrot.slane %v4728, 4
      %v4731 = vshll.u32 %v4416, 16
      %v4733 = vrot.slane %v4731, 5
      %v4734 = vor.u32 %v4730, %v4733
      %v4735 = vrot.slane %v4734, 4
      %v4737 = vshll.u32 %v4417, 16
      %v4739 = vrot.slane %v4737, 5
      %v4740 = vsel %vm733, %v4735, %v4739
      %v4741 = vshrl.u32 %v4417, 16
      %v4743 = vrot.slane %v4741, 4
      %v4744 = vor.u32 %v4743, %v4739
      %v4745 = vrot.slane %v4744, 4
      %v4747 = vshll.u32 %v4418, 16
      %v4749 = vrot.slane %v4747, 5
      %v4750 = vsel %vm733, %v4745, %v4749
      %v4752 = vshrl.u32 %v4419, 16
      %v4754 = vrot.slane %v4752, 4
      %v4755 = vshll.u32 %v4419, 16
      %v4757 = vrot.slane %v4755, 5
      %v4758 = vor.u32 %v4754, %v4757
      %v4759 = vrot.slane %v4758, 4
      %v4761 = vshll.u32 %v4420, 16
      %v4763 = vrot.slane %v4761, 5
      %v4764 = vsel %vm733, %v4759, %v4763
      %v4765 = vshrl.u32 %v4420, 16
      %v4767 = vrot.slane %v4765, 4
      %v4768 = vor.u32 %v4767, %v4763
      %v4769 = vrot.slane %v4768, 4
      %v4771 = vshll.u32 %v4421, 16
      %v4773 = vrot.slane %v4771, 5
      %v4774 = vsel %vm733, %v4769, %v4773
      %v4776 = vshrl.u32 %v4422, 16
      %v4778 = vrot.slane %v4776, 4
      %v4779 = vshll.u32 %v4422, 16
      %v4781 = vrot.slane %v4779, 5
      %v4782 = vor.u32 %v4778, %v4781
      %v4783 = vrot.slane %v4782, 4
      %v4785 = vshll.u32 %v4423, 16
      %v4787 = vrot.slane %v4785, 5
      %v4788 = vsel %vm733, %v4783, %v4787
      %v4789 = vshrl.u32 %v4423, 16
      %v4791 = vrot.slane %v4789, 4
      %v4792 = vor.u32 %v4791, %v4787
      %v4793 = vrot.slane %v4792, 4
      %v4795 = vshll.u32 %v4424, 16
      %v4797 = vrot.slane %v4795, 5
      %v4798 = vsel %vm733, %v4793, %v4797
      %v4800 = vshrl.u32 %v4425, 16
      %v4802 = vrot.slane %v4800, 4
      %v4803 = vshll.u32 %v4425, 16
      %v4805 = vrot.slane %v4803, 5
      %v4806 = vor.u32 %v4802, %v4805
      %v4807 = vrot.slane %v4806, 4
      %v4809 = vshll.u32 %v4426, 16
      %v4811 = vrot.slane %v4809, 5
      %v4812 = vsel %vm733, %v4807, %v4811
      %v4813 = vshrl.u32 %v4426, 16
      %v4815 = vrot.slane %v4813, 4
      %v4816 = vor.u32 %v4815, %v4811
      %v4817 = vrot.slane %v4816, 4
      %v4819 = vshll.u32 %v4427, 16
      %v4821 = vrot.slane %v4819, 5
      %v4822 = vsel %vm733, %v4817, %v4821
      %v4824 = vshrl.u32 %v4428, 16
      %v4826 = vrot.slane %v4824, 4
      %v4827 = vshll.u32 %v4428, 16
      %v4829 = vrot.slane %v4827, 5
      %v4830 = vor.u32 %v4826, %v4829
      %v4831 = vrot.slane %v4830, 4
      %v4833 = vshll.u32 %v4429, 16
      %v4835 = vrot.slane %v4833, 5
      %v4836 = vsel %vm733, %v4831, %v4835
      %v4837 = vshrl.u32 %v4429, 16
      %v4839 = vrot.slane %v4837, 4
      %v4840 = vor.u32 %v4839, %v4835
      %v4841 = vrot.slane %v4840, 4
      %v4843 = vshll.u32 %v4430, 16
      %v4845 = vrot.slane %v4843, 5
      %v4846 = vsel %vm733, %v4841, %v4845
      %s4847 = scalar_lea.vmem %s1, 448
      %v4848 = vld [vmem:[%s4847] sm:$0xf]
      %v4849 = vld [vmem:[%s4847 + $0x4] sm:$0xf]
      %v4850 = vld [vmem:[%s4847 + $0x8] sm:$0xf]
      %v4851 = vld [vmem:[%s4847 + $0xc] sm:$0xf]
      %v4852 = vld [vmem:[%s4847 + $0x10] sm:$0xf]
      %v4853 = vld [vmem:[%s4847 + $0x14] sm:$0xf]
      %v4854 = vld [vmem:[%s4847 + $0x18] sm:$0xf]
      %v4855 = vld [vmem:[%s4847 + $0x1c] sm:$0xf]
      %v4856 = vld [vmem:[%s4847 + $0x20] sm:$0xf]
      %v4857 = vld [vmem:[%s4847 + $0x24] sm:$0xf]
      %v4858 = vld [vmem:[%s4847 + $0x28] sm:$0xf]
      %v4859 = vld [vmem:[%s4847 + $0x2c] sm:$0xf]
      %v4860 = vld [vmem:[%s4847 + $0x30] sm:$0xf]
      %v4861 = vld [vmem:[%s4847 + $0x34] sm:$0xf]
      %v4862 = vld [vmem:[%s4847 + $0x38] sm:$0xf]
      %v4863 = vld [vmem:[%s4847 + $0x3c] sm:$0xf]
      %v4864 = vunpack.c.l.b16 %v4476
      %v4865 = vunpack.c.l.b16 %v4486
      %v4866 = vunpack.c.l.b16 %v4500
      %v4867 = vunpack.c.l.b16 %v4510
      %v4868 = vunpack.c.l.b16 %v4524
      %v4869 = vunpack.c.l.b16 %v4534
      %v4870 = vunpack.c.l.b16 %v4548
      %v4871 = vunpack.c.l.b16 %v4558
      %v4872 = vunpack.c.l.b16 %v4572
      %v4873 = vunpack.c.l.b16 %v4582
      %v4874 = vunpack.c.l.b16 %v4596
      %v4875 = vunpack.c.l.b16 %v4606
      %v4876 = vunpack.c.l.b16 %v4620
      %v4877 = vunpack.c.l.b16 %v4630
      %v4878 = vunpack.c.l.b16 %v4644
      %v4879 = vunpack.c.l.b16 %v4654
      %v4880 = vunpack.c.l.b16 %v4668
      %v4881 = vunpack.c.l.b16 %v4678
      %v4882 = vunpack.c.l.b16 %v4692
      %v4883 = vunpack.c.l.b16 %v4702
      %v4884 = vunpack.c.l.b16 %v4716
      %v4885 = vunpack.c.l.b16 %v4726
      %v4886 = vunpack.c.l.b16 %v4740
      %v4887 = vunpack.c.l.b16 %v4750
      %v4888 = vunpack.c.l.b16 %v4764
      %v4889 = vunpack.c.l.b16 %v4774
      %v4890 = vunpack.c.l.b16 %v4788
      %v4891 = vunpack.c.l.b16 %v4798
      %v4892 = vunpack.c.l.b16 %v4812
      %v4893 = vunpack.c.l.b16 %v4822
      %v4894 = vunpack.c.l.b16 %v4836
      %v4895 = vunpack.c.l.b16 %v4846
      %v4896 = vpack.c.b16 %v4865, %v4864
      %v4897 = vpack.c.b16 %v4867, %v4866
      %v4898 = vpack.c.b16 %v4869, %v4868
      %v4899 = vpack.c.b16 %v4871, %v4870
      %v4900 = vpack.c.b16 %v4873, %v4872
      %v4901 = vpack.c.b16 %v4875, %v4874
      %v4902 = vpack.c.b16 %v4877, %v4876
      %v4903 = vpack.c.b16 %v4879, %v4878
      %v4904 = vpack.c.b16 %v4881, %v4880
      %v4905 = vpack.c.b16 %v4883, %v4882
      %v4906 = vpack.c.b16 %v4885, %v4884
      %v4907 = vpack.c.b16 %v4887, %v4886
      %v4908 = vpack.c.b16 %v4889, %v4888
      %v4909 = vpack.c.b16 %v4891, %v4890
      %v4910 = vpack.c.b16 %v4893, %v4892
      %v4911 = vpack.c.b16 %v4895, %v4894
      %v4944 = vunpack.c.l.b16 %v4848
      %v4945 = vunpack.c.l.b16 %v4849
      %v4946 = vunpack.c.l.b16 %v4850
      %v4947 = vunpack.c.l.b16 %v4851
      %v4948 = vunpack.c.l.b16 %v4852
      %v4949 = vunpack.c.l.b16 %v4853
      %v4950 = vunpack.c.l.b16 %v4854
      %v4951 = vunpack.c.l.b16 %v4855
      %v4952 = vunpack.c.l.b16 %v4856
      %v4953 = vunpack.c.l.b16 %v4857
      %v4954 = vunpack.c.l.b16 %v4858
      %v4955 = vunpack.c.l.b16 %v4859
      %v4956 = vunpack.c.l.b16 %v4860
      %v4957 = vunpack.c.l.b16 %v4861
      %v4958 = vunpack.c.l.b16 %v4862
      %v4959 = vunpack.c.l.b16 %v4863
      %v4960 = vpack.c.b16 %v4945, %v4944
      %v4961 = vpack.c.b16 %v4947, %v4946
      %v4962 = vpack.c.b16 %v4949, %v4948
      %v4963 = vpack.c.b16 %v4951, %v4950
      %v4964 = vpack.c.b16 %v4953, %v4952
      %v4965 = vpack.c.b16 %v4955, %v4954
      %v4966 = vpack.c.b16 %v4957, %v4956
      %v4967 = vpack.c.b16 %v4959, %v4958
      %4976 = vmatprep.subr.bf16.mxu0 0
      %4977 = vmatpush1.bf16.msra.mxu0 %v4960
      %4978 = vmatprep.subr.bf16.mxu0 0
      %4979 = vmatpush1.bf16.msra.mxu0 %v4961
      %4980 = vmatprep.subr.bf16.mxu0 0
      %4981 = vmatpush1.bf16.msra.mxu0 %v4962
      %4982 = vmatprep.subr.bf16.mxu0 0
      %4983 = vmatpush1.bf16.msra.mxu0 %v4963
      %4984 = vmatprep.subr.bf16.mxu0 0
      %4985 = vmatpush1.bf16.msra.mxu0 %v4964
      %4986 = vmatprep.subr.bf16.mxu0 0
      %4987 = vmatpush1.bf16.msra.mxu0 %v4965
      %4988 = vmatprep.subr.bf16.mxu0 0
      %4989 = vmatpush1.bf16.msra.mxu0 %v4966
      %4990 = vmatprep.subr.bf16.mxu0 0
      %4991 = vmatpush1.bf16.msra.mxu0 %v4967
      %4992 = vmatprep.subr.bf16.mxu0 0
      %4993 = vmatpush1.bf16.msra.mxu0 0
      %4994 = vmatprep.subr.bf16.mxu0 0
      %4995 = vmatpush1.bf16.msra.mxu0 0
      %4996 = vmatprep.subr.bf16.mxu0 0
      %4997 = vmatpush1.bf16.msra.mxu0 0
      %4998 = vmatprep.subr.bf16.mxu0 0
      %4999 = vmatpush1.bf16.msra.mxu0 0
      %5000 = vmatprep.subr.bf16.mxu0 0
      %5001 = vmatpush1.bf16.msra.mxu0 0
      %5002 = vmatprep.subr.bf16.mxu0 0
      %5003 = vmatpush1.bf16.msra.mxu0 0
      %5004 = vmatprep.subr.bf16.mxu0 0
      %5005 = vmatpush1.bf16.msra.mxu0 0
      %5006 = vmatprep.subr.bf16.mxu0 0
      %5007 = vmatpush1.bf16.msra.mxu0 0
      %5008 = vmatprep.mubr.bf16.mxu0 0
      %5009 = vmatmul.mubr.bf16.gmra.mrb[0].mxu0 %v4896
      %v5010 = vpop.f32.mrb[0].mxu0
      %v5011 = vadd.f32 0.0, %v5010
      %v5012 = vpop.f32.mrb[0].mxu0
      %v5013 = vpop.f32.mrb[0].mxu0
      %v5014 = vadd.f32 0.0, %v5013
      %v5015 = vpop.f32.mrb[0].mxu0
      %5016 = vmatprep.mubr.bf16.mxu0 0
      %5017 = vmatmul.mubr.bf16.gmra.mrb[0].mxu0 %v4897
      %v5018 = vpop.f32.mrb[0].mxu0
      %v5019 = vadd.f32 0.0, %v5018
      %v5020 = vpop.f32.mrb[0].mxu0
      %v5021 = vpop.f32.mrb[0].mxu0
      %v5022 = vadd.f32 0.0, %v5021
      %v5023 = vpop.f32.mrb[0].mxu0
      %5024 = vmatprep.mubr.bf16.mxu0 0
      %5025 = vmatmul.mubr.bf16.gmra.mrb[0].mxu0 %v4898
      %v5026 = vpop.f32.mrb[0].mxu0
      %v5027 = vadd.f32 0.0, %v5026
      %v5028 = vpop.f32.mrb[0].mxu0
      %v5029 = vpop.f32.mrb[0].mxu0
      %v5030 = vadd.f32 0.0, %v5029
      %v5031 = vpop.f32.mrb[0].mxu0
      %5032 = vmatprep.mubr.bf16.mxu0 0
      %5033 = vmatmul.mubr.bf16.gmra.mrb[0].mxu0 %v4899
      %v5034 = vpop.f32.mrb[0].mxu0
      %v5035 = vadd.f32 0.0, %v5034
      %v5036 = vpop.f32.mrb[0].mxu0
      %v5037 = vpop.f32.mrb[0].mxu0
      %v5038 = vadd.f32 0.0, %v5037
      %v5039 = vpop.f32.mrb[0].mxu0
      %5040 = vmatprep.mubr.bf16.mxu0 0
      %5041 = vmatmul.mubr.bf16.gmra.mrb[0].mxu0 %v4900
      %v5042 = vpop.f32.mrb[0].mxu0
      %v5043 = vadd.f32 0.0, %v5042
      %v5044 = vpop.f32.mrb[0].mxu0
      %v5045 = vpop.f32.mrb[0].mxu0
      %v5046 = vadd.f32 0.0, %v5045
      %v5047 = vpop.f32.mrb[0].mxu0
      %5048 = vmatprep.mubr.bf16.mxu0 0
      %5049 = vmatmul.mubr.bf16.gmra.mrb[0].mxu0 %v4901
      %v5050 = vpop.f32.mrb[0].mxu0
      %v5051 = vadd.f32 0.0, %v5050
      %v5052 = vpop.f32.mrb[0].mxu0
      %v5053 = vpop.f32.mrb[0].mxu0
      %v5054 = vadd.f32 0.0, %v5053
      %v5055 = vpop.f32.mrb[0].mxu0
      %5056 = vmatprep.mubr.bf16.mxu0 0
      %5057 = vmatmul.mubr.bf16.gmra.mrb[0].mxu0 %v4902
      %v5058 = vpop.f32.mrb[0].mxu0
      %v5059 = vadd.f32 0.0, %v5058
      %v5060 = vpop.f32.mrb[0].mxu0
      %v5061 = vpop.f32.mrb[0].mxu0
      %v5062 = vadd.f32 0.0, %v5061
      %v5063 = vpop.f32.mrb[0].mxu0
      %5064 = vmatprep.mubr.bf16.mxu0 0
      %5065 = vmatmul.mubr.bf16.gmra.mrb[0].mxu0 %v4903
      %v5066 = vpop.f32.mrb[0].mxu0
      %v5067 = vadd.f32 0.0, %v5066
      %v5068 = vpop.f32.mrb[0].mxu0
      %v5069 = vpop.f32.mrb[0].mxu0
      %v5070 = vadd.f32 0.0, %v5069
      %v5071 = vpop.f32.mrb[0].mxu0
      %5072 = vmatprep.mubr.bf16.mxu0 0
      %5073 = vmatmul.mubr.bf16.gmra.mrb[0].mxu0 %v4904
      %v5074 = vpop.f32.mrb[0].mxu0
      %v5075 = vadd.f32 0.0, %v5074
      %v5076 = vpop.f32.mrb[0].mxu0
      %v5077 = vpop.f32.mrb[0].mxu0
      %v5078 = vadd.f32 0.0, %v5077
      %v5079 = vpop.f32.mrb[0].mxu0
      %5080 = vmatprep.mubr.bf16.mxu0 0
      %5081 = vmatmul.mubr.bf16.gmra.mrb[0].mxu0 %v4905
      %v5082 = vpop.f32.mrb[0].mxu0
      %v5083 = vadd.f32 0.0, %v5082
      %v5084 = vpop.f32.mrb[0].mxu0
      %v5085 = vpop.f32.mrb[0].mxu0
      %v5086 = vadd.f32 0.0, %v5085
      %v5087 = vpop.f32.mrb[0].mxu0
      %5088 = vmatprep.mubr.bf16.mxu0 0
      %5089 = vmatmul.mubr.bf16.gmra.mrb[0].mxu0 %v4906
      %v5090 = vpop.f32.mrb[0].mxu0
      %v5091 = vadd.f32 0.0, %v5090
      %v5092 = vpop.f32.mrb[0].mxu0
      %v5093 = vpop.f32.mrb[0].mxu0
      %v5094 = vadd.f32 0.0, %v5093
      %v5095 = vpop.f32.mrb[0].mxu0
      %5096 = vmatprep.mubr.bf16.mxu0 0
      %5097 = vmatmul.mubr.bf16.gmra.mrb[0].mxu0 %v4907
      %v5098 = vpop.f32.mrb[0].mxu0
      %v5099 = vadd.f32 0.0, %v5098
      %v5100 = vpop.f32.mrb[0].mxu0
      %v5101 = vpop.f32.mrb[0].mxu0
      %v5102 = vadd.f32 0.0, %v5101
      %v5103 = vpop.f32.mrb[0].mxu0
      %5104 = vmatprep.mubr.bf16.mxu0 0
      %5105 = vmatmul.mubr.bf16.gmra.mrb[0].mxu0 %v4908
      %v5106 = vpop.f32.mrb[0].mxu0
      %v5107 = vadd.f32 0.0, %v5106
      %v5108 = vpop.f32.mrb[0].mxu0
      %v5109 = vpop.f32.mrb[0].mxu0
      %v5110 = vadd.f32 0.0, %v5109
      %v5111 = vpop.f32.mrb[0].mxu0
      %5112 = vmatprep.mubr.bf16.mxu0 0
      %5113 = vmatmul.mubr.bf16.gmra.mrb[0].mxu0 %v4909
      %v5114 = vpop.f32.mrb[0].mxu0
      %v5115 = vadd.f32 0.0, %v5114
      %v5116 = vpop.f32.mrb[0].mxu0
      %v5117 = vpop.f32.mrb[0].mxu0
      %v5118 = vadd.f32 0.0, %v5117
      %v5119 = vpop.f32.mrb[0].mxu0
      %5120 = vmatprep.mubr.bf16.mxu0 0
      %5121 = vmatmul.mubr.bf16.gmra.mrb[0].mxu0 %v4910
      %v5122 = vpop.f32.mrb[0].mxu0
      %v5123 = vadd.f32 0.0, %v5122
      %v5124 = vpop.f32.mrb[0].mxu0
      %v5125 = vpop.f32.mrb[0].mxu0
      %v5126 = vadd.f32 0.0, %v5125
      %v5127 = vpop.f32.mrb[0].mxu0
      %5128 = vmatprep.mubr.bf16.mxu0 0
      %5129 = vmatmul.mubr.bf16.gmra.mrb[0].mxu0 %v4911
      %v5130 = vpop.f32.mrb[0].mxu0
      %v5131 = vadd.f32 0.0, %v5130
      %v5132 = vpop.f32.mrb[0].mxu0
      %v5133 = vpop.f32.mrb[0].mxu0
      %v5134 = vadd.f32 0.0, %v5133
      %v5135 = vpop.f32.mrb[0].mxu0
      %5136 = vdwg.mxu0
      %v5137 = vadd.f32 %v4431, %v5011
      %v5138 = vadd.f32 %v4432, %v5014
      %v5139 = vadd.f32 %v4433, %v5019
      %v5140 = vadd.f32 %v4434, %v5022
      %v5141 = vadd.f32 %v4435, %v5027
      %v5142 = vadd.f32 %v4436, %v5030
      %v5143 = vadd.f32 %v4437, %v5035
      %v5144 = vadd.f32 %v4438, %v5038
      %v5145 = vadd.f32 %v4439, %v5043
      %v5146 = vadd.f32 %v4440, %v5046
      %v5147 = vadd.f32 %v4441, %v5051
      %v5148 = vadd.f32 %v4442, %v5054
      %v5149 = vadd.f32 %v4443, %v5059
      %v5150 = vadd.f32 %v4444, %v5062
      %v5151 = vadd.f32 %v4445, %v5067
      %v5152 = vadd.f32 %v4446, %v5070
      %v5153 = vadd.f32 %v4447, %v5075
      %v5154 = vadd.f32 %v4448, %v5078
      %v5155 = vadd.f32 %v4449, %v5083
      %v5156 = vadd.f32 %v4450, %v5086
      %v5157 = vadd.f32 %v4451, %v5091
      %v5158 = vadd.f32 %v4452, %v5094
      %v5159 = vadd.f32 %v4453, %v5099
      %v5160 = vadd.f32 %v4454, %v5102
      %v5161 = vadd.f32 %v4455, %v5107
      %v5162 = vadd.f32 %v4456, %v5110
      %v5163 = vadd.f32 %v4457, %v5115
      %v5164 = vadd.f32 %v4458, %v5118
      %v5165 = vadd.f32 %v4459, %v5123
      %v5166 = vadd.f32 %v4460, %v5126
      %v5167 = vadd.f32 %v4461, %v5131
      %v5168 = vadd.f32 %v4462, %v5134
      %5169 = vst [vmem:[#allocation2] sm:$0xff] %v5137
      %5170 = vst [vmem:[#allocation2 + $0x8] sm:$0xff] %v5138
      %5171 = vst [vmem:[#allocation2 + $0x10] sm:$0xff] %v5139
      %5172 = vst [vmem:[#allocation2 + $0x18] sm:$0xff] %v5140
      %5173 = vst [vmem:[#allocation2 + $0x20] sm:$0xff] %v5141
      %5174 = vst [vmem:[#allocation2 + $0x28] sm:$0xff] %v5142
      %5175 = vst [vmem:[#allocation2 + $0x30] sm:$0xff] %v5143
      %5176 = vst [vmem:[#allocation2 + $0x38] sm:$0xff] %v5144
      %5177 = vst [vmem:[#allocation2 + $0x40] sm:$0xff] %v5145
      %5178 = vst [vmem:[#allocation2 + $0x48] sm:$0xff] %v5146
      %5179 = vst [vmem:[#allocation2 + $0x50] sm:$0xff] %v5147
      %5180 = vst [vmem:[#allocation2 + $0x58] sm:$0xff] %v5148
      %5181 = vst [vmem:[#allocation2 + $0x60] sm:$0xff] %v5149
      %5182 = vst [vmem:[#allocation2 + $0x68] sm:$0xff] %v5150
      %5183 = vst [vmem:[#allocation2 + $0x70] sm:$0xff] %v5151
      %5184 = vst [vmem:[#allocation2 + $0x78] sm:$0xff] %v5152
      %5185 = vst [vmem:[#allocation2 + $0x80] sm:$0xff] %v5153
      %5186 = vst [vmem:[#allocation2 + $0x88] sm:$0xff] %v5154
      %5187 = vst [vmem:[#allocation2 + $0x90] sm:$0xff] %v5155
      %5188 = vst [vmem:[#allocation2 + $0x98] sm:$0xff] %v5156
      %5189 = vst [vmem:[#allocation2 + $0xa0] sm:$0xff] %v5157
      %5190 = vst [vmem:[#allocation2 + $0xa8] sm:$0xff] %v5158
      %5191 = vst [vmem:[#allocation2 + $0xb0] sm:$0xff] %v5159
      %5192 = vst [vmem:[#allocation2 + $0xb8] sm:$0xff] %v5160
      %5193 = vst [vmem:[#allocation2 + $0xc0] sm:$0xff] %v5161
      %5194 = vst [vmem:[#allocation2 + $0xc8] sm:$0xff] %v5162
      %5195 = vst [vmem:[#allocation2 + $0xd0] sm:$0xff] %v5163
      %5196 = vst [vmem:[#allocation2 + $0xd8] sm:$0xff] %v5164
      %5197 = vst [vmem:[#allocation2 + $0xe0] sm:$0xff] %v5165
      %5198 = vst [vmem:[#allocation2 + $0xe8] sm:$0xff] %v5166
      %5199 = vst [vmem:[#allocation2 + $0xf0] sm:$0xff] %v5167
      %5200 = vst [vmem:[#allocation2 + $0xf8] sm:$0xff] %v5168
      %v5201 = vld [vmem:[%s3932] sm:$0xe]
      %v5202 = vld [vmem:[%s3932 + $0x4] sm:$0xf]
      %v5203 = vld [vmem:[%s3932 + $0x8] sm:$0x1]
      %v5204 = vld [vmem:[%s3932 + $0xc] sm:$0xe]
      %v5205 = vld [vmem:[%s3932 + $0x10] sm:$0xf]
      %v5206 = vld [vmem:[%s3932 + $0x14] sm:$0x1]
      %v5207 = vld [vmem:[%s3932 + $0x18] sm:$0xe]
      %v5208 = vld [vmem:[%s3932 + $0x1c] sm:$0xf]
      %v5209 = vld [vmem:[%s3932 + $0x20] sm:$0x1]
      %v5210 = vld [vmem:[%s3932 + $0x24] sm:$0xe]
      %v5211 = vld [vmem:[%s3932 + $0x28] sm:$0xf]
      %v5212 = vld [vmem:[%s3932 + $0x2c] sm:$0x1]
      %v5213 = vld [vmem:[%s3932 + $0x30] sm:$0xe]
      %v5214 = vld [vmem:[%s3932 + $0x34] sm:$0xf]
      %v5215 = vld [vmem:[%s3932 + $0x38] sm:$0x1]
      %v5216 = vld [vmem:[%s3932 + $0x3c] sm:$0xe]
      %v5217 = vld [vmem:[%s3932 + $0x40] sm:$0xf]
      %v5218 = vld [vmem:[%s3932 + $0x44] sm:$0x1]
      %v5219 = vld [vmem:[%s3932 + $0x48] sm:$0xe]
      %v5220 = vld [vmem:[%s3932 + $0x4c] sm:$0xf]
      %v5221 = vld [vmem:[%s3932 + $0x50] sm:$0x1]
      %v5222 = vld [vmem:[%s3932 + $0x54] sm:$0xe]
      %v5223 = vld [vmem:[%s3932 + $0x58] sm:$0xf]
      %v5224 = vld [vmem:[%s3932 + $0x5c] sm:$0x1]
      %v5225 = vld [vmem:[%s3932 + $0x60] sm:$0xe]
      %v5226 = vld [vmem:[%s3932 + $0x64] sm:$0xf]
      %v5227 = vld [vmem:[%s3932 + $0x68] sm:$0x1]
      %v5228 = vld [vmem:[%s3932 + $0x6c] sm:$0xe]
      %v5229 = vld [vmem:[%s3932 + $0x70] sm:$0xf]
      %v5230 = vld [vmem:[%s3932 + $0x74] sm:$0x1]
      %v5231 = vld [vmem:[%s3932 + $0x78] sm:$0xe]
      %v5232 = vld [vmem:[%s3932 + $0x7c] sm:$0xf]
      %v5233 = vld [vmem:[%s3932 + $0x80] sm:$0x1]
      %v5234 = vld [vmem:[%s3932 + $0x84] sm:$0xe]
      %v5235 = vld [vmem:[%s3932 + $0x88] sm:$0xf]
      %v5236 = vld [vmem:[%s3932 + $0x8c] sm:$0x1]
      %v5237 = vld [vmem:[%s3932 + $0x90] sm:$0xe]
      %v5238 = vld [vmem:[%s3932 + $0x94] sm:$0xf]
      %v5239 = vld [vmem:[%s3932 + $0x98] sm:$0x1]
      %v5240 = vld [vmem:[%s3932 + $0x9c] sm:$0xe]
      %v5241 = vld [vmem:[%s3932 + $0xa0] sm:$0xf]
      %v5242 = vld [vmem:[%s3932 + $0xa4] sm:$0x1]
      %v5243 = vld [vmem:[%s3932 + $0xa8] sm:$0xe]
      %v5244 = vld [vmem:[%s3932 + $0xac] sm:$0xf]
      %v5245 = vld [vmem:[%s3932 + $0xb0] sm:$0x1]
      %v5246 = vld [vmem:[%s3932 + $0xb4] sm:$0xe]
      %v5247 = vld [vmem:[%s3932 + $0xb8] sm:$0xf]
      %v5248 = vld [vmem:[%s3932 + $0xbc] sm:$0x1]
      %v5249 = vld [vmem:[#allocation2] sm:$0xff]
      %v5250 = vld [vmem:[#allocation2 + $0x8] sm:$0xff]
      %v5251 = vld [vmem:[#allocation2 + $0x10] sm:$0xff]
      %v5252 = vld [vmem:[#allocation2 + $0x18] sm:$0xff]
      %v5253 = vld [vmem:[#allocation2 + $0x20] sm:$0xff]
      %v5254 = vld [vmem:[#allocation2 + $0x28] sm:$0xff]
      %v5255 = vld [vmem:[#allocation2 + $0x30] sm:$0xff]
      %v5256 = vld [vmem:[#allocation2 + $0x38] sm:$0xff]
      %v5257 = vld [vmem:[#allocation2 + $0x40] sm:$0xff]
      %v5258 = vld [vmem:[#allocation2 + $0x48] sm:$0xff]
      %v5259 = vld [vmem:[#allocation2 + $0x50] sm:$0xff]
      %v5260 = vld [vmem:[#allocation2 + $0x58] sm:$0xff]
      %v5261 = vld [vmem:[#allocation2 + $0x60] sm:$0xff]
      %v5262 = vld [vmem:[#allocation2 + $0x68] sm:$0xff]
      %v5263 = vld [vmem:[#allocation2 + $0x70] sm:$0xff]
      %v5264 = vld [vmem:[#allocation2 + $0x78] sm:$0xff]
      %v5265 = vld [vmem:[#allocation2 + $0x80] sm:$0xff]
      %v5266 = vld [vmem:[#allocation2 + $0x88] sm:$0xff]
      %v5267 = vld [vmem:[#allocation2 + $0x90] sm:$0xff]
      %v5268 = vld [vmem:[#allocation2 + $0x98] sm:$0xff]
      %v5269 = vld [vmem:[#allocation2 + $0xa0] sm:$0xff]
      %v5270 = vld [vmem:[#allocation2 + $0xa8] sm:$0xff]
      %v5271 = vld [vmem:[#allocation2 + $0xb0] sm:$0xff]
      %v5272 = vld [vmem:[#allocation2 + $0xb8] sm:$0xff]
      %v5273 = vld [vmem:[#allocation2 + $0xc0] sm:$0xff]
      %v5274 = vld [vmem:[#allocation2 + $0xc8] sm:$0xff]
      %v5275 = vld [vmem:[#allocation2 + $0xd0] sm:$0xff]
      %v5276 = vld [vmem:[#allocation2 + $0xd8] sm:$0xff]
      %v5277 = vld [vmem:[#allocation2 + $0xe0] sm:$0xff]
      %v5278 = vld [vmem:[#allocation2 + $0xe8] sm:$0xff]
      %v5279 = vld [vmem:[#allocation2 + $0xf0] sm:$0xff]
      %v5280 = vld [vmem:[#allocation2 + $0xf8] sm:$0xff]
      %v5329 = vrot.slane %v5201, 5
      %v5330 = vrot.slane %v5329, 4
      %v5331 = vrot.slane %v5202, 5
      %v5332 = vsel %vm1602, %v5330, %v5331
      %v5333 = vrot.slane %v5331, 4
      %v5334 = vrot.slane %v5203, 5
      %v5335 = vsel %vm1602, %v5333, %v5334
      %v5336 = vrot.slane %v5204, 5
      %v5337 = vrot.slane %v5336, 4
      %v5338 = vrot.slane %v5205, 5
      %v5339 = vsel %vm1602, %v5337, %v5338
      %v5340 = vrot.slane %v5338, 4
      %v5341 = vrot.slane %v5206, 5
      %v5342 = vsel %vm1602, %v5340, %v5341
      %v5343 = vrot.slane %v5207, 5
      %v5344 = vrot.slane %v5343, 4
      %v5345 = vrot.slane %v5208, 5
      %v5346 = vsel %vm1602, %v5344, %v5345
      %v5347 = vrot.slane %v5345, 4
      %v5348 = vrot.slane %v5209, 5
      %v5349 = vsel %vm1602, %v5347, %v5348
      %v5350 = vrot.slane %v5210, 5
      %v5351 = vrot.slane %v5350, 4
      %v5352 = vrot.slane %v5211, 5
      %v5353 = vsel %vm1602, %v5351, %v5352
      %v5354 = vrot.slane %v5352, 4
      %v5355 = vrot.slane %v5212, 5
      %v5356 = vsel %vm1602, %v5354, %v5355
      %v5357 = vrot.slane %v5213, 5
      %v5358 = vrot.slane %v5357, 4
      %v5359 = vrot.slane %v5214, 5
      %v5360 = vsel %vm1602, %v5358, %v5359
      %v5361 = vrot.slane %v5359, 4
      %v5362 = vrot.slane %v5215, 5
      %v5363 = vsel %vm1602, %v5361, %v5362
      %v5364 = vrot.slane %v5216, 5
      %v5365 = vrot.slane %v5364, 4
      %v5366 = vrot.slane %v5217, 5
      %v5367 = vsel %vm1602, %v5365, %v5366
      %v5368 = vrot.slane %v5366, 4
      %v5369 = vrot.slane %v5218, 5
      %v5370 = vsel %vm1602, %v5368, %v5369
      %v5371 = vrot.slane %v5219, 5
      %v5372 = vrot.slane %v5371, 4
      %v5373 = vrot.slane %v5220, 5
      %v5374 = vsel %vm1602, %v5372, %v5373
      %v5375 = vrot.slane %v5373, 4
      %v5376 = vrot.slane %v5221, 5
      %v5377 = vsel %vm1602, %v5375, %v5376
      %v5378 = vrot.slane %v5222, 5
      %v5379 = vrot.slane %v5378, 4
      %v5380 = vrot.slane %v5223, 5
      %v5381 = vsel %vm1602, %v5379, %v5380
      %v5382 = vrot.slane %v5380, 4
      %v5383 = vrot.slane %v5224, 5
      %v5384 = vsel %vm1602, %v5382, %v5383
      %v5385 = vrot.slane %v5225, 5
      %v5386 = vrot.slane %v5385, 4
      %v5387 = vrot.slane %v5226, 5
      %v5388 = vsel %vm1602, %v5386, %v5387
      %v5389 = vrot.slane %v5387, 4
      %v5390 = vrot.slane %v5227, 5
      %v5391 = vsel %vm1602, %v5389, %v5390
      %v5392 = vrot.slane %v5228, 5
      %v5393 = vrot.slane %v5392, 4
      %v5394 = vrot.slane %v5229, 5
      %v5395 = vsel %vm1602, %v5393, %v5394
      %v5396 = vrot.slane %v5394, 4
      %v5397 = vrot.slane %v5230, 5
      %v5398 = vsel %vm1602, %v5396, %v5397
      %v5399 = vrot.slane %v5231, 5
      %v5400 = vrot.slane %v5399, 4
      %v5401 = vrot.slane %v5232, 5
      %v5402 = vsel %vm1602, %v5400, %v5401
      %v5403 = vrot.slane %v5401, 4
      %v5404 = vrot.slane %v5233, 5
      %v5405 = vsel %vm1602, %v5403, %v5404
      %v5406 = vrot.slane %v5234, 5
      %v5407 = vrot.slane %v5406, 4
      %v5408 = vrot.slane %v5235, 5
      %v5409 = vsel %vm1602, %v5407, %v5408
      %v5410 = vrot.slane %v5408, 4
      %v5411 = vrot.slane %v5236, 5
      %v5412 = vsel %vm1602, %v5410, %v5411
      %v5413 = vrot.slane %v5237, 5
      %v5414 = vrot.slane %v5413, 4
      %v5415 = vrot.slane %v5238, 5
      %v5416 = vsel %vm1602, %v5414, %v5415
      %v5417 = vrot.slane %v5415, 4
      %v5418 = vrot.slane %v5239, 5
      %v5419 = vsel %vm1602, %v5417, %v5418
      %v5420 = vrot.slane %v5240, 5
      %v5421 = vrot.slane %v5420, 4
      %v5422 = vrot.slane %v5241, 5
      %v5423 = vsel %vm1602, %v5421, %v5422
      %v5424 = vrot.slane %v5422, 4
      %v5425 = vrot.slane %v5242, 5
      %v5426 = vsel %vm1602, %v5424, %v5425
      %v5427 = vrot.slane %v5243, 5
      %v5428 = vrot.slane %v5427, 4
      %v5429 = vrot.slane %v5244, 5
      %v5430 = vsel %vm1602, %v5428, %v5429
      %v5431 = vrot.slane %v5429, 4
      %v5432 = vrot.slane %v5245, 5
      %v5433 = vsel %vm1602, %v5431, %v5432
      %v5434 = vrot.slane %v5246, 5
      %v5435 = vrot.slane %v5434, 4
      %v5436 = vrot.slane %v5247, 5
      %v5437 = vsel %vm1602, %v5435, %v5436
      %v5438 = vrot.slane %v5436, 4
      %v5439 = vrot.slane %v5248, 5
      %v5440 = vsel %vm1602, %v5438, %v5439
      %s5441 = scalar_lea.vmem %s1, 512
      %v5442 = vld [vmem:[%s5441] sm:$0xf]
      %v5443 = vld [vmem:[%s5441 + $0x4] sm:$0xf]
      %v5444 = vld [vmem:[%s5441 + $0x8] sm:$0xf]
      %v5445 = vld [vmem:[%s5441 + $0xc] sm:$0xf]
      %v5446 = vld [vmem:[%s5441 + $0x10] sm:$0xf]
      %v5447 = vld [vmem:[%s5441 + $0x14] sm:$0xf]
      %v5448 = vld [vmem:[%s5441 + $0x18] sm:$0xf]
      %v5449 = vld [vmem:[%s5441 + $0x1c] sm:$0xf]
      %v5450 = vld [vmem:[%s5441 + $0x20] sm:$0xf]
      %v5451 = vld [vmem:[%s5441 + $0x24] sm:$0xf]
      %v5452 = vld [vmem:[%s5441 + $0x28] sm:$0xf]
      %v5453 = vld [vmem:[%s5441 + $0x2c] sm:$0xf]
      %v5454 = vld [vmem:[%s5441 + $0x30] sm:$0xf]
      %v5455 = vld [vmem:[%s5441 + $0x34] sm:$0xf]
      %v5456 = vld [vmem:[%s5441 + $0x38] sm:$0xf]
      %v5457 = vld [vmem:[%s5441 + $0x3c] sm:$0xf]
      %v5458 = vunpack.c.l.b16 %v5332
      %v5459 = vunpack.c.l.b16 %v5335
      %v5460 = vunpack.c.l.b16 %v5339
      %v5461 = vunpack.c.l.b16 %v5342
      %v5462 = vunpack.c.l.b16 %v5346
      %v5463 = vunpack.c.l.b16 %v5349
      %v5464 = vunpack.c.l.b16 %v5353
      %v5465 = vunpack.c.l.b16 %v5356
      %v5466 = vunpack.c.l.b16 %v5360
      %v5467 = vunpack.c.l.b16 %v5363
      %v5468 = vunpack.c.l.b16 %v5367
      %v5469 = vunpack.c.l.b16 %v5370
      %v5470 = vunpack.c.l.b16 %v5374
      %v5471 = vunpack.c.l.b16 %v5377
      %v5472 = vunpack.c.l.b16 %v5381
      %v5473 = vunpack.c.l.b16 %v5384
      %v5474 = vunpack.c.l.b16 %v5388
      %v5475 = vunpack.c.l.b16 %v5391
      %v5476 = vunpack.c.l.b16 %v5395
      %v5477 = vunpack.c.l.b16 %v5398
      %v5478 = vunpack.c.l.b16 %v5402
      %v5479 = vunpack.c.l.b16 %v5405
      %v5480 = vunpack.c.l.b16 %v5409
      %v5481 = vunpack.c.l.b16 %v5412
      %v5482 = vunpack.c.l.b16 %v5416
      %v5483 = vunpack.c.l.b16 %v5419
      %v5484 = vunpack.c.l.b16 %v5423
      %v5485 = vunpack.c.l.b16 %v5426
      %v5486 = vunpack.c.l.b16 %v5430
      %v5487 = vunpack.c.l.b16 %v5433
      %v5488 = vunpack.c.l.b16 %v5437
      %v5489 = vunpack.c.l.b16 %v5440
      %v5490 = vpack.c.b16 %v5459, %v5458
      %v5491 = vpack.c.b16 %v5461, %v5460
      %v5492 = vpack.c.b16 %v5463, %v5462
      %v5493 = vpack.c.b16 %v5465, %v5464
      %v5494 = vpack.c.b16 %v5467, %v5466
      %v5495 = vpack.c.b16 %v5469, %v5468
      %v5496 = vpack.c.b16 %v5471, %v5470
      %v5497 = vpack.c.b16 %v5473, %v5472
      %v5498 = vpack.c.b16 %v5475, %v5474
      %v5499 = vpack.c.b16 %v5477, %v5476
      %v5500 = vpack.c.b16 %v5479, %v5478
      %v5501 = vpack.c.b16 %v5481, %v5480
      %v5502 = vpack.c.b16 %v5483, %v5482
      %v5503 = vpack.c.b16 %v5485, %v5484
      %v5504 = vpack.c.b16 %v5487, %v5486
      %v5505 = vpack.c.b16 %v5489, %v5488
      %v5538 = vunpack.c.l.b16 %v5442
      %v5539 = vunpack.c.l.b16 %v5443
      %v5540 = vunpack.c.l.b16 %v5444
      %v5541 = vunpack.c.l.b16 %v5445
      %v5542 = vunpack.c.l.b16 %v5446
      %v5543 = vunpack.c.l.b16 %v5447
      %v5544 = vunpack.c.l.b16 %v5448
      %v5545 = vunpack.c.l.b16 %v5449
      %v5546 = vunpack.c.l.b16 %v5450
      %v5547 = vunpack.c.l.b16 %v5451
      %v5548 = vunpack.c.l.b16 %v5452
      %v5549 = vunpack.c.l.b16 %v5453
      %v5550 = vunpack.c.l.b16 %v5454
      %v5551 = vunpack.c.l.b16 %v5455
      %v5552 = vunpack.c.l.b16 %v5456
      %v5553 = vunpack.c.l.b16 %v5457
      %v5554 = vpack.c.b16 %v5539, %v5538
      %v5555 = vpack.c.b16 %v5541, %v5540
      %v5556 = vpack.c.b16 %v5543, %v5542
      %v5557 = vpack.c.b16 %v5545, %v5544
      %v5558 = vpack.c.b16 %v5547, %v5546
      %v5559 = vpack.c.b16 %v5549, %v5548
      %v5560 = vpack.c.b16 %v5551, %v5550
      %v5561 = vpack.c.b16 %v5553, %v5552
      %5570 = vmatprep.subr.bf16.mxu0 0
      %5571 = vmatpush1.bf16.msra.mxu0 %v5554
      %5572 = vmatprep.subr.bf16.mxu0 0
      %5573 = vmatpush1.bf16.msra.mxu0 %v5555
      %5574 = vmatprep.subr.bf16.mxu0 0
      %5575 = vmatpush1.bf16.msra.mxu0 %v5556
      %5576 = vmatprep.subr.bf16.mxu0 0
      %5577 = vmatpush1.bf16.msra.mxu0 %v5557
      %5578 = vmatprep.subr.bf16.mxu0 0
      %5579 = vmatpush1.bf16.msra.mxu0 %v5558
      %5580 = vmatprep.subr.bf16.mxu0 0
      %5581 = vmatpush1.bf16.msra.mxu0 %v5559
      %5582 = vmatprep.subr.bf16.mxu0 0
      %5583 = vmatpush1.bf16.msra.mxu0 %v5560
      %5584 = vmatprep.subr.bf16.mxu0 0
      %5585 = vmatpush1.bf16.msra.mxu0 %v5561
      %5586 = vmatprep.subr.bf16.mxu0 0
      %5587 = vmatpush1.bf16.msra.mxu0 0
      %5588 = vmatprep.subr.bf16.mxu0 0
      %5589 = vmatpush1.bf16.msra.mxu0 0
      %5590 = vmatprep.subr.bf16.mxu0 0
      %5591 = vmatpush1.bf16.msra.mxu0 0
      %5592 = vmatprep.subr.bf16.mxu0 0
      %5593 = vmatpush1.bf16.msra.mxu0 0
      %5594 = vmatprep.subr.bf16.mxu0 0
      %5595 = vmatpush1.bf16.msra.mxu0 0
      %5596 = vmatprep.subr.bf16.mxu0 0
      %5597 = vmatpush1.bf16.msra.mxu0 0
      %5598 = vmatprep.subr.bf16.mxu0 0
      %5599 = vmatpush1.bf16.msra.mxu0 0
      %5600 = vmatprep.subr.bf16.mxu0 0
      %5601 = vmatpush1.bf16.msra.mxu0 0
      %5602 = vmatprep.mubr.bf16.mxu0 0
      %5603 = vmatmul.mubr.bf16.gmra.mrb[0].mxu0 %v5490
      %v5604 = vpop.f32.mrb[0].mxu0
      %v5605 = vadd.f32 0.0, %v5604
      %v5606 = vpop.f32.mrb[0].mxu0
      %v5607 = vpop.f32.mrb[0].mxu0
      %v5608 = vadd.f32 0.0, %v5607
      %v5609 = vpop.f32.mrb[0].mxu0
      %5610 = vmatprep.mubr.bf16.mxu0 0
      %5611 = vmatmul.mubr.bf16.gmra.mrb[0].mxu0 %v5491
      %v5612 = vpop.f32.mrb[0].mxu0
      %v5613 = vadd.f32 0.0, %v5612
      %v5614 = vpop.f32.mrb[0].mxu0
      %v5615 = vpop.f32.mrb[0].mxu0
      %v5616 = vadd.f32 0.0, %v5615
      %v5617 = vpop.f32.mrb[0].mxu0
      %5618 = vmatprep.mubr.bf16.mxu0 0
      %5619 = vmatmul.mubr.bf16.gmra.mrb[0].mxu0 %v5492
      %v5620 = vpop.f32.mrb[0].mxu0
      %v5621 = vadd.f32 0.0, %v5620
      %v5622 = vpop.f32.mrb[0].mxu0
      %v5623 = vpop.f32.mrb[0].mxu0
      %v5624 = vadd.f32 0.0, %v5623
      %v5625 = vpop.f32.mrb[0].mxu0
      %5626 = vmatprep.mubr.bf16.mxu0 0
      %5627 = vmatmul.mubr.bf16.gmra.mrb[0].mxu0 %v5493
      %v5628 = vpop.f32.mrb[0].mxu0
      %v5629 = vadd.f32 0.0, %v5628
      %v5630 = vpop.f32.mrb[0].mxu0
      %v5631 = vpop.f32.mrb[0].mxu0
      %v5632 = vadd.f32 0.0, %v5631
      %v5633 = vpop.f32.mrb[0].mxu0
      %5634 = vmatprep.mubr.bf16.mxu0 0
      %5635 = vmatmul.mubr.bf16.gmra.mrb[0].mxu0 %v5494
      %v5636 = vpop.f32.mrb[0].mxu0
      %v5637 = vadd.f32 0.0, %v5636
      %v5638 = vpop.f32.mrb[0].mxu0
      %v5639 = vpop.f32.mrb[0].mxu0
      %v5640 = vadd.f32 0.0, %v5639
      %v5641 = vpop.f32.mrb[0].mxu0
      %5642 = vmatprep.mubr.bf16.mxu0 0
      %5643 = vmatmul.mubr.bf16.gmra.mrb[0].mxu0 %v5495
      %v5644 = vpop.f32.mrb[0].mxu0
      %v5645 = vadd.f32 0.0, %v5644
      %v5646 = vpop.f32.mrb[0].mxu0
      %v5647 = vpop.f32.mrb[0].mxu0
      %v5648 = vadd.f32 0.0, %v5647
      %v5649 = vpop.f32.mrb[0].mxu0
      %5650 = vmatprep.mubr.bf16.mxu0 0
      %5651 = vmatmul.mubr.bf16.gmra.mrb[0].mxu0 %v5496
      %v5652 = vpop.f32.mrb[0].mxu0
      %v5653 = vadd.f32 0.0, %v5652
      %v5654 = vpop.f32.mrb[0].mxu0
      %v5655 = vpop.f32.mrb[0].mxu0
      %v5656 = vadd.f32 0.0, %v5655
      %v5657 = vpop.f32.mrb[0].mxu0
      %5658 = vmatprep.mubr.bf16.mxu0 0
      %5659 = vmatmul.mubr.bf16.gmra.mrb[0].mxu0 %v5497
      %v5660 = vpop.f32.mrb[0].mxu0
      %v5661 = vadd.f32 0.0, %v5660
      %v5662 = vpop.f32.mrb[0].mxu0
      %v5663 = vpop.f32.mrb[0].mxu0
      %v5664 = vadd.f32 0.0, %v5663
      %v5665 = vpop.f32.mrb[0].mxu0
      %5666 = vmatprep.mubr.bf16.mxu0 0
      %5667 = vmatmul.mubr.bf16.gmra.mrb[0].mxu0 %v5498
      %v5668 = vpop.f32.mrb[0].mxu0
      %v5669 = vadd.f32 0.0, %v5668
      %v5670 = vpop.f32.mrb[0].mxu0
      %v5671 = vpop.f32.mrb[0].mxu0
      %v5672 = vadd.f32 0.0, %v5671
      %v5673 = vpop.f32.mrb[0].mxu0
      %5674 = vmatprep.mubr.bf16.mxu0 0
      %5675 = vmatmul.mubr.bf16.gmra.mrb[0].mxu0 %v5499
      %v5676 = vpop.f32.mrb[0].mxu0
      %v5677 = vadd.f32 0.0, %v5676
      %v5678 = vpop.f32.mrb[0].mxu0
      %v5679 = vpop.f32.mrb[0].mxu0
      %v5680 = vadd.f32 0.0, %v5679
      %v5681 = vpop.f32.mrb[0].mxu0
      %5682 = vmatprep.mubr.bf16.mxu0 0
      %5683 = vmatmul.mubr.bf16.gmra.mrb[0].mxu0 %v5500
      %v5684 = vpop.f32.mrb[0].mxu0
      %v5685 = vadd.f32 0.0, %v5684
      %v5686 = vpop.f32.mrb[0].mxu0
      %v5687 = vpop.f32.mrb[0].mxu0
      %v5688 = vadd.f32 0.0, %v5687
      %v5689 = vpop.f32.mrb[0].mxu0
      %5690 = vmatprep.mubr.bf16.mxu0 0
      %5691 = vmatmul.mubr.bf16.gmra.mrb[0].mxu0 %v5501
      %v5692 = vpop.f32.mrb[0].mxu0
      %v5693 = vadd.f32 0.0, %v5692
      %v5694 = vpop.f32.mrb[0].mxu0
      %v5695 = vpop.f32.mrb[0].mxu0
      %v5696 = vadd.f32 0.0, %v5695
      %v5697 = vpop.f32.mrb[0].mxu0
      %5698 = vmatprep.mubr.bf16.mxu0 0
      %5699 = vmatmul.mubr.bf16.gmra.mrb[0].mxu0 %v5502
      %v5700 = vpop.f32.mrb[0].mxu0
      %v5701 = vadd.f32 0.0, %v5700
      %v5702 = vpop.f32.mrb[0].mxu0
      %v5703 = vpop.f32.mrb[0].mxu0
      %v5704 = vadd.f32 0.0, %v5703
      %v5705 = vpop.f32.mrb[0].mxu0
      %5706 = vmatprep.mubr.bf16.mxu0 0
      %5707 = vmatmul.mubr.bf16.gmra.mrb[0].mxu0 %v5503
      %v5708 = vpop.f32.mrb[0].mxu0
      %v5709 = vadd.f32 0.0, %v5708
      %v5710 = vpop.f32.mrb[0].mxu0
      %v5711 = vpop.f32.mrb[0].mxu0
      %v5712 = vadd.f32 0.0, %v5711
      %v5713 = vpop.f32.mrb[0].mxu0
      %5714 = vmatprep.mubr.bf16.mxu0 0
      %5715 = vmatmul.mubr.bf16.gmra.mrb[0].mxu0 %v5504
      %v5716 = vpop.f32.mrb[0].mxu0
      %v5717 = vadd.f32 0.0, %v5716
      %v5718 = vpop.f32.mrb[0].mxu0
      %v5719 = vpop.f32.mrb[0].mxu0
      %v5720 = vadd.f32 0.0, %v5719
      %v5721 = vpop.f32.mrb[0].mxu0
      %5722 = vmatprep.mubr.bf16.mxu0 0
      %5723 = vmatmul.mubr.bf16.gmra.mrb[0].mxu0 %v5505
      %v5724 = vpop.f32.mrb[0].mxu0
      %v5725 = vadd.f32 0.0, %v5724
      %v5726 = vpop.f32.mrb[0].mxu0
      %v5727 = vpop.f32.mrb[0].mxu0
      %v5728 = vadd.f32 0.0, %v5727
      %v5729 = vpop.f32.mrb[0].mxu0
      %5730 = vdwg.mxu0
      %v5731 = vadd.f32 %v5249, %v5605
      %v5732 = vadd.f32 %v5250, %v5608
      %v5733 = vadd.f32 %v5251, %v5613
      %v5734 = vadd.f32 %v5252, %v5616
      %v5735 = vadd.f32 %v5253, %v5621
      %v5736 = vadd.f32 %v5254, %v5624
      %v5737 = vadd.f32 %v5255, %v5629
      %v5738 = vadd.f32 %v5256, %v5632
      %v5739 = vadd.f32 %v5257, %v5637
      %v5740 = vadd.f32 %v5258, %v5640
      %v5741 = vadd.f32 %v5259, %v5645
      %v5742 = vadd.f32 %v5260, %v5648
      %v5743 = vadd.f32 %v5261, %v5653
      %v5744 = vadd.f32 %v5262, %v5656
      %v5745 = vadd.f32 %v5263, %v5661
      %v5746 = vadd.f32 %v5264, %v5664
      %v5747 = vadd.f32 %v5265, %v5669
      %v5748 = vadd.f32 %v5266, %v5672
      %v5749 = vadd.f32 %v5267, %v5677
      %v5750 = vadd.f32 %v5268, %v5680
      %v5751 = vadd.f32 %v5269, %v5685
      %v5752 = vadd.f32 %v5270, %v5688
      %v5753 = vadd.f32 %v5271, %v5693
      %v5754 = vadd.f32 %v5272, %v5696
      %v5755 = vadd.f32 %v5273, %v5701
      %v5756 = vadd.f32 %v5274, %v5704
      %v5757 = vadd.f32 %v5275, %v5709
      %v5758 = vadd.f32 %v5276, %v5712
      %v5759 = vadd.f32 %v5277, %v5717
      %v5760 = vadd.f32 %v5278, %v5720
      %v5761 = vadd.f32 %v5279, %v5725
      %v5762 = vadd.f32 %v5280, %v5728
      %5763 = vst [vmem:[#allocation2] sm:$0xff] %v5731
      %5764 = vst [vmem:[#allocation2 + $0x8] sm:$0xff] %v5732
      %5765 = vst [vmem:[#allocation2 + $0x10] sm:$0xff] %v5733
      %5766 = vst [vmem:[#allocation2 + $0x18] sm:$0xff] %v5734
      %5767 = vst [vmem:[#allocation2 + $0x20] sm:$0xff] %v5735
      %5768 = vst [vmem:[#allocation2 + $0x28] sm:$0xff] %v5736
      %5769 = vst [vmem:[#allocation2 + $0x30] sm:$0xff] %v5737
      %5770 = vst [vmem:[#allocation2 + $0x38] sm:$0xff] %v5738
      %5771 = vst [vmem:[#allocation2 + $0x40] sm:$0xff] %v5739
      %5772 = vst [vmem:[#allocation2 + $0x48] sm:$0xff] %v5740
      %5773 = vst [vmem:[#allocation2 + $0x50] sm:$0xff] %v5741
      %5774 = vst [vmem:[#allocation2 + $0x58] sm:$0xff] %v5742
      %5775 = vst [vmem:[#allocation2 + $0x60] sm:$0xff] %v5743
      %5776 = vst [vmem:[#allocation2 + $0x68] sm:$0xff] %v5744
      %5777 = vst [vmem:[#allocation2 + $0x70] sm:$0xff] %v5745
      %5778 = vst [vmem:[#allocation2 + $0x78] sm:$0xff] %v5746
      %5779 = vst [vmem:[#allocation2 + $0x80] sm:$0xff] %v5747
      %5780 = vst [vmem:[#allocation2 + $0x88] sm:$0xff] %v5748
      %5781 = vst [vmem:[#allocation2 + $0x90] sm:$0xff] %v5749
      %5782 = vst [vmem:[#allocation2 + $0x98] sm:$0xff] %v5750
      %5783 = vst [vmem:[#allocation2 + $0xa0] sm:$0xff] %v5751
      %5784 = vst [vmem:[#allocation2 + $0xa8] sm:$0xff] %v5752
      %5785 = vst [vmem:[#allocation2 + $0xb0] sm:$0xff] %v5753
      %5786 = vst [vmem:[#allocation2 + $0xb8] sm:$0xff] %v5754
      %5787 = vst [vmem:[#allocation2 + $0xc0] sm:$0xff] %v5755
      %5788 = vst [vmem:[#allocation2 + $0xc8] sm:$0xff] %v5756
      %5789 = vst [vmem:[#allocation2 + $0xd0] sm:$0xff] %v5757
      %5790 = vst [vmem:[#allocation2 + $0xd8] sm:$0xff] %v5758
      %5791 = vst [vmem:[#allocation2 + $0xe0] sm:$0xff] %v5759
      %5792 = vst [vmem:[#allocation2 + $0xe8] sm:$0xff] %v5760
      %5793 = vst [vmem:[#allocation2 + $0xf0] sm:$0xff] %v5761
      %5794 = vst [vmem:[#allocation2 + $0xf8] sm:$0xff] %v5762
      %v5795 = vld [vmem:[#allocation2] sm:$0xff]
      %v5796 = vld [vmem:[#allocation2 + $0x8] sm:$0xff]
      %v5797 = vld [vmem:[#allocation2 + $0x10] sm:$0xff]
      %v5798 = vld [vmem:[#allocation2 + $0x18] sm:$0xff]
      %v5799 = vld [vmem:[#allocation2 + $0x20] sm:$0xff]
      %v5800 = vld [vmem:[#allocation2 + $0x28] sm:$0xff]
      %v5801 = vld [vmem:[#allocation2 + $0x30] sm:$0xff]
      %v5802 = vld [vmem:[#allocation2 + $0x38] sm:$0xff]
      %v5803 = vld [vmem:[#allocation2 + $0x40] sm:$0xff]
      %v5804 = vld [vmem:[#allocation2 + $0x48] sm:$0xff]
      %v5805 = vld [vmem:[#allocation2 + $0x50] sm:$0xff]
      %v5806 = vld [vmem:[#allocation2 + $0x58] sm:$0xff]
      %v5807 = vld [vmem:[#allocation2 + $0x60] sm:$0xff]
      %v5808 = vld [vmem:[#allocation2 + $0x68] sm:$0xff]
      %v5809 = vld [vmem:[#allocation2 + $0x70] sm:$0xff]
      %v5810 = vld [vmem:[#allocation2 + $0x78] sm:$0xff]
      %v5811 = vld [vmem:[#allocation2 + $0x80] sm:$0xff]
      %v5812 = vld [vmem:[#allocation2 + $0x88] sm:$0xff]
      %v5813 = vld [vmem:[#allocation2 + $0x90] sm:$0xff]
      %v5814 = vld [vmem:[#allocation2 + $0x98] sm:$0xff]
      %v5815 = vld [vmem:[#allocation2 + $0xa0] sm:$0xff]
      %v5816 = vld [vmem:[#allocation2 + $0xa8] sm:$0xff]
      %v5817 = vld [vmem:[#allocation2 + $0xb0] sm:$0xff]
      %v5818 = vld [vmem:[#allocation2 + $0xb8] sm:$0xff]
      %v5819 = vld [vmem:[#allocation2 + $0xc0] sm:$0xff]
      %v5820 = vld [vmem:[#allocation2 + $0xc8] sm:$0xff]
      %v5821 = vld [vmem:[#allocation2 + $0xd0] sm:$0xff]
      %v5822 = vld [vmem:[#allocation2 + $0xd8] sm:$0xff]
      %v5823 = vld [vmem:[#allocation2 + $0xe0] sm:$0xff]
      %v5824 = vld [vmem:[#allocation2 + $0xe8] sm:$0xff]
      %v5825 = vld [vmem:[#allocation2 + $0xf0] sm:$0xff]
      %v5826 = vld [vmem:[#allocation2 + $0xf8] sm:$0xff]
      %5827 = vst [vmem:[%s168] sm:$0xff] %v5795
      %5828 = vst [vmem:[%s168 + $0x8] sm:$0xff] %v5796
      %5829 = vst [vmem:[%s168 + $0x10] sm:$0xff] %v5797
      %5830 = vst [vmem:[%s168 + $0x18] sm:$0xff] %v5798
      %5831 = vst [vmem:[%s168 + $0x20] sm:$0xff] %v5799
      %5832 = vst [vmem:[%s168 + $0x28] sm:$0xff] %v5800
      %5833 = vst [vmem:[%s168 + $0x30] sm:$0xff] %v5801
      %5834 = vst [vmem:[%s168 + $0x38] sm:$0xff] %v5802
      %5835 = vst [vmem:[%s168 + $0x40] sm:$0xff] %v5803
      %5836 = vst [vmem:[%s168 + $0x48] sm:$0xff] %v5804
      %5837 = vst [vmem:[%s168 + $0x50] sm:$0xff] %v5805
      %5838 = vst [vmem:[%s168 + $0x58] sm:$0xff] %v5806
      %5839 = vst [vmem:[%s168 + $0x60] sm:$0xff] %v5807
      %5840 = vst [vmem:[%s168 + $0x68] sm:$0xff] %v5808
      %5841 = vst [vmem:[%s168 + $0x70] sm:$0xff] %v5809
      %5842 = vst [vmem:[%s168 + $0x78] sm:$0xff] %v5810
      %5843 = vst [vmem:[%s168 + $0x80] sm:$0xff] %v5811
      %5844 = vst [vmem:[%s168 + $0x88] sm:$0xff] %v5812
      %5845 = vst [vmem:[%s168 + $0x90] sm:$0xff] %v5813
      %5846 = vst [vmem:[%s168 + $0x98] sm:$0xff] %v5814
      %5847 = vst [vmem:[%s168 + $0xa0] sm:$0xff] %v5815
      %5848 = vst [vmem:[%s168 + $0xa8] sm:$0xff] %v5816
      %5849 = vst [vmem:[%s168 + $0xb0] sm:$0xff] %v5817
      %5850 = vst [vmem:[%s168 + $0xb8] sm:$0xff] %v5818
      %5851 = vst [vmem:[%s168 + $0xc0] sm:$0xff] %v5819
      %5852 = vst [vmem:[%s168 + $0xc8] sm:$0xff] %v5820
      %5853 = vst [vmem:[%s168 + $0xd0] sm:$0xff] %v5821
      %5854 = vst [vmem:[%s168 + $0xd8] sm:$0xff] %v5822
      %5855 = vst [vmem:[%s168 + $0xe0] sm:$0xff] %v5823
      %5856 = vst [vmem:[%s168 + $0xe8] sm:$0xff] %v5824
      %5857 = vst [vmem:[%s168 + $0xf0] sm:$0xff] %v5825
      %5858 = vst [vmem:[%s168 + $0xf8] sm:$0xff] %v5826
      %p5859 = scmp.eq.s32.totalorder %s15, 0
      // Predicated region
      $region29: #{bottleneck_forward.10} parent=27 // pred_check
        %p5860 = pneg %p5859
      $region30: #{bottleneck_forward.10} parent=27 // pred_check_branch
        %5862 = sbr.rel (%p5860) target = $region32
      $region31: #{bottleneck_forward.10} parent=27 // pred_region
        %5863 = vst [vmem:[%s3] sm:$0x3] 0.0
      $region32: #{bottleneck_forward.10} parent=27 // pred_fallthru
        _
      %v5864 = vld [vmem:[%s3] sm:$0x1]
      %v5865 = vadd.f32 %v5795, %v5796
      %v5866 = vadd.f32 %v5865, %v5797
      %v5867 = vadd.f32 %v5866, %v5798
      %v5868 = vadd.f32 %v5867, %v5799
      %v5869 = vadd.f32 %v5868, %v5800
      %v5870 = vadd.f32 %v5869, %v5801
      %v5871 = vadd.f32 %v5870, %v5802
      %v5872 = vadd.f32 %v5871, %v5803
      %v5873 = vadd.f32 %v5872, %v5804
      %v5874 = vadd.f32 %v5873, %v5805
      %v5875 = vadd.f32 %v5874, %v5806
      %v5876 = vadd.f32 %v5875, %v5807
      %v5877 = vadd.f32 %v5876, %v5808
      %v5878 = vadd.f32 %v5877, %v5809
      %v5879 = vadd.f32 %v5878, %v5810
      %v5880 = vadd.f32 %v5879, %v5811
      %v5881 = vadd.f32 %v5880, %v5812
      %v5882 = vadd.f32 %v5881, %v5813
      %v5883 = vadd.f32 %v5882, %v5814
      %v5884 = vadd.f32 %v5883, %v5815
      %v5885 = vadd.f32 %v5884, %v5816
      %v5886 = vadd.f32 %v5885, %v5817
      %v5887 = vadd.f32 %v5886, %v5818
      %v5888 = vadd.f32 %v5887, %v5819
      %v5889 = vadd.f32 %v5888, %v5820
      %v5890 = vadd.f32 %v5889, %v5821
      %v5891 = vadd.f32 %v5890, %v5822
      %v5892 = vadd.f32 %v5891, %v5823
      %v5893 = vadd.f32 %v5892, %v5824
      %v5894 = vadd.f32 %v5893, %v5825
      %v5895 = vadd.f32 %v5894, %v5826
      %v5896 = vrot.slane %v5895, 4
      %v5897 = vadd.f32 %v5895, %v5896
      %v5898 = vrot.slane %v5897, 2
      %v5899 = vadd.f32 %v5897, %v5898
      %v5900 = vrot.slane %v5899, 1
      %v5901 = vadd.f32 %v5899, %v5900
      %v5902 = vadd.f32 %v5864, %v5901
      %5903 = vst [vmem:[%s3] sm:$0x1] %v5902
      %v5904 = vld [vmem:[%s3 + $0x1] sm:$0x1]
      %v5905 = vmul.f32 %v5795, %v5795
      %v5906 = vmul.f32 %v5796, %v5796
      %v5907 = vmul.f32 %v5797, %v5797
      %v5908 = vmul.f32 %v5798, %v5798
      %v5909 = vmul.f32 %v5799, %v5799
      %v5910 = vmul.f32 %v5800, %v5800
      %v5911 = vmul.f32 %v5801, %v5801
      %v5912 = vmul.f32 %v5802, %v5802
      %v5913 = vmul.f32 %v5803, %v5803
      %v5914 = vmul.f32 %v5804, %v5804
      %v5915 = vmul.f32 %v5805, %v5805
      %v5916 = vmul.f32 %v5806, %v5806
      %v5917 = vmul.f32 %v5807, %v5807
      %v5918 = vmul.f32 %v5808, %v5808
      %v5919 = vmul.f32 %v5809, %v5809
      %v5920 = vmul.f32 %v5810, %v5810
      %v5921 = vmul.f32 %v5811, %v5811
      %v5922 = vmul.f32 %v5812, %v5812
      %v5923 = vmul.f32 %v5813, %v5813
      %v5924 = vmul.f32 %v5814, %v5814
      %v5925 = vmul.f32 %v5815, %v5815
      %v5926 = vmul.f32 %v5816, %v5816
      %v5927 = vmul.f32 %v5817, %v5817
      %v5928 = vmul.f32 %v5818, %v5818
      %v5929 = vmul.f32 %v5819, %v5819
      %v5930 = vmul.f32 %v5820, %v5820
      %v5931 = vmul.f32 %v5821, %v5821
      %v5932 = vmul.f32 %v5822, %v5822
      %v5933 = vmul.f32 %v5823, %v5823
      %v5934 = vmul.f32 %v5824, %v5824
      %v5935 = vmul.f32 %v5825, %v5825
      %v5936 = vmul.f32 %v5826, %v5826
      %v5937 = vadd.f32 %v5905, %v5906
      %v5938 = vadd.f32 %v5937, %v5907
      %v5939 = vadd.f32 %v5938, %v5908
      %v5940 = vadd.f32 %v5939, %v5909
      %v5941 = vadd.f32 %v5940, %v5910
      %v5942 = vadd.f32 %v5941, %v5911
      %v5943 = vadd.f32 %v5942, %v5912
      %v5944 = vadd.f32 %v5943, %v5913
      %v5945 = vadd.f32 %v5944, %v5914
      %v5946 = vadd.f32 %v5945, %v5915
      %v5947 = vadd.f32 %v5946, %v5916
      %v5948 = vadd.f32 %v5947, %v5917
      %v5949 = vadd.f32 %v5948, %v5918
      %v5950 = vadd.f32 %v5949, %v5919
      %v5951 = vadd.f32 %v5950, %v5920
      %v5952 = vadd.f32 %v5951, %v5921
      %v5953 = vadd.f32 %v5952, %v5922
      %v5954 = vadd.f32 %v5953, %v5923
      %v5955 = vadd.f32 %v5954, %v5924
      %v5956 = vadd.f32 %v5955, %v5925
      %v5957 = vadd.f32 %v5956, %v5926
      %v5958 = vadd.f32 %v5957, %v5927
      %v5959 = vadd.f32 %v5958, %v5928
      %v5960 = vadd.f32 %v5959, %v5929
      %v5961 = vadd.f32 %v5960, %v5930
      %v5962 = vadd.f32 %v5961, %v5931
      %v5963 = vadd.f32 %v5962, %v5932
      %v5964 = vadd.f32 %v5963, %v5933
      %v5965 = vadd.f32 %v5964, %v5934
      %v5966 = vadd.f32 %v5965, %v5935
      %v5967 = vadd.f32 %v5966, %v5936
      %v5968 = vrot.slane %v5967, 4
      %v5969 = vadd.f32 %v5967, %v5968
      %v5970 = vrot.slane %v5969, 2
      %v5971 = vadd.f32 %v5969, %v5970
      %v5972 = vrot.slane %v5971, 1
      %v5973 = vadd.f32 %v5971, %v5972
      %v5974 = vadd.f32 %v5904, %v5973
      %5975 = vst [vmem:[%s3 + $0x1] sm:$0x1] %v5974
      %p5976 = scmp.lt.s32.totalorder %s15, 1
      %s5977 = scalar_select %p5976, %s15, 1
      %s5978 = smul.addr %s5977, 32
      %s5979 = smul.addr %s5978, 8
      %s5980 = scalar_lea.vmem %s2, %s5979
      // Predicated region
      $region33: #{bottleneck_forward.10} parent=27 // pred_check
        %p5981 = pneg %p80
      $region34: #{bottleneck_forward.10} parent=27 // pred_check_branch
        %5983 = sbr.rel (%p5981) target = $region36
      $region35: #{bottleneck_forward.10} parent=27 // pred_region
        _
      $region36: #{bottleneck_forward.10} parent=27 // pred_fallthru
        _
      // Predicated region
      $region37: #{bottleneck_forward.10} parent=27 // pred_check
        %p5984 = pneg %p101
      $region38: #{bottleneck_forward.10} parent=27 // pred_check_branch
        %5986 = sbr.rel (%p5984) target = $region40
      $region39: #{bottleneck_forward.10} parent=27 // pred_region
        _
      $region40: #{bottleneck_forward.10} parent=27 // pred_fallthru
        _
      // Predicated region
      $region41: #{bottleneck_forward.10} parent=27 // pred_check
        %p5987 = pneg %p101
      $region42: #{bottleneck_forward.10} parent=27 // pred_check_branch
        %5989 = sbr.rel (%p5987) target = $region44
      $region43: #{bottleneck_forward.10} parent=27 // pred_region
        _
      $region44: #{bottleneck_forward.10} parent=27 // pred_fallthru
        _
    $region28: #{bottleneck_forward.10} parent=5 // pred_fallthru
      _
    %p5990 = scmp.le.s32.totalorder 2, %s10
    // Predicated region
    $region45: #{bottleneck_forward.10} parent=5 // pred_check
      %p5991 = pneg %p5990
    $region46: #{bottleneck_forward.10} parent=5 // pred_check_branch
      %5993 = sbr.rel (%p5991) target = $region48
    $region47: #{bottleneck_forward.10} parent=5 // pred_region
      %s5994 = ssub.s32 %s10, 2
      // Predicated region
      $region49: #{bottleneck_forward.10} parent=47 // pred_check
        %p5995 = pneg %p86
      $region50: #{bottleneck_forward.10} parent=47 // pred_check_branch
        %5997 = sbr.rel (%p5995) target = $region52
      $region51: #{bottleneck_forward.10} parent=47 // pred_region
        %p5998 = scmp.lt.s32.totalorder %s16, 1
        %s5999 = scalar_select %p5998, %s16, 1
        %s6000 = smul.addr %s5999, 32
        %s6001 = smul.addr %s6000, 8
        %s6002 = scalar_lea.vmem %s2, %s6001
      $region52: #{bottleneck_forward.10} parent=47 // pred_fallthru
        _
    $region48: #{bottleneck_forward.10} parent=5 // pred_fallthru
      _
  $region6: #{bottleneck_forward.10} parent=0 // loop_footer
    %s14 = sadd.s32 1, %s10
  $region7: #{bottleneck_forward.10} parent=0 // loop_footer_branch
    %9 = sbr.rel target = $region3
  $region8: #{bottleneck_forward.10} parent=0 // loop_exit
    _

</llo_original>
